<compile_context>
chip_gen: v6e
topology: v6e:2x2x1
jax: 0.10.0
libtpu: 0.0.40
codegen_flags: <defaults>
</compile_context>

<pallas_src>
import jax
import jax.numpy as jnp
from jax import lax
from jax.experimental import pallas as pl
from jax.experimental.pallas import tpu as pltpu

_LANES = 128
_MAX_TILE_M = 1024          # conv layers: K <= 144, tiny VMEM per row
_FC_TILE_M = 256            # fc layer: K = 6272 -> ~3.2 MB of bf16 rows per tile
_CONV_VMEM = 32 * 1024 * 1024
_FC_VMEM = 32 * 1024 * 1024


def _round_up(x, m):
    return (x + m - 1) // m * m


def _choose_tile_m(m, cap):
    """Row-tile size: multiple of 16 (unmasked stores); once the row count is
    large enough, force >=2 grid steps so v7x's two TensorCores both get work."""
    if m <= 256:
        return _round_up(m, 16)
    return min(cap, _round_up((m + 1) // 2, 16))


# ----------------------------- Pallas kernels ------------------------------ #

def _conv_relu_pool_kernel(p_ref, w_ref, b_ref, o_ref):
    """Fused 3x3-conv (im2col matmul) + bias + ReLU + 2x2 max-pool.

    p_ref: (4, TM, K) bf16 -- patches; leading dim = pooling position r*2+s,
                              row m = flattened pooled pixel (n, i, j).
    w_ref: (K, 128)   bf16 -- conv weights, Cout zero-padded to 128 lanes.
    b_ref: (1, 128)   f32  -- bias, zero-padded.
    o_ref: (TM, 128)  bf16 -- pooled activations (lane-dense store).
    """
    w = w_ref[...]
    # Running max: each MXU result folds into the accumulator immediately, so
    # only one f32 (TM,128) tile stays live and the VPU max overlaps the next
    # MXU pass.
    acc = jnp.dot(p_ref[0], w, preferred_element_type=jnp.float32)
    acc = jnp.maximum(acc, jnp.dot(p_ref[1], w, preferred_element_type=jnp.float32))
    acc = jnp.maximum(acc, jnp.dot(p_ref[2], w, preferred_element_type=jnp.float32))
    acc = jnp.maximum(acc, jnp.dot(p_ref[3], w, preferred_element_type=jnp.float32))
    # bias + ReLU after the max is exact (bias uniform over the window, ReLU monotone).
    o_ref[...] = jnp.maximum(acc + b_ref[...], 0.0).astype(o_ref.dtype)


def _fc_kernel(x_ref, w_ref, b_ref, o_ref):
    # x_ref: (TM, K) bf16   w_ref: (K, 128) bf16   b_ref: (1, 128) f32
    o_ref[...] = (jnp.dot(x_ref[...], w_ref[...],
                          preferred_element_type=jnp.float32) + b_ref[...])


# ------------------------------- layer wrappers ----------------------------- #

def conv3x3_relu_pool(a, wmat, brow, cout, *, return_padded_rows=False):
    """3x3 conv (stride 1, pad 1) + bias + ReLU + 2x2/2 max-pool, fused.

    a:    (N, H, W, Cin) NHWC (cast to bf16 before the im2col glue).
    wmat: (9*Cin, 128) bf16  -- prepared conv weight, Cout zero-padded.
    brow: (1, 128) f32       -- prepared bias row.
    Returns (N, H//2, W//2, cout) bf16 NHWC, or -- with return_padded_rows --
    the lane-padded (N*H//2*W//2, 128) tensor (lanes >= cout are exact zeros).
    """
    n, h, wd, cin = a.shape
    k = 9 * cin
    hp, wp = h // 2, wd // 2
    mp = n * hp * wp

    # --- XLA glue: pad + im2col in bf16, rows grouped by 2x2 pooling position.
    # TODO(synk): a VPU shift-accumulate path for cin==1 (conv1) would remove
    # this ~9x input expansion entirely, but needs in-VMEM halo relayouts not
    # worth the lowering risk at these shapes.
    a = a.astype(jnp.bfloat16)
    apad = jnp.pad(a, ((0, 0), (1, 1), (1, 1), (0, 0)))
    shifts = jnp.stack([apad[:, dy:dy + h, dx:dx + wd, :]
                        for dy in range(3) for dx in range(3)], axis=3)
    patches = shifts.reshape(n, h, wd, k)                    # k = (dy*3+dx)*Cin+ci
    patches = (patches.reshape(n, hp, 2, wp, 2, k)
               .transpose(2, 4, 0, 1, 3, 5)                  # (r, s, n, i, j, k)
               .reshape(4, mp, k))

    tm = _choose_tile_m(mp, _MAX_TILE_M)
    mp_pad = _round_up(mp, tm)
    if mp_pad != mp:
        patches = jnp.pad(patches, ((0, 0), (0, mp_pad - mp), (0, 0)))

    out = pl.pallas_call(
        _conv_relu_pool_kernel,
        out_shape=jax.ShapeDtypeStruct((mp_pad, _LANES), jnp.bfloat16),
        grid=(mp_pad // tm,),
        in_specs=[
            pl.BlockSpec((4, tm, k), lambda t: (0, t, 0)),
            pl.BlockSpec((k, _LANES), lambda t: (0, 0)),
            pl.BlockSpec((1, _LANES), lambda t: (0, 0)),
        ],
        out_specs=pl.BlockSpec((tm, _LANES), lambda t: (t, 0)),
        compiler_params=pltpu.CompilerParams(
            dimension_semantics=("parallel",),
            vmem_limit_bytes=_CONV_VMEM),
    )(patches, wmat, brow)

    if return_padded_rows:
        return out[:mp]                                      # (mp, 128)
    # TODO(synk): the conv1 intermediate writes 128 lanes of which only `cout`
    # are valid; packing 8 pooled pixels x 16 channels per lane row would cut
    # that writeback 8x but needs an in-kernel sublane->lane relayout.  We rely
    # on this slice fusing into the next layer's im2col glue instead.
    return out[:mp, :cout].reshape(n, hp, wp, cout)


def linear_lane_dense(x, wmat, brow, cout, *, tile_cap=_FC_TILE_M):
    """y = x @ wmat + brow with 128-lane-padded outputs.  Returns (N, cout) f32."""
    n, kdim = x.shape
    xb = x.astype(jnp.bfloat16)
    tm = _choose_tile_m(n, tile_cap)
    n_pad = _round_up(n, tm)
    if n_pad != n:
        xb = jnp.pad(xb, ((0, n_pad - n), (0, 0)))

    out = pl.pallas_call(
        _fc_kernel,
        out_shape=jax.ShapeDtypeStruct((n_pad, _LANES), jnp.float32),
        grid=(n_pad // tm,),
        in_specs=[
            pl.BlockSpec((tm, kdim), lambda t: (t, 0)),
            pl.BlockSpec((kdim, _LANES), lambda t: (0, 0)),
            pl.BlockSpec((1, _LANES), lambda t: (0, 0)),
        ],
        out_specs=pl.BlockSpec((tm, _LANES), lambda t: (t, 0)),
        compiler_params=pltpu.CompilerParams(
            dimension_semantics=("parallel",),
            vmem_limit_bytes=_FC_VMEM),
    )(xb, wmat, brow)
    return out[:n, :cout]


# ------------------------- one-time parameter prep -------------------------- #

def prepare_params(params):
    """One-time XLA-side weight/bias re-layout, hoisted out of the forward."""
    w1, b1, w2, b2, wf, bf = params

    def conv_prep(w, b):
        cout, cin = w.shape[0], w.shape[1]
        k = 9 * cin
        wmat = w.transpose(2, 3, 1, 0).reshape(k, cout)       # row=(dy*3+dx)*Cin+ci
        wmat = jnp.pad(wmat, ((0, 0), (0, _LANES - cout))).astype(jnp.bfloat16)
        brow = jnp.pad(b, (0, _LANES - cout)).reshape(1, _LANES).astype(jnp.float32)
        return wmat, brow

    w1m, b1r = conv_prep(w1, b1)
    w2m, b2r = conv_prep(w2, b2)

    # fc: fold the 32-channel slice and torch's C*H*W flatten order into the
    # weight, so the fc reads conv2's lane-padded (rows, 128) output directly.
    # K = 49*128 = 6272 (multiple of 128 -> unmasked lane loads); extra rows
    # and columns are zeros.
    cout2 = w2.shape[0]                                                # 32
    wf_hwc = wf.reshape(10, cout2, 7, 7).transpose(2, 3, 1, 0)          # (7,7,32,10)
    wf_pad = jnp.pad(wf_hwc, ((0, 0), (0, 0), (0, _LANES - cout2), (0, 0)))
    wfm = wf_pad.reshape(7 * 7 * _LANES, 10)                            # (6272,10)
    wfm = jnp.pad(wfm, ((0, 0), (0, _LANES - 10))).astype(jnp.bfloat16)
    bfr = jnp.pad(bf, (0, _LANES - 10)).reshape(1, _LANES).astype(jnp.float32)
    return (w1m, b1r, w2m, b2r, wfm, bfr)


# --------------------------------- model ------------------------------------ #

def net_forward(x, prepared):
    """x: (N, 1, 28, 28) NCHW f32 -> logits (N, 10); matches torch Net.forward."""
    w1m, b1r, w2m, b2r, wfm, bfr = prepared
    a = x.astype(jnp.bfloat16).transpose(0, 2, 3, 1)          # NHWC (N,28,28,1)
    a = conv3x3_relu_pool(a, w1m, b1r, 16)                    # (N,14,14,16) bf16
    rows = conv3x3_relu_pool(a, w2m, b2r, 32,
                             return_padded_rows=True)         # (N*49, 128) bf16
    n = x.shape[0]
    flat = rows.reshape(n, 7 * 7 * _LANES)                    # free row-major reshape
    return linear_lane_dense(flat, wfm, bfr, 10)              # (N, 10) f32


def init_params(key):
    k1, k2, k3 = jax.random.split(key, 3)
    w1 = 0.10 * jax.random.normal(k1, (16, 1, 3, 3), jnp.float32)
    b1 = jnp.linspace(-0.1, 0.1, 16, dtype=jnp.float32)
    w2 = 0.05 * jax.random.normal(k2, (32, 16, 3, 3), jnp.float32)
    b2 = jnp.linspace(-0.1, 0.1, 32, dtype=jnp.float32)
    wf = 0.02 * jax.random.normal(k3, (10, 32 * 7 * 7), jnp.float32)
    bf = jnp.linspace(-0.1, 0.1, 10, dtype=jnp.float32)
    return w1, b1, w2, b2, wf, bf


# ------------------------------ pure-JAX reference --------------------------- #

def ref_forward(x, params):
    w1, b1, w2, b2, wf, bf = params

    def conv(x, w, b):
        y = lax.conv_general_dilated(x, w, (1, 1), ((1, 1), (1, 1)),
                                     dimension_numbers=('NCHW', 'OIHW', 'NCHW'))
        return jnp.maximum(y + b[None, :, None, None], 0.0)

    def pool(x):
        n, c, h, wd = x.shape
        return x.reshape(n, c, h // 2, 2, wd // 2, 2).max(axis=(3, 5))

    y = pool(conv(x, w1, b1))
    y = pool(conv(y, w2, b2))
    y = y.reshape(x.shape[0], -1)
    return y @ wf.T + bf


if __name__ == "__main__":
    key = jax.random.PRNGKey(0)
    kx, kp = jax.random.split(key)
    # MNIST-shaped NCHW input (the fc layer requires 28x28 spatial); small batch.
    x = jax.random.normal(kx, (2, 1, 28, 28), jnp.float32)
    params = init_params(kp)

    prepared = prepare_params(params)        # weight re-layout done once, not per call
    out = jax.jit(net_forward)(x, prepared)
    out = jax.block_until_ready(out)

    ref = ref_forward(x, params)
    assert out.shape == (2, 10), out.shape
    assert jnp.allclose(out, ref, rtol=5e-2, atol=5e-2), (
        f"max abs diff = {jnp.max(jnp.abs(out - ref))}")
    print("KERNEL_OK")
</pallas_src>

<mosaic_0001>
module attributes {stable_mosaic.version = 11 : i64} {
  func.func @_conv_relu_pool_kernel(%arg0: i32, %arg1: memref<4x208x9xbf16, #tpu.memory_space<vmem>>, %arg2: memref<9x128xbf16, #tpu.memory_space<vmem>>, %arg3: memref<1x128xf32, #tpu.memory_space<vmem>>, %arg4: memref<208x128xbf16, #tpu.memory_space<vmem>>) attributes {dimension_semantics = [#tpu.dimension_semantics<parallel>], iteration_bounds = array<i64: 2>, scalar_prefetch = 0 : i64, scratch_operands = 0 : i64, tpu.core_type = #tpu.core_type<tc>, window_params = [{transform_indices = @transform_0, window_bounds = array<i64: 4, 208, 9>}, {pipeline_mode = #tpu.pipeline_mode<synchronous>, transform_indices = @transform_1, window_bounds = array<i64: 9, 128>}, {pipeline_mode = #tpu.pipeline_mode<synchronous>, transform_indices = @transform_2, window_bounds = array<i64: 1, 128>}, {transform_indices = @transform_3, window_bounds = array<i64: 208, 128>}]} {
    %c0 = arith.constant 0 : index
    %c0_0 = arith.constant 0 : index
    %0 = vector.load %arg2[%c0, %c0_0] : memref<9x128xbf16, #tpu.memory_space<vmem>>, vector<9x128xbf16>
    %c0_1 = arith.constant 0 : index
    %c0_2 = arith.constant 0 : index
    %c0_3 = arith.constant 0 : index
    %1 = vector.load %arg1[%c0_1, %c0_2, %c0_3] : memref<4x208x9xbf16, #tpu.memory_space<vmem>>, vector<1x208x9xbf16>
    %2 = vector.shape_cast %1 : vector<1x208x9xbf16> to vector<208x9xbf16>
    %cst = arith.constant dense<0.000000e+00> : vector<208x128xf32>
    %3 = tpu.matmul %2, %0, %cst {dimension_numbers = #tpu.dot_dimension_numbers<[1], [0], [0], [1], [0, 0, 1, 1], [], []>} : vector<208x9xbf16>, vector<9x128xbf16>, vector<208x128xf32> -> vector<208x128xf32>
    %c1 = arith.constant 1 : index
    %c0_4 = arith.constant 0 : index
    %c0_5 = arith.constant 0 : index
    %4 = vector.load %arg1[%c1, %c0_4, %c0_5] : memref<4x208x9xbf16, #tpu.memory_space<vmem>>, vector<1x208x9xbf16>
    %5 = vector.shape_cast %4 : vector<1x208x9xbf16> to vector<208x9xbf16>
    %cst_6 = arith.constant dense<0.000000e+00> : vector<208x128xf32>
    %6 = tpu.matmul %5, %0, %cst_6 {dimension_numbers = #tpu.dot_dimension_numbers<[1], [0], [0], [1], [0, 0, 1, 1], [], []>} : vector<208x9xbf16>, vector<9x128xbf16>, vector<208x128xf32> -> vector<208x128xf32>
    %7 = arith.maximumf %3, %6 : vector<208x128xf32>
    %c2 = arith.constant 2 : index
    %c0_7 = arith.constant 0 : index
    %c0_8 = arith.constant 0 : index
    %8 = vector.load %arg1[%c2, %c0_7, %c0_8] : memref<4x208x9xbf16, #tpu.memory_space<vmem>>, vector<1x208x9xbf16>
    %9 = vector.shape_cast %8 : vector<1x208x9xbf16> to vector<208x9xbf16>
    %cst_9 = arith.constant dense<0.000000e+00> : vector<208x128xf32>
    %10 = tpu.matmul %9, %0, %cst_9 {dimension_numbers = #tpu.dot_dimension_numbers<[1], [0], [0], [1], [0, 0, 1, 1], [], []>} : vector<208x9xbf16>, vector<9x128xbf16>, vector<208x128xf32> -> vector<208x128xf32>
    %11 = arith.maximumf %7, %10 : vector<208x128xf32>
    %c3 = arith.constant 3 : index
    %c0_10 = arith.constant 0 : index
    %c0_11 = arith.constant 0 : index
    %12 = vector.load %arg1[%c3, %c0_10, %c0_11] : memref<4x208x9xbf16, #tpu.memory_space<vmem>>, vector<1x208x9xbf16>
    %13 = vector.shape_cast %12 : vector<1x208x9xbf16> to vector<208x9xbf16>
    %cst_12 = arith.constant dense<0.000000e+00> : vector<208x128xf32>
    %14 = tpu.matmul %13, %0, %cst_12 {dimension_numbers = #tpu.dot_dimension_numbers<[1], [0], [0], [1], [0, 0, 1, 1], [], []>} : vector<208x9xbf16>, vector<9x128xbf16>, vector<208x128xf32> -> vector<208x128xf32>
    %15 = arith.maximumf %11, %14 : vector<208x128xf32>
    %c0_13 = arith.constant 0 : index
    %c0_14 = arith.constant 0 : index
    %16 = vector.load %arg3[%c0_13, %c0_14] : memref<1x128xf32, #tpu.memory_space<vmem>>, vector<1x128xf32>
    %17 = vector.broadcast %16 : vector<1x128xf32> to vector<208x128xf32>
    %18 = arith.addf %15, %17 : vector<208x128xf32>
    %cst_15 = arith.constant 0.000000e+00 : f32
    %19 = vector.broadcast %cst_15 : f32 to vector<208x128xf32>
    %20 = arith.maximumf %18, %19 : vector<208x128xf32>
    %21 = arith.truncf %20 : vector<208x128xf32> to vector<208x128xbf16>
    %c0_16 = arith.constant 0 : index
    %c0_17 = arith.constant 0 : index
    %22 = vector.load %arg4[%c0_16, %c0_17] : memref<208x128xbf16, #tpu.memory_space<vmem>>, vector<208x128xbf16>
    tpu.vector_store %arg4[%c0_16, %c0_17], %21 {strides = array<i32>} : memref<208x128xbf16, #tpu.memory_space<vmem>>, vector<208x128xbf16>,
    return
  }
  func.func @transform_0(%arg0: i32) -> (i32, i32, i32) {
    %c0_i32 = arith.constant 0 : i32
    %c0_i32_0 = arith.constant 0 : i32
    %c0_i32_1 = arith.constant 0 : i32
    return %c0_i32, %arg0, %c0_i32_0 : i32, i32, i32
  }
  func.func @transform_1(%arg0: i32) -> (i32, i32) {
    %c0_i32 = arith.constant 0 : i32
    %c0_i32_0 = arith.constant 0 : i32
    %c0_i32_1 = arith.constant 0 : i32
    return %c0_i32, %c0_i32_0 : i32, i32
  }
  func.func @transform_2(%arg0: i32) -> (i32, i32) {
    %c0_i32 = arith.constant 0 : i32
    %c0_i32_0 = arith.constant 0 : i32
    %c0_i32_1 = arith.constant 0 : i32
    return %c0_i32, %c0_i32_0 : i32, i32
  }
  func.func @transform_3(%arg0: i32) -> (i32, i32) {
    %c0_i32 = arith.constant 0 : i32
    %c0_i32_0 = arith.constant 0 : i32
    return %arg0, %c0_i32 : i32, i32
  }
}

module attributes {stable_mosaic.version = 11 : i64} {
  func.func @_conv_relu_pool_kernel(%arg0: i32, %arg1: memref<4x112x144xbf16, #tpu.memory_space<vmem>>, %arg2: memref<144x128xbf16, #tpu.memory_space<vmem>>, %arg3: memref<1x128xf32, #tpu.memory_space<vmem>>, %arg4: memref<112x128xbf16, #tpu.memory_space<vmem>>) attributes {dimension_semantics = [#tpu.dimension_semantics<parallel>], iteration_bounds = array<i64: 1>, scalar_prefetch = 0 : i64, scratch_operands = 0 : i64, tpu.core_type = #tpu.core_type<tc>, window_params = [{transform_indices = @transform_0, window_bounds = array<i64: 4, 112, 144>}, {pipeline_mode = #tpu.pipeline_mode<synchronous>, transform_indices = @transform_1, window_bounds = array<i64: 144, 128>}, {pipeline_mode = #tpu.pipeline_mode<synchronous>, transform_indices = @transform_2, window_bounds = array<i64: 1, 128>}, {transform_indices = @transform_3, window_bounds = array<i64: 112, 128>}]} {
    %c0 = arith.constant 0 : index
    %c0_0 = arith.constant 0 : index
    %0 = vector.load %arg2[%c0, %c0_0] : memref<144x128xbf16, #tpu.memory_space<vmem>>, vector<144x128xbf16>
    %c0_1 = arith.constant 0 : index
    %c0_2 = arith.constant 0 : index
    %c0_3 = arith.constant 0 : index
    %1 = vector.load %arg1[%c0_1, %c0_2, %c0_3] : memref<4x112x144xbf16, #tpu.memory_space<vmem>>, vector<1x112x144xbf16>
    %2 = vector.shape_cast %1 : vector<1x112x144xbf16> to vector<112x144xbf16>
    %cst = arith.constant dense<0.000000e+00> : vector<112x128xf32>
    %3 = tpu.matmul %2, %0, %cst {dimension_numbers = #tpu.dot_dimension_numbers<[1], [0], [0], [1], [0, 0, 1, 1], [], []>} : vector<112x144xbf16>, vector<144x128xbf16>, vector<112x128xf32> -> vector<112x128xf32>
    %c1 = arith.constant 1 : index
    %c0_4 = arith.constant 0 : index
    %c0_5 = arith.constant 0 : index
    %4 = vector.load %arg1[%c1, %c0_4, %c0_5] : memref<4x112x144xbf16, #tpu.memory_space<vmem>>, vector<1x112x144xbf16>
    %5 = vector.shape_cast %4 : vector<1x112x144xbf16> to vector<112x144xbf16>
    %cst_6 = arith.constant dense<0.000000e+00> : vector<112x128xf32>
    %6 = tpu.matmul %5, %0, %cst_6 {dimension_numbers = #tpu.dot_dimension_numbers<[1], [0], [0], [1], [0, 0, 1, 1], [], []>} : vector<112x144xbf16>, vector<144x128xbf16>, vector<112x128xf32> -> vector<112x128xf32>
    %7 = arith.maximumf %3, %6 : vector<112x128xf32>
    %c2 = arith.constant 2 : index
    %c0_7 = arith.constant 0 : index
    %c0_8 = arith.constant 0 : index
    %8 = vector.load %arg1[%c2, %c0_7, %c0_8] : memref<4x112x144xbf16, #tpu.memory_space<vmem>>, vector<1x112x144xbf16>
    %9 = vector.shape_cast %8 : vector<1x112x144xbf16> to vector<112x144xbf16>
    %cst_9 = arith.constant dense<0.000000e+00> : vector<112x128xf32>
    %10 = tpu.matmul %9, %0, %cst_9 {dimension_numbers = #tpu.dot_dimension_numbers<[1], [0], [0], [1], [0, 0, 1, 1], [], []>} : vector<112x144xbf16>, vector<144x128xbf16>, vector<112x128xf32> -> vector<112x128xf32>
    %11 = arith.maximumf %7, %10 : vector<112x128xf32>
    %c3 = arith.constant 3 : index
    %c0_10 = arith.constant 0 : index
    %c0_11 = arith.constant 0 : index
    %12 = vector.load %arg1[%c3, %c0_10, %c0_11] : memref<4x112x144xbf16, #tpu.memory_space<vmem>>, vector<1x112x144xbf16>
    %13 = vector.shape_cast %12 : vector<1x112x144xbf16> to vector<112x144xbf16>
    %cst_12 = arith.constant dense<0.000000e+00> : vector<112x128xf32>
    %14 = tpu.matmul %13, %0, %cst_12 {dimension_numbers = #tpu.dot_dimension_numbers<[1], [0], [0], [1], [0, 0, 1, 1], [], []>} : vector<112x144xbf16>, vector<144x128xbf16>, vector<112x128xf32> -> vector<112x128xf32>
    %15 = arith.maximumf %11, %14 : vector<112x128xf32>
    %c0_13 = arith.constant 0 : index
    %c0_14 = arith.constant 0 : index
    %16 = vector.load %arg3[%c0_13, %c0_14] : memref<1x128xf32, #tpu.memory_space<vmem>>, vector<1x128xf32>
    %17 = vector.broadcast %16 : vector<1x128xf32> to vector<112x128xf32>
    %18 = arith.addf %15, %17 : vector<112x128xf32>
    %cst_15 = arith.constant 0.000000e+00 : f32
    %19 = vector.broadcast %cst_15 : f32 to vector<112x128xf32>
    %20 = arith.maximumf %18, %19 : vector<112x128xf32>
    %21 = arith.truncf %20 : vector<112x128xf32> to vector<112x128xbf16>
    %c0_16 = arith.constant 0 : index
    %c0_17 = arith.constant 0 : index
    %22 = vector.load %arg4[%c0_16, %c0_17] : memref<112x128xbf16, #tpu.memory_space<vmem>>, vector<112x128xbf16>
    tpu.vector_store %arg4[%c0_16, %c0_17], %21 {strides = array<i32>} : memref<112x128xbf16, #tpu.memory_space<vmem>>, vector<112x128xbf16>,
    return
  }
  func.func @transform_0(%arg0: i32) -> (i32, i32, i32) {
    %c0_i32 = arith.constant 0 : i32
    %c0_i32_0 = arith.constant 0 : i32
    %c0_i32_1 = arith.constant 0 : i32
    return %c0_i32, %arg0, %c0_i32_0 : i32, i32, i32
  }
  func.func @transform_1(%arg0: i32) -> (i32, i32) {
    %c0_i32 = arith.constant 0 : i32
    %c0_i32_0 = arith.constant 0 : i32
    %c0_i32_1 = arith.constant 0 : i32
    return %c0_i32, %c0_i32_0 : i32, i32
  }
  func.func @transform_2(%arg0: i32) -> (i32, i32) {
    %c0_i32 = arith.constant 0 : i32
    %c0_i32_0 = arith.constant 0 : i32
    %c0_i32_1 = arith.constant 0 : i32
    return %c0_i32, %c0_i32_0 : i32, i32
  }
  func.func @transform_3(%arg0: i32) -> (i32, i32) {
    %c0_i32 = arith.constant 0 : i32
    %c0_i32_0 = arith.constant 0 : i32
    return %arg0, %c0_i32 : i32, i32
  }
}

module attributes {stable_mosaic.version = 11 : i64} {
  func.func @_fc_kernel(%arg0: i32, %arg1: memref<16x6272xbf16, #tpu.memory_space<vmem>>, %arg2: memref<6272x128xbf16, #tpu.memory_space<vmem>>, %arg3: memref<1x128xf32, #tpu.memory_space<vmem>>, %arg4: memref<16x128xf32, #tpu.memory_space<vmem>>) attributes {dimension_semantics = [#tpu.dimension_semantics<parallel>], iteration_bounds = array<i64: 1>, scalar_prefetch = 0 : i64, scratch_operands = 0 : i64, tpu.core_type = #tpu.core_type<tc>, window_params = [{transform_indices = @transform_0, window_bounds = array<i64: 16, 6272>}, {pipeline_mode = #tpu.pipeline_mode<synchronous>, transform_indices = @transform_1, window_bounds = array<i64: 6272, 128>}, {pipeline_mode = #tpu.pipeline_mode<synchronous>, transform_indices = @transform_2, window_bounds = array<i64: 1, 128>}, {transform_indices = @transform_3, window_bounds = array<i64: 16, 128>}]} {
    %c0 = arith.constant 0 : index
    %c0_0 = arith.constant 0 : index
    %0 = vector.load %arg1[%c0, %c0_0] : memref<16x6272xbf16, #tpu.memory_space<vmem>>, vector<16x6272xbf16>
    %c0_1 = arith.constant 0 : index
    %c0_2 = arith.constant 0 : index
    %1 = vector.load %arg2[%c0_1, %c0_2] : memref<6272x128xbf16, #tpu.memory_space<vmem>>, vector<6272x128xbf16>
    %cst = arith.constant dense<0.000000e+00> : vector<16x128xf32>
    %2 = tpu.matmul %0, %1, %cst {dimension_numbers = #tpu.dot_dimension_numbers<[1], [0], [0], [1], [0, 0, 1, 1], [], []>} : vector<16x6272xbf16>, vector<6272x128xbf16>, vector<16x128xf32> -> vector<16x128xf32>
    %c0_3 = arith.constant 0 : index
    %c0_4 = arith.constant 0 : index
    %3 = vector.load %arg3[%c0_3, %c0_4] : memref<1x128xf32, #tpu.memory_space<vmem>>, vector<1x128xf32>
    %4 = vector.broadcast %3 : vector<1x128xf32> to vector<16x128xf32>
    %5 = arith.addf %2, %4 : vector<16x128xf32>
    %c0_5 = arith.constant 0 : index
    %c0_6 = arith.constant 0 : index
    %6 = vector.load %arg4[%c0_5, %c0_6] : memref<16x128xf32, #tpu.memory_space<vmem>>, vector<16x128xf32>
    tpu.vector_store %arg4[%c0_5, %c0_6], %5 {strides = array<i32>} : memref<16x128xf32, #tpu.memory_space<vmem>>, vector<16x128xf32>,
    return
  }
  func.func @transform_0(%arg0: i32) -> (i32, i32) {
    %c0_i32 = arith.constant 0 : i32
    %c0_i32_0 = arith.constant 0 : i32
    return %arg0, %c0_i32 : i32, i32
  }
  func.func @transform_1(%arg0: i32) -> (i32, i32) {
    %c0_i32 = arith.constant 0 : i32
    %c0_i32_0 = arith.constant 0 : i32
    %c0_i32_1 = arith.constant 0 : i32
    return %c0_i32, %c0_i32_0 : i32, i32
  }
  func.func @transform_2(%arg0: i32) -> (i32, i32) {
    %c0_i32 = arith.constant 0 : i32
    %c0_i32_0 = arith.constant 0 : i32
    %c0_i32_1 = arith.constant 0 : i32
    return %c0_i32, %c0_i32_0 : i32, i32
  }
  func.func @transform_3(%arg0: i32) -> (i32, i32) {
    %c0_i32 = arith.constant 0 : i32
    %c0_i32_0 = arith.constant 0 : i32
    return %arg0, %c0_i32 : i32, i32
  }
}

</mosaic_0001>

<llo_original>
// kernel: net_forward.3
$region0: #{net_forward.3}
  #allocation0 [shape = 'u32[]', space=smem, size = 0x4, offset = 0x4, fixed_abs, tag = 'smem constant byte address 0x4 - core index']
  #allocation1 [shape = 'u32[144,128]{1,0:T(1,128)}', space=vmem, size = 0x12000, scoped, tag = 'internal scratch']
  %s0 = inlined_call_operand.vmem [shape: bf16[4,416,9], index: 0, kind: input, shape index: {}]
  %s1 = inlined_call_operand.vmem [shape: bf16[9,128], index: 1, kind: input, shape index: {}]
  %s2 = inlined_call_operand.vmem [shape: f32[1,128], index: 2, kind: input, shape index: {}]
  %s3 = inlined_call_operand.vmem [shape: bf16[416,128], index: 3, kind: output, shape index: {}]
  %s4 = sld [smem:[#allocation0]]
  $region86: #{net_forward.3} parent=0
    _
  %s6 = ssub.s32 1, %s4
  %s7 = scalar_select 0, %s6, %s4
  $region1: #{net_forward.3} parent=0
    #allocation2 [shape = 'u8[425984]{0}', space=vmem, size = 0x68000, scoped, tag = 'input window, operand 0']
    loop: start=0, step=1, limit=4
    $region2: #{net_forward.3} parent=1 // loop_pre_header
      _
    $region3: #{net_forward.3} parent=1 // loop_header
      %s9 = sphi 0, %s13
      %p10 = scmp.ge.s32.totalorder %s9, 4
      %s19 = sphi 0, %s21
      %s22 = sphi 0, %s19
      %s23 = sphi 0, %s22
      %s39 = sphi 0, %s23
      %s43 = sphi 0, %s43
      %s45 = sphi 0, %s43
      %s46 = sphi 0, %s45
      %s60 = sphi 0, %s46
      %s64 = sphi 0, %s64
      %s66 = sphi 0, %s64
      %s67 = sphi 0, %s66
      %s81 = sphi 0, %s67
      %s87 = sphi 0, %s89
      %s90 = sphi 0, %s87
      %s91 = sphi 0, %s90
      %s107 = sphi 0, %s91
    $region4: #{net_forward.3} parent=1 // loop_header_branch
      %12 = sbr.rel (%p10) target = $region8
    $region5: #{net_forward.3} parent=1 // loop_body
      %s14 = ssub.s32 %s9, 1
      %s15 = ssub.s32 %s9, 2
      %s16 = sadd.s32 %s9, 1
      %s17 = ssub.s32 %s9, %s16
      %p18 = scmp.eq.s32.totalorder %s17, 0
      %s20 = sadd.s32 %s19, 1
      %s21 = scalar_select %p18, %s19, %s20
      %p24 = pneg %p18
      %p25 = scmp.eq.s32.totalorder %s9, 1
      %p26 = por %p24, %p25
      %p27 = scmp.ne.s32.totalorder %s19, %s22
      %p28 = scmp.eq.s32.totalorder %s9, 0
      %p29 = por %p27, %p28
      %p30 = scmp.ne.s32.totalorder %s19, %s22
      %p31 = scmp.eq.s32.totalorder %s14, 1
      %p32 = por %p30, %p31
      %p33 = scmp.ne.s32.totalorder %s22, %s23
      %p34 = scmp.eq.s32.totalorder %s14, 0
      %p35 = por %p33, %p34
      %p36 = scmp.ne.s32.totalorder %s22, %s23
      %p37 = scmp.eq.s32.totalorder %s15, 1
      %p38 = por %p36, %p37
      %p40 = scmp.ne.s32.totalorder %s23, %s39
      %p41 = scmp.eq.s32.totalorder %s15, 0
      %p42 = por %p40, %p41
      %s44 = sadd.s32 %s43, 1
      %p47 = scmp.eq.s32.totalorder %s9, 1
      %p48 = scmp.ne.s32.totalorder %s43, %s45
      %p49 = scmp.eq.s32.totalorder %s9, 0
      %p50 = por %p48, %p49
      %p51 = scmp.ne.s32.totalorder %s43, %s45
      %p52 = scmp.eq.s32.totalorder %s14, 1
      %p53 = por %p51, %p52
      %p54 = scmp.ne.s32.totalorder %s45, %s46
      %p55 = scmp.eq.s32.totalorder %s14, 0
      %p56 = por %p54, %p55
      %p57 = scmp.ne.s32.totalorder %s45, %s46
      %p58 = scmp.eq.s32.totalorder %s15, 1
      %p59 = por %p57, %p58
      %p61 = scmp.ne.s32.totalorder %s46, %s60
      %p62 = scmp.eq.s32.totalorder %s15, 0
      %p63 = por %p61, %p62
      %s65 = sadd.s32 %s64, 1
      %p68 = scmp.eq.s32.totalorder %s9, 1
      %p69 = scmp.ne.s32.totalorder %s64, %s66
      %p70 = scmp.eq.s32.totalorder %s9, 0
      %p71 = por %p69, %p70
      %p72 = scmp.ne.s32.totalorder %s64, %s66
      %p73 = scmp.eq.s32.totalorder %s14, 1
      %p74 = por %p72, %p73
      %p75 = scmp.ne.s32.totalorder %s66, %s67
      %p76 = scmp.eq.s32.totalorder %s14, 0
      %p77 = por %p75, %p76
      %p78 = scmp.ne.s32.totalorder %s66, %s67
      %p79 = scmp.eq.s32.totalorder %s15, 1
      %p80 = por %p78, %p79
      %p82 = scmp.ne.s32.totalorder %s67, %s81
      %p83 = scmp.eq.s32.totalorder %s15, 0
      %p84 = por %p82, %p83
      %s85 = ssub.s32 %s9, %s16
      %p86 = scmp.eq.s32.totalorder %s85, 0
      %s88 = sadd.s32 %s87, 1
      %s89 = scalar_select %p86, %s87, %s88
      %p92 = pneg %p86
      %p93 = scmp.eq.s32.totalorder %s9, 1
      %p94 = por %p92, %p93
      %p95 = scmp.ne.s32.totalorder %s87, %s90
      %p96 = scmp.eq.s32.totalorder %s9, 0
      %p97 = por %p95, %p96
      %p98 = scmp.ne.s32.totalorder %s87, %s90
      %p99 = scmp.eq.s32.totalorder %s14, 1
      %p100 = por %p98, %p99
      %p101 = scmp.ne.s32.totalorder %s90, %s91
      %p102 = scmp.eq.s32.totalorder %s14, 0
      %p103 = por %p101, %p102
      %p104 = scmp.ne.s32.totalorder %s90, %s91
      %p105 = scmp.eq.s32.totalorder %s15, 1
      %p106 = por %p104, %p105
      %p108 = scmp.ne.s32.totalorder %s91, %s107
      %p109 = scmp.eq.s32.totalorder %s15, 0
      %p110 = por %p108, %p109
      %p111 = scmp.le.s32.totalorder 1, %s9
      %p112 = scmp.lt.s32.totalorder %s9, 3
      %p113 = pnand %p111, %p112
      %p114 = pneg %p113
      // Predicated region
      $region9: #{net_forward.3} parent=5 // pred_check
        _
      $region10: #{net_forward.3} parent=5 // pred_check_branch
        %116 = sbr.rel (%p113) target = $region12
      $region11: #{net_forward.3} parent=5 // pred_region
        %s117 = ssub.s32 %s9, 1
        // Predicated region
        $region13: #{net_forward.3} parent=11 // pred_check
          %p118 = pneg %p56
        $region14: #{net_forward.3} parent=11 // pred_check_branch
          %120 = sbr.rel (%p118) target = $region16
        $region15: #{net_forward.3} parent=11 // pred_region
          _
        $region16: #{net_forward.3} parent=11 // pred_fallthru
          _
        // Predicated region
        $region17: #{net_forward.3} parent=11 // pred_check
          %p121 = pneg %p77
        $region18: #{net_forward.3} parent=11 // pred_check_branch
          %123 = sbr.rel (%p121) target = $region20
        $region19: #{net_forward.3} parent=11 // pred_region
          _
        $region20: #{net_forward.3} parent=11 // pred_fallthru
          _
      $region12: #{net_forward.3} parent=5 // pred_fallthru
        _
      %p124 = scmp.lt.s32.totalorder %s9, 2
      // Predicated region
      $region21: #{net_forward.3} parent=5 // pred_check
        %p125 = pneg %p124
      $region22: #{net_forward.3} parent=5 // pred_check_branch
        %127 = sbr.rel (%p125) target = $region24
      $region23: #{net_forward.3} parent=5 // pred_region
        // Predicated region
        $region25: #{net_forward.3} parent=23 // pred_check
          %p128 = pneg %p29
        $region26: #{net_forward.3} parent=23 // pred_check_branch
          %130 = sbr.rel (%p128) target = $region28
        $region27: #{net_forward.3} parent=23 // pred_region
          %s131 = sand.u32 %s19, 1
          %s132 = sand.u32 %s19, 1
          %s133 = smul.addr %s132, 416
          %s134 = scalar_lea.vmem [#allocation2], %s133
          %s135 = smul.u32 26, %s9
          %s136 = smul.addr %s135, 4
          %s137 = scalar_lea.vmem %s0, %s136
          // Predicated region
          $region29: #{net_forward.3} parent=27 // pred_check
            _
          $region30: #{net_forward.3} parent=27 // pred_check_branch
            %139 = sbr.rel (0) target = $region32
          $region31: #{net_forward.3} parent=27 // pred_region
            // Predicated region
            $region33: #{net_forward.3} parent=31 // pred_check
              _
            $region34: #{net_forward.3} parent=31 // pred_check_branch
              %141 = sbr.rel target = $region36
            $region35: #{net_forward.3} parent=31 // pred_region
              // Predicated region
              $region48: #{net_forward.3} parent=35 // pred_check
                _
              $region49: #{net_forward.3} parent=35 // pred_check_branch
                %363 = sbr.rel (0) target = $region51
              $region50: #{net_forward.3} parent=35 // pred_region
                loop: start=0, step=1, limit=1
                $region52: #{net_forward.3} parent=50 // loop_pre_header
                  _
                $region53: #{net_forward.3} parent=50 // loop_header
                  %s365 = sphi 0, %s369
                  %p366 = scmp.ge.s32.totalorder %s365, 1
                  %s370 = sphi %s137, %s137
                  %s371 = sphi %s134, %s134
                $region54: #{net_forward.3} parent=50 // loop_header_branch
                  %368 = sbr.rel (%p366) target = $region58
                $region55: #{net_forward.3} parent=50 // loop_body
                  _
                $region56: #{net_forward.3} parent=50 // loop_footer
                  %s369 = sadd.s32 1, %s365
                $region57: #{net_forward.3} parent=50 // loop_footer_branch
                  %364 = sbr.rel target = $region53
                $region58: #{net_forward.3} parent=50 // loop_exit
                  _
                %s373 = ssub.s32 16, 1
                loop: start=0, step=1, limit=1
                $region59: #{net_forward.3} parent=50 // loop_pre_header
                  _
                $region60: #{net_forward.3} parent=50 // loop_header
                  %s375 = sphi 0, %s379
                  %p376 = scmp.ge.s32.totalorder %s375, 1
                  %s380 = sphi %s137, %s137
                  %s381 = sphi %s134, %s134
                $region61: #{net_forward.3} parent=50 // loop_header_branch
                  %378 = sbr.rel (%p376) target = $region65
                $region62: #{net_forward.3} parent=50 // loop_body
                  %v382 = vld [vmem:[%s380] sm:%s373]
                  %383 = vst [vmem:[%s381] sm:%s373] %v382
                  %v384 = vld [vmem:[%s380 + $0x4] sm:%s373]
                  %385 = vst [vmem:[%s381 + $0x4] sm:%s373] %v384
                  %v386 = vld [vmem:[%s380 + $0x8] sm:%s373]
                  %387 = vst [vmem:[%s381 + $0x8] sm:%s373] %v386
                  %v388 = vld [vmem:[%s380 + $0xc] sm:%s373]
                  %389 = vst [vmem:[%s381 + $0xc] sm:%s373] %v388
                  %v390 = vld [vmem:[%s380 + $0x10] sm:%s373]
                  %391 = vst [vmem:[%s381 + $0x10] sm:%s373] %v390
                  %v392 = vld [vmem:[%s380 + $0x14] sm:%s373]
                  %393 = vst [vmem:[%s381 + $0x14] sm:%s373] %v392
                  %v394 = vld [vmem:[%s380 + $0x18] sm:%s373]
                  %395 = vst [vmem:[%s381 + $0x18] sm:%s373] %v394
                  %v396 = vld [vmem:[%s380 + $0x1c] sm:%s373]
                  %397 = vst [vmem:[%s381 + $0x1c] sm:%s373] %v396
                  %v398 = vld [vmem:[%s380 + $0x20] sm:%s373]
                  %399 = vst [vmem:[%s381 + $0x20] sm:%s373] %v398
                  %v400 = vld [vmem:[%s380 + $0x24] sm:%s373]
                  %401 = vst [vmem:[%s381 + $0x24] sm:%s373] %v400
                  %v402 = vld [vmem:[%s380 + $0x28] sm:%s373]
                  %403 = vst [vmem:[%s381 + $0x28] sm:%s373] %v402
                  %v404 = vld [vmem:[%s380 + $0x2c] sm:%s373]
                  %405 = vst [vmem:[%s381 + $0x2c] sm:%s373] %v404
                  %v406 = vld [vmem:[%s380 + $0x30] sm:%s373]
                  %407 = vst [vmem:[%s381 + $0x30] sm:%s373] %v406
                  %v408 = vld [vmem:[%s380 + $0x34] sm:%s373]
                  %409 = vst [vmem:[%s381 + $0x34] sm:%s373] %v408
                  %v410 = vld [vmem:[%s380 + $0x38] sm:%s373]
                  %411 = vst [vmem:[%s381 + $0x38] sm:%s373] %v410
                  %v412 = vld [vmem:[%s380 + $0x3c] sm:%s373]
                  %413 = vst [vmem:[%s381 + $0x3c] sm:%s373] %v412
                  %v414 = vld [vmem:[%s380 + $0x40] sm:%s373]
                  %415 = vst [vmem:[%s381 + $0x40] sm:%s373] %v414
                  %v416 = vld [vmem:[%s380 + $0x44] sm:%s373]
                  %417 = vst [vmem:[%s381 + $0x44] sm:%s373] %v416
                  %v418 = vld [vmem:[%s380 + $0x48] sm:%s373]
                  %419 = vst [vmem:[%s381 + $0x48] sm:%s373] %v418
                  %v420 = vld [vmem:[%s380 + $0x4c] sm:%s373]
                  %421 = vst [vmem:[%s381 + $0x4c] sm:%s373] %v420
                  %v422 = vld [vmem:[%s380 + $0x50] sm:%s373]
                  %423 = vst [vmem:[%s381 + $0x50] sm:%s373] %v422
                  %v424 = vld [vmem:[%s380 + $0x54] sm:%s373]
                  %425 = vst [vmem:[%s381 + $0x54] sm:%s373] %v424
                  %v426 = vld [vmem:[%s380 + $0x58] sm:%s373]
                  %427 = vst [vmem:[%s381 + $0x58] sm:%s373] %v426
                  %v428 = vld [vmem:[%s380 + $0x5c] sm:%s373]
                  %429 = vst [vmem:[%s381 + $0x5c] sm:%s373] %v428
                  %v430 = vld [vmem:[%s380 + $0x60] sm:%s373]
                  %431 = vst [vmem:[%s381 + $0x60] sm:%s373] %v430
                  %v432 = vld [vmem:[%s380 + $0x64] sm:%s373]
                  %433 = vst [vmem:[%s381 + $0x64] sm:%s373] %v432
                  %v434 = vld [vmem:[%s380 + $0xd0] sm:%s373]
                  %435 = vst [vmem:[%s381 + $0x68] sm:%s373] %v434
                  %v436 = vld [vmem:[%s380 + $0xd4] sm:%s373]
                  %437 = vst [vmem:[%s381 + $0x6c] sm:%s373] %v436
                  %v438 = vld [vmem:[%s380 + $0xd8] sm:%s373]
                  %439 = vst [vmem:[%s381 + $0x70] sm:%s373] %v438
                  %v440 = vld [vmem:[%s380 + $0xdc] sm:%s373]
                  %441 = vst [vmem:[%s381 + $0x74] sm:%s373] %v440
                  %v442 = vld [vmem:[%s380 + $0xe0] sm:%s373]
                  %443 = vst [vmem:[%s381 + $0x78] sm:%s373] %v442
                  %v444 = vld [vmem:[%s380 + $0xe4] sm:%s373]
                  %445 = vst [vmem:[%s381 + $0x7c] sm:%s373] %v444
                  %v446 = vld [vmem:[%s380 + $0xe8] sm:%s373]
                  %447 = vst [vmem:[%s381 + $0x80] sm:%s373] %v446
                  %v448 = vld [vmem:[%s380 + $0xec] sm:%s373]
                  %449 = vst [vmem:[%s381 + $0x84] sm:%s373] %v448
                  %v450 = vld [vmem:[%s380 + $0xf0] sm:%s373]
                  %451 = vst [vmem:[%s381 + $0x88] sm:%s373] %v450
                  %v452 = vld [vmem:[%s380 + $0xf4] sm:%s373]
                  %453 = vst [vmem:[%s381 + $0x8c] sm:%s373] %v452
                  %v454 = vld [vmem:[%s380 + $0xf8] sm:%s373]
                  %455 = vst [vmem:[%s381 + $0x90] sm:%s373] %v454
                  %v456 = vld [vmem:[%s380 + $0xfc] sm:%s373]
                  %457 = vst [vmem:[%s381 + $0x94] sm:%s373] %v456
                  %v458 = vld [vmem:[%s380 + $0x100] sm:%s373]
                  %459 = vst [vmem:[%s381 + $0x98] sm:%s373] %v458
                  %v460 = vld [vmem:[%s380 + $0x104] sm:%s373]
                  %461 = vst [vmem:[%s381 + $0x9c] sm:%s373] %v460
                  %v462 = vld [vmem:[%s380 + $0x108] sm:%s373]
                  %463 = vst [vmem:[%s381 + $0xa0] sm:%s373] %v462
                  %v464 = vld [vmem:[%s380 + $0x10c] sm:%s373]
                  %465 = vst [vmem:[%s381 + $0xa4] sm:%s373] %v464
                  %v466 = vld [vmem:[%s380 + $0x110] sm:%s373]
                  %467 = vst [vmem:[%s381 + $0xa8] sm:%s373] %v466
                  %v468 = vld [vmem:[%s380 + $0x114] sm:%s373]
                  %469 = vst [vmem:[%s381 + $0xac] sm:%s373] %v468
                  %v470 = vld [vmem:[%s380 + $0x118] sm:%s373]
                  %471 = vst [vmem:[%s381 + $0xb0] sm:%s373] %v470
                  %v472 = vld [vmem:[%s380 + $0x11c] sm:%s373]
                  %473 = vst [vmem:[%s381 + $0xb4] sm:%s373] %v472
                  %v474 = vld [vmem:[%s380 + $0x120] sm:%s373]
                  %475 = vst [vmem:[%s381 + $0xb8] sm:%s373] %v474
                  %v476 = vld [vmem:[%s380 + $0x124] sm:%s373]
                  %477 = vst [vmem:[%s381 + $0xbc] sm:%s373] %v476
                  %v478 = vld [vmem:[%s380 + $0x128] sm:%s373]
                  %479 = vst [vmem:[%s381 + $0xc0] sm:%s373] %v478
                  %v480 = vld [vmem:[%s380 + $0x12c] sm:%s373]
                  %481 = vst [vmem:[%s381 + $0xc4] sm:%s373] %v480
                  %v482 = vld [vmem:[%s380 + $0x130] sm:%s373]
                  %483 = vst [vmem:[%s381 + $0xc8] sm:%s373] %v482
                  %v484 = vld [vmem:[%s380 + $0x134] sm:%s373]
                  %485 = vst [vmem:[%s381 + $0xcc] sm:%s373] %v484
                  %v486 = vld [vmem:[%s380 + $0x1a0] sm:%s373]
                  %487 = vst [vmem:[%s381 + $0xd0] sm:%s373] %v486
                  %v488 = vld [vmem:[%s380 + $0x1a4] sm:%s373]
                  %489 = vst [vmem:[%s381 + $0xd4] sm:%s373] %v488
                  %v490 = vld [vmem:[%s380 + $0x1a8] sm:%s373]
                  %491 = vst [vmem:[%s381 + $0xd8] sm:%s373] %v490
                  %v492 = vld [vmem:[%s380 + $0x1ac] sm:%s373]
                  %493 = vst [vmem:[%s381 + $0xdc] sm:%s373] %v492
                  %v494 = vld [vmem:[%s380 + $0x1b0] sm:%s373]
                  %495 = vst [vmem:[%s381 + $0xe0] sm:%s373] %v494
                  %v496 = vld [vmem:[%s380 + $0x1b4] sm:%s373]
                  %497 = vst [vmem:[%s381 + $0xe4] sm:%s373] %v496
                  %v498 = vld [vmem:[%s380 + $0x1b8] sm:%s373]
                  %499 = vst [vmem:[%s381 + $0xe8] sm:%s373] %v498
                  %v500 = vld [vmem:[%s380 + $0x1bc] sm:%s373]
                  %501 = vst [vmem:[%s381 + $0xec] sm:%s373] %v500
                  %v502 = vld [vmem:[%s380 + $0x1c0] sm:%s373]
                  %503 = vst [vmem:[%s381 + $0xf0] sm:%s373] %v502
                  %v504 = vld [vmem:[%s380 + $0x1c4] sm:%s373]
                  %505 = vst [vmem:[%s381 + $0xf4] sm:%s373] %v504
                  %v506 = vld [vmem:[%s380 + $0x1c8] sm:%s373]
                  %507 = vst [vmem:[%s381 + $0xf8] sm:%s373] %v506
                  %v508 = vld [vmem:[%s380 + $0x1cc] sm:%s373]
                  %509 = vst [vmem:[%s381 + $0xfc] sm:%s373] %v508
                  %v510 = vld [vmem:[%s380 + $0x1d0] sm:%s373]
                  %511 = vst [vmem:[%s381 + $0x100] sm:%s373] %v510
                  %v512 = vld [vmem:[%s380 + $0x1d4] sm:%s373]
                  %513 = vst [vmem:[%s381 + $0x104] sm:%s373] %v512
                  %v514 = vld [vmem:[%s380 + $0x1d8] sm:%s373]
                  %515 = vst [vmem:[%s381 + $0x108] sm:%s373] %v514
                  %v516 = vld [vmem:[%s380 + $0x1dc] sm:%s373]
                  %517 = vst [vmem:[%s381 + $0x10c] sm:%s373] %v516
                  %v518 = vld [vmem:[%s380 + $0x1e0] sm:%s373]
                  %519 = vst [vmem:[%s381 + $0x110] sm:%s373] %v518
                  %v520 = vld [vmem:[%s380 + $0x1e4] sm:%s373]
                  %521 = vst [vmem:[%s381 + $0x114] sm:%s373] %v520
                  %v522 = vld [vmem:[%s380 + $0x1e8] sm:%s373]
                  %523 = vst [vmem:[%s381 + $0x118] sm:%s373] %v522
                  %v524 = vld [vmem:[%s380 + $0x1ec] sm:%s373]
                  %525 = vst [vmem:[%s381 + $0x11c] sm:%s373] %v524
                  %v526 = vld [vmem:[%s380 + $0x1f0] sm:%s373]
                  %527 = vst [vmem:[%s381 + $0x120] sm:%s373] %v526
                  %v528 = vld [vmem:[%s380 + $0x1f4] sm:%s373]
                  %529 = vst [vmem:[%s381 + $0x124] sm:%s373] %v528
                  %v530 = vld [vmem:[%s380 + $0x1f8] sm:%s373]
                  %531 = vst [vmem:[%s381 + $0x128] sm:%s373] %v530
                  %v532 = vld [vmem:[%s380 + $0x1fc] sm:%s373]
                  %533 = vst [vmem:[%s381 + $0x12c] sm:%s373] %v532
                  %v534 = vld [vmem:[%s380 + $0x200] sm:%s373]
                  %535 = vst [vmem:[%s381 + $0x130] sm:%s373] %v534
                  %v536 = vld [vmem:[%s380 + $0x204] sm:%s373]
                  %537 = vst [vmem:[%s381 + $0x134] sm:%s373] %v536
                  %v538 = vld [vmem:[%s380 + $0x270] sm:%s373]
                  %539 = vst [vmem:[%s381 + $0x138] sm:%s373] %v538
                  %v540 = vld [vmem:[%s380 + $0x274] sm:%s373]
                  %541 = vst [vmem:[%s381 + $0x13c] sm:%s373] %v540
                  %v542 = vld [vmem:[%s380 + $0x278] sm:%s373]
                  %543 = vst [vmem:[%s381 + $0x140] sm:%s373] %v542
                  %v544 = vld [vmem:[%s380 + $0x27c] sm:%s373]
                  %545 = vst [vmem:[%s381 + $0x144] sm:%s373] %v544
                  %v546 = vld [vmem:[%s380 + $0x280] sm:%s373]
                  %547 = vst [vmem:[%s381 + $0x148] sm:%s373] %v546
                  %v548 = vld [vmem:[%s380 + $0x284] sm:%s373]
                  %549 = vst [vmem:[%s381 + $0x14c] sm:%s373] %v548
                  %v550 = vld [vmem:[%s380 + $0x288] sm:%s373]
                  %551 = vst [vmem:[%s381 + $0x150] sm:%s373] %v550
                  %v552 = vld [vmem:[%s380 + $0x28c] sm:%s373]
                  %553 = vst [vmem:[%s381 + $0x154] sm:%s373] %v552
                  %v554 = vld [vmem:[%s380 + $0x290] sm:%s373]
                  %555 = vst [vmem:[%s381 + $0x158] sm:%s373] %v554
                  %v556 = vld [vmem:[%s380 + $0x294] sm:%s373]
                  %557 = vst [vmem:[%s381 + $0x15c] sm:%s373] %v556
                  %v558 = vld [vmem:[%s380 + $0x298] sm:%s373]
                  %559 = vst [vmem:[%s381 + $0x160] sm:%s373] %v558
                  %v560 = vld [vmem:[%s380 + $0x29c] sm:%s373]
                  %561 = vst [vmem:[%s381 + $0x164] sm:%s373] %v560
                  %v562 = vld [vmem:[%s380 + $0x2a0] sm:%s373]
                  %563 = vst [vmem:[%s381 + $0x168] sm:%s373] %v562
                  %v564 = vld [vmem:[%s380 + $0x2a4] sm:%s373]
                  %565 = vst [vmem:[%s381 + $0x16c] sm:%s373] %v564
                  %v566 = vld [vmem:[%s380 + $0x2a8] sm:%s373]
                  %567 = vst [vmem:[%s381 + $0x170] sm:%s373] %v566
                  %v568 = vld [vmem:[%s380 + $0x2ac] sm:%s373]
                  %569 = vst [vmem:[%s381 + $0x174] sm:%s373] %v568
                  %v570 = vld [vmem:[%s380 + $0x2b0] sm:%s373]
                  %571 = vst [vmem:[%s381 + $0x178] sm:%s373] %v570
                  %v572 = vld [vmem:[%s380 + $0x2b4] sm:%s373]
                  %573 = vst [vmem:[%s381 + $0x17c] sm:%s373] %v572
                  %v574 = vld [vmem:[%s380 + $0x2b8] sm:%s373]
                  %575 = vst [vmem:[%s381 + $0x180] sm:%s373] %v574
                  %v576 = vld [vmem:[%s380 + $0x2bc] sm:%s373]
                  %577 = vst [vmem:[%s381 + $0x184] sm:%s373] %v576
                  %v578 = vld [vmem:[%s380 + $0x2c0] sm:%s373]
                  %579 = vst [vmem:[%s381 + $0x188] sm:%s373] %v578
                  %v580 = vld [vmem:[%s380 + $0x2c4] sm:%s373]
                  %581 = vst [vmem:[%s381 + $0x18c] sm:%s373] %v580
                  %v582 = vld [vmem:[%s380 + $0x2c8] sm:%s373]
                  %583 = vst [vmem:[%s381 + $0x190] sm:%s373] %v582
                  %v584 = vld [vmem:[%s380 + $0x2cc] sm:%s373]
                  %585 = vst [vmem:[%s381 + $0x194] sm:%s373] %v584
                  %v586 = vld [vmem:[%s380 + $0x2d0] sm:%s373]
                  %587 = vst [vmem:[%s381 + $0x198] sm:%s373] %v586
                  %v588 = vld [vmem:[%s380 + $0x2d4] sm:%s373]
                  %589 = vst [vmem:[%s381 + $0x19c] sm:%s373] %v588
                $region63: #{net_forward.3} parent=50 // loop_footer
                  %s379 = sadd.s32 1, %s375
                $region64: #{net_forward.3} parent=50 // loop_footer_branch
                  %374 = sbr.rel target = $region60
                $region65: #{net_forward.3} parent=50 // loop_exit
                  _
              $region51: #{net_forward.3} parent=35 // pred_fallthru
                _
            $region36: #{net_forward.3} parent=31 // pred_fallthru
              _
            // Predicated region
            $region37: #{net_forward.3} parent=31 // pred_check
              _
            $region38: #{net_forward.3} parent=31 // pred_check_branch
              %143 = sbr.rel (0) target = $region40
            $region39: #{net_forward.3} parent=31 // pred_region
              %s145 = ssub.s32 16, 1
              loop: start=0, step=1, limit=1
              $region41: #{net_forward.3} parent=39 // loop_pre_header
                _
              $region42: #{net_forward.3} parent=39 // loop_header
                %s147 = sphi 0, %s151
                %p148 = scmp.ge.s32.totalorder %s147, 1
                %s152 = sphi %s137, %s137
                %s153 = sphi %s134, %s134
              $region43: #{net_forward.3} parent=39 // loop_header_branch
                %150 = sbr.rel (%p148) target = $region47
              $region44: #{net_forward.3} parent=39 // loop_body
                %v154 = vld [vmem:[%s152] sm:%s145]
                %155 = vst [vmem:[%s153] sm:%s145] %v154
                %v156 = vld [vmem:[%s152 + $0x4] sm:%s145]
                %157 = vst [vmem:[%s153 + $0x4] sm:%s145] %v156
                %v158 = vld [vmem:[%s152 + $0x8] sm:%s145]
                %159 = vst [vmem:[%s153 + $0x8] sm:%s145] %v158
                %v160 = vld [vmem:[%s152 + $0xc] sm:%s145]
                %161 = vst [vmem:[%s153 + $0xc] sm:%s145] %v160
                %v162 = vld [vmem:[%s152 + $0x10] sm:%s145]
                %163 = vst [vmem:[%s153 + $0x10] sm:%s145] %v162
                %v164 = vld [vmem:[%s152 + $0x14] sm:%s145]
                %165 = vst [vmem:[%s153 + $0x14] sm:%s145] %v164
                %v166 = vld [vmem:[%s152 + $0x18] sm:%s145]
                %167 = vst [vmem:[%s153 + $0x18] sm:%s145] %v166
                %v168 = vld [vmem:[%s152 + $0x1c] sm:%s145]
                %169 = vst [vmem:[%s153 + $0x1c] sm:%s145] %v168
                %v170 = vld [vmem:[%s152 + $0x20] sm:%s145]
                %171 = vst [vmem:[%s153 + $0x20] sm:%s145] %v170
                %v172 = vld [vmem:[%s152 + $0x24] sm:%s145]
                %173 = vst [vmem:[%s153 + $0x24] sm:%s145] %v172
                %v174 = vld [vmem:[%s152 + $0x28] sm:%s145]
                %175 = vst [vmem:[%s153 + $0x28] sm:%s145] %v174
                %v176 = vld [vmem:[%s152 + $0x2c] sm:%s145]
                %177 = vst [vmem:[%s153 + $0x2c] sm:%s145] %v176
                %v178 = vld [vmem:[%s152 + $0x30] sm:%s145]
                %179 = vst [vmem:[%s153 + $0x30] sm:%s145] %v178
                %v180 = vld [vmem:[%s152 + $0x34] sm:%s145]
                %181 = vst [vmem:[%s153 + $0x34] sm:%s145] %v180
                %v182 = vld [vmem:[%s152 + $0x38] sm:%s145]
                %183 = vst [vmem:[%s153 + $0x38] sm:%s145] %v182
                %v184 = vld [vmem:[%s152 + $0x3c] sm:%s145]
                %185 = vst [vmem:[%s153 + $0x3c] sm:%s145] %v184
                %v186 = vld [vmem:[%s152 + $0x40] sm:%s145]
                %187 = vst [vmem:[%s153 + $0x40] sm:%s145] %v186
                %v188 = vld [vmem:[%s152 + $0x44] sm:%s145]
                %189 = vst [vmem:[%s153 + $0x44] sm:%s145] %v188
                %v190 = vld [vmem:[%s152 + $0x48] sm:%s145]
                %191 = vst [vmem:[%s153 + $0x48] sm:%s145] %v190
                %v192 = vld [vmem:[%s152 + $0x4c] sm:%s145]
                %193 = vst [vmem:[%s153 + $0x4c] sm:%s145] %v192
                %v194 = vld [vmem:[%s152 + $0x50] sm:%s145]
                %195 = vst [vmem:[%s153 + $0x50] sm:%s145] %v194
                %v196 = vld [vmem:[%s152 + $0x54] sm:%s145]
                %197 = vst [vmem:[%s153 + $0x54] sm:%s145] %v196
                %v198 = vld [vmem:[%s152 + $0x58] sm:%s145]
                %199 = vst [vmem:[%s153 + $0x58] sm:%s145] %v198
                %v200 = vld [vmem:[%s152 + $0x5c] sm:%s145]
                %201 = vst [vmem:[%s153 + $0x5c] sm:%s145] %v200
                %v202 = vld [vmem:[%s152 + $0x60] sm:%s145]
                %203 = vst [vmem:[%s153 + $0x60] sm:%s145] %v202
                %v204 = vld [vmem:[%s152 + $0x64] sm:%s145]
                %205 = vst [vmem:[%s153 + $0x64] sm:%s145] %v204
                %v206 = vld [vmem:[%s152 + $0xd0] sm:%s145]
                %207 = vst [vmem:[%s153 + $0x68] sm:%s145] %v206
                %v208 = vld [vmem:[%s152 + $0xd4] sm:%s145]
                %209 = vst [vmem:[%s153 + $0x6c] sm:%s145] %v208
                %v210 = vld [vmem:[%s152 + $0xd8] sm:%s145]
                %211 = vst [vmem:[%s153 + $0x70] sm:%s145] %v210
                %v212 = vld [vmem:[%s152 + $0xdc] sm:%s145]
                %213 = vst [vmem:[%s153 + $0x74] sm:%s145] %v212
                %v214 = vld [vmem:[%s152 + $0xe0] sm:%s145]
                %215 = vst [vmem:[%s153 + $0x78] sm:%s145] %v214
                %v216 = vld [vmem:[%s152 + $0xe4] sm:%s145]
                %217 = vst [vmem:[%s153 + $0x7c] sm:%s145] %v216
                %v218 = vld [vmem:[%s152 + $0xe8] sm:%s145]
                %219 = vst [vmem:[%s153 + $0x80] sm:%s145] %v218
                %v220 = vld [vmem:[%s152 + $0xec] sm:%s145]
                %221 = vst [vmem:[%s153 + $0x84] sm:%s145] %v220
                %v222 = vld [vmem:[%s152 + $0xf0] sm:%s145]
                %223 = vst [vmem:[%s153 + $0x88] sm:%s145] %v222
                %v224 = vld [vmem:[%s152 + $0xf4] sm:%s145]
                %225 = vst [vmem:[%s153 + $0x8c] sm:%s145] %v224
                %v226 = vld [vmem:[%s152 + $0xf8] sm:%s145]
                %227 = vst [vmem:[%s153 + $0x90] sm:%s145] %v226
                %v228 = vld [vmem:[%s152 + $0xfc] sm:%s145]
                %229 = vst [vmem:[%s153 + $0x94] sm:%s145] %v228
                %v230 = vld [vmem:[%s152 + $0x100] sm:%s145]
                %231 = vst [vmem:[%s153 + $0x98] sm:%s145] %v230
                %v232 = vld [vmem:[%s152 + $0x104] sm:%s145]
                %233 = vst [vmem:[%s153 + $0x9c] sm:%s145] %v232
                %v234 = vld [vmem:[%s152 + $0x108] sm:%s145]
                %235 = vst [vmem:[%s153 + $0xa0] sm:%s145] %v234
                %v236 = vld [vmem:[%s152 + $0x10c] sm:%s145]
                %237 = vst [vmem:[%s153 + $0xa4] sm:%s145] %v236
                %v238 = vld [vmem:[%s152 + $0x110] sm:%s145]
                %239 = vst [vmem:[%s153 + $0xa8] sm:%s145] %v238
                %v240 = vld [vmem:[%s152 + $0x114] sm:%s145]
                %241 = vst [vmem:[%s153 + $0xac] sm:%s145] %v240
                %v242 = vld [vmem:[%s152 + $0x118] sm:%s145]
                %243 = vst [vmem:[%s153 + $0xb0] sm:%s145] %v242
                %v244 = vld [vmem:[%s152 + $0x11c] sm:%s145]
                %245 = vst [vmem:[%s153 + $0xb4] sm:%s145] %v244
                %v246 = vld [vmem:[%s152 + $0x120] sm:%s145]
                %247 = vst [vmem:[%s153 + $0xb8] sm:%s145] %v246
                %v248 = vld [vmem:[%s152 + $0x124] sm:%s145]
                %249 = vst [vmem:[%s153 + $0xbc] sm:%s145] %v248
                %v250 = vld [vmem:[%s152 + $0x128] sm:%s145]
                %251 = vst [vmem:[%s153 + $0xc0] sm:%s145] %v250
                %v252 = vld [vmem:[%s152 + $0x12c] sm:%s145]
                %253 = vst [vmem:[%s153 + $0xc4] sm:%s145] %v252
                %v254 = vld [vmem:[%s152 + $0x130] sm:%s145]
                %255 = vst [vmem:[%s153 + $0xc8] sm:%s145] %v254
                %v256 = vld [vmem:[%s152 + $0x134] sm:%s145]
                %257 = vst [vmem:[%s153 + $0xcc] sm:%s145] %v256
                %v258 = vld [vmem:[%s152 + $0x1a0] sm:%s145]
                %259 = vst [vmem:[%s153 + $0xd0] sm:%s145] %v258
                %v260 = vld [vmem:[%s152 + $0x1a4] sm:%s145]
                %261 = vst [vmem:[%s153 + $0xd4] sm:%s145] %v260
                %v262 = vld [vmem:[%s152 + $0x1a8] sm:%s145]
                %263 = vst [vmem:[%s153 + $0xd8] sm:%s145] %v262
                %v264 = vld [vmem:[%s152 + $0x1ac] sm:%s145]
                %265 = vst [vmem:[%s153 + $0xdc] sm:%s145] %v264
                %v266 = vld [vmem:[%s152 + $0x1b0] sm:%s145]
                %267 = vst [vmem:[%s153 + $0xe0] sm:%s145] %v266
                %v268 = vld [vmem:[%s152 + $0x1b4] sm:%s145]
                %269 = vst [vmem:[%s153 + $0xe4] sm:%s145] %v268
                %v270 = vld [vmem:[%s152 + $0x1b8] sm:%s145]
                %271 = vst [vmem:[%s153 + $0xe8] sm:%s145] %v270
                %v272 = vld [vmem:[%s152 + $0x1bc] sm:%s145]
                %273 = vst [vmem:[%s153 + $0xec] sm:%s145] %v272
                %v274 = vld [vmem:[%s152 + $0x1c0] sm:%s145]
                %275 = vst [vmem:[%s153 + $0xf0] sm:%s145] %v274
                %v276 = vld [vmem:[%s152 + $0x1c4] sm:%s145]
                %277 = vst [vmem:[%s153 + $0xf4] sm:%s145] %v276
                %v278 = vld [vmem:[%s152 + $0x1c8] sm:%s145]
                %279 = vst [vmem:[%s153 + $0xf8] sm:%s145] %v278
                %v280 = vld [vmem:[%s152 + $0x1cc] sm:%s145]
                %281 = vst [vmem:[%s153 + $0xfc] sm:%s145] %v280
                %v282 = vld [vmem:[%s152 + $0x1d0] sm:%s145]
                %283 = vst [vmem:[%s153 + $0x100] sm:%s145] %v282
                %v284 = vld [vmem:[%s152 + $0x1d4] sm:%s145]
                %285 = vst [vmem:[%s153 + $0x104] sm:%s145] %v284
                %v286 = vld [vmem:[%s152 + $0x1d8] sm:%s145]
                %287 = vst [vmem:[%s153 + $0x108] sm:%s145] %v286
                %v288 = vld [vmem:[%s152 + $0x1dc] sm:%s145]
                %289 = vst [vmem:[%s153 + $0x10c] sm:%s145] %v288
                %v290 = vld [vmem:[%s152 + $0x1e0] sm:%s145]
                %291 = vst [vmem:[%s153 + $0x110] sm:%s145] %v290
                %v292 = vld [vmem:[%s152 + $0x1e4] sm:%s145]
                %293 = vst [vmem:[%s153 + $0x114] sm:%s145] %v292
                %v294 = vld [vmem:[%s152 + $0x1e8] sm:%s145]
                %295 = vst [vmem:[%s153 + $0x118] sm:%s145] %v294
                %v296 = vld [vmem:[%s152 + $0x1ec] sm:%s145]
                %297 = vst [vmem:[%s153 + $0x11c] sm:%s145] %v296
                %v298 = vld [vmem:[%s152 + $0x1f0] sm:%s145]
                %299 = vst [vmem:[%s153 + $0x120] sm:%s145] %v298
                %v300 = vld [vmem:[%s152 + $0x1f4] sm:%s145]
                %301 = vst [vmem:[%s153 + $0x124] sm:%s145] %v300
                %v302 = vld [vmem:[%s152 + $0x1f8] sm:%s145]
                %303 = vst [vmem:[%s153 + $0x128] sm:%s145] %v302
                %v304 = vld [vmem:[%s152 + $0x1fc] sm:%s145]
                %305 = vst [vmem:[%s153 + $0x12c] sm:%s145] %v304
                %v306 = vld [vmem:[%s152 + $0x200] sm:%s145]
                %307 = vst [vmem:[%s153 + $0x130] sm:%s145] %v306
                %v308 = vld [vmem:[%s152 + $0x204] sm:%s145]
                %309 = vst [vmem:[%s153 + $0x134] sm:%s145] %v308
                %v310 = vld [vmem:[%s152 + $0x270] sm:%s145]
                %311 = vst [vmem:[%s153 + $0x138] sm:%s145] %v310
                %v312 = vld [vmem:[%s152 + $0x274] sm:%s145]
                %313 = vst [vmem:[%s153 + $0x13c] sm:%s145] %v312
                %v314 = vld [vmem:[%s152 + $0x278] sm:%s145]
                %315 = vst [vmem:[%s153 + $0x140] sm:%s145] %v314
                %v316 = vld [vmem:[%s152 + $0x27c] sm:%s145]
                %317 = vst [vmem:[%s153 + $0x144] sm:%s145] %v316
                %v318 = vld [vmem:[%s152 + $0x280] sm:%s145]
                %319 = vst [vmem:[%s153 + $0x148] sm:%s145] %v318
                %v320 = vld [vmem:[%s152 + $0x284] sm:%s145]
                %321 = vst [vmem:[%s153 + $0x14c] sm:%s145] %v320
                %v322 = vld [vmem:[%s152 + $0x288] sm:%s145]
                %323 = vst [vmem:[%s153 + $0x150] sm:%s145] %v322
                %v324 = vld [vmem:[%s152 + $0x28c] sm:%s145]
                %325 = vst [vmem:[%s153 + $0x154] sm:%s145] %v324
                %v326 = vld [vmem:[%s152 + $0x290] sm:%s145]
                %327 = vst [vmem:[%s153 + $0x158] sm:%s145] %v326
                %v328 = vld [vmem:[%s152 + $0x294] sm:%s145]
                %329 = vst [vmem:[%s153 + $0x15c] sm:%s145] %v328
                %v330 = vld [vmem:[%s152 + $0x298] sm:%s145]
                %331 = vst [vmem:[%s153 + $0x160] sm:%s145] %v330
                %v332 = vld [vmem:[%s152 + $0x29c] sm:%s145]
                %333 = vst [vmem:[%s153 + $0x164] sm:%s145] %v332
                %v334 = vld [vmem:[%s152 + $0x2a0] sm:%s145]
                %335 = vst [vmem:[%s153 + $0x168] sm:%s145] %v334
                %v336 = vld [vmem:[%s152 + $0x2a4] sm:%s145]
                %337 = vst [vmem:[%s153 + $0x16c] sm:%s145] %v336
                %v338 = vld [vmem:[%s152 + $0x2a8] sm:%s145]
                %339 = vst [vmem:[%s153 + $0x170] sm:%s145] %v338
                %v340 = vld [vmem:[%s152 + $0x2ac] sm:%s145]
                %341 = vst [vmem:[%s153 + $0x174] sm:%s145] %v340
                %v342 = vld [vmem:[%s152 + $0x2b0] sm:%s145]
                %343 = vst [vmem:[%s153 + $0x178] sm:%s145] %v342
                %v344 = vld [vmem:[%s152 + $0x2b4] sm:%s145]
                %345 = vst [vmem:[%s153 + $0x17c] sm:%s145] %v344
                %v346 = vld [vmem:[%s152 + $0x2b8] sm:%s145]
                %347 = vst [vmem:[%s153 + $0x180] sm:%s145] %v346
                %v348 = vld [vmem:[%s152 + $0x2bc] sm:%s145]
                %349 = vst [vmem:[%s153 + $0x184] sm:%s145] %v348
                %v350 = vld [vmem:[%s152 + $0x2c0] sm:%s145]
                %351 = vst [vmem:[%s153 + $0x188] sm:%s145] %v350
                %v352 = vld [vmem:[%s152 + $0x2c4] sm:%s145]
                %353 = vst [vmem:[%s153 + $0x18c] sm:%s145] %v352
                %v354 = vld [vmem:[%s152 + $0x2c8] sm:%s145]
                %355 = vst [vmem:[%s153 + $0x190] sm:%s145] %v354
                %v356 = vld [vmem:[%s152 + $0x2cc] sm:%s145]
                %357 = vst [vmem:[%s153 + $0x194] sm:%s145] %v356
                %v358 = vld [vmem:[%s152 + $0x2d0] sm:%s145]
                %359 = vst [vmem:[%s153 + $0x198] sm:%s145] %v358
                %v360 = vld [vmem:[%s152 + $0x2d4] sm:%s145]
                %361 = vst [vmem:[%s153 + $0x19c] sm:%s145] %v360
              $region45: #{net_forward.3} parent=39 // loop_footer
                %s151 = sadd.s32 1, %s147
              $region46: #{net_forward.3} parent=39 // loop_footer_branch
                %146 = sbr.rel target = $region42
              $region47: #{net_forward.3} parent=39 // loop_exit
                _
            $region40: #{net_forward.3} parent=31 // pred_fallthru
              _
          $region32: #{net_forward.3} parent=27 // pred_fallthru
            _
          %590 = vnop
        $region28: #{net_forward.3} parent=23 // pred_fallthru
          _
      $region24: #{net_forward.3} parent=5 // pred_fallthru
        _
      %p591 = scmp.le.s32.totalorder 1, %s9
      %p592 = scmp.lt.s32.totalorder %s9, 3
      %p593 = pnand %p591, %p592
      %p594 = pneg %p593
      // Predicated region
      $region66: #{net_forward.3} parent=5 // pred_check
        _
      $region67: #{net_forward.3} parent=5 // pred_check_branch
        %596 = sbr.rel (%p593) target = $region69
      $region68: #{net_forward.3} parent=5 // pred_region
        %s597 = ssub.s32 %s9, 1
        %s598 = sand.u32 %s22, 1
        %s599 = sand.u32 %s22, 1
        %s600 = smul.addr %s599, 416
        %s601 = scalar_lea.vmem [#allocation2], %s600
        // Predicated region
        $region70: #{net_forward.3} parent=68 // pred_check
          %p602 = pneg %p35
        $region71: #{net_forward.3} parent=68 // pred_check_branch
          %604 = sbr.rel (%p602) target = $region73
        $region72: #{net_forward.3} parent=68 // pred_region
          _
        $region73: #{net_forward.3} parent=68 // pred_fallthru
          _
        %s605 = sand.u32 %s22, 1
        %s606 = sand.u32 %s22, 1
        %s607 = smul.addr %s606, 416
        %s608 = scalar_lea.vmem [#allocation2], %s607
        %p609 = pneg %p35
        %p610 = pneg %p32
        %p611 = pneg %p56
        %p612 = pneg %p53
        %p613 = pneg %p77
        %p614 = pneg %p74
        %p615 = pneg %p103
        %p616 = pneg %p100
        %s617 = smul.u32 26, %s14
        %p618 = scmp.lt.s32.totalorder %s617, 51
        %s619 = scalar_select %p618, %s617, 51
        %s620 = smul.addr %s619, 4
        %s621 = scalar_lea.vmem %s3, %s620
        %s622 = smul.u32 26, %s14
        %s623 = smul.u32 26, %s14
        %p624 = scmp.lt.s32.totalorder %s623, 51
        %s625 = scalar_select %p624, %s623, 51
        %s626 = smul.addr %s625, 4
        %s627 = scalar_lea.vmem %s3, %s626
        %s628 = smul.u32 26, %s14
        %v630 = vld [vmem:[%s1] sm:$0xf]
        %v631 = vld [vmem:[%s1 + $0x4] sm:$0x1]
        %v632 = vld [vmem:[%s601] sm:$0xf]
        %v633 = vld [vmem:[%s601 + $0x4] sm:$0xf]
        %v634 = vld [vmem:[%s601 + $0x8] sm:$0xf]
        %v635 = vld [vmem:[%s601 + $0xc] sm:$0xf]
        %v636 = vld [vmem:[%s601 + $0x10] sm:$0xf]
        %v637 = vld [vmem:[%s601 + $0x14] sm:$0xf]
        %v638 = vld [vmem:[%s601 + $0x18] sm:$0xf]
        %v639 = vld [vmem:[%s601 + $0x1c] sm:$0xf]
        %v640 = vld [vmem:[%s601 + $0x20] sm:$0xf]
        %v641 = vld [vmem:[%s601 + $0x24] sm:$0xf]
        %v642 = vld [vmem:[%s601 + $0x28] sm:$0xf]
        %v643 = vld [vmem:[%s601 + $0x2c] sm:$0xf]
        %v644 = vld [vmem:[%s601 + $0x30] sm:$0xf]
        %v645 = vld [vmem:[%s601 + $0x34] sm:$0xf]
        %v646 = vld [vmem:[%s601 + $0x38] sm:$0xf]
        %v647 = vld [vmem:[%s601 + $0x3c] sm:$0xf]
        %v648 = vld [vmem:[%s601 + $0x40] sm:$0xf]
        %v649 = vld [vmem:[%s601 + $0x44] sm:$0xf]
        %v650 = vld [vmem:[%s601 + $0x48] sm:$0xf]
        %v651 = vld [vmem:[%s601 + $0x4c] sm:$0xf]
        %v652 = vld [vmem:[%s601 + $0x50] sm:$0xf]
        %v653 = vld [vmem:[%s601 + $0x54] sm:$0xf]
        %v654 = vld [vmem:[%s601 + $0x58] sm:$0xf]
        %v655 = vld [vmem:[%s601 + $0x5c] sm:$0xf]
        %v656 = vld [vmem:[%s601 + $0x60] sm:$0xf]
        %v657 = vld [vmem:[%s601 + $0x64] sm:$0xf]
        %v684 = vunpack.c.l.b16 %v632
        %v685 = vunpack.c.l.b16 %v633
        %v686 = vunpack.c.l.b16 %v634
        %v687 = vunpack.c.l.b16 %v635
        %v688 = vunpack.c.l.b16 %v636
        %v689 = vunpack.c.l.b16 %v637
        %v690 = vunpack.c.l.b16 %v638
        %v691 = vunpack.c.l.b16 %v639
        %v692 = vunpack.c.l.b16 %v640
        %v693 = vunpack.c.l.b16 %v641
        %v694 = vunpack.c.l.b16 %v642
        %v695 = vunpack.c.l.b16 %v643
        %v696 = vunpack.c.l.b16 %v644
        %v697 = vunpack.c.l.b16 %v645
        %v698 = vunpack.c.l.b16 %v646
        %v699 = vunpack.c.l.b16 %v647
        %v700 = vunpack.c.l.b16 %v648
        %v701 = vunpack.c.l.b16 %v649
        %v702 = vunpack.c.l.b16 %v650
        %v703 = vunpack.c.l.b16 %v651
        %v704 = vunpack.c.l.b16 %v652
        %v705 = vunpack.c.l.b16 %v653
        %v706 = vunpack.c.l.b16 %v654
        %v707 = vunpack.c.l.b16 %v655
        %v708 = vunpack.c.l.b16 %v656
        %v709 = vunpack.c.l.b16 %v657
        %v710 = vpack.c.b16 %v685, %v684
        %v711 = vpack.c.b16 %v687, %v686
        %v712 = vpack.c.b16 %v689, %v688
        %v713 = vpack.c.b16 %v691, %v690
        %v714 = vpack.c.b16 %v693, %v692
        %v715 = vpack.c.b16 %v695, %v694
        %v716 = vpack.c.b16 %v697, %v696
        %v717 = vpack.c.b16 %v699, %v698
        %v718 = vpack.c.b16 %v701, %v700
        %v719 = vpack.c.b16 %v703, %v702
        %v720 = vpack.c.b16 %v705, %v704
        %v721 = vpack.c.b16 %v707, %v706
        %v722 = vpack.c.b16 %v709, %v708
        %v725 = vunpack.c.l.b16 %v630
        %v726 = vunpack.c.l.b16 %v631
        %v727 = vpack.c.b16 %v726, %v725
        %vm728 = vcmask 72704
        %v730 = vsel %vm728, %v710, 0
        %v733 = vsel %vm728, %v711, 0
        %v736 = vsel %vm728, %v712, 0
        %v739 = vsel %vm728, %v713, 0
        %v742 = vsel %vm728, %v714, 0
        %v745 = vsel %vm728, %v715, 0
        %v748 = vsel %vm728, %v716, 0
        %v751 = vsel %vm728, %v717, 0
        %v754 = vsel %vm728, %v718, 0
        %v757 = vsel %vm728, %v719, 0
        %v760 = vsel %vm728, %v720, 0
        %v763 = vsel %vm728, %v721, 0
        %v766 = vsel %vm728, %v722, 0
        %vm768 = vcmask 1043456
        %vm769 = vcmask 1044480
        %v770 = vsel %vm768, 4294967295, 65535
        %v771 = vsel %vm769, %v770, 0
        %v773 = vand.u32 %v727, %v771
        %775 = vmatprep.subr.bf16.mxu0 0
        %776 = vmatpush1.bf16.msra.mxu0 0
        %777 = vmatprep.subr.bf16.mxu0 0
        %778 = vmatpush1.bf16.msra.mxu0 0
        %779 = vmatprep.subr.bf16.mxu0 0
        %780 = vmatpush1.bf16.msra.mxu0 0
        %781 = vmatprep.subr.bf16.mxu0 0
        %782 = vmatpush1.bf16.msra.mxu0 0
        %783 = vmatprep.subr.bf16.mxu0 0
        %784 = vmatpush1.bf16.msra.mxu0 0
        %785 = vmatprep.subr.bf16.mxu0 0
        %786 = vmatpush1.bf16.msra.mxu0 0
        %787 = vmatprep.subr.bf16.mxu0 0
        %788 = vmatpush1.bf16.msra.mxu0 0
        %789 = vmatprep.subr.bf16.mxu0 0
        %790 = vmatpush1.bf16.msra.mxu0 %v773
        %791 = vmatprep.subr.bf16.mxu0 0
        %792 = vmatpush2.bf16.msra.mxu0 0
        %793 = vmatprep.subr.bf16.mxu0 0
        %794 = vmatpush2.bf16.msra.mxu0 0
        %795 = vmatprep.subr.bf16.mxu0 0
        %796 = vmatpush2.bf16.msra.mxu0 0
        %797 = vmatprep.subr.bf16.mxu0 0
        %798 = vmatpush2.bf16.msra.mxu0 0
        %799 = vmatprep.subr.bf16.mxu0 0
        %800 = vmatpush2.bf16.msra.mxu0 0
        %801 = vmatprep.subr.bf16.mxu0 0
        %802 = vmatpush2.bf16.msra.mxu0 0
        %803 = vmatprep.subr.bf16.mxu0 0
        %804 = vmatpush2.bf16.msra.mxu0 0
        %805 = vmatprep.subr.bf16.mxu0 0
        %806 = vmatpush2.bf16.msra.mxu0 0
        %807 = vmatprep.mubr.bf16.mxu0 0
        %808 = vmatmul.mubr.bf16.gmra.mxu0 %v730
        %v809 = vpop.f32.mrf.mxu0
        %v810 = vadd.f32 0.0, %v809
        %v811 = vpop.f32.mrf.mxu0
        %v812 = vpop.f32.mrf.mxu0
        %v813 = vadd.f32 0.0, %v812
        %v814 = vpop.f32.mrf.mxu0
        %815 = vmatprep.mubr.bf16.mxu0 0
        %816 = vmatmul.mubr.bf16.gmra.mxu0 %v733
        %v817 = vpop.f32.mrf.mxu0
        %v818 = vadd.f32 0.0, %v817
        %v819 = vpop.f32.mrf.mxu0
        %v820 = vpop.f32.mrf.mxu0
        %v821 = vadd.f32 0.0, %v820
        %v822 = vpop.f32.mrf.mxu0
        %823 = vmatprep.mubr.bf16.mxu0 0
        %824 = vmatmul.mubr.bf16.gmra.mxu0 %v736
        %v825 = vpop.f32.mrf.mxu0
        %v826 = vadd.f32 0.0, %v825
        %v827 = vpop.f32.mrf.mxu0
        %v828 = vpop.f32.mrf.mxu0
        %v829 = vadd.f32 0.0, %v828
        %v830 = vpop.f32.mrf.mxu0
        %831 = vmatprep.mubr.bf16.mxu0 0
        %832 = vmatmul.mubr.bf16.gmra.mxu0 %v739
        %v833 = vpop.f32.mrf.mxu0
        %v834 = vadd.f32 0.0, %v833
        %v835 = vpop.f32.mrf.mxu0
        %v836 = vpop.f32.mrf.mxu0
        %v837 = vadd.f32 0.0, %v836
        %v838 = vpop.f32.mrf.mxu0
        %839 = vmatprep.mubr.bf16.mxu0 0
        %840 = vmatmul.mubr.bf16.gmra.mxu0 %v742
        %v841 = vpop.f32.mrf.mxu0
        %v842 = vadd.f32 0.0, %v841
        %v843 = vpop.f32.mrf.mxu0
        %v844 = vpop.f32.mrf.mxu0
        %v845 = vadd.f32 0.0, %v844
        %v846 = vpop.f32.mrf.mxu0
        %847 = vmatprep.mubr.bf16.mxu0 0
        %848 = vmatmul.mubr.bf16.gmra.mxu0 %v745
        %v849 = vpop.f32.mrf.mxu0
        %v850 = vadd.f32 0.0, %v849
        %v851 = vpop.f32.mrf.mxu0
        %v852 = vpop.f32.mrf.mxu0
        %v853 = vadd.f32 0.0, %v852
        %v854 = vpop.f32.mrf.mxu0
        %855 = vmatprep.mubr.bf16.mxu0 0
        %856 = vmatmul.mubr.bf16.gmra.mxu0 %v748
        %v857 = vpop.f32.mrf.mxu0
        %v858 = vadd.f32 0.0, %v857
        %v859 = vpop.f32.mrf.mxu0
        %v860 = vpop.f32.mrf.mxu0
        %v861 = vadd.f32 0.0, %v860
        %v862 = vpop.f32.mrf.mxu0
        %863 = vmatprep.mubr.bf16.mxu0 0
        %864 = vmatmul.mubr.bf16.gmra.mxu0 %v751
        %v865 = vpop.f32.mrf.mxu0
        %v866 = vadd.f32 0.0, %v865
        %v867 = vpop.f32.mrf.mxu0
        %v868 = vpop.f32.mrf.mxu0
        %v869 = vadd.f32 0.0, %v868
        %v870 = vpop.f32.mrf.mxu0
        %871 = vmatprep.mubr.bf16.mxu0 0
        %872 = vmatmul.mubr.bf16.gmra.mxu0 %v754
        %v873 = vpop.f32.mrf.mxu0
        %v874 = vadd.f32 0.0, %v873
        %v875 = vpop.f32.mrf.mxu0
        %v876 = vpop.f32.mrf.mxu0
        %v877 = vadd.f32 0.0, %v876
        %v878 = vpop.f32.mrf.mxu0
        %879 = vmatprep.mubr.bf16.mxu0 0
        %880 = vmatmul.mubr.bf16.gmra.mxu0 %v757
        %v881 = vpop.f32.mrf.mxu0
        %v882 = vadd.f32 0.0, %v881
        %v883 = vpop.f32.mrf.mxu0
        %v884 = vpop.f32.mrf.mxu0
        %v885 = vadd.f32 0.0, %v884
        %v886 = vpop.f32.mrf.mxu0
        %887 = vmatprep.mubr.bf16.mxu0 0
        %888 = vmatmul.mubr.bf16.gmra.mxu0 %v760
        %v889 = vpop.f32.mrf.mxu0
        %v890 = vadd.f32 0.0, %v889
        %v891 = vpop.f32.mrf.mxu0
        %v892 = vpop.f32.mrf.mxu0
        %v893 = vadd.f32 0.0, %v892
        %v894 = vpop.f32.mrf.mxu0
        %895 = vmatprep.mubr.bf16.mxu0 0
        %896 = vmatmul.mubr.bf16.gmra.mxu0 %v763
        %v897 = vpop.f32.mrf.mxu0
        %v898 = vadd.f32 0.0, %v897
        %v899 = vpop.f32.mrf.mxu0
        %v900 = vpop.f32.mrf.mxu0
        %v901 = vadd.f32 0.0, %v900
        %v902 = vpop.f32.mrf.mxu0
        %903 = vmatprep.mubr.bf16.mxu0 0
        %904 = vmatmul.mubr.bf16.gmra.mxu0 %v766
        %v905 = vpop.f32.mrf.mxu0
        %v906 = vadd.f32 0.0, %v905
        %v907 = vpop.f32.mrf.mxu0
        %v908 = vpop.f32.mrf.mxu0
        %v909 = vadd.f32 0.0, %v908
        %v910 = vpop.f32.mrf.mxu0
        %911 = vdwg.mxu0
        %s912 = scalar_lea.vmem %s601, 104 [#allocation2]
        %v913 = vld [vmem:[%s912] sm:$0xf]
        %v914 = vld [vmem:[%s912 + $0x4] sm:$0xf]
        %v915 = vld [vmem:[%s912 + $0x8] sm:$0xf]
        %v916 = vld [vmem:[%s912 + $0xc] sm:$0xf]
        %v917 = vld [vmem:[%s912 + $0x10] sm:$0xf]
        %v918 = vld [vmem:[%s912 + $0x14] sm:$0xf]
        %v919 = vld [vmem:[%s912 + $0x18] sm:$0xf]
        %v920 = vld [vmem:[%s912 + $0x1c] sm:$0xf]
        %v921 = vld [vmem:[%s912 + $0x20] sm:$0xf]
        %v922 = vld [vmem:[%s912 + $0x24] sm:$0xf]
        %v923 = vld [vmem:[%s912 + $0x28] sm:$0xf]
        %v924 = vld [vmem:[%s912 + $0x2c] sm:$0xf]
        %v925 = vld [vmem:[%s912 + $0x30] sm:$0xf]
        %v926 = vld [vmem:[%s912 + $0x34] sm:$0xf]
        %v927 = vld [vmem:[%s912 + $0x38] sm:$0xf]
        %v928 = vld [vmem:[%s912 + $0x3c] sm:$0xf]
        %v929 = vld [vmem:[%s912 + $0x40] sm:$0xf]
        %v930 = vld [vmem:[%s912 + $0x44] sm:$0xf]
        %v931 = vld [vmem:[%s912 + $0x48] sm:$0xf]
        %v932 = vld [vmem:[%s912 + $0x4c] sm:$0xf]
        %v933 = vld [vmem:[%s912 + $0x50] sm:$0xf]
        %v934 = vld [vmem:[%s912 + $0x54] sm:$0xf]
        %v935 = vld [vmem:[%s912 + $0x58] sm:$0xf]
        %v936 = vld [vmem:[%s912 + $0x5c] sm:$0xf]
        %v937 = vld [vmem:[%s912 + $0x60] sm:$0xf]
        %v938 = vld [vmem:[%s912 + $0x64] sm:$0xf]
        %v965 = vunpack.c.l.b16 %v913
        %v966 = vunpack.c.l.b16 %v914
        %v967 = vunpack.c.l.b16 %v915
        %v968 = vunpack.c.l.b16 %v916
        %v969 = vunpack.c.l.b16 %v917
        %v970 = vunpack.c.l.b16 %v918
        %v971 = vunpack.c.l.b16 %v919
        %v972 = vunpack.c.l.b16 %v920
        %v973 = vunpack.c.l.b16 %v921
        %v974 = vunpack.c.l.b16 %v922
        %v975 = vunpack.c.l.b16 %v923
        %v976 = vunpack.c.l.b16 %v924
        %v977 = vunpack.c.l.b16 %v925
        %v978 = vunpack.c.l.b16 %v926
        %v979 = vunpack.c.l.b16 %v927
        %v980 = vunpack.c.l.b16 %v928
        %v981 = vunpack.c.l.b16 %v929
        %v982 = vunpack.c.l.b16 %v930
        %v983 = vunpack.c.l.b16 %v931
        %v984 = vunpack.c.l.b16 %v932
        %v985 = vunpack.c.l.b16 %v933
        %v986 = vunpack.c.l.b16 %v934
        %v987 = vunpack.c.l.b16 %v935
        %v988 = vunpack.c.l.b16 %v936
        %v989 = vunpack.c.l.b16 %v937
        %v990 = vunpack.c.l.b16 %v938
        %v991 = vpack.c.b16 %v966, %v965
        %v992 = vpack.c.b16 %v968, %v967
        %v993 = vpack.c.b16 %v970, %v969
        %v994 = vpack.c.b16 %v972, %v971
        %v995 = vpack.c.b16 %v974, %v973
        %v996 = vpack.c.b16 %v976, %v975
        %v997 = vpack.c.b16 %v978, %v977
        %v998 = vpack.c.b16 %v980, %v979
        %v999 = vpack.c.b16 %v982, %v981
        %v1000 = vpack.c.b16 %v984, %v983
        %v1001 = vpack.c.b16 %v986, %v985
        %v1002 = vpack.c.b16 %v988, %v987
        %v1003 = vpack.c.b16 %v990, %v989
        %v1005 = vsel %vm728, %v991, 0
        %v1008 = vsel %vm728, %v992, 0
        %v1011 = vsel %vm728, %v993, 0
        %v1014 = vsel %vm728, %v994, 0
        %v1017 = vsel %vm728, %v995, 0
        %v1020 = vsel %vm728, %v996, 0
        %v1023 = vsel %vm728, %v997, 0
        %v1026 = vsel %vm728, %v998, 0
        %v1029 = vsel %vm728, %v999, 0
        %v1032 = vsel %vm728, %v1000, 0
        %v1035 = vsel %vm728, %v1001, 0
        %v1038 = vsel %vm728, %v1002, 0
        %v1041 = vsel %vm728, %v1003, 0
        %1043 = vmatprep.subr.bf16.mxu0 0
        %1044 = vmatpush1.bf16.msra.mxu0 0
        %1045 = vmatprep.subr.bf16.mxu0 0
        %1046 = vmatpush1.bf16.msra.mxu0 0
        %1047 = vmatprep.subr.bf16.mxu0 0
        %1048 = vmatpush1.bf16.msra.mxu0 0
        %1049 = vmatprep.subr.bf16.mxu0 0
        %1050 = vmatpush1.bf16.msra.mxu0 0
        %1051 = vmatprep.subr.bf16.mxu0 0
        %1052 = vmatpush1.bf16.msra.mxu0 0
        %1053 = vmatprep.subr.bf16.mxu0 0
        %1054 = vmatpush1.bf16.msra.mxu0 0
        %1055 = vmatprep.subr.bf16.mxu0 0
        %1056 = vmatpush1.bf16.msra.mxu0 0
        %1057 = vmatprep.subr.bf16.mxu0 0
        %1058 = vmatpush1.bf16.msra.mxu0 %v773
        %1059 = vmatprep.subr.bf16.mxu0 0
        %1060 = vmatpush2.bf16.msra.mxu0 0
        %1061 = vmatprep.subr.bf16.mxu0 0
        %1062 = vmatpush2.bf16.msra.mxu0 0
        %1063 = vmatprep.subr.bf16.mxu0 0
        %1064 = vmatpush2.bf16.msra.mxu0 0
        %1065 = vmatprep.subr.bf16.mxu0 0
        %1066 = vmatpush2.bf16.msra.mxu0 0
        %1067 = vmatprep.subr.bf16.mxu0 0
        %1068 = vmatpush2.bf16.msra.mxu0 0
        %1069 = vmatprep.subr.bf16.mxu0 0
        %1070 = vmatpush2.bf16.msra.mxu0 0
        %1071 = vmatprep.subr.bf16.mxu0 0
        %1072 = vmatpush2.bf16.msra.mxu0 0
        %1073 = vmatprep.subr.bf16.mxu0 0
        %1074 = vmatpush2.bf16.msra.mxu0 0
        %1075 = vmatprep.mubr.bf16.mxu0 0
        %1076 = vmatmul.mubr.bf16.gmra.mxu0 %v1005
        %v1077 = vpop.f32.mrf.mxu0
        %v1078 = vadd.f32 0.0, %v1077
        %v1079 = vpop.f32.mrf.mxu0
        %v1080 = vpop.f32.mrf.mxu0
        %v1081 = vadd.f32 0.0, %v1080
        %v1082 = vpop.f32.mrf.mxu0
        %1083 = vmatprep.mubr.bf16.mxu0 0
        %1084 = vmatmul.mubr.bf16.gmra.mxu0 %v1008
        %v1085 = vpop.f32.mrf.mxu0
        %v1086 = vadd.f32 0.0, %v1085
        %v1087 = vpop.f32.mrf.mxu0
        %v1088 = vpop.f32.mrf.mxu0
        %v1089 = vadd.f32 0.0, %v1088
        %v1090 = vpop.f32.mrf.mxu0
        %1091 = vmatprep.mubr.bf16.mxu0 0
        %1092 = vmatmul.mubr.bf16.gmra.mxu0 %v1011
        %v1093 = vpop.f32.mrf.mxu0
        %v1094 = vadd.f32 0.0, %v1093
        %v1095 = vpop.f32.mrf.mxu0
        %v1096 = vpop.f32.mrf.mxu0
        %v1097 = vadd.f32 0.0, %v1096
        %v1098 = vpop.f32.mrf.mxu0
        %1099 = vmatprep.mubr.bf16.mxu0 0
        %1100 = vmatmul.mubr.bf16.gmra.mxu0 %v1014
        %v1101 = vpop.f32.mrf.mxu0
        %v1102 = vadd.f32 0.0, %v1101
        %v1103 = vpop.f32.mrf.mxu0
        %v1104 = vpop.f32.mrf.mxu0
        %v1105 = vadd.f32 0.0, %v1104
        %v1106 = vpop.f32.mrf.mxu0
        %1107 = vmatprep.mubr.bf16.mxu0 0
        %1108 = vmatmul.mubr.bf16.gmra.mxu0 %v1017
        %v1109 = vpop.f32.mrf.mxu0
        %v1110 = vadd.f32 0.0, %v1109
        %v1111 = vpop.f32.mrf.mxu0
        %v1112 = vpop.f32.mrf.mxu0
        %v1113 = vadd.f32 0.0, %v1112
        %v1114 = vpop.f32.mrf.mxu0
        %1115 = vmatprep.mubr.bf16.mxu0 0
        %1116 = vmatmul.mubr.bf16.gmra.mxu0 %v1020
        %v1117 = vpop.f32.mrf.mxu0
        %v1118 = vadd.f32 0.0, %v1117
        %v1119 = vpop.f32.mrf.mxu0
        %v1120 = vpop.f32.mrf.mxu0
        %v1121 = vadd.f32 0.0, %v1120
        %v1122 = vpop.f32.mrf.mxu0
        %1123 = vmatprep.mubr.bf16.mxu0 0
        %1124 = vmatmul.mubr.bf16.gmra.mxu0 %v1023
        %v1125 = vpop.f32.mrf.mxu0
        %v1126 = vadd.f32 0.0, %v1125
        %v1127 = vpop.f32.mrf.mxu0
        %v1128 = vpop.f32.mrf.mxu0
        %v1129 = vadd.f32 0.0, %v1128
        %v1130 = vpop.f32.mrf.mxu0
        %1131 = vmatprep.mubr.bf16.mxu0 0
        %1132 = vmatmul.mubr.bf16.gmra.mxu0 %v1026
        %v1133 = vpop.f32.mrf.mxu0
        %v1134 = vadd.f32 0.0, %v1133
        %v1135 = vpop.f32.mrf.mxu0
        %v1136 = vpop.f32.mrf.mxu0
        %v1137 = vadd.f32 0.0, %v1136
        %v1138 = vpop.f32.mrf.mxu0
        %1139 = vmatprep.mubr.bf16.mxu0 0
        %1140 = vmatmul.mubr.bf16.gmra.mxu0 %v1029
        %v1141 = vpop.f32.mrf.mxu0
        %v1142 = vadd.f32 0.0, %v1141
        %v1143 = vpop.f32.mrf.mxu0
        %v1144 = vpop.f32.mrf.mxu0
        %v1145 = vadd.f32 0.0, %v1144
        %v1146 = vpop.f32.mrf.mxu0
        %1147 = vmatprep.mubr.bf16.mxu0 0
        %1148 = vmatmul.mubr.bf16.gmra.mxu0 %v1032
        %v1149 = vpop.f32.mrf.mxu0
        %v1150 = vadd.f32 0.0, %v1149
        %v1151 = vpop.f32.mrf.mxu0
        %v1152 = vpop.f32.mrf.mxu0
        %v1153 = vadd.f32 0.0, %v1152
        %v1154 = vpop.f32.mrf.mxu0
        %1155 = vmatprep.mubr.bf16.mxu0 0
        %1156 = vmatmul.mubr.bf16.gmra.mxu0 %v1035
        %v1157 = vpop.f32.mrf.mxu0
        %v1158 = vadd.f32 0.0, %v1157
        %v1159 = vpop.f32.mrf.mxu0
        %v1160 = vpop.f32.mrf.mxu0
        %v1161 = vadd.f32 0.0, %v1160
        %v1162 = vpop.f32.mrf.mxu0
        %1163 = vmatprep.mubr.bf16.mxu0 0
        %1164 = vmatmul.mubr.bf16.gmra.mxu0 %v1038
        %v1165 = vpop.f32.mrf.mxu0
        %v1166 = vadd.f32 0.0, %v1165
        %v1167 = vpop.f32.mrf.mxu0
        %v1168 = vpop.f32.mrf.mxu0
        %v1169 = vadd.f32 0.0, %v1168
        %v1170 = vpop.f32.mrf.mxu0
        %1171 = vmatprep.mubr.bf16.mxu0 0
        %1172 = vmatmul.mubr.bf16.gmra.mxu0 %v1041
        %v1173 = vpop.f32.mrf.mxu0
        %v1174 = vadd.f32 0.0, %v1173
        %v1175 = vpop.f32.mrf.mxu0
        %v1176 = vpop.f32.mrf.mxu0
        %v1177 = vadd.f32 0.0, %v1176
        %v1178 = vpop.f32.mrf.mxu0
        %1179 = vdwg.mxu0
        %v1180 = vmax.f32 %v810, %v1078
        %v1181 = vmax.f32 %v813, %v1081
        %v1182 = vmax.f32 %v818, %v1086
        %v1183 = vmax.f32 %v821, %v1089
        %v1184 = vmax.f32 %v826, %v1094
        %v1185 = vmax.f32 %v829, %v1097
        %v1186 = vmax.f32 %v834, %v1102
        %v1187 = vmax.f32 %v837, %v1105
        %v1188 = vmax.f32 %v842, %v1110
        %v1189 = vmax.f32 %v845, %v1113
        %v1190 = vmax.f32 %v850, %v1118
        %v1191 = vmax.f32 %v853, %v1121
        %v1192 = vmax.f32 %v858, %v1126
        %v1193 = vmax.f32 %v861, %v1129
        %v1194 = vmax.f32 %v866, %v1134
        %v1195 = vmax.f32 %v869, %v1137
        %v1196 = vmax.f32 %v874, %v1142
        %v1197 = vmax.f32 %v877, %v1145
        %v1198 = vmax.f32 %v882, %v1150
        %v1199 = vmax.f32 %v885, %v1153
        %v1200 = vmax.f32 %v890, %v1158
        %v1201 = vmax.f32 %v893, %v1161
        %v1202 = vmax.f32 %v898, %v1166
        %v1203 = vmax.f32 %v901, %v1169
        %v1204 = vmax.f32 %v906, %v1174
        %v1205 = vmax.f32 %v909, %v1177
        %s1206 = scalar_lea.vmem %s601, 208 [#allocation2]
        %v1207 = vld [vmem:[%s1206] sm:$0xf]
        %v1208 = vld [vmem:[%s1206 + $0x4] sm:$0xf]
        %v1209 = vld [vmem:[%s1206 + $0x8] sm:$0xf]
        %v1210 = vld [vmem:[%s1206 + $0xc] sm:$0xf]
        %v1211 = vld [vmem:[%s1206 + $0x10] sm:$0xf]
        %v1212 = vld [vmem:[%s1206 + $0x14] sm:$0xf]
        %v1213 = vld [vmem:[%s1206 + $0x18] sm:$0xf]
        %v1214 = vld [vmem:[%s1206 + $0x1c] sm:$0xf]
        %v1215 = vld [vmem:[%s1206 + $0x20] sm:$0xf]
        %v1216 = vld [vmem:[%s1206 + $0x24] sm:$0xf]
        %v1217 = vld [vmem:[%s1206 + $0x28] sm:$0xf]
        %v1218 = vld [vmem:[%s1206 + $0x2c] sm:$0xf]
        %v1219 = vld [vmem:[%s1206 + $0x30] sm:$0xf]
        %v1220 = vld [vmem:[%s1206 + $0x34] sm:$0xf]
        %v1221 = vld [vmem:[%s1206 + $0x38] sm:$0xf]
        %v1222 = vld [vmem:[%s1206 + $0x3c] sm:$0xf]
        %v1223 = vld [vmem:[%s1206 + $0x40] sm:$0xf]
        %v1224 = vld [vmem:[%s1206 + $0x44] sm:$0xf]
        %v1225 = vld [vmem:[%s1206 + $0x48] sm:$0xf]
        %v1226 = vld [vmem:[%s1206 + $0x4c] sm:$0xf]
        %v1227 = vld [vmem:[%s1206 + $0x50] sm:$0xf]
        %v1228 = vld [vmem:[%s1206 + $0x54] sm:$0xf]
        %v1229 = vld [vmem:[%s1206 + $0x58] sm:$0xf]
        %v1230 = vld [vmem:[%s1206 + $0x5c] sm:$0xf]
        %v1231 = vld [vmem:[%s1206 + $0x60] sm:$0xf]
        %v1232 = vld [vmem:[%s1206 + $0x64] sm:$0xf]
        %v1259 = vunpack.c.l.b16 %v1207
        %v1260 = vunpack.c.l.b16 %v1208
        %v1261 = vunpack.c.l.b16 %v1209
        %v1262 = vunpack.c.l.b16 %v1210
        %v1263 = vunpack.c.l.b16 %v1211
        %v1264 = vunpack.c.l.b16 %v1212
        %v1265 = vunpack.c.l.b16 %v1213
        %v1266 = vunpack.c.l.b16 %v1214
        %v1267 = vunpack.c.l.b16 %v1215
        %v1268 = vunpack.c.l.b16 %v1216
        %v1269 = vunpack.c.l.b16 %v1217
        %v1270 = vunpack.c.l.b16 %v1218
        %v1271 = vunpack.c.l.b16 %v1219
        %v1272 = vunpack.c.l.b16 %v1220
        %v1273 = vunpack.c.l.b16 %v1221
        %v1274 = vunpack.c.l.b16 %v1222
        %v1275 = vunpack.c.l.b16 %v1223
        %v1276 = vunpack.c.l.b16 %v1224
        %v1277 = vunpack.c.l.b16 %v1225
        %v1278 = vunpack.c.l.b16 %v1226
        %v1279 = vunpack.c.l.b16 %v1227
        %v1280 = vunpack.c.l.b16 %v1228
        %v1281 = vunpack.c.l.b16 %v1229
        %v1282 = vunpack.c.l.b16 %v1230
        %v1283 = vunpack.c.l.b16 %v1231
        %v1284 = vunpack.c.l.b16 %v1232
        %v1285 = vpack.c.b16 %v1260, %v1259
        %v1286 = vpack.c.b16 %v1262, %v1261
        %v1287 = vpack.c.b16 %v1264, %v1263
        %v1288 = vpack.c.b16 %v1266, %v1265
        %v1289 = vpack.c.b16 %v1268, %v1267
        %v1290 = vpack.c.b16 %v1270, %v1269
        %v1291 = vpack.c.b16 %v1272, %v1271
        %v1292 = vpack.c.b16 %v1274, %v1273
        %v1293 = vpack.c.b16 %v1276, %v1275
        %v1294 = vpack.c.b16 %v1278, %v1277
        %v1295 = vpack.c.b16 %v1280, %v1279
        %v1296 = vpack.c.b16 %v1282, %v1281
        %v1297 = vpack.c.b16 %v1284, %v1283
        %v1299 = vsel %vm728, %v1285, 0
        %v1302 = vsel %vm728, %v1286, 0
        %v1305 = vsel %vm728, %v1287, 0
        %v1308 = vsel %vm728, %v1288, 0
        %v1311 = vsel %vm728, %v1289, 0
        %v1314 = vsel %vm728, %v1290, 0
        %v1317 = vsel %vm728, %v1291, 0
        %v1320 = vsel %vm728, %v1292, 0
        %v1323 = vsel %vm728, %v1293, 0
        %v1326 = vsel %vm728, %v1294, 0
        %v1329 = vsel %vm728, %v1295, 0
        %v1332 = vsel %vm728, %v1296, 0
        %v1335 = vsel %vm728, %v1297, 0
        %1337 = vmatprep.subr.bf16.mxu0 0
        %1338 = vmatpush1.bf16.msra.mxu0 0
        %1339 = vmatprep.subr.bf16.mxu0 0
        %1340 = vmatpush1.bf16.msra.mxu0 0
        %1341 = vmatprep.subr.bf16.mxu0 0
        %1342 = vmatpush1.bf16.msra.mxu0 0
        %1343 = vmatprep.subr.bf16.mxu0 0
        %1344 = vmatpush1.bf16.msra.mxu0 0
        %1345 = vmatprep.subr.bf16.mxu0 0
        %1346 = vmatpush1.bf16.msra.mxu0 0
        %1347 = vmatprep.subr.bf16.mxu0 0
        %1348 = vmatpush1.bf16.msra.mxu0 0
        %1349 = vmatprep.subr.bf16.mxu0 0
        %1350 = vmatpush1.bf16.msra.mxu0 0
        %1351 = vmatprep.subr.bf16.mxu0 0
        %1352 = vmatpush1.bf16.msra.mxu0 %v773
        %1353 = vmatprep.subr.bf16.mxu0 0
        %1354 = vmatpush2.bf16.msra.mxu0 0
        %1355 = vmatprep.subr.bf16.mxu0 0
        %1356 = vmatpush2.bf16.msra.mxu0 0
        %1357 = vmatprep.subr.bf16.mxu0 0
        %1358 = vmatpush2.bf16.msra.mxu0 0
        %1359 = vmatprep.subr.bf16.mxu0 0
        %1360 = vmatpush2.bf16.msra.mxu0 0
        %1361 = vmatprep.subr.bf16.mxu0 0
        %1362 = vmatpush2.bf16.msra.mxu0 0
        %1363 = vmatprep.subr.bf16.mxu0 0
        %1364 = vmatpush2.bf16.msra.mxu0 0
        %1365 = vmatprep.subr.bf16.mxu0 0
        %1366 = vmatpush2.bf16.msra.mxu0 0
        %1367 = vmatprep.subr.bf16.mxu0 0
        %1368 = vmatpush2.bf16.msra.mxu0 0
        %1369 = vmatprep.mubr.bf16.mxu0 0
        %1370 = vmatmul.mubr.bf16.gmra.mxu0 %v1299
        %v1371 = vpop.f32.mrf.mxu0
        %v1372 = vadd.f32 0.0, %v1371
        %v1373 = vpop.f32.mrf.mxu0
        %v1374 = vpop.f32.mrf.mxu0
        %v1375 = vadd.f32 0.0, %v1374
        %v1376 = vpop.f32.mrf.mxu0
        %1377 = vmatprep.mubr.bf16.mxu0 0
        %1378 = vmatmul.mubr.bf16.gmra.mxu0 %v1302
        %v1379 = vpop.f32.mrf.mxu0
        %v1380 = vadd.f32 0.0, %v1379
        %v1381 = vpop.f32.mrf.mxu0
        %v1382 = vpop.f32.mrf.mxu0
        %v1383 = vadd.f32 0.0, %v1382
        %v1384 = vpop.f32.mrf.mxu0
        %1385 = vmatprep.mubr.bf16.mxu0 0
        %1386 = vmatmul.mubr.bf16.gmra.mxu0 %v1305
        %v1387 = vpop.f32.mrf.mxu0
        %v1388 = vadd.f32 0.0, %v1387
        %v1389 = vpop.f32.mrf.mxu0
        %v1390 = vpop.f32.mrf.mxu0
        %v1391 = vadd.f32 0.0, %v1390
        %v1392 = vpop.f32.mrf.mxu0
        %1393 = vmatprep.mubr.bf16.mxu0 0
        %1394 = vmatmul.mubr.bf16.gmra.mxu0 %v1308
        %v1395 = vpop.f32.mrf.mxu0
        %v1396 = vadd.f32 0.0, %v1395
        %v1397 = vpop.f32.mrf.mxu0
        %v1398 = vpop.f32.mrf.mxu0
        %v1399 = vadd.f32 0.0, %v1398
        %v1400 = vpop.f32.mrf.mxu0
        %1401 = vmatprep.mubr.bf16.mxu0 0
        %1402 = vmatmul.mubr.bf16.gmra.mxu0 %v1311
        %v1403 = vpop.f32.mrf.mxu0
        %v1404 = vadd.f32 0.0, %v1403
        %v1405 = vpop.f32.mrf.mxu0
        %v1406 = vpop.f32.mrf.mxu0
        %v1407 = vadd.f32 0.0, %v1406
        %v1408 = vpop.f32.mrf.mxu0
        %1409 = vmatprep.mubr.bf16.mxu0 0
        %1410 = vmatmul.mubr.bf16.gmra.mxu0 %v1314
        %v1411 = vpop.f32.mrf.mxu0
        %v1412 = vadd.f32 0.0, %v1411
        %v1413 = vpop.f32.mrf.mxu0
        %v1414 = vpop.f32.mrf.mxu0
        %v1415 = vadd.f32 0.0, %v1414
        %v1416 = vpop.f32.mrf.mxu0
        %1417 = vmatprep.mubr.bf16.mxu0 0
        %1418 = vmatmul.mubr.bf16.gmra.mxu0 %v1317
        %v1419 = vpop.f32.mrf.mxu0
        %v1420 = vadd.f32 0.0, %v1419
        %v1421 = vpop.f32.mrf.mxu0
        %v1422 = vpop.f32.mrf.mxu0
        %v1423 = vadd.f32 0.0, %v1422
        %v1424 = vpop.f32.mrf.mxu0
        %1425 = vmatprep.mubr.bf16.mxu0 0
        %1426 = vmatmul.mubr.bf16.gmra.mxu0 %v1320
        %v1427 = vpop.f32.mrf.mxu0
        %v1428 = vadd.f32 0.0, %v1427
        %v1429 = vpop.f32.mrf.mxu0
        %v1430 = vpop.f32.mrf.mxu0
        %v1431 = vadd.f32 0.0, %v1430
        %v1432 = vpop.f32.mrf.mxu0
        %1433 = vmatprep.mubr.bf16.mxu0 0
        %1434 = vmatmul.mubr.bf16.gmra.mxu0 %v1323
        %v1435 = vpop.f32.mrf.mxu0
        %v1436 = vadd.f32 0.0, %v1435
        %v1437 = vpop.f32.mrf.mxu0
        %v1438 = vpop.f32.mrf.mxu0
        %v1439 = vadd.f32 0.0, %v1438
        %v1440 = vpop.f32.mrf.mxu0
        %1441 = vmatprep.mubr.bf16.mxu0 0
        %1442 = vmatmul.mubr.bf16.gmra.mxu0 %v1326
        %v1443 = vpop.f32.mrf.mxu0
        %v1444 = vadd.f32 0.0, %v1443
        %v1445 = vpop.f32.mrf.mxu0
        %v1446 = vpop.f32.mrf.mxu0
        %v1447 = vadd.f32 0.0, %v1446
        %v1448 = vpop.f32.mrf.mxu0
        %1449 = vmatprep.mubr.bf16.mxu0 0
        %1450 = vmatmul.mubr.bf16.gmra.mxu0 %v1329
        %v1451 = vpop.f32.mrf.mxu0
        %v1452 = vadd.f32 0.0, %v1451
        %v1453 = vpop.f32.mrf.mxu0
        %v1454 = vpop.f32.mrf.mxu0
        %v1455 = vadd.f32 0.0, %v1454
        %v1456 = vpop.f32.mrf.mxu0
        %1457 = vmatprep.mubr.bf16.mxu0 0
        %1458 = vmatmul.mubr.bf16.gmra.mxu0 %v1332
        %v1459 = vpop.f32.mrf.mxu0
        %v1460 = vadd.f32 0.0, %v1459
        %v1461 = vpop.f32.mrf.mxu0
        %v1462 = vpop.f32.mrf.mxu0
        %v1463 = vadd.f32 0.0, %v1462
        %v1464 = vpop.f32.mrf.mxu0
        %1465 = vmatprep.mubr.bf16.mxu0 0
        %1466 = vmatmul.mubr.bf16.gmra.mxu0 %v1335
        %v1467 = vpop.f32.mrf.mxu0
        %v1468 = vadd.f32 0.0, %v1467
        %v1469 = vpop.f32.mrf.mxu0
        %v1470 = vpop.f32.mrf.mxu0
        %v1471 = vadd.f32 0.0, %v1470
        %v1472 = vpop.f32.mrf.mxu0
        %1473 = vdwg.mxu0
        %v1474 = vmax.f32 %v1180, %v1372
        %v1475 = vmax.f32 %v1181, %v1375
        %v1476 = vmax.f32 %v1182, %v1380
        %v1477 = vmax.f32 %v1183, %v1383
        %v1478 = vmax.f32 %v1184, %v1388
        %v1479 = vmax.f32 %v1185, %v1391
        %v1480 = vmax.f32 %v1186, %v1396
        %v1481 = vmax.f32 %v1187, %v1399
        %v1482 = vmax.f32 %v1188, %v1404
        %v1483 = vmax.f32 %v1189, %v1407
        %v1484 = vmax.f32 %v1190, %v1412
        %v1485 = vmax.f32 %v1191, %v1415
        %v1486 = vmax.f32 %v1192, %v1420
        %v1487 = vmax.f32 %v1193, %v1423
        %v1488 = vmax.f32 %v1194, %v1428
        %v1489 = vmax.f32 %v1195, %v1431
        %v1490 = vmax.f32 %v1196, %v1436
        %v1491 = vmax.f32 %v1197, %v1439
        %v1492 = vmax.f32 %v1198, %v1444
        %v1493 = vmax.f32 %v1199, %v1447
        %v1494 = vmax.f32 %v1200, %v1452
        %v1495 = vmax.f32 %v1201, %v1455
        %v1496 = vmax.f32 %v1202, %v1460
        %v1497 = vmax.f32 %v1203, %v1463
        %v1498 = vmax.f32 %v1204, %v1468
        %v1499 = vmax.f32 %v1205, %v1471
        %s1500 = scalar_lea.vmem %s601, 312 [#allocation2]
        %v1501 = vld [vmem:[%s1500] sm:$0xf]
        %v1502 = vld [vmem:[%s1500 + $0x4] sm:$0xf]
        %v1503 = vld [vmem:[%s1500 + $0x8] sm:$0xf]
        %v1504 = vld [vmem:[%s1500 + $0xc] sm:$0xf]
        %v1505 = vld [vmem:[%s1500 + $0x10] sm:$0xf]
        %v1506 = vld [vmem:[%s1500 + $0x14] sm:$0xf]
        %v1507 = vld [vmem:[%s1500 + $0x18] sm:$0xf]
        %v1508 = vld [vmem:[%s1500 + $0x1c] sm:$0xf]
        %v1509 = vld [vmem:[%s1500 + $0x20] sm:$0xf]
        %v1510 = vld [vmem:[%s1500 + $0x24] sm:$0xf]
        %v1511 = vld [vmem:[%s1500 + $0x28] sm:$0xf]
        %v1512 = vld [vmem:[%s1500 + $0x2c] sm:$0xf]
        %v1513 = vld [vmem:[%s1500 + $0x30] sm:$0xf]
        %v1514 = vld [vmem:[%s1500 + $0x34] sm:$0xf]
        %v1515 = vld [vmem:[%s1500 + $0x38] sm:$0xf]
        %v1516 = vld [vmem:[%s1500 + $0x3c] sm:$0xf]
        %v1517 = vld [vmem:[%s1500 + $0x40] sm:$0xf]
        %v1518 = vld [vmem:[%s1500 + $0x44] sm:$0xf]
        %v1519 = vld [vmem:[%s1500 + $0x48] sm:$0xf]
        %v1520 = vld [vmem:[%s1500 + $0x4c] sm:$0xf]
        %v1521 = vld [vmem:[%s1500 + $0x50] sm:$0xf]
        %v1522 = vld [vmem:[%s1500 + $0x54] sm:$0xf]
        %v1523 = vld [vmem:[%s1500 + $0x58] sm:$0xf]
        %v1524 = vld [vmem:[%s1500 + $0x5c] sm:$0xf]
        %v1525 = vld [vmem:[%s1500 + $0x60] sm:$0xf]
        %v1526 = vld [vmem:[%s1500 + $0x64] sm:$0xf]
        %v1553 = vunpack.c.l.b16 %v1501
        %v1554 = vunpack.c.l.b16 %v1502
        %v1555 = vunpack.c.l.b16 %v1503
        %v1556 = vunpack.c.l.b16 %v1504
        %v1557 = vunpack.c.l.b16 %v1505
        %v1558 = vunpack.c.l.b16 %v1506
        %v1559 = vunpack.c.l.b16 %v1507
        %v1560 = vunpack.c.l.b16 %v1508
        %v1561 = vunpack.c.l.b16 %v1509
        %v1562 = vunpack.c.l.b16 %v1510
        %v1563 = vunpack.c.l.b16 %v1511
        %v1564 = vunpack.c.l.b16 %v1512
        %v1565 = vunpack.c.l.b16 %v1513
        %v1566 = vunpack.c.l.b16 %v1514
        %v1567 = vunpack.c.l.b16 %v1515
        %v1568 = vunpack.c.l.b16 %v1516
        %v1569 = vunpack.c.l.b16 %v1517
        %v1570 = vunpack.c.l.b16 %v1518
        %v1571 = vunpack.c.l.b16 %v1519
        %v1572 = vunpack.c.l.b16 %v1520
        %v1573 = vunpack.c.l.b16 %v1521
        %v1574 = vunpack.c.l.b16 %v1522
        %v1575 = vunpack.c.l.b16 %v1523
        %v1576 = vunpack.c.l.b16 %v1524
        %v1577 = vunpack.c.l.b16 %v1525
        %v1578 = vunpack.c.l.b16 %v1526
        %v1579 = vpack.c.b16 %v1554, %v1553
        %v1580 = vpack.c.b16 %v1556, %v1555
        %v1581 = vpack.c.b16 %v1558, %v1557
        %v1582 = vpack.c.b16 %v1560, %v1559
        %v1583 = vpack.c.b16 %v1562, %v1561
        %v1584 = vpack.c.b16 %v1564, %v1563
        %v1585 = vpack.c.b16 %v1566, %v1565
        %v1586 = vpack.c.b16 %v1568, %v1567
        %v1587 = vpack.c.b16 %v1570, %v1569
        %v1588 = vpack.c.b16 %v1572, %v1571
        %v1589 = vpack.c.b16 %v1574, %v1573
        %v1590 = vpack.c.b16 %v1576, %v1575
        %v1591 = vpack.c.b16 %v1578, %v1577
        %v1593 = vsel %vm728, %v1579, 0
        %v1596 = vsel %vm728, %v1580, 0
        %v1599 = vsel %vm728, %v1581, 0
        %v1602 = vsel %vm728, %v1582, 0
        %v1605 = vsel %vm728, %v1583, 0
        %v1608 = vsel %vm728, %v1584, 0
        %v1611 = vsel %vm728, %v1585, 0
        %v1614 = vsel %vm728, %v1586, 0
        %v1617 = vsel %vm728, %v1587, 0
        %v1620 = vsel %vm728, %v1588, 0
        %v1623 = vsel %vm728, %v1589, 0
        %v1626 = vsel %vm728, %v1590, 0
        %v1629 = vsel %vm728, %v1591, 0
        %1631 = vmatprep.subr.bf16.mxu0 0
        %1632 = vmatpush1.bf16.msra.mxu0 0
        %1633 = vmatprep.subr.bf16.mxu0 0
        %1634 = vmatpush1.bf16.msra.mxu0 0
        %1635 = vmatprep.subr.bf16.mxu0 0
        %1636 = vmatpush1.bf16.msra.mxu0 0
        %1637 = vmatprep.subr.bf16.mxu0 0
        %1638 = vmatpush1.bf16.msra.mxu0 0
        %1639 = vmatprep.subr.bf16.mxu0 0
        %1640 = vmatpush1.bf16.msra.mxu0 0
        %1641 = vmatprep.subr.bf16.mxu0 0
        %1642 = vmatpush1.bf16.msra.mxu0 0
        %1643 = vmatprep.subr.bf16.mxu0 0
        %1644 = vmatpush1.bf16.msra.mxu0 0
        %1645 = vmatprep.subr.bf16.mxu0 0
        %1646 = vmatpush1.bf16.msra.mxu0 %v773
        %1647 = vmatprep.subr.bf16.mxu0 0
        %1648 = vmatpush2.bf16.msra.mxu0 0
        %1649 = vmatprep.subr.bf16.mxu0 0
        %1650 = vmatpush2.bf16.msra.mxu0 0
        %1651 = vmatprep.subr.bf16.mxu0 0
        %1652 = vmatpush2.bf16.msra.mxu0 0
        %1653 = vmatprep.subr.bf16.mxu0 0
        %1654 = vmatpush2.bf16.msra.mxu0 0
        %1655 = vmatprep.subr.bf16.mxu0 0
        %1656 = vmatpush2.bf16.msra.mxu0 0
        %1657 = vmatprep.subr.bf16.mxu0 0
        %1658 = vmatpush2.bf16.msra.mxu0 0
        %1659 = vmatprep.subr.bf16.mxu0 0
        %1660 = vmatpush2.bf16.msra.mxu0 0
        %1661 = vmatprep.subr.bf16.mxu0 0
        %1662 = vmatpush2.bf16.msra.mxu0 0
        %1663 = vmatprep.mubr.bf16.mxu0 0
        %1664 = vmatmul.mubr.bf16.gmra.mxu0 %v1593
        %v1665 = vpop.f32.mrf.mxu0
        %v1666 = vadd.f32 0.0, %v1665
        %v1667 = vpop.f32.mrf.mxu0
        %v1668 = vpop.f32.mrf.mxu0
        %v1669 = vadd.f32 0.0, %v1668
        %v1670 = vpop.f32.mrf.mxu0
        %1671 = vmatprep.mubr.bf16.mxu0 0
        %1672 = vmatmul.mubr.bf16.gmra.mxu0 %v1596
        %v1673 = vpop.f32.mrf.mxu0
        %v1674 = vadd.f32 0.0, %v1673
        %v1675 = vpop.f32.mrf.mxu0
        %v1676 = vpop.f32.mrf.mxu0
        %v1677 = vadd.f32 0.0, %v1676
        %v1678 = vpop.f32.mrf.mxu0
        %1679 = vmatprep.mubr.bf16.mxu0 0
        %1680 = vmatmul.mubr.bf16.gmra.mxu0 %v1599
        %v1681 = vpop.f32.mrf.mxu0
        %v1682 = vadd.f32 0.0, %v1681
        %v1683 = vpop.f32.mrf.mxu0
        %v1684 = vpop.f32.mrf.mxu0
        %v1685 = vadd.f32 0.0, %v1684
        %v1686 = vpop.f32.mrf.mxu0
        %1687 = vmatprep.mubr.bf16.mxu0 0
        %1688 = vmatmul.mubr.bf16.gmra.mxu0 %v1602
        %v1689 = vpop.f32.mrf.mxu0
        %v1690 = vadd.f32 0.0, %v1689
        %v1691 = vpop.f32.mrf.mxu0
        %v1692 = vpop.f32.mrf.mxu0
        %v1693 = vadd.f32 0.0, %v1692
        %v1694 = vpop.f32.mrf.mxu0
        %1695 = vmatprep.mubr.bf16.mxu0 0
        %1696 = vmatmul.mubr.bf16.gmra.mxu0 %v1605
        %v1697 = vpop.f32.mrf.mxu0
        %v1698 = vadd.f32 0.0, %v1697
        %v1699 = vpop.f32.mrf.mxu0
        %v1700 = vpop.f32.mrf.mxu0
        %v1701 = vadd.f32 0.0, %v1700
        %v1702 = vpop.f32.mrf.mxu0
        %1703 = vmatprep.mubr.bf16.mxu0 0
        %1704 = vmatmul.mubr.bf16.gmra.mxu0 %v1608
        %v1705 = vpop.f32.mrf.mxu0
        %v1706 = vadd.f32 0.0, %v1705
        %v1707 = vpop.f32.mrf.mxu0
        %v1708 = vpop.f32.mrf.mxu0
        %v1709 = vadd.f32 0.0, %v1708
        %v1710 = vpop.f32.mrf.mxu0
        %1711 = vmatprep.mubr.bf16.mxu0 0
        %1712 = vmatmul.mubr.bf16.gmra.mxu0 %v1611
        %v1713 = vpop.f32.mrf.mxu0
        %v1714 = vadd.f32 0.0, %v1713
        %v1715 = vpop.f32.mrf.mxu0
        %v1716 = vpop.f32.mrf.mxu0
        %v1717 = vadd.f32 0.0, %v1716
        %v1718 = vpop.f32.mrf.mxu0
        %1719 = vmatprep.mubr.bf16.mxu0 0
        %1720 = vmatmul.mubr.bf16.gmra.mxu0 %v1614
        %v1721 = vpop.f32.mrf.mxu0
        %v1722 = vadd.f32 0.0, %v1721
        %v1723 = vpop.f32.mrf.mxu0
        %v1724 = vpop.f32.mrf.mxu0
        %v1725 = vadd.f32 0.0, %v1724
        %v1726 = vpop.f32.mrf.mxu0
        %1727 = vmatprep.mubr.bf16.mxu0 0
        %1728 = vmatmul.mubr.bf16.gmra.mxu0 %v1617
        %v1729 = vpop.f32.mrf.mxu0
        %v1730 = vadd.f32 0.0, %v1729
        %v1731 = vpop.f32.mrf.mxu0
        %v1732 = vpop.f32.mrf.mxu0
        %v1733 = vadd.f32 0.0, %v1732
        %v1734 = vpop.f32.mrf.mxu0
        %1735 = vmatprep.mubr.bf16.mxu0 0
        %1736 = vmatmul.mubr.bf16.gmra.mxu0 %v1620
        %v1737 = vpop.f32.mrf.mxu0
        %v1738 = vadd.f32 0.0, %v1737
        %v1739 = vpop.f32.mrf.mxu0
        %v1740 = vpop.f32.mrf.mxu0
        %v1741 = vadd.f32 0.0, %v1740
        %v1742 = vpop.f32.mrf.mxu0
        %1743 = vmatprep.mubr.bf16.mxu0 0
        %1744 = vmatmul.mubr.bf16.gmra.mxu0 %v1623
        %v1745 = vpop.f32.mrf.mxu0
        %v1746 = vadd.f32 0.0, %v1745
        %v1747 = vpop.f32.mrf.mxu0
        %v1748 = vpop.f32.mrf.mxu0
        %v1749 = vadd.f32 0.0, %v1748
        %v1750 = vpop.f32.mrf.mxu0
        %1751 = vmatprep.mubr.bf16.mxu0 0
        %1752 = vmatmul.mubr.bf16.gmra.mxu0 %v1626
        %v1753 = vpop.f32.mrf.mxu0
        %v1754 = vadd.f32 0.0, %v1753
        %v1755 = vpop.f32.mrf.mxu0
        %v1756 = vpop.f32.mrf.mxu0
        %v1757 = vadd.f32 0.0, %v1756
        %v1758 = vpop.f32.mrf.mxu0
        %1759 = vmatprep.mubr.bf16.mxu0 0
        %1760 = vmatmul.mubr.bf16.gmra.mxu0 %v1629
        %v1761 = vpop.f32.mrf.mxu0
        %v1762 = vadd.f32 0.0, %v1761
        %v1763 = vpop.f32.mrf.mxu0
        %v1764 = vpop.f32.mrf.mxu0
        %v1765 = vadd.f32 0.0, %v1764
        %v1766 = vpop.f32.mrf.mxu0
        %1767 = vdwg.mxu0
        %v1768 = vmax.f32 %v1474, %v1666
        %v1769 = vmax.f32 %v1475, %v1669
        %v1770 = vmax.f32 %v1476, %v1674
        %v1771 = vmax.f32 %v1477, %v1677
        %v1772 = vmax.f32 %v1478, %v1682
        %v1773 = vmax.f32 %v1479, %v1685
        %v1774 = vmax.f32 %v1480, %v1690
        %v1775 = vmax.f32 %v1481, %v1693
        %v1776 = vmax.f32 %v1482, %v1698
        %v1777 = vmax.f32 %v1483, %v1701
        %v1778 = vmax.f32 %v1484, %v1706
        %v1779 = vmax.f32 %v1485, %v1709
        %v1780 = vmax.f32 %v1486, %v1714
        %v1781 = vmax.f32 %v1487, %v1717
        %v1782 = vmax.f32 %v1488, %v1722
        %v1783 = vmax.f32 %v1489, %v1725
        %v1784 = vmax.f32 %v1490, %v1730
        %v1785 = vmax.f32 %v1491, %v1733
        %v1786 = vmax.f32 %v1492, %v1738
        %v1787 = vmax.f32 %v1493, %v1741
        %v1788 = vmax.f32 %v1494, %v1746
        %v1789 = vmax.f32 %v1495, %v1749
        %v1790 = vmax.f32 %v1496, %v1754
        %v1791 = vmax.f32 %v1497, %v1757
        %v1792 = vmax.f32 %v1498, %v1762
        %v1793 = vmax.f32 %v1499, %v1765
        %v1794 = vld [vmem:[%s2] sm:$0x1]
        %v1796 = vlaneseq
        %v1797 = vshrl.u32 %v1796, 7
        %v1798 = vsub.s32 0, %v1797
        %v1799 = vrot.slane %v1794, %v1798
        %v1801 = vadd.f32 %v1768, %v1799
        %v1802 = vadd.f32 %v1769, %v1799
        %v1803 = vadd.f32 %v1770, %v1799
        %v1804 = vadd.f32 %v1771, %v1799
        %v1805 = vadd.f32 %v1772, %v1799
        %v1806 = vadd.f32 %v1773, %v1799
        %v1807 = vadd.f32 %v1774, %v1799
        %v1808 = vadd.f32 %v1775, %v1799
        %v1809 = vadd.f32 %v1776, %v1799
        %v1810 = vadd.f32 %v1777, %v1799
        %v1811 = vadd.f32 %v1778, %v1799
        %v1812 = vadd.f32 %v1779, %v1799
        %v1813 = vadd.f32 %v1780, %v1799
        %v1814 = vadd.f32 %v1781, %v1799
        %v1815 = vadd.f32 %v1782, %v1799
        %v1816 = vadd.f32 %v1783, %v1799
        %v1817 = vadd.f32 %v1784, %v1799
        %v1818 = vadd.f32 %v1785, %v1799
        %v1819 = vadd.f32 %v1786, %v1799
        %v1820 = vadd.f32 %v1787, %v1799
        %v1821 = vadd.f32 %v1788, %v1799
        %v1822 = vadd.f32 %v1789, %v1799
        %v1823 = vadd.f32 %v1790, %v1799
        %v1824 = vadd.f32 %v1791, %v1799
        %v1825 = vadd.f32 %v1792, %v1799
        %v1826 = vadd.f32 %v1793, %v1799
        %v1827 = vmax.f32 %v1801, 0.0
        %v1828 = vmax.f32 %v1802, 0.0
        %v1829 = vmax.f32 %v1803, 0.0
        %v1830 = vmax.f32 %v1804, 0.0
        %v1831 = vmax.f32 %v1805, 0.0
        %v1832 = vmax.f32 %v1806, 0.0
        %v1833 = vmax.f32 %v1807, 0.0
        %v1834 = vmax.f32 %v1808, 0.0
        %v1835 = vmax.f32 %v1809, 0.0
        %v1836 = vmax.f32 %v1810, 0.0
        %v1837 = vmax.f32 %v1811, 0.0
        %v1838 = vmax.f32 %v1812, 0.0
        %v1839 = vmax.f32 %v1813, 0.0
        %v1840 = vmax.f32 %v1814, 0.0
        %v1841 = vmax.f32 %v1815, 0.0
        %v1842 = vmax.f32 %v1816, 0.0
        %v1843 = vmax.f32 %v1817, 0.0
        %v1844 = vmax.f32 %v1818, 0.0
        %v1845 = vmax.f32 %v1819, 0.0
        %v1846 = vmax.f32 %v1820, 0.0
        %v1847 = vmax.f32 %v1821, 0.0
        %v1848 = vmax.f32 %v1822, 0.0
        %v1849 = vmax.f32 %v1823, 0.0
        %v1850 = vmax.f32 %v1824, 0.0
        %v1851 = vmax.f32 %v1825, 0.0
        %v1852 = vmax.f32 %v1826, 0.0
        %v1853 = vpack.c.bf16 %v1828, %v1827
        %v1854 = vpack.c.bf16 %v1830, %v1829
        %v1855 = vpack.c.bf16 %v1832, %v1831
        %v1856 = vpack.c.bf16 %v1834, %v1833
        %v1857 = vpack.c.bf16 %v1836, %v1835
        %v1858 = vpack.c.bf16 %v1838, %v1837
        %v1859 = vpack.c.bf16 %v1840, %v1839
        %v1860 = vpack.c.bf16 %v1842, %v1841
        %v1861 = vpack.c.bf16 %v1844, %v1843
        %v1862 = vpack.c.bf16 %v1846, %v1845
        %v1863 = vpack.c.bf16 %v1848, %v1847
        %v1864 = vpack.c.bf16 %v1850, %v1849
        %v1865 = vpack.c.bf16 %v1852, %v1851
        %v1879 = vunpack.c.l.b16 %v1853
        %v1880 = vunpack.c.h.b16 %v1853
        %v1881 = vunpack.c.l.b16 %v1854
        %v1882 = vunpack.c.h.b16 %v1854
        %v1883 = vunpack.c.l.b16 %v1855
        %v1884 = vunpack.c.h.b16 %v1855
        %v1885 = vunpack.c.l.b16 %v1856
        %v1886 = vunpack.c.h.b16 %v1856
        %v1887 = vunpack.c.l.b16 %v1857
        %v1888 = vunpack.c.h.b16 %v1857
        %v1889 = vunpack.c.l.b16 %v1858
        %v1890 = vunpack.c.h.b16 %v1858
        %v1891 = vunpack.c.l.b16 %v1859
        %v1892 = vunpack.c.h.b16 %v1859
        %v1893 = vunpack.c.l.b16 %v1860
        %v1894 = vunpack.c.h.b16 %v1860
        %v1895 = vunpack.c.l.b16 %v1861
        %v1896 = vunpack.c.h.b16 %v1861
        %v1897 = vunpack.c.l.b16 %v1862
        %v1898 = vunpack.c.h.b16 %v1862
        %v1899 = vunpack.c.l.b16 %v1863
        %v1900 = vunpack.c.h.b16 %v1863
        %v1901 = vunpack.c.l.b16 %v1864
        %v1902 = vunpack.c.h.b16 %v1864
        %v1903 = vunpack.c.l.b16 %v1865
        %v1904 = vunpack.c.h.b16 %v1865
        %v1905 = vpack.c.b16 %v1879, %v1879
        %v1906 = vpack.c.b16 %v1880, %v1880
        %v1907 = vpack.c.b16 %v1881, %v1881
        %v1908 = vpack.c.b16 %v1882, %v1882
        %v1909 = vpack.c.b16 %v1883, %v1883
        %v1910 = vpack.c.b16 %v1884, %v1884
        %v1911 = vpack.c.b16 %v1885, %v1885
        %v1912 = vpack.c.b16 %v1886, %v1886
        %v1913 = vpack.c.b16 %v1887, %v1887
        %v1914 = vpack.c.b16 %v1888, %v1888
        %v1915 = vpack.c.b16 %v1889, %v1889
        %v1916 = vpack.c.b16 %v1890, %v1890
        %v1917 = vpack.c.b16 %v1891, %v1891
        %v1918 = vpack.c.b16 %v1892, %v1892
        %v1919 = vpack.c.b16 %v1893, %v1893
        %v1920 = vpack.c.b16 %v1894, %v1894
        %v1921 = vpack.c.b16 %v1895, %v1895
        %v1922 = vpack.c.b16 %v1896, %v1896
        %v1923 = vpack.c.b16 %v1897, %v1897
        %v1924 = vpack.c.b16 %v1898, %v1898
        %v1925 = vpack.c.b16 %v1899, %v1899
        %v1926 = vpack.c.b16 %v1900, %v1900
        %v1927 = vpack.c.b16 %v1901, %v1901
        %v1928 = vpack.c.b16 %v1902, %v1902
        %v1929 = vpack.c.b16 %v1903, %v1903
        %v1930 = vpack.c.b16 %v1904, %v1904
        %1957 = vst [vmem:[%s627] sm:$0xf] %v1905
        %1958 = vst [vmem:[%s627 + $0x4] sm:$0xf] %v1906
        %1959 = vst [vmem:[%s627 + $0x8] sm:$0xf] %v1907
        %1960 = vst [vmem:[%s627 + $0xc] sm:$0xf] %v1908
        %1961 = vst [vmem:[%s627 + $0x10] sm:$0xf] %v1909
        %1962 = vst [vmem:[%s627 + $0x14] sm:$0xf] %v1910
        %1963 = vst [vmem:[%s627 + $0x18] sm:$0xf] %v1911
        %1964 = vst [vmem:[%s627 + $0x1c] sm:$0xf] %v1912
        %1965 = vst [vmem:[%s627 + $0x20] sm:$0xf] %v1913
        %1966 = vst [vmem:[%s627 + $0x24] sm:$0xf] %v1914
        %1967 = vst [vmem:[%s627 + $0x28] sm:$0xf] %v1915
        %1968 = vst [vmem:[%s627 + $0x2c] sm:$0xf] %v1916
        %1969 = vst [vmem:[%s627 + $0x30] sm:$0xf] %v1917
        %1970 = vst [vmem:[%s627 + $0x34] sm:$0xf] %v1918
        %1971 = vst [vmem:[%s627 + $0x38] sm:$0xf] %v1919
        %1972 = vst [vmem:[%s627 + $0x3c] sm:$0xf] %v1920
        %1973 = vst [vmem:[%s627 + $0x40] sm:$0xf] %v1921
        %1974 = vst [vmem:[%s627 + $0x44] sm:$0xf] %v1922
        %1975 = vst [vmem:[%s627 + $0x48] sm:$0xf] %v1923
        %1976 = vst [vmem:[%s627 + $0x4c] sm:$0xf] %v1924
        %1977 = vst [vmem:[%s627 + $0x50] sm:$0xf] %v1925
        %1978 = vst [vmem:[%s627 + $0x54] sm:$0xf] %v1926
        %1979 = vst [vmem:[%s627 + $0x58] sm:$0xf] %v1927
        %1980 = vst [vmem:[%s627 + $0x5c] sm:$0xf] %v1928
        %1981 = vst [vmem:[%s627 + $0x60] sm:$0xf] %v1929
        %1982 = vst [vmem:[%s627 + $0x64] sm:$0xf] %v1930
        %s1983 = smul.u32 26, %s14
        %p1984 = scmp.lt.s32.totalorder %s1983, 51
        %s1985 = scalar_select %p1984, %s1983, 51
        %s1986 = smul.addr %s1985, 4
        %s1987 = scalar_lea.vmem %s3, %s1986
        // Predicated region
        $region74: #{net_forward.3} parent=68 // pred_check
          %p1988 = pneg %p100
        $region75: #{net_forward.3} parent=68 // pred_check_branch
          %1990 = sbr.rel (%p1988) target = $region77
        $region76: #{net_forward.3} parent=68 // pred_region
          %s1991 = smul.u32 26, %s14
        $region77: #{net_forward.3} parent=68 // pred_fallthru
          _
      $region69: #{net_forward.3} parent=5 // pred_fallthru
        _
      %p1992 = scmp.le.s32.totalorder 2, %s9
      // Predicated region
      $region78: #{net_forward.3} parent=5 // pred_check
        %p1993 = pneg %p1992
      $region79: #{net_forward.3} parent=5 // pred_check_branch
        %1995 = sbr.rel (%p1993) target = $region81
      $region80: #{net_forward.3} parent=5 // pred_region
        %s1996 = ssub.s32 %s9, 2
        // Predicated region
        $region82: #{net_forward.3} parent=80 // pred_check
          %p1997 = pneg %p106
        $region83: #{net_forward.3} parent=80 // pred_check_branch
          %1999 = sbr.rel (%p1997) target = $region85
        $region84: #{net_forward.3} parent=80 // pred_region
          %s2000 = smul.u32 26, %s15
          %p2001 = scmp.lt.s32.totalorder %s2000, 51
          %s2002 = scalar_select %p2001, %s2000, 51
          %s2003 = smul.addr %s2002, 4
          %s2004 = scalar_lea.vmem %s3, %s2003
        $region85: #{net_forward.3} parent=80 // pred_fallthru
          _
      $region81: #{net_forward.3} parent=5 // pred_fallthru
        _
    $region6: #{net_forward.3} parent=1 // loop_footer
      %s13 = sadd.s32 1, %s9
    $region7: #{net_forward.3} parent=1 // loop_footer_branch
      %8 = sbr.rel target = $region3
    $region8: #{net_forward.3} parent=1 // loop_exit
      _

// kernel: net_forward.4
$region0: #{net_forward.4}
  #allocation0 [shape = 'u32[]', space=smem, size = 0x4, offset = 0x4, fixed_abs, tag = 'smem constant byte address 0x4 - core index']
  #allocation1 [shape = 'u32[144,128]{1,0:T(1,128)}', space=vmem, size = 0x12000, scoped, tag = 'internal scratch']
  %s0 = inlined_call_operand.vmem [shape: bf16[4,112,144], index: 0, kind: input, shape index: {}]
  %s1 = inlined_call_operand.vmem [shape: bf16[144,128], index: 1, kind: input, shape index: {}]
  %s2 = inlined_call_operand.vmem [shape: f32[1,128], index: 2, kind: input, shape index: {}]
  %s3 = inlined_call_operand.vmem [shape: bf16[112,128], index: 3, kind: output, shape index: {}]
  %s4 = sld [smem:[#allocation0]]
  $region22: #{net_forward.4} parent=0
    _
  %s6 = ssub.s32 1, %s4
  %s7 = scalar_select 0, %s6, %s4
  // Predicated region
  $region2: #{net_forward.4} parent=0 // pred_check
    _
  $region3: #{net_forward.4} parent=0 // pred_check_branch
    %9 = sbr.rel (0) target = $region5
  $region4: #{net_forward.4} parent=0 // pred_region
    _
  $region5: #{net_forward.4} parent=0 // pred_fallthru
    _
  // Predicated region
  $region6: #{net_forward.4} parent=0 // pred_check
    _
  $region7: #{net_forward.4} parent=0 // pred_check_branch
    %11 = sbr.rel (0) target = $region9
  $region8: #{net_forward.4} parent=0 // pred_region
    _
  $region9: #{net_forward.4} parent=0 // pred_fallthru
    _
  // Predicated region
  $region10: #{net_forward.4} parent=0 // pred_check
    _
  $region11: #{net_forward.4} parent=0 // pred_check_branch
    %13 = sbr.rel (0) target = $region13
  $region12: #{net_forward.4} parent=0 // pred_region
    _
  $region13: #{net_forward.4} parent=0 // pred_fallthru
    _
  %v15 = vld [vmem:[%s1] sm:$0xf]
  %v16 = vld [vmem:[%s1 + $0x4] sm:$0xf]
  %v17 = vld [vmem:[%s1 + $0x8] sm:$0xf]
  %v18 = vld [vmem:[%s1 + $0xc] sm:$0xf]
  %v19 = vld [vmem:[%s1 + $0x10] sm:$0xf]
  %v20 = vld [vmem:[%s1 + $0x14] sm:$0xf]
  %v21 = vld [vmem:[%s1 + $0x18] sm:$0xf]
  %v22 = vld [vmem:[%s1 + $0x1c] sm:$0xf]
  %v23 = vld [vmem:[%s1 + $0x20] sm:$0xf]
  %v24 = vld [vmem:[%s1 + $0x24] sm:$0xf]
  %v25 = vld [vmem:[%s1 + $0x28] sm:$0xf]
  %v26 = vld [vmem:[%s1 + $0x2c] sm:$0xf]
  %v27 = vld [vmem:[%s1 + $0x30] sm:$0xf]
  %v28 = vld [vmem:[%s1 + $0x34] sm:$0xf]
  %v29 = vld [vmem:[%s1 + $0x38] sm:$0xf]
  %v30 = vld [vmem:[%s1 + $0x3c] sm:$0xf]
  %v31 = vld [vmem:[%s1 + $0x40] sm:$0xf]
  %v32 = vld [vmem:[%s1 + $0x44] sm:$0xf]
  %v33 = vld [vmem:[%s0] sm:$0xff]
  %v34 = vld [vmem:[%s0 + $0x8] sm:$0xff]
  %v35 = vld [vmem:[%s0 + $0x10] sm:$0xff]
  %v36 = vld [vmem:[%s0 + $0x18] sm:$0xff]
  %v37 = vld [vmem:[%s0 + $0x20] sm:$0xff]
  %v38 = vld [vmem:[%s0 + $0x28] sm:$0xff]
  %v39 = vld [vmem:[%s0 + $0x30] sm:$0xff]
  %v40 = vld [vmem:[%s0 + $0x38] sm:$0xff]
  %v41 = vld [vmem:[%s0 + $0x40] sm:$0xff]
  %v42 = vld [vmem:[%s0 + $0x48] sm:$0xff]
  %v43 = vld [vmem:[%s0 + $0x50] sm:$0xff]
  %v44 = vld [vmem:[%s0 + $0x58] sm:$0xff]
  %v45 = vld [vmem:[%s0 + $0x60] sm:$0xff]
  %v46 = vld [vmem:[%s0 + $0x68] sm:$0xff]
  %v61 = vunpack.c.l.b16 %v33
  %v62 = vunpack.c.h.b16 %v33
  %v63 = vunpack.c.l.b16 %v34
  %v64 = vunpack.c.h.b16 %v34
  %v65 = vunpack.c.l.b16 %v35
  %v66 = vunpack.c.h.b16 %v35
  %v67 = vunpack.c.l.b16 %v36
  %v68 = vunpack.c.h.b16 %v36
  %v69 = vunpack.c.l.b16 %v37
  %v70 = vunpack.c.h.b16 %v37
  %v71 = vunpack.c.l.b16 %v38
  %v72 = vunpack.c.h.b16 %v38
  %v73 = vunpack.c.l.b16 %v39
  %v74 = vunpack.c.h.b16 %v39
  %v75 = vunpack.c.l.b16 %v40
  %v76 = vunpack.c.h.b16 %v40
  %v77 = vunpack.c.l.b16 %v41
  %v78 = vunpack.c.h.b16 %v41
  %v79 = vunpack.c.l.b16 %v42
  %v80 = vunpack.c.h.b16 %v42
  %v81 = vunpack.c.l.b16 %v43
  %v82 = vunpack.c.h.b16 %v43
  %v83 = vunpack.c.l.b16 %v44
  %v84 = vunpack.c.h.b16 %v44
  %v85 = vunpack.c.l.b16 %v45
  %v86 = vunpack.c.h.b16 %v45
  %v87 = vunpack.c.l.b16 %v46
  %v88 = vunpack.c.h.b16 %v46
  %v89 = vpack.c.b16 %v63, %v61
  %v90 = vpack.c.b16 %v64, %v62
  %v91 = vpack.c.b16 %v67, %v65
  %v92 = vpack.c.b16 %v68, %v66
  %v93 = vpack.c.b16 %v71, %v69
  %v94 = vpack.c.b16 %v72, %v70
  %v95 = vpack.c.b16 %v75, %v73
  %v96 = vpack.c.b16 %v76, %v74
  %v97 = vpack.c.b16 %v79, %v77
  %v98 = vpack.c.b16 %v80, %v78
  %v99 = vpack.c.b16 %v83, %v81
  %v100 = vpack.c.b16 %v84, %v82
  %v101 = vpack.c.b16 %v87, %v85
  %v102 = vpack.c.b16 %v88, %v86
  %v128 = vunpack.c.l.b16 %v15
  %v129 = vunpack.c.l.b16 %v16
  %v130 = vunpack.c.l.b16 %v17
  %v131 = vunpack.c.l.b16 %v18
  %v132 = vunpack.c.l.b16 %v19
  %v133 = vunpack.c.l.b16 %v20
  %v134 = vunpack.c.l.b16 %v21
  %v135 = vunpack.c.l.b16 %v22
  %v136 = vunpack.c.l.b16 %v23
  %v137 = vunpack.c.l.b16 %v24
  %v138 = vunpack.c.l.b16 %v25
  %v139 = vunpack.c.l.b16 %v26
  %v140 = vunpack.c.l.b16 %v27
  %v141 = vunpack.c.l.b16 %v28
  %v142 = vunpack.c.l.b16 %v29
  %v143 = vunpack.c.l.b16 %v30
  %v144 = vunpack.c.l.b16 %v31
  %v145 = vunpack.c.l.b16 %v32
  %v146 = vpack.c.b16 %v129, %v128
  %v147 = vpack.c.b16 %v131, %v130
  %v148 = vpack.c.b16 %v133, %v132
  %v149 = vpack.c.b16 %v135, %v134
  %v150 = vpack.c.b16 %v137, %v136
  %v151 = vpack.c.b16 %v139, %v138
  %v152 = vpack.c.b16 %v141, %v140
  %v153 = vpack.c.b16 %v143, %v142
  %v154 = vpack.c.b16 %v145, %v144
  %vm164 = vcmask 130048
  %v166 = vsel %vm164, %v90, 0
  %v169 = vsel %vm164, %v92, 0
  %v172 = vsel %vm164, %v94, 0
  %v175 = vsel %vm164, %v96, 0
  %v178 = vsel %vm164, %v98, 0
  %v181 = vsel %vm164, %v100, 0
  %v184 = vsel %vm164, %v102, 0
  %186 = vmatprep.subr.bf16.mxu0 0
  %187 = vmatpush1.bf16.msra.mxu0 %v153
  %188 = vmatprep.subr.bf16.mxu0 0
  %189 = vmatpush1.bf16.msra.mxu0 %v152
  %190 = vmatprep.subr.bf16.mxu0 0
  %191 = vmatpush1.bf16.msra.mxu0 %v151
  %192 = vmatprep.subr.bf16.mxu0 0
  %193 = vmatpush1.bf16.msra.mxu0 %v150
  %194 = vmatprep.subr.bf16.mxu0 0
  %195 = vmatpush1.bf16.msra.mxu0 %v149
  %196 = vmatprep.subr.bf16.mxu0 0
  %197 = vmatpush1.bf16.msra.mxu0 %v148
  %198 = vmatprep.subr.bf16.mxu0 0
  %199 = vmatpush1.bf16.msra.mxu0 %v147
  %200 = vmatprep.subr.bf16.mxu0 0
  %201 = vmatpush1.bf16.msra.mxu0 %v146
  %202 = vmatprep.subr.bf16.mxu0 0
  %203 = vmatpush2.bf16.msra.mxu0 0
  %204 = vmatprep.subr.bf16.mxu0 0
  %205 = vmatpush2.bf16.msra.mxu0 0
  %206 = vmatprep.subr.bf16.mxu0 0
  %207 = vmatpush2.bf16.msra.mxu0 0
  %208 = vmatprep.subr.bf16.mxu0 0
  %209 = vmatpush2.bf16.msra.mxu0 0
  %210 = vmatprep.subr.bf16.mxu0 0
  %211 = vmatpush2.bf16.msra.mxu0 0
  %212 = vmatprep.subr.bf16.mxu0 0
  %213 = vmatpush2.bf16.msra.mxu0 0
  %214 = vmatprep.subr.bf16.mxu0 0
  %215 = vmatpush2.bf16.msra.mxu0 0
  %216 = vmatprep.subr.bf16.mxu0 0
  %217 = vmatpush2.bf16.msra.mxu0 %v154
  %218 = vmatprep.mubr.bf16.mxu0 %v166
  %219 = vmatmul.mubr.bf16.gmra.mxu0 %v89
  %v220 = vpop.f32.mrf.mxu0
  %v221 = vadd.f32 0.0, %v220
  %v222 = vpop.f32.mrf.mxu0
  %v223 = vpop.f32.mrf.mxu0
  %v224 = vadd.f32 0.0, %v223
  %v225 = vpop.f32.mrf.mxu0
  %226 = vmatprep.mubr.bf16.mxu0 %v169
  %227 = vmatmul.mubr.bf16.gmra.mxu0 %v91
  %v228 = vpop.f32.mrf.mxu0
  %v229 = vadd.f32 0.0, %v228
  %v230 = vpop.f32.mrf.mxu0
  %v231 = vpop.f32.mrf.mxu0
  %v232 = vadd.f32 0.0, %v231
  %v233 = vpop.f32.mrf.mxu0
  %234 = vmatprep.mubr.bf16.mxu0 %v172
  %235 = vmatmul.mubr.bf16.gmra.mxu0 %v93
  %v236 = vpop.f32.mrf.mxu0
  %v237 = vadd.f32 0.0, %v236
  %v238 = vpop.f32.mrf.mxu0
  %v239 = vpop.f32.mrf.mxu0
  %v240 = vadd.f32 0.0, %v239
  %v241 = vpop.f32.mrf.mxu0
  %242 = vmatprep.mubr.bf16.mxu0 %v175
  %243 = vmatmul.mubr.bf16.gmra.mxu0 %v95
  %v244 = vpop.f32.mrf.mxu0
  %v245 = vadd.f32 0.0, %v244
  %v246 = vpop.f32.mrf.mxu0
  %v247 = vpop.f32.mrf.mxu0
  %v248 = vadd.f32 0.0, %v247
  %v249 = vpop.f32.mrf.mxu0
  %250 = vmatprep.mubr.bf16.mxu0 %v178
  %251 = vmatmul.mubr.bf16.gmra.mxu0 %v97
  %v252 = vpop.f32.mrf.mxu0
  %v253 = vadd.f32 0.0, %v252
  %v254 = vpop.f32.mrf.mxu0
  %v255 = vpop.f32.mrf.mxu0
  %v256 = vadd.f32 0.0, %v255
  %v257 = vpop.f32.mrf.mxu0
  %258 = vmatprep.mubr.bf16.mxu0 %v181
  %259 = vmatmul.mubr.bf16.gmra.mxu0 %v99
  %v260 = vpop.f32.mrf.mxu0
  %v261 = vadd.f32 0.0, %v260
  %v262 = vpop.f32.mrf.mxu0
  %v263 = vpop.f32.mrf.mxu0
  %v264 = vadd.f32 0.0, %v263
  %v265 = vpop.f32.mrf.mxu0
  %266 = vmatprep.mubr.bf16.mxu0 %v184
  %267 = vmatmul.mubr.bf16.gmra.mxu0 %v101
  %v268 = vpop.f32.mrf.mxu0
  %v269 = vadd.f32 0.0, %v268
  %v270 = vpop.f32.mrf.mxu0
  %v271 = vpop.f32.mrf.mxu0
  %v272 = vadd.f32 0.0, %v271
  %v273 = vpop.f32.mrf.mxu0
  %274 = vdwg.mxu0
  %s275 = scalar_lea.vmem %s0, 112
  %v276 = vld [vmem:[%s275] sm:$0xff]
  %v277 = vld [vmem:[%s275 + $0x8] sm:$0xff]
  %v278 = vld [vmem:[%s275 + $0x10] sm:$0xff]
  %v279 = vld [vmem:[%s275 + $0x18] sm:$0xff]
  %v280 = vld [vmem:[%s275 + $0x20] sm:$0xff]
  %v281 = vld [vmem:[%s275 + $0x28] sm:$0xff]
  %v282 = vld [vmem:[%s275 + $0x30] sm:$0xff]
  %v283 = vld [vmem:[%s275 + $0x38] sm:$0xff]
  %v284 = vld [vmem:[%s275 + $0x40] sm:$0xff]
  %v285 = vld [vmem:[%s275 + $0x48] sm:$0xff]
  %v286 = vld [vmem:[%s275 + $0x50] sm:$0xff]
  %v287 = vld [vmem:[%s275 + $0x58] sm:$0xff]
  %v288 = vld [vmem:[%s275 + $0x60] sm:$0xff]
  %v289 = vld [vmem:[%s275 + $0x68] sm:$0xff]
  %v304 = vunpack.c.l.b16 %v276
  %v305 = vunpack.c.h.b16 %v276
  %v306 = vunpack.c.l.b16 %v277
  %v307 = vunpack.c.h.b16 %v277
  %v308 = vunpack.c.l.b16 %v278
  %v309 = vunpack.c.h.b16 %v278
  %v310 = vunpack.c.l.b16 %v279
  %v311 = vunpack.c.h.b16 %v279
  %v312 = vunpack.c.l.b16 %v280
  %v313 = vunpack.c.h.b16 %v280
  %v314 = vunpack.c.l.b16 %v281
  %v315 = vunpack.c.h.b16 %v281
  %v316 = vunpack.c.l.b16 %v282
  %v317 = vunpack.c.h.b16 %v282
  %v318 = vunpack.c.l.b16 %v283
  %v319 = vunpack.c.h.b16 %v283
  %v320 = vunpack.c.l.b16 %v284
  %v321 = vunpack.c.h.b16 %v284
  %v322 = vunpack.c.l.b16 %v285
  %v323 = vunpack.c.h.b16 %v285
  %v324 = vunpack.c.l.b16 %v286
  %v325 = vunpack.c.h.b16 %v286
  %v326 = vunpack.c.l.b16 %v287
  %v327 = vunpack.c.h.b16 %v287
  %v328 = vunpack.c.l.b16 %v288
  %v329 = vunpack.c.h.b16 %v288
  %v330 = vunpack.c.l.b16 %v289
  %v331 = vunpack.c.h.b16 %v289
  %v332 = vpack.c.b16 %v306, %v304
  %v333 = vpack.c.b16 %v307, %v305
  %v334 = vpack.c.b16 %v310, %v308
  %v335 = vpack.c.b16 %v311, %v309
  %v336 = vpack.c.b16 %v314, %v312
  %v337 = vpack.c.b16 %v315, %v313
  %v338 = vpack.c.b16 %v318, %v316
  %v339 = vpack.c.b16 %v319, %v317
  %v340 = vpack.c.b16 %v322, %v320
  %v341 = vpack.c.b16 %v323, %v321
  %v342 = vpack.c.b16 %v326, %v324
  %v343 = vpack.c.b16 %v327, %v325
  %v344 = vpack.c.b16 %v330, %v328
  %v345 = vpack.c.b16 %v331, %v329
  %v354 = vsel %vm164, %v333, 0
  %v357 = vsel %vm164, %v335, 0
  %v360 = vsel %vm164, %v337, 0
  %v363 = vsel %vm164, %v339, 0
  %v366 = vsel %vm164, %v341, 0
  %v369 = vsel %vm164, %v343, 0
  %v372 = vsel %vm164, %v345, 0
  %374 = vmatprep.subr.bf16.mxu0 0
  %375 = vmatpush1.bf16.msra.mxu0 %v153
  %376 = vmatprep.subr.bf16.mxu0 0
  %377 = vmatpush1.bf16.msra.mxu0 %v152
  %378 = vmatprep.subr.bf16.mxu0 0
  %379 = vmatpush1.bf16.msra.mxu0 %v151
  %380 = vmatprep.subr.bf16.mxu0 0
  %381 = vmatpush1.bf16.msra.mxu0 %v150
  %382 = vmatprep.subr.bf16.mxu0 0
  %383 = vmatpush1.bf16.msra.mxu0 %v149
  %384 = vmatprep.subr.bf16.mxu0 0
  %385 = vmatpush1.bf16.msra.mxu0 %v148
  %386 = vmatprep.subr.bf16.mxu0 0
  %387 = vmatpush1.bf16.msra.mxu0 %v147
  %388 = vmatprep.subr.bf16.mxu0 0
  %389 = vmatpush1.bf16.msra.mxu0 %v146
  %390 = vmatprep.subr.bf16.mxu0 0
  %391 = vmatpush2.bf16.msra.mxu0 0
  %392 = vmatprep.subr.bf16.mxu0 0
  %393 = vmatpush2.bf16.msra.mxu0 0
  %394 = vmatprep.subr.bf16.mxu0 0
  %395 = vmatpush2.bf16.msra.mxu0 0
  %396 = vmatprep.subr.bf16.mxu0 0
  %397 = vmatpush2.bf16.msra.mxu0 0
  %398 = vmatprep.subr.bf16.mxu0 0
  %399 = vmatpush2.bf16.msra.mxu0 0
  %400 = vmatprep.subr.bf16.mxu0 0
  %401 = vmatpush2.bf16.msra.mxu0 0
  %402 = vmatprep.subr.bf16.mxu0 0
  %403 = vmatpush2.bf16.msra.mxu0 0
  %404 = vmatprep.subr.bf16.mxu0 0
  %405 = vmatpush2.bf16.msra.mxu0 %v154
  %406 = vmatprep.mubr.bf16.mxu0 %v354
  %407 = vmatmul.mubr.bf16.gmra.mxu0 %v332
  %v408 = vpop.f32.mrf.mxu0
  %v409 = vadd.f32 0.0, %v408
  %v410 = vpop.f32.mrf.mxu0
  %v411 = vpop.f32.mrf.mxu0
  %v412 = vadd.f32 0.0, %v411
  %v413 = vpop.f32.mrf.mxu0
  %414 = vmatprep.mubr.bf16.mxu0 %v357
  %415 = vmatmul.mubr.bf16.gmra.mxu0 %v334
  %v416 = vpop.f32.mrf.mxu0
  %v417 = vadd.f32 0.0, %v416
  %v418 = vpop.f32.mrf.mxu0
  %v419 = vpop.f32.mrf.mxu0
  %v420 = vadd.f32 0.0, %v419
  %v421 = vpop.f32.mrf.mxu0
  %422 = vmatprep.mubr.bf16.mxu0 %v360
  %423 = vmatmul.mubr.bf16.gmra.mxu0 %v336
  %v424 = vpop.f32.mrf.mxu0
  %v425 = vadd.f32 0.0, %v424
  %v426 = vpop.f32.mrf.mxu0
  %v427 = vpop.f32.mrf.mxu0
  %v428 = vadd.f32 0.0, %v427
  %v429 = vpop.f32.mrf.mxu0
  %430 = vmatprep.mubr.bf16.mxu0 %v363
  %431 = vmatmul.mubr.bf16.gmra.mxu0 %v338
  %v432 = vpop.f32.mrf.mxu0
  %v433 = vadd.f32 0.0, %v432
  %v434 = vpop.f32.mrf.mxu0
  %v435 = vpop.f32.mrf.mxu0
  %v436 = vadd.f32 0.0, %v435
  %v437 = vpop.f32.mrf.mxu0
  %438 = vmatprep.mubr.bf16.mxu0 %v366
  %439 = vmatmul.mubr.bf16.gmra.mxu0 %v340
  %v440 = vpop.f32.mrf.mxu0
  %v441 = vadd.f32 0.0, %v440
  %v442 = vpop.f32.mrf.mxu0
  %v443 = vpop.f32.mrf.mxu0
  %v444 = vadd.f32 0.0, %v443
  %v445 = vpop.f32.mrf.mxu0
  %446 = vmatprep.mubr.bf16.mxu0 %v369
  %447 = vmatmul.mubr.bf16.gmra.mxu0 %v342
  %v448 = vpop.f32.mrf.mxu0
  %v449 = vadd.f32 0.0, %v448
  %v450 = vpop.f32.mrf.mxu0
  %v451 = vpop.f32.mrf.mxu0
  %v452 = vadd.f32 0.0, %v451
  %v453 = vpop.f32.mrf.mxu0
  %454 = vmatprep.mubr.bf16.mxu0 %v372
  %455 = vmatmul.mubr.bf16.gmra.mxu0 %v344
  %v456 = vpop.f32.mrf.mxu0
  %v457 = vadd.f32 0.0, %v456
  %v458 = vpop.f32.mrf.mxu0
  %v459 = vpop.f32.mrf.mxu0
  %v460 = vadd.f32 0.0, %v459
  %v461 = vpop.f32.mrf.mxu0
  %462 = vdwg.mxu0
  %v463 = vmax.f32 %v221, %v409
  %v464 = vmax.f32 %v224, %v412
  %v465 = vmax.f32 %v229, %v417
  %v466 = vmax.f32 %v232, %v420
  %v467 = vmax.f32 %v237, %v425
  %v468 = vmax.f32 %v240, %v428
  %v469 = vmax.f32 %v245, %v433
  %v470 = vmax.f32 %v248, %v436
  %v471 = vmax.f32 %v253, %v441
  %v472 = vmax.f32 %v256, %v444
  %v473 = vmax.f32 %v261, %v449
  %v474 = vmax.f32 %v264, %v452
  %v475 = vmax.f32 %v269, %v457
  %v476 = vmax.f32 %v272, %v460
  %s477 = scalar_lea.vmem %s0, 224
  %v478 = vld [vmem:[%s477] sm:$0xff]
  %v479 = vld [vmem:[%s477 + $0x8] sm:$0xff]
  %v480 = vld [vmem:[%s477 + $0x10] sm:$0xff]
  %v481 = vld [vmem:[%s477 + $0x18] sm:$0xff]
  %v482 = vld [vmem:[%s477 + $0x20] sm:$0xff]
  %v483 = vld [vmem:[%s477 + $0x28] sm:$0xff]
  %v484 = vld [vmem:[%s477 + $0x30] sm:$0xff]
  %v485 = vld [vmem:[%s477 + $0x38] sm:$0xff]
  %v486 = vld [vmem:[%s477 + $0x40] sm:$0xff]
  %v487 = vld [vmem:[%s477 + $0x48] sm:$0xff]
  %v488 = vld [vmem:[%s477 + $0x50] sm:$0xff]
  %v489 = vld [vmem:[%s477 + $0x58] sm:$0xff]
  %v490 = vld [vmem:[%s477 + $0x60] sm:$0xff]
  %v491 = vld [vmem:[%s477 + $0x68] sm:$0xff]
  %v506 = vunpack.c.l.b16 %v478
  %v507 = vunpack.c.h.b16 %v478
  %v508 = vunpack.c.l.b16 %v479
  %v509 = vunpack.c.h.b16 %v479
  %v510 = vunpack.c.l.b16 %v480
  %v511 = vunpack.c.h.b16 %v480
  %v512 = vunpack.c.l.b16 %v481
  %v513 = vunpack.c.h.b16 %v481
  %v514 = vunpack.c.l.b16 %v482
  %v515 = vunpack.c.h.b16 %v482
  %v516 = vunpack.c.l.b16 %v483
  %v517 = vunpack.c.h.b16 %v483
  %v518 = vunpack.c.l.b16 %v484
  %v519 = vunpack.c.h.b16 %v484
  %v520 = vunpack.c.l.b16 %v485
  %v521 = vunpack.c.h.b16 %v485
  %v522 = vunpack.c.l.b16 %v486
  %v523 = vunpack.c.h.b16 %v486
  %v524 = vunpack.c.l.b16 %v487
  %v525 = vunpack.c.h.b16 %v487
  %v526 = vunpack.c.l.b16 %v488
  %v527 = vunpack.c.h.b16 %v488
  %v528 = vunpack.c.l.b16 %v489
  %v529 = vunpack.c.h.b16 %v489
  %v530 = vunpack.c.l.b16 %v490
  %v531 = vunpack.c.h.b16 %v490
  %v532 = vunpack.c.l.b16 %v491
  %v533 = vunpack.c.h.b16 %v491
  %v534 = vpack.c.b16 %v508, %v506
  %v535 = vpack.c.b16 %v509, %v507
  %v536 = vpack.c.b16 %v512, %v510
  %v537 = vpack.c.b16 %v513, %v511
  %v538 = vpack.c.b16 %v516, %v514
  %v539 = vpack.c.b16 %v517, %v515
  %v540 = vpack.c.b16 %v520, %v518
  %v541 = vpack.c.b16 %v521, %v519
  %v542 = vpack.c.b16 %v524, %v522
  %v543 = vpack.c.b16 %v525, %v523
  %v544 = vpack.c.b16 %v528, %v526
  %v545 = vpack.c.b16 %v529, %v527
  %v546 = vpack.c.b16 %v532, %v530
  %v547 = vpack.c.b16 %v533, %v531
  %v556 = vsel %vm164, %v535, 0
  %v559 = vsel %vm164, %v537, 0
  %v562 = vsel %vm164, %v539, 0
  %v565 = vsel %vm164, %v541, 0
  %v568 = vsel %vm164, %v543, 0
  %v571 = vsel %vm164, %v545, 0
  %v574 = vsel %vm164, %v547, 0
  %576 = vmatprep.subr.bf16.mxu0 0
  %577 = vmatpush1.bf16.msra.mxu0 %v153
  %578 = vmatprep.subr.bf16.mxu0 0
  %579 = vmatpush1.bf16.msra.mxu0 %v152
  %580 = vmatprep.subr.bf16.mxu0 0
  %581 = vmatpush1.bf16.msra.mxu0 %v151
  %582 = vmatprep.subr.bf16.mxu0 0
  %583 = vmatpush1.bf16.msra.mxu0 %v150
  %584 = vmatprep.subr.bf16.mxu0 0
  %585 = vmatpush1.bf16.msra.mxu0 %v149
  %586 = vmatprep.subr.bf16.mxu0 0
  %587 = vmatpush1.bf16.msra.mxu0 %v148
  %588 = vmatprep.subr.bf16.mxu0 0
  %589 = vmatpush1.bf16.msra.mxu0 %v147
  %590 = vmatprep.subr.bf16.mxu0 0
  %591 = vmatpush1.bf16.msra.mxu0 %v146
  %592 = vmatprep.subr.bf16.mxu0 0
  %593 = vmatpush2.bf16.msra.mxu0 0
  %594 = vmatprep.subr.bf16.mxu0 0
  %595 = vmatpush2.bf16.msra.mxu0 0
  %596 = vmatprep.subr.bf16.mxu0 0
  %597 = vmatpush2.bf16.msra.mxu0 0
  %598 = vmatprep.subr.bf16.mxu0 0
  %599 = vmatpush2.bf16.msra.mxu0 0
  %600 = vmatprep.subr.bf16.mxu0 0
  %601 = vmatpush2.bf16.msra.mxu0 0
  %602 = vmatprep.subr.bf16.mxu0 0
  %603 = vmatpush2.bf16.msra.mxu0 0
  %604 = vmatprep.subr.bf16.mxu0 0
  %605 = vmatpush2.bf16.msra.mxu0 0
  %606 = vmatprep.subr.bf16.mxu0 0
  %607 = vmatpush2.bf16.msra.mxu0 %v154
  %608 = vmatprep.mubr.bf16.mxu0 %v556
  %609 = vmatmul.mubr.bf16.gmra.mxu0 %v534
  %v610 = vpop.f32.mrf.mxu0
  %v611 = vadd.f32 0.0, %v610
  %v612 = vpop.f32.mrf.mxu0
  %v613 = vpop.f32.mrf.mxu0
  %v614 = vadd.f32 0.0, %v613
  %v615 = vpop.f32.mrf.mxu0
  %616 = vmatprep.mubr.bf16.mxu0 %v559
  %617 = vmatmul.mubr.bf16.gmra.mxu0 %v536
  %v618 = vpop.f32.mrf.mxu0
  %v619 = vadd.f32 0.0, %v618
  %v620 = vpop.f32.mrf.mxu0
  %v621 = vpop.f32.mrf.mxu0
  %v622 = vadd.f32 0.0, %v621
  %v623 = vpop.f32.mrf.mxu0
  %624 = vmatprep.mubr.bf16.mxu0 %v562
  %625 = vmatmul.mubr.bf16.gmra.mxu0 %v538
  %v626 = vpop.f32.mrf.mxu0
  %v627 = vadd.f32 0.0, %v626
  %v628 = vpop.f32.mrf.mxu0
  %v629 = vpop.f32.mrf.mxu0
  %v630 = vadd.f32 0.0, %v629
  %v631 = vpop.f32.mrf.mxu0
  %632 = vmatprep.mubr.bf16.mxu0 %v565
  %633 = vmatmul.mubr.bf16.gmra.mxu0 %v540
  %v634 = vpop.f32.mrf.mxu0
  %v635 = vadd.f32 0.0, %v634
  %v636 = vpop.f32.mrf.mxu0
  %v637 = vpop.f32.mrf.mxu0
  %v638 = vadd.f32 0.0, %v637
  %v639 = vpop.f32.mrf.mxu0
  %640 = vmatprep.mubr.bf16.mxu0 %v568
  %641 = vmatmul.mubr.bf16.gmra.mxu0 %v542
  %v642 = vpop.f32.mrf.mxu0
  %v643 = vadd.f32 0.0, %v642
  %v644 = vpop.f32.mrf.mxu0
  %v645 = vpop.f32.mrf.mxu0
  %v646 = vadd.f32 0.0, %v645
  %v647 = vpop.f32.mrf.mxu0
  %648 = vmatprep.mubr.bf16.mxu0 %v571
  %649 = vmatmul.mubr.bf16.gmra.mxu0 %v544
  %v650 = vpop.f32.mrf.mxu0
  %v651 = vadd.f32 0.0, %v650
  %v652 = vpop.f32.mrf.mxu0
  %v653 = vpop.f32.mrf.mxu0
  %v654 = vadd.f32 0.0, %v653
  %v655 = vpop.f32.mrf.mxu0
  %656 = vmatprep.mubr.bf16.mxu0 %v574
  %657 = vmatmul.mubr.bf16.gmra.mxu0 %v546
  %v658 = vpop.f32.mrf.mxu0
  %v659 = vadd.f32 0.0, %v658
  %v660 = vpop.f32.mrf.mxu0
  %v661 = vpop.f32.mrf.mxu0
  %v662 = vadd.f32 0.0, %v661
  %v663 = vpop.f32.mrf.mxu0
  %664 = vdwg.mxu0
  %v665 = vmax.f32 %v463, %v611
  %v666 = vmax.f32 %v464, %v614
  %v667 = vmax.f32 %v465, %v619
  %v668 = vmax.f32 %v466, %v622
  %v669 = vmax.f32 %v467, %v627
  %v670 = vmax.f32 %v468, %v630
  %v671 = vmax.f32 %v469, %v635
  %v672 = vmax.f32 %v470, %v638
  %v673 = vmax.f32 %v471, %v643
  %v674 = vmax.f32 %v472, %v646
  %v675 = vmax.f32 %v473, %v651
  %v676 = vmax.f32 %v474, %v654
  %v677 = vmax.f32 %v475, %v659
  %v678 = vmax.f32 %v476, %v662
  %s679 = scalar_lea.vmem %s0, 336
  %v680 = vld [vmem:[%s679] sm:$0xff]
  %v681 = vld [vmem:[%s679 + $0x8] sm:$0xff]
  %v682 = vld [vmem:[%s679 + $0x10] sm:$0xff]
  %v683 = vld [vmem:[%s679 + $0x18] sm:$0xff]
  %v684 = vld [vmem:[%s679 + $0x20] sm:$0xff]
  %v685 = vld [vmem:[%s679 + $0x28] sm:$0xff]
  %v686 = vld [vmem:[%s679 + $0x30] sm:$0xff]
  %v687 = vld [vmem:[%s679 + $0x38] sm:$0xff]
  %v688 = vld [vmem:[%s679 + $0x40] sm:$0xff]
  %v689 = vld [vmem:[%s679 + $0x48] sm:$0xff]
  %v690 = vld [vmem:[%s679 + $0x50] sm:$0xff]
  %v691 = vld [vmem:[%s679 + $0x58] sm:$0xff]
  %v692 = vld [vmem:[%s679 + $0x60] sm:$0xff]
  %v693 = vld [vmem:[%s679 + $0x68] sm:$0xff]
  %v708 = vunpack.c.l.b16 %v680
  %v709 = vunpack.c.h.b16 %v680
  %v710 = vunpack.c.l.b16 %v681
  %v711 = vunpack.c.h.b16 %v681
  %v712 = vunpack.c.l.b16 %v682
  %v713 = vunpack.c.h.b16 %v682
  %v714 = vunpack.c.l.b16 %v683
  %v715 = vunpack.c.h.b16 %v683
  %v716 = vunpack.c.l.b16 %v684
  %v717 = vunpack.c.h.b16 %v684
  %v718 = vunpack.c.l.b16 %v685
  %v719 = vunpack.c.h.b16 %v685
  %v720 = vunpack.c.l.b16 %v686
  %v721 = vunpack.c.h.b16 %v686
  %v722 = vunpack.c.l.b16 %v687
  %v723 = vunpack.c.h.b16 %v687
  %v724 = vunpack.c.l.b16 %v688
  %v725 = vunpack.c.h.b16 %v688
  %v726 = vunpack.c.l.b16 %v689
  %v727 = vunpack.c.h.b16 %v689
  %v728 = vunpack.c.l.b16 %v690
  %v729 = vunpack.c.h.b16 %v690
  %v730 = vunpack.c.l.b16 %v691
  %v731 = vunpack.c.h.b16 %v691
  %v732 = vunpack.c.l.b16 %v692
  %v733 = vunpack.c.h.b16 %v692
  %v734 = vunpack.c.l.b16 %v693
  %v735 = vunpack.c.h.b16 %v693
  %v736 = vpack.c.b16 %v710, %v708
  %v737 = vpack.c.b16 %v711, %v709
  %v738 = vpack.c.b16 %v714, %v712
  %v739 = vpack.c.b16 %v715, %v713
  %v740 = vpack.c.b16 %v718, %v716
  %v741 = vpack.c.b16 %v719, %v717
  %v742 = vpack.c.b16 %v722, %v720
  %v743 = vpack.c.b16 %v723, %v721
  %v744 = vpack.c.b16 %v726, %v724
  %v745 = vpack.c.b16 %v727, %v725
  %v746 = vpack.c.b16 %v730, %v728
  %v747 = vpack.c.b16 %v731, %v729
  %v748 = vpack.c.b16 %v734, %v732
  %v749 = vpack.c.b16 %v735, %v733
  %v758 = vsel %vm164, %v737, 0
  %v761 = vsel %vm164, %v739, 0
  %v764 = vsel %vm164, %v741, 0
  %v767 = vsel %vm164, %v743, 0
  %v770 = vsel %vm164, %v745, 0
  %v773 = vsel %vm164, %v747, 0
  %v776 = vsel %vm164, %v749, 0
  %778 = vmatprep.subr.bf16.mxu0 0
  %779 = vmatpush1.bf16.msra.mxu0 %v153
  %780 = vmatprep.subr.bf16.mxu0 0
  %781 = vmatpush1.bf16.msra.mxu0 %v152
  %782 = vmatprep.subr.bf16.mxu0 0
  %783 = vmatpush1.bf16.msra.mxu0 %v151
  %784 = vmatprep.subr.bf16.mxu0 0
  %785 = vmatpush1.bf16.msra.mxu0 %v150
  %786 = vmatprep.subr.bf16.mxu0 0
  %787 = vmatpush1.bf16.msra.mxu0 %v149
  %788 = vmatprep.subr.bf16.mxu0 0
  %789 = vmatpush1.bf16.msra.mxu0 %v148
  %790 = vmatprep.subr.bf16.mxu0 0
  %791 = vmatpush1.bf16.msra.mxu0 %v147
  %792 = vmatprep.subr.bf16.mxu0 0
  %793 = vmatpush1.bf16.msra.mxu0 %v146
  %794 = vmatprep.subr.bf16.mxu0 0
  %795 = vmatpush2.bf16.msra.mxu0 0
  %796 = vmatprep.subr.bf16.mxu0 0
  %797 = vmatpush2.bf16.msra.mxu0 0
  %798 = vmatprep.subr.bf16.mxu0 0
  %799 = vmatpush2.bf16.msra.mxu0 0
  %800 = vmatprep.subr.bf16.mxu0 0
  %801 = vmatpush2.bf16.msra.mxu0 0
  %802 = vmatprep.subr.bf16.mxu0 0
  %803 = vmatpush2.bf16.msra.mxu0 0
  %804 = vmatprep.subr.bf16.mxu0 0
  %805 = vmatpush2.bf16.msra.mxu0 0
  %806 = vmatprep.subr.bf16.mxu0 0
  %807 = vmatpush2.bf16.msra.mxu0 0
  %808 = vmatprep.subr.bf16.mxu0 0
  %809 = vmatpush2.bf16.msra.mxu0 %v154
  %810 = vmatprep.mubr.bf16.mxu0 %v758
  %811 = vmatmul.mubr.bf16.gmra.mxu0 %v736
  %v812 = vpop.f32.mrf.mxu0
  %v813 = vadd.f32 0.0, %v812
  %v814 = vpop.f32.mrf.mxu0
  %v815 = vpop.f32.mrf.mxu0
  %v816 = vadd.f32 0.0, %v815
  %v817 = vpop.f32.mrf.mxu0
  %818 = vmatprep.mubr.bf16.mxu0 %v761
  %819 = vmatmul.mubr.bf16.gmra.mxu0 %v738
  %v820 = vpop.f32.mrf.mxu0
  %v821 = vadd.f32 0.0, %v820
  %v822 = vpop.f32.mrf.mxu0
  %v823 = vpop.f32.mrf.mxu0
  %v824 = vadd.f32 0.0, %v823
  %v825 = vpop.f32.mrf.mxu0
  %826 = vmatprep.mubr.bf16.mxu0 %v764
  %827 = vmatmul.mubr.bf16.gmra.mxu0 %v740
  %v828 = vpop.f32.mrf.mxu0
  %v829 = vadd.f32 0.0, %v828
  %v830 = vpop.f32.mrf.mxu0
  %v831 = vpop.f32.mrf.mxu0
  %v832 = vadd.f32 0.0, %v831
  %v833 = vpop.f32.mrf.mxu0
  %834 = vmatprep.mubr.bf16.mxu0 %v767
  %835 = vmatmul.mubr.bf16.gmra.mxu0 %v742
  %v836 = vpop.f32.mrf.mxu0
  %v837 = vadd.f32 0.0, %v836
  %v838 = vpop.f32.mrf.mxu0
  %v839 = vpop.f32.mrf.mxu0
  %v840 = vadd.f32 0.0, %v839
  %v841 = vpop.f32.mrf.mxu0
  %842 = vmatprep.mubr.bf16.mxu0 %v770
  %843 = vmatmul.mubr.bf16.gmra.mxu0 %v744
  %v844 = vpop.f32.mrf.mxu0
  %v845 = vadd.f32 0.0, %v844
  %v846 = vpop.f32.mrf.mxu0
  %v847 = vpop.f32.mrf.mxu0
  %v848 = vadd.f32 0.0, %v847
  %v849 = vpop.f32.mrf.mxu0
  %850 = vmatprep.mubr.bf16.mxu0 %v773
  %851 = vmatmul.mubr.bf16.gmra.mxu0 %v746
  %v852 = vpop.f32.mrf.mxu0
  %v853 = vadd.f32 0.0, %v852
  %v854 = vpop.f32.mrf.mxu0
  %v855 = vpop.f32.mrf.mxu0
  %v856 = vadd.f32 0.0, %v855
  %v857 = vpop.f32.mrf.mxu0
  %858 = vmatprep.mubr.bf16.mxu0 %v776
  %859 = vmatmul.mubr.bf16.gmra.mxu0 %v748
  %v860 = vpop.f32.mrf.mxu0
  %v861 = vadd.f32 0.0, %v860
  %v862 = vpop.f32.mrf.mxu0
  %v863 = vpop.f32.mrf.mxu0
  %v864 = vadd.f32 0.0, %v863
  %v865 = vpop.f32.mrf.mxu0
  %866 = vdwg.mxu0
  %v867 = vmax.f32 %v665, %v813
  %v868 = vmax.f32 %v666, %v816
  %v869 = vmax.f32 %v667, %v821
  %v870 = vmax.f32 %v668, %v824
  %v871 = vmax.f32 %v669, %v829
  %v872 = vmax.f32 %v670, %v832
  %v873 = vmax.f32 %v671, %v837
  %v874 = vmax.f32 %v672, %v840
  %v875 = vmax.f32 %v673, %v845
  %v876 = vmax.f32 %v674, %v848
  %v877 = vmax.f32 %v675, %v853
  %v878 = vmax.f32 %v676, %v856
  %v879 = vmax.f32 %v677, %v861
  %v880 = vmax.f32 %v678, %v864
  %v881 = vld [vmem:[%s2] sm:$0x1]
  %v883 = vlaneseq
  %v884 = vshrl.u32 %v883, 7
  %v885 = vsub.s32 0, %v884
  %v886 = vrot.slane %v881, %v885
  %v888 = vadd.f32 %v867, %v886
  %v889 = vadd.f32 %v868, %v886
  %v890 = vadd.f32 %v869, %v886
  %v891 = vadd.f32 %v870, %v886
  %v892 = vadd.f32 %v871, %v886
  %v893 = vadd.f32 %v872, %v886
  %v894 = vadd.f32 %v873, %v886
  %v895 = vadd.f32 %v874, %v886
  %v896 = vadd.f32 %v875, %v886
  %v897 = vadd.f32 %v876, %v886
  %v898 = vadd.f32 %v877, %v886
  %v899 = vadd.f32 %v878, %v886
  %v900 = vadd.f32 %v879, %v886
  %v901 = vadd.f32 %v880, %v886
  %v902 = vmax.f32 %v888, 0.0
  %v903 = vmax.f32 %v889, 0.0
  %v904 = vmax.f32 %v890, 0.0
  %v905 = vmax.f32 %v891, 0.0
  %v906 = vmax.f32 %v892, 0.0
  %v907 = vmax.f32 %v893, 0.0
  %v908 = vmax.f32 %v894, 0.0
  %v909 = vmax.f32 %v895, 0.0
  %v910 = vmax.f32 %v896, 0.0
  %v911 = vmax.f32 %v897, 0.0
  %v912 = vmax.f32 %v898, 0.0
  %v913 = vmax.f32 %v899, 0.0
  %v914 = vmax.f32 %v900, 0.0
  %v915 = vmax.f32 %v901, 0.0
  %v916 = vpack.c.bf16 %v903, %v902
  %v917 = vpack.c.bf16 %v905, %v904
  %v918 = vpack.c.bf16 %v907, %v906
  %v919 = vpack.c.bf16 %v909, %v908
  %v920 = vpack.c.bf16 %v911, %v910
  %v921 = vpack.c.bf16 %v913, %v912
  %v922 = vpack.c.bf16 %v915, %v914
  %v930 = vunpack.c.l.b16 %v916
  %v931 = vunpack.c.h.b16 %v916
  %v932 = vunpack.c.l.b16 %v917
  %v933 = vunpack.c.h.b16 %v917
  %v934 = vunpack.c.l.b16 %v918
  %v935 = vunpack.c.h.b16 %v918
  %v936 = vunpack.c.l.b16 %v919
  %v937 = vunpack.c.h.b16 %v919
  %v938 = vunpack.c.l.b16 %v920
  %v939 = vunpack.c.h.b16 %v920
  %v940 = vunpack.c.l.b16 %v921
  %v941 = vunpack.c.h.b16 %v921
  %v942 = vunpack.c.l.b16 %v922
  %v943 = vunpack.c.h.b16 %v922
  %v944 = vpack.c.b16 %v930, %v930
  %v945 = vpack.c.b16 %v931, %v931
  %v946 = vpack.c.b16 %v932, %v932
  %v947 = vpack.c.b16 %v933, %v933
  %v948 = vpack.c.b16 %v934, %v934
  %v949 = vpack.c.b16 %v935, %v935
  %v950 = vpack.c.b16 %v936, %v936
  %v951 = vpack.c.b16 %v937, %v937
  %v952 = vpack.c.b16 %v938, %v938
  %v953 = vpack.c.b16 %v939, %v939
  %v954 = vpack.c.b16 %v940, %v940
  %v955 = vpack.c.b16 %v941, %v941
  %v956 = vpack.c.b16 %v942, %v942
  %v957 = vpack.c.b16 %v943, %v943
  %972 = vst [vmem:[%s3] sm:$0xf] %v944
  %973 = vst [vmem:[%s3 + $0x4] sm:$0xf] %v945
  %974 = vst [vmem:[%s3 + $0x8] sm:$0xf] %v946
  %975 = vst [vmem:[%s3 + $0xc] sm:$0xf] %v947
  %976 = vst [vmem:[%s3 + $0x10] sm:$0xf] %v948
  %977 = vst [vmem:[%s3 + $0x14] sm:$0xf] %v949
  %978 = vst [vmem:[%s3 + $0x18] sm:$0xf] %v950
  %979 = vst [vmem:[%s3 + $0x1c] sm:$0xf] %v951
  %980 = vst [vmem:[%s3 + $0x20] sm:$0xf] %v952
  %981 = vst [vmem:[%s3 + $0x24] sm:$0xf] %v953
  %982 = vst [vmem:[%s3 + $0x28] sm:$0xf] %v954
  %983 = vst [vmem:[%s3 + $0x2c] sm:$0xf] %v955
  %984 = vst [vmem:[%s3 + $0x30] sm:$0xf] %v956
  %985 = vst [vmem:[%s3 + $0x34] sm:$0xf] %v957
  // Predicated region
  $region14: #{net_forward.4} parent=0 // pred_check
    _
  $region15: #{net_forward.4} parent=0 // pred_check_branch
    %987 = sbr.rel (0) target = $region17
  $region16: #{net_forward.4} parent=0 // pred_region
    _
  $region17: #{net_forward.4} parent=0 // pred_fallthru
    _
  // Predicated region
  $region18: #{net_forward.4} parent=0 // pred_check
    _
  $region19: #{net_forward.4} parent=0 // pred_check_branch
    %989 = sbr.rel (0) target = $region21
  $region20: #{net_forward.4} parent=0 // pred_region
    _
  $region21: #{net_forward.4} parent=0 // pred_fallthru
    _

// kernel: net_forward.5
$region0: #{net_forward.5}
  #allocation0 [shape = 'u32[]', space=smem, size = 0x4, offset = 0x4, fixed_abs, tag = 'smem constant byte address 0x4 - core index']
  #allocation1 [shape = 'u32[144,128]{1,0:T(1,128)}', space=vmem, size = 0x12000, scoped, tag = 'internal scratch']
  %s0 = inlined_call_operand.vmem [shape: bf16[16,6272], index: 0, kind: input, shape index: {}]
  %s1 = inlined_call_operand.vmem [shape: bf16[6272,128], index: 1, kind: input, shape index: {}]
  %s2 = inlined_call_operand.vmem [shape: f32[1,128], index: 2, kind: input, shape index: {}]
  %s3 = inlined_call_operand.vmem [shape: f32[16,128], index: 3, kind: output, shape index: {}]
  %s4 = sld [smem:[#allocation0]]
  $region22: #{net_forward.5} parent=0
    _
  %s6 = ssub.s32 1, %s4
  %s7 = scalar_select 0, %s6, %s4
  // Predicated region
  $region2: #{net_forward.5} parent=0 // pred_check
    _
  $region3: #{net_forward.5} parent=0 // pred_check_branch
    %9 = sbr.rel (0) target = $region5
  $region4: #{net_forward.5} parent=0 // pred_region
    _
  $region5: #{net_forward.5} parent=0 // pred_fallthru
    _
  // Predicated region
  $region6: #{net_forward.5} parent=0 // pred_check
    _
  $region7: #{net_forward.5} parent=0 // pred_check_branch
    %11 = sbr.rel (0) target = $region9
  $region8: #{net_forward.5} parent=0 // pred_region
    _
  $region9: #{net_forward.5} parent=0 // pred_fallthru
    _
  // Predicated region
  $region10: #{net_forward.5} parent=0 // pred_check
    _
  $region11: #{net_forward.5} parent=0 // pred_check_branch
    %13 = sbr.rel (0) target = $region13
  $region12: #{net_forward.5} parent=0 // pred_region
    _
  $region13: #{net_forward.5} parent=0 // pred_fallthru
    _
  %v15 = vld [vmem:[%s0] sm:$0xff]
  %v16 = vld [vmem:[%s0 + $0x8] sm:$0xff]
  %v17 = vld [vmem:[%s0 + $0x10] sm:$0xff]
  %v18 = vld [vmem:[%s0 + $0x18] sm:$0xff]
  %v19 = vld [vmem:[%s0 + $0x20] sm:$0xff]
  %v20 = vld [vmem:[%s0 + $0x28] sm:$0xff]
  %v21 = vld [vmem:[%s0 + $0x30] sm:$0xff]
  %v22 = vld [vmem:[%s0 + $0x38] sm:$0xff]
  %v23 = vld [vmem:[%s0 + $0x40] sm:$0xff]
  %v24 = vld [vmem:[%s0 + $0x48] sm:$0xff]
  %v25 = vld [vmem:[%s0 + $0x50] sm:$0xff]
  %v26 = vld [vmem:[%s0 + $0x58] sm:$0xff]
  %v27 = vld [vmem:[%s0 + $0x60] sm:$0xff]
  %v28 = vld [vmem:[%s0 + $0x68] sm:$0xff]
  %v29 = vld [vmem:[%s0 + $0x70] sm:$0xff]
  %v30 = vld [vmem:[%s0 + $0x78] sm:$0xff]
  %v31 = vld [vmem:[%s0 + $0x80] sm:$0xff]
  %v32 = vld [vmem:[%s0 + $0x88] sm:$0xff]
  %v33 = vld [vmem:[%s0 + $0x90] sm:$0xff]
  %v34 = vld [vmem:[%s0 + $0x98] sm:$0xff]
  %v35 = vld [vmem:[%s0 + $0xa0] sm:$0xff]
  %v36 = vld [vmem:[%s0 + $0xa8] sm:$0xff]
  %v37 = vld [vmem:[%s0 + $0xb0] sm:$0xff]
  %v38 = vld [vmem:[%s0 + $0xb8] sm:$0xff]
  %v39 = vld [vmem:[%s0 + $0xc0] sm:$0xf]
  %v40 = vld [vmem:[%s0 + $0xc4] sm:$0xff]
  %v41 = vld [vmem:[%s0 + $0xcc] sm:$0xff]
  %v42 = vld [vmem:[%s0 + $0xd4] sm:$0xff]
  %v43 = vld [vmem:[%s0 + $0xdc] sm:$0xff]
  %v44 = vld [vmem:[%s0 + $0xe4] sm:$0xff]
  %v45 = vld [vmem:[%s0 + $0xec] sm:$0xff]
  %v46 = vld [vmem:[%s0 + $0xf4] sm:$0xff]
  %v47 = vld [vmem:[%s0 + $0xfc] sm:$0xff]
  %v48 = vld [vmem:[%s0 + $0x104] sm:$0xff]
  %v49 = vld [vmem:[%s0 + $0x10c] sm:$0xff]
  %v50 = vld [vmem:[%s0 + $0x114] sm:$0xff]
  %v51 = vld [vmem:[%s0 + $0x11c] sm:$0xff]
  %v52 = vld [vmem:[%s0 + $0x124] sm:$0xff]
  %v53 = vld [vmem:[%s0 + $0x12c] sm:$0xff]
  %v54 = vld [vmem:[%s0 + $0x134] sm:$0xff]
  %v55 = vld [vmem:[%s0 + $0x13c] sm:$0xff]
  %v56 = vld [vmem:[%s0 + $0x144] sm:$0xff]
  %v57 = vld [vmem:[%s0 + $0x14c] sm:$0xff]
  %v58 = vld [vmem:[%s0 + $0x154] sm:$0xff]
  %v59 = vld [vmem:[%s0 + $0x15c] sm:$0xff]
  %v60 = vld [vmem:[%s0 + $0x164] sm:$0xff]
  %v61 = vld [vmem:[%s0 + $0x16c] sm:$0xff]
  %v62 = vld [vmem:[%s0 + $0x174] sm:$0xff]
  %v63 = vld [vmem:[%s0 + $0x17c] sm:$0xff]
  %v64 = vld [vmem:[%s0 + $0x184] sm:$0xf]
  %v65 = vld [vmem:[%s1] sm:$0xf]
  %v66 = vld [vmem:[%s1 + $0x4] sm:$0xf]
  %v67 = vld [vmem:[%s1 + $0x8] sm:$0xf]
  %v68 = vld [vmem:[%s1 + $0xc] sm:$0xf]
  %v69 = vld [vmem:[%s1 + $0x10] sm:$0xf]
  %v70 = vld [vmem:[%s1 + $0x14] sm:$0xf]
  %v71 = vld [vmem:[%s1 + $0x18] sm:$0xf]
  %v72 = vld [vmem:[%s1 + $0x1c] sm:$0xf]
  %v73 = vld [vmem:[%s1 + $0x20] sm:$0xf]
  %v74 = vld [vmem:[%s1 + $0x24] sm:$0xf]
  %v75 = vld [vmem:[%s1 + $0x28] sm:$0xf]
  %v76 = vld [vmem:[%s1 + $0x2c] sm:$0xf]
  %v77 = vld [vmem:[%s1 + $0x30] sm:$0xf]
  %v78 = vld [vmem:[%s1 + $0x34] sm:$0xf]
  %v79 = vld [vmem:[%s1 + $0x38] sm:$0xf]
  %v80 = vld [vmem:[%s1 + $0x3c] sm:$0xf]
  %v81 = vld [vmem:[%s1 + $0x40] sm:$0xf]
  %v82 = vld [vmem:[%s1 + $0x44] sm:$0xf]
  %v83 = vld [vmem:[%s1 + $0x48] sm:$0xf]
  %v84 = vld [vmem:[%s1 + $0x4c] sm:$0xf]
  %v85 = vld [vmem:[%s1 + $0x50] sm:$0xf]
  %v86 = vld [vmem:[%s1 + $0x54] sm:$0xf]
  %v87 = vld [vmem:[%s1 + $0x58] sm:$0xf]
  %v88 = vld [vmem:[%s1 + $0x5c] sm:$0xf]
  %v89 = vld [vmem:[%s1 + $0x60] sm:$0xf]
  %v90 = vld [vmem:[%s1 + $0x64] sm:$0xf]
  %v91 = vld [vmem:[%s1 + $0x68] sm:$0xf]
  %v92 = vld [vmem:[%s1 + $0x6c] sm:$0xf]
  %v93 = vld [vmem:[%s1 + $0x70] sm:$0xf]
  %v94 = vld [vmem:[%s1 + $0x74] sm:$0xf]
  %v95 = vld [vmem:[%s1 + $0x78] sm:$0xf]
  %v96 = vld [vmem:[%s1 + $0x7c] sm:$0xf]
  %v97 = vld [vmem:[%s1 + $0x80] sm:$0xf]
  %v98 = vld [vmem:[%s1 + $0x84] sm:$0xf]
  %v99 = vld [vmem:[%s1 + $0x88] sm:$0xf]
  %v100 = vld [vmem:[%s1 + $0x8c] sm:$0xf]
  %v101 = vld [vmem:[%s1 + $0x90] sm:$0xf]
  %v102 = vld [vmem:[%s1 + $0x94] sm:$0xf]
  %v103 = vld [vmem:[%s1 + $0x98] sm:$0xf]
  %v104 = vld [vmem:[%s1 + $0x9c] sm:$0xf]
  %v105 = vld [vmem:[%s1 + $0xa0] sm:$0xf]
  %v106 = vld [vmem:[%s1 + $0xa4] sm:$0xf]
  %v107 = vld [vmem:[%s1 + $0xa8] sm:$0xf]
  %v108 = vld [vmem:[%s1 + $0xac] sm:$0xf]
  %v109 = vld [vmem:[%s1 + $0xb0] sm:$0xf]
  %v110 = vld [vmem:[%s1 + $0xb4] sm:$0xf]
  %v111 = vld [vmem:[%s1 + $0xb8] sm:$0xf]
  %v112 = vld [vmem:[%s1 + $0xbc] sm:$0xf]
  %v113 = vld [vmem:[%s1 + $0xc0] sm:$0xf]
  %v114 = vld [vmem:[%s1 + $0xc4] sm:$0xf]
  %v115 = vld [vmem:[%s1 + $0xc8] sm:$0xf]
  %v116 = vld [vmem:[%s1 + $0xcc] sm:$0xf]
  %v117 = vld [vmem:[%s1 + $0xd0] sm:$0xf]
  %v118 = vld [vmem:[%s1 + $0xd4] sm:$0xf]
  %v119 = vld [vmem:[%s1 + $0xd8] sm:$0xf]
  %v120 = vld [vmem:[%s1 + $0xdc] sm:$0xf]
  %v121 = vld [vmem:[%s1 + $0xe0] sm:$0xf]
  %v122 = vld [vmem:[%s1 + $0xe4] sm:$0xf]
  %v123 = vld [vmem:[%s1 + $0xe8] sm:$0xf]
  %v124 = vld [vmem:[%s1 + $0xec] sm:$0xf]
  %v125 = vld [vmem:[%s1 + $0xf0] sm:$0xf]
  %v126 = vld [vmem:[%s1 + $0xf4] sm:$0xf]
  %v127 = vld [vmem:[%s1 + $0xf8] sm:$0xf]
  %v128 = vld [vmem:[%s1 + $0xfc] sm:$0xf]
  %v129 = vld [vmem:[%s1 + $0x100] sm:$0xf]
  %v130 = vld [vmem:[%s1 + $0x104] sm:$0xf]
  %v131 = vld [vmem:[%s1 + $0x108] sm:$0xf]
  %v132 = vld [vmem:[%s1 + $0x10c] sm:$0xf]
  %v133 = vld [vmem:[%s1 + $0x110] sm:$0xf]
  %v134 = vld [vmem:[%s1 + $0x114] sm:$0xf]
  %v135 = vld [vmem:[%s1 + $0x118] sm:$0xf]
  %v136 = vld [vmem:[%s1 + $0x11c] sm:$0xf]
  %v137 = vld [vmem:[%s1 + $0x120] sm:$0xf]
  %v138 = vld [vmem:[%s1 + $0x124] sm:$0xf]
  %v139 = vld [vmem:[%s1 + $0x128] sm:$0xf]
  %v140 = vld [vmem:[%s1 + $0x12c] sm:$0xf]
  %v141 = vld [vmem:[%s1 + $0x130] sm:$0xf]
  %v142 = vld [vmem:[%s1 + $0x134] sm:$0xf]
  %v143 = vld [vmem:[%s1 + $0x138] sm:$0xf]
  %v144 = vld [vmem:[%s1 + $0x13c] sm:$0xf]
  %v145 = vld [vmem:[%s1 + $0x140] sm:$0xf]
  %v146 = vld [vmem:[%s1 + $0x144] sm:$0xf]
  %v147 = vld [vmem:[%s1 + $0x148] sm:$0xf]
  %v148 = vld [vmem:[%s1 + $0x14c] sm:$0xf]
  %v149 = vld [vmem:[%s1 + $0x150] sm:$0xf]
  %v150 = vld [vmem:[%s1 + $0x154] sm:$0xf]
  %v151 = vld [vmem:[%s1 + $0x158] sm:$0xf]
  %v152 = vld [vmem:[%s1 + $0x15c] sm:$0xf]
  %v153 = vld [vmem:[%s1 + $0x160] sm:$0xf]
  %v154 = vld [vmem:[%s1 + $0x164] sm:$0xf]
  %v155 = vld [vmem:[%s1 + $0x168] sm:$0xf]
  %v156 = vld [vmem:[%s1 + $0x16c] sm:$0xf]
  %v157 = vld [vmem:[%s1 + $0x170] sm:$0xf]
  %v158 = vld [vmem:[%s1 + $0x174] sm:$0xf]
  %v159 = vld [vmem:[%s1 + $0x178] sm:$0xf]
  %v160 = vld [vmem:[%s1 + $0x17c] sm:$0xf]
  %v161 = vld [vmem:[%s1 + $0x180] sm:$0xf]
  %v162 = vld [vmem:[%s1 + $0x184] sm:$0xf]
  %v163 = vld [vmem:[%s1 + $0x188] sm:$0xf]
  %v164 = vld [vmem:[%s1 + $0x18c] sm:$0xf]
  %v165 = vld [vmem:[%s1 + $0x190] sm:$0xf]
  %v166 = vld [vmem:[%s1 + $0x194] sm:$0xf]
  %v167 = vld [vmem:[%s1 + $0x198] sm:$0xf]
  %v168 = vld [vmem:[%s1 + $0x19c] sm:$0xf]
  %v169 = vld [vmem:[%s1 + $0x1a0] sm:$0xf]
  %v170 = vld [vmem:[%s1 + $0x1a4] sm:$0xf]
  %v171 = vld [vmem:[%s1 + $0x1a8] sm:$0xf]
  %v172 = vld [vmem:[%s1 + $0x1ac] sm:$0xf]
  %v173 = vld [vmem:[%s1 + $0x1b0] sm:$0xf]
  %v174 = vld [vmem:[%s1 + $0x1b4] sm:$0xf]
  %v175 = vld [vmem:[%s1 + $0x1b8] sm:$0xf]
  %v176 = vld [vmem:[%s1 + $0x1bc] sm:$0xf]
  %v177 = vld [vmem:[%s1 + $0x1c0] sm:$0xf]
  %v178 = vld [vmem:[%s1 + $0x1c4] sm:$0xf]
  %v179 = vld [vmem:[%s1 + $0x1c8] sm:$0xf]
  %v180 = vld [vmem:[%s1 + $0x1cc] sm:$0xf]
  %v181 = vld [vmem:[%s1 + $0x1d0] sm:$0xf]
  %v182 = vld [vmem:[%s1 + $0x1d4] sm:$0xf]
  %v183 = vld [vmem:[%s1 + $0x1d8] sm:$0xf]
  %v184 = vld [vmem:[%s1 + $0x1dc] sm:$0xf]
  %v185 = vld [vmem:[%s1 + $0x1e0] sm:$0xf]
  %v186 = vld [vmem:[%s1 + $0x1e4] sm:$0xf]
  %v187 = vld [vmem:[%s1 + $0x1e8] sm:$0xf]
  %v188 = vld [vmem:[%s1 + $0x1ec] sm:$0xf]
  %v189 = vld [vmem:[%s1 + $0x1f0] sm:$0xf]
  %v190 = vld [vmem:[%s1 + $0x1f4] sm:$0xf]
  %v191 = vld [vmem:[%s1 + $0x1f8] sm:$0xf]
  %v192 = vld [vmem:[%s1 + $0x1fc] sm:$0xf]
  %v193 = vld [vmem:[%s1 + $0x200] sm:$0xf]
  %v194 = vld [vmem:[%s1 + $0x204] sm:$0xf]
  %v195 = vld [vmem:[%s1 + $0x208] sm:$0xf]
  %v196 = vld [vmem:[%s1 + $0x20c] sm:$0xf]
  %v197 = vld [vmem:[%s1 + $0x210] sm:$0xf]
  %v198 = vld [vmem:[%s1 + $0x214] sm:$0xf]
  %v199 = vld [vmem:[%s1 + $0x218] sm:$0xf]
  %v200 = vld [vmem:[%s1 + $0x21c] sm:$0xf]
  %v201 = vld [vmem:[%s1 + $0x220] sm:$0xf]
  %v202 = vld [vmem:[%s1 + $0x224] sm:$0xf]
  %v203 = vld [vmem:[%s1 + $0x228] sm:$0xf]
  %v204 = vld [vmem:[%s1 + $0x22c] sm:$0xf]
  %v205 = vld [vmem:[%s1 + $0x230] sm:$0xf]
  %v206 = vld [vmem:[%s1 + $0x234] sm:$0xf]
  %v207 = vld [vmem:[%s1 + $0x238] sm:$0xf]
  %v208 = vld [vmem:[%s1 + $0x23c] sm:$0xf]
  %v209 = vld [vmem:[%s1 + $0x240] sm:$0xf]
  %v210 = vld [vmem:[%s1 + $0x244] sm:$0xf]
  %v211 = vld [vmem:[%s1 + $0x248] sm:$0xf]
  %v212 = vld [vmem:[%s1 + $0x24c] sm:$0xf]
  %v213 = vld [vmem:[%s1 + $0x250] sm:$0xf]
  %v214 = vld [vmem:[%s1 + $0x254] sm:$0xf]
  %v215 = vld [vmem:[%s1 + $0x258] sm:$0xf]
  %v216 = vld [vmem:[%s1 + $0x25c] sm:$0xf]
  %v217 = vld [vmem:[%s1 + $0x260] sm:$0xf]
  %v218 = vld [vmem:[%s1 + $0x264] sm:$0xf]
  %v219 = vld [vmem:[%s1 + $0x268] sm:$0xf]
  %v220 = vld [vmem:[%s1 + $0x26c] sm:$0xf]
  %v221 = vld [vmem:[%s1 + $0x270] sm:$0xf]
  %v222 = vld [vmem:[%s1 + $0x274] sm:$0xf]
  %v223 = vld [vmem:[%s1 + $0x278] sm:$0xf]
  %v224 = vld [vmem:[%s1 + $0x27c] sm:$0xf]
  %v225 = vld [vmem:[%s1 + $0x280] sm:$0xf]
  %v226 = vld [vmem:[%s1 + $0x284] sm:$0xf]
  %v227 = vld [vmem:[%s1 + $0x288] sm:$0xf]
  %v228 = vld [vmem:[%s1 + $0x28c] sm:$0xf]
  %v229 = vld [vmem:[%s1 + $0x290] sm:$0xf]
  %v230 = vld [vmem:[%s1 + $0x294] sm:$0xf]
  %v231 = vld [vmem:[%s1 + $0x298] sm:$0xf]
  %v232 = vld [vmem:[%s1 + $0x29c] sm:$0xf]
  %v233 = vld [vmem:[%s1 + $0x2a0] sm:$0xf]
  %v234 = vld [vmem:[%s1 + $0x2a4] sm:$0xf]
  %v235 = vld [vmem:[%s1 + $0x2a8] sm:$0xf]
  %v236 = vld [vmem:[%s1 + $0x2ac] sm:$0xf]
  %v237 = vld [vmem:[%s1 + $0x2b0] sm:$0xf]
  %v238 = vld [vmem:[%s1 + $0x2b4] sm:$0xf]
  %v239 = vld [vmem:[%s1 + $0x2b8] sm:$0xf]
  %v240 = vld [vmem:[%s1 + $0x2bc] sm:$0xf]
  %v241 = vld [vmem:[%s1 + $0x2c0] sm:$0xf]
  %v242 = vld [vmem:[%s1 + $0x2c4] sm:$0xf]
  %v243 = vld [vmem:[%s1 + $0x2c8] sm:$0xf]
  %v244 = vld [vmem:[%s1 + $0x2cc] sm:$0xf]
  %v245 = vld [vmem:[%s1 + $0x2d0] sm:$0xf]
  %v246 = vld [vmem:[%s1 + $0x2d4] sm:$0xf]
  %v247 = vld [vmem:[%s1 + $0x2d8] sm:$0xf]
  %v248 = vld [vmem:[%s1 + $0x2dc] sm:$0xf]
  %v249 = vld [vmem:[%s1 + $0x2e0] sm:$0xf]
  %v250 = vld [vmem:[%s1 + $0x2e4] sm:$0xf]
  %v251 = vld [vmem:[%s1 + $0x2e8] sm:$0xf]
  %v252 = vld [vmem:[%s1 + $0x2ec] sm:$0xf]
  %v253 = vld [vmem:[%s1 + $0x2f0] sm:$0xf]
  %v254 = vld [vmem:[%s1 + $0x2f4] sm:$0xf]
  %v255 = vld [vmem:[%s1 + $0x2f8] sm:$0xf]
  %v256 = vld [vmem:[%s1 + $0x2fc] sm:$0xf]
  %v257 = vld [vmem:[%s1 + $0x300] sm:$0xf]
  %v258 = vld [vmem:[%s1 + $0x304] sm:$0xf]
  %v259 = vld [vmem:[%s1 + $0x308] sm:$0xf]
  %v260 = vld [vmem:[%s1 + $0x30c] sm:$0xf]
  %v261 = vld [vmem:[%s1 + $0x310] sm:$0xf]
  %v262 = vld [vmem:[%s1 + $0x314] sm:$0xf]
  %v263 = vld [vmem:[%s1 + $0x318] sm:$0xf]
  %v264 = vld [vmem:[%s1 + $0x31c] sm:$0xf]
  %v265 = vld [vmem:[%s1 + $0x320] sm:$0xf]
  %v266 = vld [vmem:[%s1 + $0x324] sm:$0xf]
  %v267 = vld [vmem:[%s1 + $0x328] sm:$0xf]
  %v268 = vld [vmem:[%s1 + $0x32c] sm:$0xf]
  %v269 = vld [vmem:[%s1 + $0x330] sm:$0xf]
  %v270 = vld [vmem:[%s1 + $0x334] sm:$0xf]
  %v271 = vld [vmem:[%s1 + $0x338] sm:$0xf]
  %v272 = vld [vmem:[%s1 + $0x33c] sm:$0xf]
  %v273 = vld [vmem:[%s1 + $0x340] sm:$0xf]
  %v274 = vld [vmem:[%s1 + $0x344] sm:$0xf]
  %v275 = vld [vmem:[%s1 + $0x348] sm:$0xf]
  %v276 = vld [vmem:[%s1 + $0x34c] sm:$0xf]
  %v277 = vld [vmem:[%s1 + $0x350] sm:$0xf]
  %v278 = vld [vmem:[%s1 + $0x354] sm:$0xf]
  %v279 = vld [vmem:[%s1 + $0x358] sm:$0xf]
  %v280 = vld [vmem:[%s1 + $0x35c] sm:$0xf]
  %v281 = vld [vmem:[%s1 + $0x360] sm:$0xf]
  %v282 = vld [vmem:[%s1 + $0x364] sm:$0xf]
  %v283 = vld [vmem:[%s1 + $0x368] sm:$0xf]
  %v284 = vld [vmem:[%s1 + $0x36c] sm:$0xf]
  %v285 = vld [vmem:[%s1 + $0x370] sm:$0xf]
  %v286 = vld [vmem:[%s1 + $0x374] sm:$0xf]
  %v287 = vld [vmem:[%s1 + $0x378] sm:$0xf]
  %v288 = vld [vmem:[%s1 + $0x37c] sm:$0xf]
  %v289 = vld [vmem:[%s1 + $0x380] sm:$0xf]
  %v290 = vld [vmem:[%s1 + $0x384] sm:$0xf]
  %v291 = vld [vmem:[%s1 + $0x388] sm:$0xf]
  %v292 = vld [vmem:[%s1 + $0x38c] sm:$0xf]
  %v293 = vld [vmem:[%s1 + $0x390] sm:$0xf]
  %v294 = vld [vmem:[%s1 + $0x394] sm:$0xf]
  %v295 = vld [vmem:[%s1 + $0x398] sm:$0xf]
  %v296 = vld [vmem:[%s1 + $0x39c] sm:$0xf]
  %v297 = vld [vmem:[%s1 + $0x3a0] sm:$0xf]
  %v298 = vld [vmem:[%s1 + $0x3a4] sm:$0xf]
  %v299 = vld [vmem:[%s1 + $0x3a8] sm:$0xf]
  %v300 = vld [vmem:[%s1 + $0x3ac] sm:$0xf]
  %v301 = vld [vmem:[%s1 + $0x3b0] sm:$0xf]
  %v302 = vld [vmem:[%s1 + $0x3b4] sm:$0xf]
  %v303 = vld [vmem:[%s1 + $0x3b8] sm:$0xf]
  %v304 = vld [vmem:[%s1 + $0x3bc] sm:$0xf]
  %v305 = vld [vmem:[%s1 + $0x3c0] sm:$0xf]
  %v306 = vld [vmem:[%s1 + $0x3c4] sm:$0xf]
  %v307 = vld [vmem:[%s1 + $0x3c8] sm:$0xf]
  %v308 = vld [vmem:[%s1 + $0x3cc] sm:$0xf]
  %v309 = vld [vmem:[%s1 + $0x3d0] sm:$0xf]
  %v310 = vld [vmem:[%s1 + $0x3d4] sm:$0xf]
  %v311 = vld [vmem:[%s1 + $0x3d8] sm:$0xf]
  %v312 = vld [vmem:[%s1 + $0x3dc] sm:$0xf]
  %v313 = vld [vmem:[%s1 + $0x3e0] sm:$0xf]
  %v314 = vld [vmem:[%s1 + $0x3e4] sm:$0xf]
  %v315 = vld [vmem:[%s1 + $0x3e8] sm:$0xf]
  %v316 = vld [vmem:[%s1 + $0x3ec] sm:$0xf]
  %v317 = vld [vmem:[%s1 + $0x3f0] sm:$0xf]
  %v318 = vld [vmem:[%s1 + $0x3f4] sm:$0xf]
  %v319 = vld [vmem:[%s1 + $0x3f8] sm:$0xf]
  %v320 = vld [vmem:[%s1 + $0x3fc] sm:$0xf]
  %v321 = vld [vmem:[%s1 + $0x400] sm:$0xf]
  %v322 = vld [vmem:[%s1 + $0x404] sm:$0xf]
  %v323 = vld [vmem:[%s1 + $0x408] sm:$0xf]
  %v324 = vld [vmem:[%s1 + $0x40c] sm:$0xf]
  %v325 = vld [vmem:[%s1 + $0x410] sm:$0xf]
  %v326 = vld [vmem:[%s1 + $0x414] sm:$0xf]
  %v327 = vld [vmem:[%s1 + $0x418] sm:$0xf]
  %v328 = vld [vmem:[%s1 + $0x41c] sm:$0xf]
  %v329 = vld [vmem:[%s1 + $0x420] sm:$0xf]
  %v330 = vld [vmem:[%s1 + $0x424] sm:$0xf]
  %v331 = vld [vmem:[%s1 + $0x428] sm:$0xf]
  %v332 = vld [vmem:[%s1 + $0x42c] sm:$0xf]
  %v333 = vld [vmem:[%s1 + $0x430] sm:$0xf]
  %v334 = vld [vmem:[%s1 + $0x434] sm:$0xf]
  %v335 = vld [vmem:[%s1 + $0x438] sm:$0xf]
  %v336 = vld [vmem:[%s1 + $0x43c] sm:$0xf]
  %v337 = vld [vmem:[%s1 + $0x440] sm:$0xf]
  %v338 = vld [vmem:[%s1 + $0x444] sm:$0xf]
  %v339 = vld [vmem:[%s1 + $0x448] sm:$0xf]
  %v340 = vld [vmem:[%s1 + $0x44c] sm:$0xf]
  %v341 = vld [vmem:[%s1 + $0x450] sm:$0xf]
  %v342 = vld [vmem:[%s1 + $0x454] sm:$0xf]
  %v343 = vld [vmem:[%s1 + $0x458] sm:$0xf]
  %v344 = vld [vmem:[%s1 + $0x45c] sm:$0xf]
  %v345 = vld [vmem:[%s1 + $0x460] sm:$0xf]
  %v346 = vld [vmem:[%s1 + $0x464] sm:$0xf]
  %v347 = vld [vmem:[%s1 + $0x468] sm:$0xf]
  %v348 = vld [vmem:[%s1 + $0x46c] sm:$0xf]
  %v349 = vld [vmem:[%s1 + $0x470] sm:$0xf]
  %v350 = vld [vmem:[%s1 + $0x474] sm:$0xf]
  %v351 = vld [vmem:[%s1 + $0x478] sm:$0xf]
  %v352 = vld [vmem:[%s1 + $0x47c] sm:$0xf]
  %v353 = vld [vmem:[%s1 + $0x480] sm:$0xf]
  %v354 = vld [vmem:[%s1 + $0x484] sm:$0xf]
  %v355 = vld [vmem:[%s1 + $0x488] sm:$0xf]
  %v356 = vld [vmem:[%s1 + $0x48c] sm:$0xf]
  %v357 = vld [vmem:[%s1 + $0x490] sm:$0xf]
  %v358 = vld [vmem:[%s1 + $0x494] sm:$0xf]
  %v359 = vld [vmem:[%s1 + $0x498] sm:$0xf]
  %v360 = vld [vmem:[%s1 + $0x49c] sm:$0xf]
  %v361 = vld [vmem:[%s1 + $0x4a0] sm:$0xf]
  %v362 = vld [vmem:[%s1 + $0x4a4] sm:$0xf]
  %v363 = vld [vmem:[%s1 + $0x4a8] sm:$0xf]
  %v364 = vld [vmem:[%s1 + $0x4ac] sm:$0xf]
  %v365 = vld [vmem:[%s1 + $0x4b0] sm:$0xf]
  %v366 = vld [vmem:[%s1 + $0x4b4] sm:$0xf]
  %v367 = vld [vmem:[%s1 + $0x4b8] sm:$0xf]
  %v368 = vld [vmem:[%s1 + $0x4bc] sm:$0xf]
  %v369 = vld [vmem:[%s1 + $0x4c0] sm:$0xf]
  %v370 = vld [vmem:[%s1 + $0x4c4] sm:$0xf]
  %v371 = vld [vmem:[%s1 + $0x4c8] sm:$0xf]
  %v372 = vld [vmem:[%s1 + $0x4cc] sm:$0xf]
  %v373 = vld [vmem:[%s1 + $0x4d0] sm:$0xf]
  %v374 = vld [vmem:[%s1 + $0x4d4] sm:$0xf]
  %v375 = vld [vmem:[%s1 + $0x4d8] sm:$0xf]
  %v376 = vld [vmem:[%s1 + $0x4dc] sm:$0xf]
  %v377 = vld [vmem:[%s1 + $0x4e0] sm:$0xf]
  %v378 = vld [vmem:[%s1 + $0x4e4] sm:$0xf]
  %v379 = vld [vmem:[%s1 + $0x4e8] sm:$0xf]
  %v380 = vld [vmem:[%s1 + $0x4ec] sm:$0xf]
  %v381 = vld [vmem:[%s1 + $0x4f0] sm:$0xf]
  %v382 = vld [vmem:[%s1 + $0x4f4] sm:$0xf]
  %v383 = vld [vmem:[%s1 + $0x4f8] sm:$0xf]
  %v384 = vld [vmem:[%s1 + $0x4fc] sm:$0xf]
  %v385 = vld [vmem:[%s1 + $0x500] sm:$0xf]
  %v386 = vld [vmem:[%s1 + $0x504] sm:$0xf]
  %v387 = vld [vmem:[%s1 + $0x508] sm:$0xf]
  %v388 = vld [vmem:[%s1 + $0x50c] sm:$0xf]
  %v389 = vld [vmem:[%s1 + $0x510] sm:$0xf]
  %v390 = vld [vmem:[%s1 + $0x514] sm:$0xf]
  %v391 = vld [vmem:[%s1 + $0x518] sm:$0xf]
  %v392 = vld [vmem:[%s1 + $0x51c] sm:$0xf]
  %v393 = vld [vmem:[%s1 + $0x520] sm:$0xf]
  %v394 = vld [vmem:[%s1 + $0x524] sm:$0xf]
  %v395 = vld [vmem:[%s1 + $0x528] sm:$0xf]
  %v396 = vld [vmem:[%s1 + $0x52c] sm:$0xf]
  %v397 = vld [vmem:[%s1 + $0x530] sm:$0xf]
  %v398 = vld [vmem:[%s1 + $0x534] sm:$0xf]
  %v399 = vld [vmem:[%s1 + $0x538] sm:$0xf]
  %v400 = vld [vmem:[%s1 + $0x53c] sm:$0xf]
  %v401 = vld [vmem:[%s1 + $0x540] sm:$0xf]
  %v402 = vld [vmem:[%s1 + $0x544] sm:$0xf]
  %v403 = vld [vmem:[%s1 + $0x548] sm:$0xf]
  %v404 = vld [vmem:[%s1 + $0x54c] sm:$0xf]
  %v405 = vld [vmem:[%s1 + $0x550] sm:$0xf]
  %v406 = vld [vmem:[%s1 + $0x554] sm:$0xf]
  %v407 = vld [vmem:[%s1 + $0x558] sm:$0xf]
  %v408 = vld [vmem:[%s1 + $0x55c] sm:$0xf]
  %v409 = vld [vmem:[%s1 + $0x560] sm:$0xf]
  %v410 = vld [vmem:[%s1 + $0x564] sm:$0xf]
  %v411 = vld [vmem:[%s1 + $0x568] sm:$0xf]
  %v412 = vld [vmem:[%s1 + $0x56c] sm:$0xf]
  %v413 = vld [vmem:[%s1 + $0x570] sm:$0xf]
  %v414 = vld [vmem:[%s1 + $0x574] sm:$0xf]
  %v415 = vld [vmem:[%s1 + $0x578] sm:$0xf]
  %v416 = vld [vmem:[%s1 + $0x57c] sm:$0xf]
  %v417 = vld [vmem:[%s1 + $0x580] sm:$0xf]
  %v418 = vld [vmem:[%s1 + $0x584] sm:$0xf]
  %v419 = vld [vmem:[%s1 + $0x588] sm:$0xf]
  %v420 = vld [vmem:[%s1 + $0x58c] sm:$0xf]
  %v421 = vld [vmem:[%s1 + $0x590] sm:$0xf]
  %v422 = vld [vmem:[%s1 + $0x594] sm:$0xf]
  %v423 = vld [vmem:[%s1 + $0x598] sm:$0xf]
  %v424 = vld [vmem:[%s1 + $0x59c] sm:$0xf]
  %v425 = vld [vmem:[%s1 + $0x5a0] sm:$0xf]
  %v426 = vld [vmem:[%s1 + $0x5a4] sm:$0xf]
  %v427 = vld [vmem:[%s1 + $0x5a8] sm:$0xf]
  %v428 = vld [vmem:[%s1 + $0x5ac] sm:$0xf]
  %v429 = vld [vmem:[%s1 + $0x5b0] sm:$0xf]
  %v430 = vld [vmem:[%s1 + $0x5b4] sm:$0xf]
  %v431 = vld [vmem:[%s1 + $0x5b8] sm:$0xf]
  %v432 = vld [vmem:[%s1 + $0x5bc] sm:$0xf]
  %v433 = vld [vmem:[%s1 + $0x5c0] sm:$0xf]
  %v434 = vld [vmem:[%s1 + $0x5c4] sm:$0xf]
  %v435 = vld [vmem:[%s1 + $0x5c8] sm:$0xf]
  %v436 = vld [vmem:[%s1 + $0x5cc] sm:$0xf]
  %v437 = vld [vmem:[%s1 + $0x5d0] sm:$0xf]
  %v438 = vld [vmem:[%s1 + $0x5d4] sm:$0xf]
  %v439 = vld [vmem:[%s1 + $0x5d8] sm:$0xf]
  %v440 = vld [vmem:[%s1 + $0x5dc] sm:$0xf]
  %v441 = vld [vmem:[%s1 + $0x5e0] sm:$0xf]
  %v442 = vld [vmem:[%s1 + $0x5e4] sm:$0xf]
  %v443 = vld [vmem:[%s1 + $0x5e8] sm:$0xf]
  %v444 = vld [vmem:[%s1 + $0x5ec] sm:$0xf]
  %v445 = vld [vmem:[%s1 + $0x5f0] sm:$0xf]
  %v446 = vld [vmem:[%s1 + $0x5f4] sm:$0xf]
  %v447 = vld [vmem:[%s1 + $0x5f8] sm:$0xf]
  %v448 = vld [vmem:[%s1 + $0x5fc] sm:$0xf]
  %v449 = vld [vmem:[%s1 + $0x600] sm:$0xf]
  %v450 = vld [vmem:[%s1 + $0x604] sm:$0xf]
  %v451 = vld [vmem:[%s1 + $0x608] sm:$0xf]
  %v452 = vld [vmem:[%s1 + $0x60c] sm:$0xf]
  %v453 = vld [vmem:[%s1 + $0x610] sm:$0xf]
  %v454 = vld [vmem:[%s1 + $0x614] sm:$0xf]
  %v455 = vld [vmem:[%s1 + $0x618] sm:$0xf]
  %v456 = vld [vmem:[%s1 + $0x61c] sm:$0xf]
  %v457 = vld [vmem:[%s1 + $0x620] sm:$0xf]
  %v458 = vld [vmem:[%s1 + $0x624] sm:$0xf]
  %v459 = vld [vmem:[%s1 + $0x628] sm:$0xf]
  %v460 = vld [vmem:[%s1 + $0x62c] sm:$0xf]
  %v461 = vld [vmem:[%s1 + $0x630] sm:$0xf]
  %v462 = vld [vmem:[%s1 + $0x634] sm:$0xf]
  %v463 = vld [vmem:[%s1 + $0x638] sm:$0xf]
  %v464 = vld [vmem:[%s1 + $0x63c] sm:$0xf]
  %v465 = vld [vmem:[%s1 + $0x640] sm:$0xf]
  %v466 = vld [vmem:[%s1 + $0x644] sm:$0xf]
  %v467 = vld [vmem:[%s1 + $0x648] sm:$0xf]
  %v468 = vld [vmem:[%s1 + $0x64c] sm:$0xf]
  %v469 = vld [vmem:[%s1 + $0x650] sm:$0xf]
  %v470 = vld [vmem:[%s1 + $0x654] sm:$0xf]
  %v471 = vld [vmem:[%s1 + $0x658] sm:$0xf]
  %v472 = vld [vmem:[%s1 + $0x65c] sm:$0xf]
  %v473 = vld [vmem:[%s1 + $0x660] sm:$0xf]
  %v474 = vld [vmem:[%s1 + $0x664] sm:$0xf]
  %v475 = vld [vmem:[%s1 + $0x668] sm:$0xf]
  %v476 = vld [vmem:[%s1 + $0x66c] sm:$0xf]
  %v477 = vld [vmem:[%s1 + $0x670] sm:$0xf]
  %v478 = vld [vmem:[%s1 + $0x674] sm:$0xf]
  %v479 = vld [vmem:[%s1 + $0x678] sm:$0xf]
  %v480 = vld [vmem:[%s1 + $0x67c] sm:$0xf]
  %v481 = vld [vmem:[%s1 + $0x680] sm:$0xf]
  %v482 = vld [vmem:[%s1 + $0x684] sm:$0xf]
  %v483 = vld [vmem:[%s1 + $0x688] sm:$0xf]
  %v484 = vld [vmem:[%s1 + $0x68c] sm:$0xf]
  %v485 = vld [vmem:[%s1 + $0x690] sm:$0xf]
  %v486 = vld [vmem:[%s1 + $0x694] sm:$0xf]
  %v487 = vld [vmem:[%s1 + $0x698] sm:$0xf]
  %v488 = vld [vmem:[%s1 + $0x69c] sm:$0xf]
  %v489 = vld [vmem:[%s1 + $0x6a0] sm:$0xf]
  %v490 = vld [vmem:[%s1 + $0x6a4] sm:$0xf]
  %v491 = vld [vmem:[%s1 + $0x6a8] sm:$0xf]
  %v492 = vld [vmem:[%s1 + $0x6ac] sm:$0xf]
  %v493 = vld [vmem:[%s1 + $0x6b0] sm:$0xf]
  %v494 = vld [vmem:[%s1 + $0x6b4] sm:$0xf]
  %v495 = vld [vmem:[%s1 + $0x6b8] sm:$0xf]
  %v496 = vld [vmem:[%s1 + $0x6bc] sm:$0xf]
  %v497 = vld [vmem:[%s1 + $0x6c0] sm:$0xf]
  %v498 = vld [vmem:[%s1 + $0x6c4] sm:$0xf]
  %v499 = vld [vmem:[%s1 + $0x6c8] sm:$0xf]
  %v500 = vld [vmem:[%s1 + $0x6cc] sm:$0xf]
  %v501 = vld [vmem:[%s1 + $0x6d0] sm:$0xf]
  %v502 = vld [vmem:[%s1 + $0x6d4] sm:$0xf]
  %v503 = vld [vmem:[%s1 + $0x6d8] sm:$0xf]
  %v504 = vld [vmem:[%s1 + $0x6dc] sm:$0xf]
  %v505 = vld [vmem:[%s1 + $0x6e0] sm:$0xf]
  %v506 = vld [vmem:[%s1 + $0x6e4] sm:$0xf]
  %v507 = vld [vmem:[%s1 + $0x6e8] sm:$0xf]
  %v508 = vld [vmem:[%s1 + $0x6ec] sm:$0xf]
  %v509 = vld [vmem:[%s1 + $0x6f0] sm:$0xf]
  %v510 = vld [vmem:[%s1 + $0x6f4] sm:$0xf]
  %v511 = vld [vmem:[%s1 + $0x6f8] sm:$0xf]
  %v512 = vld [vmem:[%s1 + $0x6fc] sm:$0xf]
  %v513 = vld [vmem:[%s1 + $0x700] sm:$0xf]
  %v514 = vld [vmem:[%s1 + $0x704] sm:$0xf]
  %v515 = vld [vmem:[%s1 + $0x708] sm:$0xf]
  %v516 = vld [vmem:[%s1 + $0x70c] sm:$0xf]
  %v517 = vld [vmem:[%s1 + $0x710] sm:$0xf]
  %v518 = vld [vmem:[%s1 + $0x714] sm:$0xf]
  %v519 = vld [vmem:[%s1 + $0x718] sm:$0xf]
  %v520 = vld [vmem:[%s1 + $0x71c] sm:$0xf]
  %v521 = vld [vmem:[%s1 + $0x720] sm:$0xf]
  %v522 = vld [vmem:[%s1 + $0x724] sm:$0xf]
  %v523 = vld [vmem:[%s1 + $0x728] sm:$0xf]
  %v524 = vld [vmem:[%s1 + $0x72c] sm:$0xf]
  %v525 = vld [vmem:[%s1 + $0x730] sm:$0xf]
  %v526 = vld [vmem:[%s1 + $0x734] sm:$0xf]
  %v527 = vld [vmem:[%s1 + $0x738] sm:$0xf]
  %v528 = vld [vmem:[%s1 + $0x73c] sm:$0xf]
  %v529 = vld [vmem:[%s1 + $0x740] sm:$0xf]
  %v530 = vld [vmem:[%s1 + $0x744] sm:$0xf]
  %v531 = vld [vmem:[%s1 + $0x748] sm:$0xf]
  %v532 = vld [vmem:[%s1 + $0x74c] sm:$0xf]
  %v533 = vld [vmem:[%s1 + $0x750] sm:$0xf]
  %v534 = vld [vmem:[%s1 + $0x754] sm:$0xf]
  %v535 = vld [vmem:[%s1 + $0x758] sm:$0xf]
  %v536 = vld [vmem:[%s1 + $0x75c] sm:$0xf]
  %v537 = vld [vmem:[%s1 + $0x760] sm:$0xf]
  %v538 = vld [vmem:[%s1 + $0x764] sm:$0xf]
  %v539 = vld [vmem:[%s1 + $0x768] sm:$0xf]
  %v540 = vld [vmem:[%s1 + $0x76c] sm:$0xf]
  %v541 = vld [vmem:[%s1 + $0x770] sm:$0xf]
  %v542 = vld [vmem:[%s1 + $0x774] sm:$0xf]
  %v543 = vld [vmem:[%s1 + $0x778] sm:$0xf]
  %v544 = vld [vmem:[%s1 + $0x77c] sm:$0xf]
  %v545 = vld [vmem:[%s1 + $0x780] sm:$0xf]
  %v546 = vld [vmem:[%s1 + $0x784] sm:$0xf]
  %v547 = vld [vmem:[%s1 + $0x788] sm:$0xf]
  %v548 = vld [vmem:[%s1 + $0x78c] sm:$0xf]
  %v549 = vld [vmem:[%s1 + $0x790] sm:$0xf]
  %v550 = vld [vmem:[%s1 + $0x794] sm:$0xf]
  %v551 = vld [vmem:[%s1 + $0x798] sm:$0xf]
  %v552 = vld [vmem:[%s1 + $0x79c] sm:$0xf]
  %v553 = vld [vmem:[%s1 + $0x7a0] sm:$0xf]
  %v554 = vld [vmem:[%s1 + $0x7a4] sm:$0xf]
  %v555 = vld [vmem:[%s1 + $0x7a8] sm:$0xf]
  %v556 = vld [vmem:[%s1 + $0x7ac] sm:$0xf]
  %v557 = vld [vmem:[%s1 + $0x7b0] sm:$0xf]
  %v558 = vld [vmem:[%s1 + $0x7b4] sm:$0xf]
  %v559 = vld [vmem:[%s1 + $0x7b8] sm:$0xf]
  %v560 = vld [vmem:[%s1 + $0x7bc] sm:$0xf]
  %v561 = vld [vmem:[%s1 + $0x7c0] sm:$0xf]
  %v562 = vld [vmem:[%s1 + $0x7c4] sm:$0xf]
  %v563 = vld [vmem:[%s1 + $0x7c8] sm:$0xf]
  %v564 = vld [vmem:[%s1 + $0x7cc] sm:$0xf]
  %v565 = vld [vmem:[%s1 + $0x7d0] sm:$0xf]
  %v566 = vld [vmem:[%s1 + $0x7d4] sm:$0xf]
  %v567 = vld [vmem:[%s1 + $0x7d8] sm:$0xf]
  %v568 = vld [vmem:[%s1 + $0x7dc] sm:$0xf]
  %v569 = vld [vmem:[%s1 + $0x7e0] sm:$0xf]
  %v570 = vld [vmem:[%s1 + $0x7e4] sm:$0xf]
  %v571 = vld [vmem:[%s1 + $0x7e8] sm:$0xf]
  %v572 = vld [vmem:[%s1 + $0x7ec] sm:$0xf]
  %v573 = vld [vmem:[%s1 + $0x7f0] sm:$0xf]
  %v574 = vld [vmem:[%s1 + $0x7f4] sm:$0xf]
  %v575 = vld [vmem:[%s1 + $0x7f8] sm:$0xf]
  %v576 = vld [vmem:[%s1 + $0x7fc] sm:$0xf]
  %v577 = vld [vmem:[%s1 + $0x800] sm:$0xf]
  %v578 = vld [vmem:[%s1 + $0x804] sm:$0xf]
  %v579 = vld [vmem:[%s1 + $0x808] sm:$0xf]
  %v580 = vld [vmem:[%s1 + $0x80c] sm:$0xf]
  %v581 = vld [vmem:[%s1 + $0x810] sm:$0xf]
  %v582 = vld [vmem:[%s1 + $0x814] sm:$0xf]
  %v583 = vld [vmem:[%s1 + $0x818] sm:$0xf]
  %v584 = vld [vmem:[%s1 + $0x81c] sm:$0xf]
  %v585 = vld [vmem:[%s1 + $0x820] sm:$0xf]
  %v586 = vld [vmem:[%s1 + $0x824] sm:$0xf]
  %v587 = vld [vmem:[%s1 + $0x828] sm:$0xf]
  %v588 = vld [vmem:[%s1 + $0x82c] sm:$0xf]
  %v589 = vld [vmem:[%s1 + $0x830] sm:$0xf]
  %v590 = vld [vmem:[%s1 + $0x834] sm:$0xf]
  %v591 = vld [vmem:[%s1 + $0x838] sm:$0xf]
  %v592 = vld [vmem:[%s1 + $0x83c] sm:$0xf]
  %v593 = vld [vmem:[%s1 + $0x840] sm:$0xf]
  %v594 = vld [vmem:[%s1 + $0x844] sm:$0xf]
  %v595 = vld [vmem:[%s1 + $0x848] sm:$0xf]
  %v596 = vld [vmem:[%s1 + $0x84c] sm:$0xf]
  %v597 = vld [vmem:[%s1 + $0x850] sm:$0xf]
  %v598 = vld [vmem:[%s1 + $0x854] sm:$0xf]
  %v599 = vld [vmem:[%s1 + $0x858] sm:$0xf]
  %v600 = vld [vmem:[%s1 + $0x85c] sm:$0xf]
  %v601 = vld [vmem:[%s1 + $0x860] sm:$0xf]
  %v602 = vld [vmem:[%s1 + $0x864] sm:$0xf]
  %v603 = vld [vmem:[%s1 + $0x868] sm:$0xf]
  %v604 = vld [vmem:[%s1 + $0x86c] sm:$0xf]
  %v605 = vld [vmem:[%s1 + $0x870] sm:$0xf]
  %v606 = vld [vmem:[%s1 + $0x874] sm:$0xf]
  %v607 = vld [vmem:[%s1 + $0x878] sm:$0xf]
  %v608 = vld [vmem:[%s1 + $0x87c] sm:$0xf]
  %v609 = vld [vmem:[%s1 + $0x880] sm:$0xf]
  %v610 = vld [vmem:[%s1 + $0x884] sm:$0xf]
  %v611 = vld [vmem:[%s1 + $0x888] sm:$0xf]
  %v612 = vld [vmem:[%s1 + $0x88c] sm:$0xf]
  %v613 = vld [vmem:[%s1 + $0x890] sm:$0xf]
  %v614 = vld [vmem:[%s1 + $0x894] sm:$0xf]
  %v615 = vld [vmem:[%s1 + $0x898] sm:$0xf]
  %v616 = vld [vmem:[%s1 + $0x89c] sm:$0xf]
  %v617 = vld [vmem:[%s1 + $0x8a0] sm:$0xf]
  %v618 = vld [vmem:[%s1 + $0x8a4] sm:$0xf]
  %v619 = vld [vmem:[%s1 + $0x8a8] sm:$0xf]
  %v620 = vld [vmem:[%s1 + $0x8ac] sm:$0xf]
  %v621 = vld [vmem:[%s1 + $0x8b0] sm:$0xf]
  %v622 = vld [vmem:[%s1 + $0x8b4] sm:$0xf]
  %v623 = vld [vmem:[%s1 + $0x8b8] sm:$0xf]
  %v624 = vld [vmem:[%s1 + $0x8bc] sm:$0xf]
  %v625 = vld [vmem:[%s1 + $0x8c0] sm:$0xf]
  %v626 = vld [vmem:[%s1 + $0x8c4] sm:$0xf]
  %v627 = vld [vmem:[%s1 + $0x8c8] sm:$0xf]
  %v628 = vld [vmem:[%s1 + $0x8cc] sm:$0xf]
  %v629 = vld [vmem:[%s1 + $0x8d0] sm:$0xf]
  %v630 = vld [vmem:[%s1 + $0x8d4] sm:$0xf]
  %v631 = vld [vmem:[%s1 + $0x8d8] sm:$0xf]
  %v632 = vld [vmem:[%s1 + $0x8dc] sm:$0xf]
  %v633 = vld [vmem:[%s1 + $0x8e0] sm:$0xf]
  %v634 = vld [vmem:[%s1 + $0x8e4] sm:$0xf]
  %v635 = vld [vmem:[%s1 + $0x8e8] sm:$0xf]
  %v636 = vld [vmem:[%s1 + $0x8ec] sm:$0xf]
  %v637 = vld [vmem:[%s1 + $0x8f0] sm:$0xf]
  %v638 = vld [vmem:[%s1 + $0x8f4] sm:$0xf]
  %v639 = vld [vmem:[%s1 + $0x8f8] sm:$0xf]
  %v640 = vld [vmem:[%s1 + $0x8fc] sm:$0xf]
  %v641 = vld [vmem:[%s1 + $0x900] sm:$0xf]
  %v642 = vld [vmem:[%s1 + $0x904] sm:$0xf]
  %v643 = vld [vmem:[%s1 + $0x908] sm:$0xf]
  %v644 = vld [vmem:[%s1 + $0x90c] sm:$0xf]
  %v645 = vld [vmem:[%s1 + $0x910] sm:$0xf]
  %v646 = vld [vmem:[%s1 + $0x914] sm:$0xf]
  %v647 = vld [vmem:[%s1 + $0x918] sm:$0xf]
  %v648 = vld [vmem:[%s1 + $0x91c] sm:$0xf]
  %v649 = vld [vmem:[%s1 + $0x920] sm:$0xf]
  %v650 = vld [vmem:[%s1 + $0x924] sm:$0xf]
  %v651 = vld [vmem:[%s1 + $0x928] sm:$0xf]
  %v652 = vld [vmem:[%s1 + $0x92c] sm:$0xf]
  %v653 = vld [vmem:[%s1 + $0x930] sm:$0xf]
  %v654 = vld [vmem:[%s1 + $0x934] sm:$0xf]
  %v655 = vld [vmem:[%s1 + $0x938] sm:$0xf]
  %v656 = vld [vmem:[%s1 + $0x93c] sm:$0xf]
  %v657 = vld [vmem:[%s1 + $0x940] sm:$0xf]
  %v658 = vld [vmem:[%s1 + $0x944] sm:$0xf]
  %v659 = vld [vmem:[%s1 + $0x948] sm:$0xf]
  %v660 = vld [vmem:[%s1 + $0x94c] sm:$0xf]
  %v661 = vld [vmem:[%s1 + $0x950] sm:$0xf]
  %v662 = vld [vmem:[%s1 + $0x954] sm:$0xf]
  %v663 = vld [vmem:[%s1 + $0x958] sm:$0xf]
  %v664 = vld [vmem:[%s1 + $0x95c] sm:$0xf]
  %v665 = vld [vmem:[%s1 + $0x960] sm:$0xf]
  %v666 = vld [vmem:[%s1 + $0x964] sm:$0xf]
  %v667 = vld [vmem:[%s1 + $0x968] sm:$0xf]
  %v668 = vld [vmem:[%s1 + $0x96c] sm:$0xf]
  %v669 = vld [vmem:[%s1 + $0x970] sm:$0xf]
  %v670 = vld [vmem:[%s1 + $0x974] sm:$0xf]
  %v671 = vld [vmem:[%s1 + $0x978] sm:$0xf]
  %v672 = vld [vmem:[%s1 + $0x97c] sm:$0xf]
  %v673 = vld [vmem:[%s1 + $0x980] sm:$0xf]
  %v674 = vld [vmem:[%s1 + $0x984] sm:$0xf]
  %v675 = vld [vmem:[%s1 + $0x988] sm:$0xf]
  %v676 = vld [vmem:[%s1 + $0x98c] sm:$0xf]
  %v677 = vld [vmem:[%s1 + $0x990] sm:$0xf]
  %v678 = vld [vmem:[%s1 + $0x994] sm:$0xf]
  %v679 = vld [vmem:[%s1 + $0x998] sm:$0xf]
  %v680 = vld [vmem:[%s1 + $0x99c] sm:$0xf]
  %v681 = vld [vmem:[%s1 + $0x9a0] sm:$0xf]
  %v682 = vld [vmem:[%s1 + $0x9a4] sm:$0xf]
  %v683 = vld [vmem:[%s1 + $0x9a8] sm:$0xf]
  %v684 = vld [vmem:[%s1 + $0x9ac] sm:$0xf]
  %v685 = vld [vmem:[%s1 + $0x9b0] sm:$0xf]
  %v686 = vld [vmem:[%s1 + $0x9b4] sm:$0xf]
  %v687 = vld [vmem:[%s1 + $0x9b8] sm:$0xf]
  %v688 = vld [vmem:[%s1 + $0x9bc] sm:$0xf]
  %v689 = vld [vmem:[%s1 + $0x9c0] sm:$0xf]
  %v690 = vld [vmem:[%s1 + $0x9c4] sm:$0xf]
  %v691 = vld [vmem:[%s1 + $0x9c8] sm:$0xf]
  %v692 = vld [vmem:[%s1 + $0x9cc] sm:$0xf]
  %v693 = vld [vmem:[%s1 + $0x9d0] sm:$0xf]
  %v694 = vld [vmem:[%s1 + $0x9d4] sm:$0xf]
  %v695 = vld [vmem:[%s1 + $0x9d8] sm:$0xf]
  %v696 = vld [vmem:[%s1 + $0x9dc] sm:$0xf]
  %v697 = vld [vmem:[%s1 + $0x9e0] sm:$0xf]
  %v698 = vld [vmem:[%s1 + $0x9e4] sm:$0xf]
  %v699 = vld [vmem:[%s1 + $0x9e8] sm:$0xf]
  %v700 = vld [vmem:[%s1 + $0x9ec] sm:$0xf]
  %v701 = vld [vmem:[%s1 + $0x9f0] sm:$0xf]
  %v702 = vld [vmem:[%s1 + $0x9f4] sm:$0xf]
  %v703 = vld [vmem:[%s1 + $0x9f8] sm:$0xf]
  %v704 = vld [vmem:[%s1 + $0x9fc] sm:$0xf]
  %v705 = vld [vmem:[%s1 + $0xa00] sm:$0xf]
  %v706 = vld [vmem:[%s1 + $0xa04] sm:$0xf]
  %v707 = vld [vmem:[%s1 + $0xa08] sm:$0xf]
  %v708 = vld [vmem:[%s1 + $0xa0c] sm:$0xf]
  %v709 = vld [vmem:[%s1 + $0xa10] sm:$0xf]
  %v710 = vld [vmem:[%s1 + $0xa14] sm:$0xf]
  %v711 = vld [vmem:[%s1 + $0xa18] sm:$0xf]
  %v712 = vld [vmem:[%s1 + $0xa1c] sm:$0xf]
  %v713 = vld [vmem:[%s1 + $0xa20] sm:$0xf]
  %v714 = vld [vmem:[%s1 + $0xa24] sm:$0xf]
  %v715 = vld [vmem:[%s1 + $0xa28] sm:$0xf]
  %v716 = vld [vmem:[%s1 + $0xa2c] sm:$0xf]
  %v717 = vld [vmem:[%s1 + $0xa30] sm:$0xf]
  %v718 = vld [vmem:[%s1 + $0xa34] sm:$0xf]
  %v719 = vld [vmem:[%s1 + $0xa38] sm:$0xf]
  %v720 = vld [vmem:[%s1 + $0xa3c] sm:$0xf]
  %v721 = vld [vmem:[%s1 + $0xa40] sm:$0xf]
  %v722 = vld [vmem:[%s1 + $0xa44] sm:$0xf]
  %v723 = vld [vmem:[%s1 + $0xa48] sm:$0xf]
  %v724 = vld [vmem:[%s1 + $0xa4c] sm:$0xf]
  %v725 = vld [vmem:[%s1 + $0xa50] sm:$0xf]
  %v726 = vld [vmem:[%s1 + $0xa54] sm:$0xf]
  %v727 = vld [vmem:[%s1 + $0xa58] sm:$0xf]
  %v728 = vld [vmem:[%s1 + $0xa5c] sm:$0xf]
  %v729 = vld [vmem:[%s1 + $0xa60] sm:$0xf]
  %v730 = vld [vmem:[%s1 + $0xa64] sm:$0xf]
  %v731 = vld [vmem:[%s1 + $0xa68] sm:$0xf]
  %v732 = vld [vmem:[%s1 + $0xa6c] sm:$0xf]
  %v733 = vld [vmem:[%s1 + $0xa70] sm:$0xf]
  %v734 = vld [vmem:[%s1 + $0xa74] sm:$0xf]
  %v735 = vld [vmem:[%s1 + $0xa78] sm:$0xf]
  %v736 = vld [vmem:[%s1 + $0xa7c] sm:$0xf]
  %v737 = vld [vmem:[%s1 + $0xa80] sm:$0xf]
  %v738 = vld [vmem:[%s1 + $0xa84] sm:$0xf]
  %v739 = vld [vmem:[%s1 + $0xa88] sm:$0xf]
  %v740 = vld [vmem:[%s1 + $0xa8c] sm:$0xf]
  %v741 = vld [vmem:[%s1 + $0xa90] sm:$0xf]
  %v742 = vld [vmem:[%s1 + $0xa94] sm:$0xf]
  %v743 = vld [vmem:[%s1 + $0xa98] sm:$0xf]
  %v744 = vld [vmem:[%s1 + $0xa9c] sm:$0xf]
  %v745 = vld [vmem:[%s1 + $0xaa0] sm:$0xf]
  %v746 = vld [vmem:[%s1 + $0xaa4] sm:$0xf]
  %v747 = vld [vmem:[%s1 + $0xaa8] sm:$0xf]
  %v748 = vld [vmem:[%s1 + $0xaac] sm:$0xf]
  %v749 = vld [vmem:[%s1 + $0xab0] sm:$0xf]
  %v750 = vld [vmem:[%s1 + $0xab4] sm:$0xf]
  %v751 = vld [vmem:[%s1 + $0xab8] sm:$0xf]
  %v752 = vld [vmem:[%s1 + $0xabc] sm:$0xf]
  %v753 = vld [vmem:[%s1 + $0xac0] sm:$0xf]
  %v754 = vld [vmem:[%s1 + $0xac4] sm:$0xf]
  %v755 = vld [vmem:[%s1 + $0xac8] sm:$0xf]
  %v756 = vld [vmem:[%s1 + $0xacc] sm:$0xf]
  %v757 = vld [vmem:[%s1 + $0xad0] sm:$0xf]
  %v758 = vld [vmem:[%s1 + $0xad4] sm:$0xf]
  %v759 = vld [vmem:[%s1 + $0xad8] sm:$0xf]
  %v760 = vld [vmem:[%s1 + $0xadc] sm:$0xf]
  %v761 = vld [vmem:[%s1 + $0xae0] sm:$0xf]
  %v762 = vld [vmem:[%s1 + $0xae4] sm:$0xf]
  %v763 = vld [vmem:[%s1 + $0xae8] sm:$0xf]
  %v764 = vld [vmem:[%s1 + $0xaec] sm:$0xf]
  %v765 = vld [vmem:[%s1 + $0xaf0] sm:$0xf]
  %v766 = vld [vmem:[%s1 + $0xaf4] sm:$0xf]
  %v767 = vld [vmem:[%s1 + $0xaf8] sm:$0xf]
  %v768 = vld [vmem:[%s1 + $0xafc] sm:$0xf]
  %v769 = vld [vmem:[%s1 + $0xb00] sm:$0xf]
  %v770 = vld [vmem:[%s1 + $0xb04] sm:$0xf]
  %v771 = vld [vmem:[%s1 + $0xb08] sm:$0xf]
  %v772 = vld [vmem:[%s1 + $0xb0c] sm:$0xf]
  %v773 = vld [vmem:[%s1 + $0xb10] sm:$0xf]
  %v774 = vld [vmem:[%s1 + $0xb14] sm:$0xf]
  %v775 = vld [vmem:[%s1 + $0xb18] sm:$0xf]
  %v776 = vld [vmem:[%s1 + $0xb1c] sm:$0xf]
  %v777 = vld [vmem:[%s1 + $0xb20] sm:$0xf]
  %v778 = vld [vmem:[%s1 + $0xb24] sm:$0xf]
  %v779 = vld [vmem:[%s1 + $0xb28] sm:$0xf]
  %v780 = vld [vmem:[%s1 + $0xb2c] sm:$0xf]
  %v781 = vld [vmem:[%s1 + $0xb30] sm:$0xf]
  %v782 = vld [vmem:[%s1 + $0xb34] sm:$0xf]
  %v783 = vld [vmem:[%s1 + $0xb38] sm:$0xf]
  %v784 = vld [vmem:[%s1 + $0xb3c] sm:$0xf]
  %v785 = vld [vmem:[%s1 + $0xb40] sm:$0xf]
  %v786 = vld [vmem:[%s1 + $0xb44] sm:$0xf]
  %v787 = vld [vmem:[%s1 + $0xb48] sm:$0xf]
  %v788 = vld [vmem:[%s1 + $0xb4c] sm:$0xf]
  %v789 = vld [vmem:[%s1 + $0xb50] sm:$0xf]
  %v790 = vld [vmem:[%s1 + $0xb54] sm:$0xf]
  %v791 = vld [vmem:[%s1 + $0xb58] sm:$0xf]
  %v792 = vld [vmem:[%s1 + $0xb5c] sm:$0xf]
  %v793 = vld [vmem:[%s1 + $0xb60] sm:$0xf]
  %v794 = vld [vmem:[%s1 + $0xb64] sm:$0xf]
  %v795 = vld [vmem:[%s1 + $0xb68] sm:$0xf]
  %v796 = vld [vmem:[%s1 + $0xb6c] sm:$0xf]
  %v797 = vld [vmem:[%s1 + $0xb70] sm:$0xf]
  %v798 = vld [vmem:[%s1 + $0xb74] sm:$0xf]
  %v799 = vld [vmem:[%s1 + $0xb78] sm:$0xf]
  %v800 = vld [vmem:[%s1 + $0xb7c] sm:$0xf]
  %v801 = vld [vmem:[%s1 + $0xb80] sm:$0xf]
  %v802 = vld [vmem:[%s1 + $0xb84] sm:$0xf]
  %v803 = vld [vmem:[%s1 + $0xb88] sm:$0xf]
  %v804 = vld [vmem:[%s1 + $0xb8c] sm:$0xf]
  %v805 = vld [vmem:[%s1 + $0xb90] sm:$0xf]
  %v806 = vld [vmem:[%s1 + $0xb94] sm:$0xf]
  %v807 = vld [vmem:[%s1 + $0xb98] sm:$0xf]
  %v808 = vld [vmem:[%s1 + $0xb9c] sm:$0xf]
  %v809 = vld [vmem:[%s1 + $0xba0] sm:$0xf]
  %v810 = vld [vmem:[%s1 + $0xba4] sm:$0xf]
  %v811 = vld [vmem:[%s1 + $0xba8] sm:$0xf]
  %v812 = vld [vmem:[%s1 + $0xbac] sm:$0xf]
  %v813 = vld [vmem:[%s1 + $0xbb0] sm:$0xf]
  %v814 = vld [vmem:[%s1 + $0xbb4] sm:$0xf]
  %v815 = vld [vmem:[%s1 + $0xbb8] sm:$0xf]
  %v816 = vld [vmem:[%s1 + $0xbbc] sm:$0xf]
  %v817 = vld [vmem:[%s1 + $0xbc0] sm:$0xf]
  %v818 = vld [vmem:[%s1 + $0xbc4] sm:$0xf]
  %v819 = vld [vmem:[%s1 + $0xbc8] sm:$0xf]
  %v820 = vld [vmem:[%s1 + $0xbcc] sm:$0xf]
  %v821 = vld [vmem:[%s1 + $0xbd0] sm:$0xf]
  %v822 = vld [vmem:[%s1 + $0xbd4] sm:$0xf]
  %v823 = vld [vmem:[%s1 + $0xbd8] sm:$0xf]
  %v824 = vld [vmem:[%s1 + $0xbdc] sm:$0xf]
  %v825 = vld [vmem:[%s1 + $0xbe0] sm:$0xf]
  %v826 = vld [vmem:[%s1 + $0xbe4] sm:$0xf]
  %v827 = vld [vmem:[%s1 + $0xbe8] sm:$0xf]
  %v828 = vld [vmem:[%s1 + $0xbec] sm:$0xf]
  %v829 = vld [vmem:[%s1 + $0xbf0] sm:$0xf]
  %v830 = vld [vmem:[%s1 + $0xbf4] sm:$0xf]
  %v831 = vld [vmem:[%s1 + $0xbf8] sm:$0xf]
  %v832 = vld [vmem:[%s1 + $0xbfc] sm:$0xf]
  %v833 = vld [vmem:[%s1 + $0xc00] sm:$0xf]
  %v834 = vld [vmem:[%s1 + $0xc04] sm:$0xf]
  %v835 = vld [vmem:[%s1 + $0xc08] sm:$0xf]
  %v836 = vld [vmem:[%s1 + $0xc0c] sm:$0xf]
  %v837 = vld [vmem:[%s1 + $0xc10] sm:$0xf]
  %v838 = vld [vmem:[%s1 + $0xc14] sm:$0xf]
  %v839 = vld [vmem:[%s1 + $0xc18] sm:$0xf]
  %v840 = vld [vmem:[%s1 + $0xc1c] sm:$0xf]
  %v841 = vld [vmem:[%s1 + $0xc20] sm:$0xf]
  %v842 = vld [vmem:[%s1 + $0xc24] sm:$0xf]
  %v843 = vld [vmem:[%s1 + $0xc28] sm:$0xf]
  %v844 = vld [vmem:[%s1 + $0xc2c] sm:$0xf]
  %v845 = vld [vmem:[%s1 + $0xc30] sm:$0xf]
  %v846 = vld [vmem:[%s1 + $0xc34] sm:$0xf]
  %v847 = vld [vmem:[%s1 + $0xc38] sm:$0xf]
  %v848 = vld [vmem:[%s1 + $0xc3c] sm:$0xf]
  %v849 = vld [vmem:[%s2] sm:$0x1]
  %v851 = vlaneseq
  %v852 = vshrl.u32 %v851, 7
  %v853 = vsub.s32 0, %v852
  %v854 = vrot.slane %v849, %v853
  %v906 = vunpack.c.l.b16 %v15
  %v907 = vunpack.c.h.b16 %v15
  %v908 = vunpack.c.l.b16 %v16
  %v909 = vunpack.c.h.b16 %v16
  %v910 = vunpack.c.l.b16 %v17
  %v911 = vunpack.c.h.b16 %v17
  %v912 = vunpack.c.l.b16 %v18
  %v913 = vunpack.c.h.b16 %v18
  %v914 = vunpack.c.l.b16 %v19
  %v915 = vunpack.c.h.b16 %v19
  %v916 = vunpack.c.l.b16 %v20
  %v917 = vunpack.c.h.b16 %v20
  %v918 = vunpack.c.l.b16 %v21
  %v919 = vunpack.c.h.b16 %v21
  %v920 = vunpack.c.l.b16 %v22
  %v921 = vunpack.c.h.b16 %v22
  %v922 = vunpack.c.l.b16 %v23
  %v923 = vunpack.c.h.b16 %v23
  %v924 = vunpack.c.l.b16 %v24
  %v925 = vunpack.c.h.b16 %v24
  %v926 = vunpack.c.l.b16 %v25
  %v927 = vunpack.c.h.b16 %v25
  %v928 = vunpack.c.l.b16 %v26
  %v929 = vunpack.c.h.b16 %v26
  %v930 = vunpack.c.l.b16 %v27
  %v931 = vunpack.c.h.b16 %v27
  %v932 = vunpack.c.l.b16 %v28
  %v933 = vunpack.c.h.b16 %v28
  %v934 = vunpack.c.l.b16 %v29
  %v935 = vunpack.c.h.b16 %v29
  %v936 = vunpack.c.l.b16 %v30
  %v937 = vunpack.c.h.b16 %v30
  %v938 = vunpack.c.l.b16 %v31
  %v939 = vunpack.c.h.b16 %v31
  %v940 = vunpack.c.l.b16 %v32
  %v941 = vunpack.c.h.b16 %v32
  %v942 = vunpack.c.l.b16 %v33
  %v943 = vunpack.c.h.b16 %v33
  %v944 = vunpack.c.l.b16 %v34
  %v945 = vunpack.c.h.b16 %v34
  %v946 = vunpack.c.l.b16 %v35
  %v947 = vunpack.c.h.b16 %v35
  %v948 = vunpack.c.l.b16 %v36
  %v949 = vunpack.c.h.b16 %v36
  %v950 = vunpack.c.l.b16 %v37
  %v951 = vunpack.c.h.b16 %v37
  %v952 = vunpack.c.l.b16 %v38
  %v953 = vunpack.c.h.b16 %v38
  %v954 = vunpack.c.l.b16 %v39
  %v955 = vunpack.c.l.b16 %v40
  %v956 = vunpack.c.h.b16 %v40
  %v957 = vunpack.c.l.b16 %v41
  %v958 = vunpack.c.h.b16 %v41
  %v959 = vunpack.c.l.b16 %v42
  %v960 = vunpack.c.h.b16 %v42
  %v961 = vunpack.c.l.b16 %v43
  %v962 = vunpack.c.h.b16 %v43
  %v963 = vunpack.c.l.b16 %v44
  %v964 = vunpack.c.h.b16 %v44
  %v965 = vunpack.c.l.b16 %v45
  %v966 = vunpack.c.h.b16 %v45
  %v967 = vunpack.c.l.b16 %v46
  %v968 = vunpack.c.h.b16 %v46
  %v969 = vunpack.c.l.b16 %v47
  %v970 = vunpack.c.h.b16 %v47
  %v971 = vunpack.c.l.b16 %v48
  %v972 = vunpack.c.h.b16 %v48
  %v973 = vunpack.c.l.b16 %v49
  %v974 = vunpack.c.h.b16 %v49
  %v975 = vunpack.c.l.b16 %v50
  %v976 = vunpack.c.h.b16 %v50
  %v977 = vunpack.c.l.b16 %v51
  %v978 = vunpack.c.h.b16 %v51
  %v979 = vunpack.c.l.b16 %v52
  %v980 = vunpack.c.h.b16 %v52
  %v981 = vunpack.c.l.b16 %v53
  %v982 = vunpack.c.h.b16 %v53
  %v983 = vunpack.c.l.b16 %v54
  %v984 = vunpack.c.h.b16 %v54
  %v985 = vunpack.c.l.b16 %v55
  %v986 = vunpack.c.h.b16 %v55
  %v987 = vunpack.c.l.b16 %v56
  %v988 = vunpack.c.h.b16 %v56
  %v989 = vunpack.c.l.b16 %v57
  %v990 = vunpack.c.h.b16 %v57
  %v991 = vunpack.c.l.b16 %v58
  %v992 = vunpack.c.h.b16 %v58
  %v993 = vunpack.c.l.b16 %v59
  %v994 = vunpack.c.h.b16 %v59
  %v995 = vunpack.c.l.b16 %v60
  %v996 = vunpack.c.h.b16 %v60
  %v997 = vunpack.c.l.b16 %v61
  %v998 = vunpack.c.h.b16 %v61
  %v999 = vunpack.c.l.b16 %v62
  %v1000 = vunpack.c.h.b16 %v62
  %v1001 = vunpack.c.l.b16 %v63
  %v1002 = vunpack.c.h.b16 %v63
  %v1003 = vunpack.c.l.b16 %v64
  %v1004 = vpack.c.b16 %v955, %v906
  %v1005 = vpack.c.b16 %v956, %v907
  %v1006 = vpack.c.b16 %v957, %v908
  %v1007 = vpack.c.b16 %v958, %v909
  %v1008 = vpack.c.b16 %v959, %v910
  %v1009 = vpack.c.b16 %v960, %v911
  %v1010 = vpack.c.b16 %v961, %v912
  %v1011 = vpack.c.b16 %v962, %v913
  %v1012 = vpack.c.b16 %v963, %v914
  %v1013 = vpack.c.b16 %v964, %v915
  %v1014 = vpack.c.b16 %v965, %v916
  %v1015 = vpack.c.b16 %v966, %v917
  %v1016 = vpack.c.b16 %v967, %v918
  %v1017 = vpack.c.b16 %v968, %v919
  %v1018 = vpack.c.b16 %v969, %v920
  %v1019 = vpack.c.b16 %v970, %v921
  %v1020 = vpack.c.b16 %v971, %v922
  %v1021 = vpack.c.b16 %v972, %v923
  %v1022 = vpack.c.b16 %v973, %v924
  %v1023 = vpack.c.b16 %v974, %v925
  %v1024 = vpack.c.b16 %v975, %v926
  %v1025 = vpack.c.b16 %v976, %v927
  %v1026 = vpack.c.b16 %v977, %v928
  %v1027 = vpack.c.b16 %v978, %v929
  %v1028 = vpack.c.b16 %v979, %v930
  %v1029 = vpack.c.b16 %v980, %v931
  %v1030 = vpack.c.b16 %v981, %v932
  %v1031 = vpack.c.b16 %v982, %v933
  %v1032 = vpack.c.b16 %v983, %v934
  %v1033 = vpack.c.b16 %v984, %v935
  %v1034 = vpack.c.b16 %v985, %v936
  %v1035 = vpack.c.b16 %v986, %v937
  %v1036 = vpack.c.b16 %v987, %v938
  %v1037 = vpack.c.b16 %v988, %v939
  %v1038 = vpack.c.b16 %v989, %v940
  %v1039 = vpack.c.b16 %v990, %v941
  %v1040 = vpack.c.b16 %v991, %v942
  %v1041 = vpack.c.b16 %v992, %v943
  %v1042 = vpack.c.b16 %v993, %v944
  %v1043 = vpack.c.b16 %v994, %v945
  %v1044 = vpack.c.b16 %v995, %v946
  %v1045 = vpack.c.b16 %v996, %v947
  %v1046 = vpack.c.b16 %v997, %v948
  %v1047 = vpack.c.b16 %v998, %v949
  %v1048 = vpack.c.b16 %v999, %v950
  %v1049 = vpack.c.b16 %v1000, %v951
  %v1050 = vpack.c.b16 %v1001, %v952
  %v1051 = vpack.c.b16 %v1002, %v953
  %v1052 = vpack.c.b16 %v1003, %v954
  %v1886 = vunpack.c.l.b16 %v65
  %v1887 = vunpack.c.l.b16 %v66
  %v1888 = vunpack.c.l.b16 %v67
  %v1889 = vunpack.c.l.b16 %v68
  %v1890 = vunpack.c.l.b16 %v69
  %v1891 = vunpack.c.l.b16 %v70
  %v1892 = vunpack.c.l.b16 %v71
  %v1893 = vunpack.c.l.b16 %v72
  %v1894 = vunpack.c.l.b16 %v73
  %v1895 = vunpack.c.l.b16 %v74
  %v1896 = vunpack.c.l.b16 %v75
  %v1897 = vunpack.c.l.b16 %v76
  %v1898 = vunpack.c.l.b16 %v77
  %v1899 = vunpack.c.l.b16 %v78
  %v1900 = vunpack.c.l.b16 %v79
  %v1901 = vunpack.c.l.b16 %v80
  %v1902 = vunpack.c.l.b16 %v81
  %v1903 = vunpack.c.l.b16 %v82
  %v1904 = vunpack.c.l.b16 %v83
  %v1905 = vunpack.c.l.b16 %v84
  %v1906 = vunpack.c.l.b16 %v85
  %v1907 = vunpack.c.l.b16 %v86
  %v1908 = vunpack.c.l.b16 %v87
  %v1909 = vunpack.c.l.b16 %v88
  %v1910 = vunpack.c.l.b16 %v89
  %v1911 = vunpack.c.l.b16 %v90
  %v1912 = vunpack.c.l.b16 %v91
  %v1913 = vunpack.c.l.b16 %v92
  %v1914 = vunpack.c.l.b16 %v93
  %v1915 = vunpack.c.l.b16 %v94
  %v1916 = vunpack.c.l.b16 %v95
  %v1917 = vunpack.c.l.b16 %v96
  %v1918 = vunpack.c.l.b16 %v97
  %v1919 = vunpack.c.l.b16 %v98
  %v1920 = vunpack.c.l.b16 %v99
  %v1921 = vunpack.c.l.b16 %v100
  %v1922 = vunpack.c.l.b16 %v101
  %v1923 = vunpack.c.l.b16 %v102
  %v1924 = vunpack.c.l.b16 %v103
  %v1925 = vunpack.c.l.b16 %v104
  %v1926 = vunpack.c.l.b16 %v105
  %v1927 = vunpack.c.l.b16 %v106
  %v1928 = vunpack.c.l.b16 %v107
  %v1929 = vunpack.c.l.b16 %v108
  %v1930 = vunpack.c.l.b16 %v109
  %v1931 = vunpack.c.l.b16 %v110
  %v1932 = vunpack.c.l.b16 %v111
  %v1933 = vunpack.c.l.b16 %v112
  %v1934 = vunpack.c.l.b16 %v113
  %v1935 = vunpack.c.l.b16 %v114
  %v1936 = vunpack.c.l.b16 %v115
  %v1937 = vunpack.c.l.b16 %v116
  %v1938 = vunpack.c.l.b16 %v117
  %v1939 = vunpack.c.l.b16 %v118
  %v1940 = vunpack.c.l.b16 %v119
  %v1941 = vunpack.c.l.b16 %v120
  %v1942 = vunpack.c.l.b16 %v121
  %v1943 = vunpack.c.l.b16 %v122
  %v1944 = vunpack.c.l.b16 %v123
  %v1945 = vunpack.c.l.b16 %v124
  %v1946 = vunpack.c.l.b16 %v125
  %v1947 = vunpack.c.l.b16 %v126
  %v1948 = vunpack.c.l.b16 %v127
  %v1949 = vunpack.c.l.b16 %v128
  %v1950 = vunpack.c.l.b16 %v129
  %v1951 = vunpack.c.l.b16 %v130
  %v1952 = vunpack.c.l.b16 %v131
  %v1953 = vunpack.c.l.b16 %v132
  %v1954 = vunpack.c.l.b16 %v133
  %v1955 = vunpack.c.l.b16 %v134
  %v1956 = vunpack.c.l.b16 %v135
  %v1957 = vunpack.c.l.b16 %v136
  %v1958 = vunpack.c.l.b16 %v137
  %v1959 = vunpack.c.l.b16 %v138
  %v1960 = vunpack.c.l.b16 %v139
  %v1961 = vunpack.c.l.b16 %v140
  %v1962 = vunpack.c.l.b16 %v141
  %v1963 = vunpack.c.l.b16 %v142
  %v1964 = vunpack.c.l.b16 %v143
  %v1965 = vunpack.c.l.b16 %v144
  %v1966 = vunpack.c.l.b16 %v145
  %v1967 = vunpack.c.l.b16 %v146
  %v1968 = vunpack.c.l.b16 %v147
  %v1969 = vunpack.c.l.b16 %v148
  %v1970 = vunpack.c.l.b16 %v149
  %v1971 = vunpack.c.l.b16 %v150
  %v1972 = vunpack.c.l.b16 %v151
  %v1973 = vunpack.c.l.b16 %v152
  %v1974 = vunpack.c.l.b16 %v153
  %v1975 = vunpack.c.l.b16 %v154
  %v1976 = vunpack.c.l.b16 %v155
  %v1977 = vunpack.c.l.b16 %v156
  %v1978 = vunpack.c.l.b16 %v157
  %v1979 = vunpack.c.l.b16 %v158
  %v1980 = vunpack.c.l.b16 %v159
  %v1981 = vunpack.c.l.b16 %v160
  %v1982 = vunpack.c.l.b16 %v161
  %v1983 = vunpack.c.l.b16 %v162
  %v1984 = vunpack.c.l.b16 %v163
  %v1985 = vunpack.c.l.b16 %v164
  %v1986 = vunpack.c.l.b16 %v165
  %v1987 = vunpack.c.l.b16 %v166
  %v1988 = vunpack.c.l.b16 %v167
  %v1989 = vunpack.c.l.b16 %v168
  %v1990 = vunpack.c.l.b16 %v169
  %v1991 = vunpack.c.l.b16 %v170
  %v1992 = vunpack.c.l.b16 %v171
  %v1993 = vunpack.c.l.b16 %v172
  %v1994 = vunpack.c.l.b16 %v173
  %v1995 = vunpack.c.l.b16 %v174
  %v1996 = vunpack.c.l.b16 %v175
  %v1997 = vunpack.c.l.b16 %v176
  %v1998 = vunpack.c.l.b16 %v177
  %v1999 = vunpack.c.l.b16 %v178
  %v2000 = vunpack.c.l.b16 %v179
  %v2001 = vunpack.c.l.b16 %v180
  %v2002 = vunpack.c.l.b16 %v181
  %v2003 = vunpack.c.l.b16 %v182
  %v2004 = vunpack.c.l.b16 %v183
  %v2005 = vunpack.c.l.b16 %v184
  %v2006 = vunpack.c.l.b16 %v185
  %v2007 = vunpack.c.l.b16 %v186
  %v2008 = vunpack.c.l.b16 %v187
  %v2009 = vunpack.c.l.b16 %v188
  %v2010 = vunpack.c.l.b16 %v189
  %v2011 = vunpack.c.l.b16 %v190
  %v2012 = vunpack.c.l.b16 %v191
  %v2013 = vunpack.c.l.b16 %v192
  %v2014 = vunpack.c.l.b16 %v193
  %v2015 = vunpack.c.l.b16 %v194
  %v2016 = vunpack.c.l.b16 %v195
  %v2017 = vunpack.c.l.b16 %v196
  %v2018 = vunpack.c.l.b16 %v197
  %v2019 = vunpack.c.l.b16 %v198
  %v2020 = vunpack.c.l.b16 %v199
  %v2021 = vunpack.c.l.b16 %v200
  %v2022 = vunpack.c.l.b16 %v201
  %v2023 = vunpack.c.l.b16 %v202
  %v2024 = vunpack.c.l.b16 %v203
  %v2025 = vunpack.c.l.b16 %v204
  %v2026 = vunpack.c.l.b16 %v205
  %v2027 = vunpack.c.l.b16 %v206
  %v2028 = vunpack.c.l.b16 %v207
  %v2029 = vunpack.c.l.b16 %v208
  %v2030 = vunpack.c.l.b16 %v209
  %v2031 = vunpack.c.l.b16 %v210
  %v2032 = vunpack.c.l.b16 %v211
  %v2033 = vunpack.c.l.b16 %v212
  %v2034 = vunpack.c.l.b16 %v213
  %v2035 = vunpack.c.l.b16 %v214
  %v2036 = vunpack.c.l.b16 %v215
  %v2037 = vunpack.c.l.b16 %v216
  %v2038 = vunpack.c.l.b16 %v217
  %v2039 = vunpack.c.l.b16 %v218
  %v2040 = vunpack.c.l.b16 %v219
  %v2041 = vunpack.c.l.b16 %v220
  %v2042 = vunpack.c.l.b16 %v221
  %v2043 = vunpack.c.l.b16 %v222
  %v2044 = vunpack.c.l.b16 %v223
  %v2045 = vunpack.c.l.b16 %v224
  %v2046 = vunpack.c.l.b16 %v225
  %v2047 = vunpack.c.l.b16 %v226
  %v2048 = vunpack.c.l.b16 %v227
  %v2049 = vunpack.c.l.b16 %v228
  %v2050 = vunpack.c.l.b16 %v229
  %v2051 = vunpack.c.l.b16 %v230
  %v2052 = vunpack.c.l.b16 %v231
  %v2053 = vunpack.c.l.b16 %v232
  %v2054 = vunpack.c.l.b16 %v233
  %v2055 = vunpack.c.l.b16 %v234
  %v2056 = vunpack.c.l.b16 %v235
  %v2057 = vunpack.c.l.b16 %v236
  %v2058 = vunpack.c.l.b16 %v237
  %v2059 = vunpack.c.l.b16 %v238
  %v2060 = vunpack.c.l.b16 %v239
  %v2061 = vunpack.c.l.b16 %v240
  %v2062 = vunpack.c.l.b16 %v241
  %v2063 = vunpack.c.l.b16 %v242
  %v2064 = vunpack.c.l.b16 %v243
  %v2065 = vunpack.c.l.b16 %v244
  %v2066 = vunpack.c.l.b16 %v245
  %v2067 = vunpack.c.l.b16 %v246
  %v2068 = vunpack.c.l.b16 %v247
  %v2069 = vunpack.c.l.b16 %v248
  %v2070 = vunpack.c.l.b16 %v249
  %v2071 = vunpack.c.l.b16 %v250
  %v2072 = vunpack.c.l.b16 %v251
  %v2073 = vunpack.c.l.b16 %v252
  %v2074 = vunpack.c.l.b16 %v253
  %v2075 = vunpack.c.l.b16 %v254
  %v2076 = vunpack.c.l.b16 %v255
  %v2077 = vunpack.c.l.b16 %v256
  %v2078 = vunpack.c.l.b16 %v257
  %v2079 = vunpack.c.l.b16 %v258
  %v2080 = vunpack.c.l.b16 %v259
  %v2081 = vunpack.c.l.b16 %v260
  %v2082 = vunpack.c.l.b16 %v261
  %v2083 = vunpack.c.l.b16 %v262
  %v2084 = vunpack.c.l.b16 %v263
  %v2085 = vunpack.c.l.b16 %v264
  %v2086 = vunpack.c.l.b16 %v265
  %v2087 = vunpack.c.l.b16 %v266
  %v2088 = vunpack.c.l.b16 %v267
  %v2089 = vunpack.c.l.b16 %v268
  %v2090 = vunpack.c.l.b16 %v269
  %v2091 = vunpack.c.l.b16 %v270
  %v2092 = vunpack.c.l.b16 %v271
  %v2093 = vunpack.c.l.b16 %v272
  %v2094 = vunpack.c.l.b16 %v273
  %v2095 = vunpack.c.l.b16 %v274
  %v2096 = vunpack.c.l.b16 %v275
  %v2097 = vunpack.c.l.b16 %v276
  %v2098 = vunpack.c.l.b16 %v277
  %v2099 = vunpack.c.l.b16 %v278
  %v2100 = vunpack.c.l.b16 %v279
  %v2101 = vunpack.c.l.b16 %v280
  %v2102 = vunpack.c.l.b16 %v281
  %v2103 = vunpack.c.l.b16 %v282
  %v2104 = vunpack.c.l.b16 %v283
  %v2105 = vunpack.c.l.b16 %v284
  %v2106 = vunpack.c.l.b16 %v285
  %v2107 = vunpack.c.l.b16 %v286
  %v2108 = vunpack.c.l.b16 %v287
  %v2109 = vunpack.c.l.b16 %v288
  %v2110 = vunpack.c.l.b16 %v289
  %v2111 = vunpack.c.l.b16 %v290
  %v2112 = vunpack.c.l.b16 %v291
  %v2113 = vunpack.c.l.b16 %v292
  %v2114 = vunpack.c.l.b16 %v293
  %v2115 = vunpack.c.l.b16 %v294
  %v2116 = vunpack.c.l.b16 %v295
  %v2117 = vunpack.c.l.b16 %v296
  %v2118 = vunpack.c.l.b16 %v297
  %v2119 = vunpack.c.l.b16 %v298
  %v2120 = vunpack.c.l.b16 %v299
  %v2121 = vunpack.c.l.b16 %v300
  %v2122 = vunpack.c.l.b16 %v301
  %v2123 = vunpack.c.l.b16 %v302
  %v2124 = vunpack.c.l.b16 %v303
  %v2125 = vunpack.c.l.b16 %v304
  %v2126 = vunpack.c.l.b16 %v305
  %v2127 = vunpack.c.l.b16 %v306
  %v2128 = vunpack.c.l.b16 %v307
  %v2129 = vunpack.c.l.b16 %v308
  %v2130 = vunpack.c.l.b16 %v309
  %v2131 = vunpack.c.l.b16 %v310
  %v2132 = vunpack.c.l.b16 %v311
  %v2133 = vunpack.c.l.b16 %v312
  %v2134 = vunpack.c.l.b16 %v313
  %v2135 = vunpack.c.l.b16 %v314
  %v2136 = vunpack.c.l.b16 %v315
  %v2137 = vunpack.c.l.b16 %v316
  %v2138 = vunpack.c.l.b16 %v317
  %v2139 = vunpack.c.l.b16 %v318
  %v2140 = vunpack.c.l.b16 %v319
  %v2141 = vunpack.c.l.b16 %v320
  %v2142 = vunpack.c.l.b16 %v321
  %v2143 = vunpack.c.l.b16 %v322
  %v2144 = vunpack.c.l.b16 %v323
  %v2145 = vunpack.c.l.b16 %v324
  %v2146 = vunpack.c.l.b16 %v325
  %v2147 = vunpack.c.l.b16 %v326
  %v2148 = vunpack.c.l.b16 %v327
  %v2149 = vunpack.c.l.b16 %v328
  %v2150 = vunpack.c.l.b16 %v329
  %v2151 = vunpack.c.l.b16 %v330
  %v2152 = vunpack.c.l.b16 %v331
  %v2153 = vunpack.c.l.b16 %v332
  %v2154 = vunpack.c.l.b16 %v333
  %v2155 = vunpack.c.l.b16 %v334
  %v2156 = vunpack.c.l.b16 %v335
  %v2157 = vunpack.c.l.b16 %v336
  %v2158 = vunpack.c.l.b16 %v337
  %v2159 = vunpack.c.l.b16 %v338
  %v2160 = vunpack.c.l.b16 %v339
  %v2161 = vunpack.c.l.b16 %v340
  %v2162 = vunpack.c.l.b16 %v341
  %v2163 = vunpack.c.l.b16 %v342
  %v2164 = vunpack.c.l.b16 %v343
  %v2165 = vunpack.c.l.b16 %v344
  %v2166 = vunpack.c.l.b16 %v345
  %v2167 = vunpack.c.l.b16 %v346
  %v2168 = vunpack.c.l.b16 %v347
  %v2169 = vunpack.c.l.b16 %v348
  %v2170 = vunpack.c.l.b16 %v349
  %v2171 = vunpack.c.l.b16 %v350
  %v2172 = vunpack.c.l.b16 %v351
  %v2173 = vunpack.c.l.b16 %v352
  %v2174 = vunpack.c.l.b16 %v353
  %v2175 = vunpack.c.l.b16 %v354
  %v2176 = vunpack.c.l.b16 %v355
  %v2177 = vunpack.c.l.b16 %v356
  %v2178 = vunpack.c.l.b16 %v357
  %v2179 = vunpack.c.l.b16 %v358
  %v2180 = vunpack.c.l.b16 %v359
  %v2181 = vunpack.c.l.b16 %v360
  %v2182 = vunpack.c.l.b16 %v361
  %v2183 = vunpack.c.l.b16 %v362
  %v2184 = vunpack.c.l.b16 %v363
  %v2185 = vunpack.c.l.b16 %v364
  %v2186 = vunpack.c.l.b16 %v365
  %v2187 = vunpack.c.l.b16 %v366
  %v2188 = vunpack.c.l.b16 %v367
  %v2189 = vunpack.c.l.b16 %v368
  %v2190 = vunpack.c.l.b16 %v369
  %v2191 = vunpack.c.l.b16 %v370
  %v2192 = vunpack.c.l.b16 %v371
  %v2193 = vunpack.c.l.b16 %v372
  %v2194 = vunpack.c.l.b16 %v373
  %v2195 = vunpack.c.l.b16 %v374
  %v2196 = vunpack.c.l.b16 %v375
  %v2197 = vunpack.c.l.b16 %v376
  %v2198 = vunpack.c.l.b16 %v377
  %v2199 = vunpack.c.l.b16 %v378
  %v2200 = vunpack.c.l.b16 %v379
  %v2201 = vunpack.c.l.b16 %v380
  %v2202 = vunpack.c.l.b16 %v381
  %v2203 = vunpack.c.l.b16 %v382
  %v2204 = vunpack.c.l.b16 %v383
  %v2205 = vunpack.c.l.b16 %v384
  %v2206 = vunpack.c.l.b16 %v385
  %v2207 = vunpack.c.l.b16 %v386
  %v2208 = vunpack.c.l.b16 %v387
  %v2209 = vunpack.c.l.b16 %v388
  %v2210 = vunpack.c.l.b16 %v389
  %v2211 = vunpack.c.l.b16 %v390
  %v2212 = vunpack.c.l.b16 %v391
  %v2213 = vunpack.c.l.b16 %v392
  %v2214 = vunpack.c.l.b16 %v393
  %v2215 = vunpack.c.l.b16 %v394
  %v2216 = vunpack.c.l.b16 %v395
  %v2217 = vunpack.c.l.b16 %v396
  %v2218 = vunpack.c.l.b16 %v397
  %v2219 = vunpack.c.l.b16 %v398
  %v2220 = vunpack.c.l.b16 %v399
  %v2221 = vunpack.c.l.b16 %v400
  %v2222 = vunpack.c.l.b16 %v401
  %v2223 = vunpack.c.l.b16 %v402
  %v2224 = vunpack.c.l.b16 %v403
  %v2225 = vunpack.c.l.b16 %v404
  %v2226 = vunpack.c.l.b16 %v405
  %v2227 = vunpack.c.l.b16 %v406
  %v2228 = vunpack.c.l.b16 %v407
  %v2229 = vunpack.c.l.b16 %v408
  %v2230 = vunpack.c.l.b16 %v409
  %v2231 = vunpack.c.l.b16 %v410
  %v2232 = vunpack.c.l.b16 %v411
  %v2233 = vunpack.c.l.b16 %v412
  %v2234 = vunpack.c.l.b16 %v413
  %v2235 = vunpack.c.l.b16 %v414
  %v2236 = vunpack.c.l.b16 %v415
  %v2237 = vunpack.c.l.b16 %v416
  %v2238 = vunpack.c.l.b16 %v417
  %v2239 = vunpack.c.l.b16 %v418
  %v2240 = vunpack.c.l.b16 %v419
  %v2241 = vunpack.c.l.b16 %v420
  %v2242 = vunpack.c.l.b16 %v421
  %v2243 = vunpack.c.l.b16 %v422
  %v2244 = vunpack.c.l.b16 %v423
  %v2245 = vunpack.c.l.b16 %v424
  %v2246 = vunpack.c.l.b16 %v425
  %v2247 = vunpack.c.l.b16 %v426
  %v2248 = vunpack.c.l.b16 %v427
  %v2249 = vunpack.c.l.b16 %v428
  %v2250 = vunpack.c.l.b16 %v429
  %v2251 = vunpack.c.l.b16 %v430
  %v2252 = vunpack.c.l.b16 %v431
  %v2253 = vunpack.c.l.b16 %v432
  %v2254 = vunpack.c.l.b16 %v433
  %v2255 = vunpack.c.l.b16 %v434
  %v2256 = vunpack.c.l.b16 %v435
  %v2257 = vunpack.c.l.b16 %v436
  %v2258 = vunpack.c.l.b16 %v437
  %v2259 = vunpack.c.l.b16 %v438
  %v2260 = vunpack.c.l.b16 %v439
  %v2261 = vunpack.c.l.b16 %v440
  %v2262 = vunpack.c.l.b16 %v441
  %v2263 = vunpack.c.l.b16 %v442
  %v2264 = vunpack.c.l.b16 %v443
  %v2265 = vunpack.c.l.b16 %v444
  %v2266 = vunpack.c.l.b16 %v445
  %v2267 = vunpack.c.l.b16 %v446
  %v2268 = vunpack.c.l.b16 %v447
  %v2269 = vunpack.c.l.b16 %v448
  %v2270 = vunpack.c.l.b16 %v449
  %v2271 = vunpack.c.l.b16 %v450
  %v2272 = vunpack.c.l.b16 %v451
  %v2273 = vunpack.c.l.b16 %v452
  %v2274 = vunpack.c.l.b16 %v453
  %v2275 = vunpack.c.l.b16 %v454
  %v2276 = vunpack.c.l.b16 %v455
  %v2277 = vunpack.c.l.b16 %v456
  %v2278 = vunpack.c.l.b16 %v457
  %v2279 = vunpack.c.l.b16 %v458
  %v2280 = vunpack.c.l.b16 %v459
  %v2281 = vunpack.c.l.b16 %v460
  %v2282 = vunpack.c.l.b16 %v461
  %v2283 = vunpack.c.l.b16 %v462
  %v2284 = vunpack.c.l.b16 %v463
  %v2285 = vunpack.c.l.b16 %v464
  %v2286 = vunpack.c.l.b16 %v465
  %v2287 = vunpack.c.l.b16 %v466
  %v2288 = vunpack.c.l.b16 %v467
  %v2289 = vunpack.c.l.b16 %v468
  %v2290 = vunpack.c.l.b16 %v469
  %v2291 = vunpack.c.l.b16 %v470
  %v2292 = vunpack.c.l.b16 %v471
  %v2293 = vunpack.c.l.b16 %v472
  %v2294 = vunpack.c.l.b16 %v473
  %v2295 = vunpack.c.l.b16 %v474
  %v2296 = vunpack.c.l.b16 %v475
  %v2297 = vunpack.c.l.b16 %v476
  %v2298 = vunpack.c.l.b16 %v477
  %v2299 = vunpack.c.l.b16 %v478
  %v2300 = vunpack.c.l.b16 %v479
  %v2301 = vunpack.c.l.b16 %v480
  %v2302 = vunpack.c.l.b16 %v481
  %v2303 = vunpack.c.l.b16 %v482
  %v2304 = vunpack.c.l.b16 %v483
  %v2305 = vunpack.c.l.b16 %v484
  %v2306 = vunpack.c.l.b16 %v485
  %v2307 = vunpack.c.l.b16 %v486
  %v2308 = vunpack.c.l.b16 %v487
  %v2309 = vunpack.c.l.b16 %v488
  %v2310 = vunpack.c.l.b16 %v489
  %v2311 = vunpack.c.l.b16 %v490
  %v2312 = vunpack.c.l.b16 %v491
  %v2313 = vunpack.c.l.b16 %v492
  %v2314 = vunpack.c.l.b16 %v493
  %v2315 = vunpack.c.l.b16 %v494
  %v2316 = vunpack.c.l.b16 %v495
  %v2317 = vunpack.c.l.b16 %v496
  %v2318 = vunpack.c.l.b16 %v497
  %v2319 = vunpack.c.l.b16 %v498
  %v2320 = vunpack.c.l.b16 %v499
  %v2321 = vunpack.c.l.b16 %v500
  %v2322 = vunpack.c.l.b16 %v501
  %v2323 = vunpack.c.l.b16 %v502
  %v2324 = vunpack.c.l.b16 %v503
  %v2325 = vunpack.c.l.b16 %v504
  %v2326 = vunpack.c.l.b16 %v505
  %v2327 = vunpack.c.l.b16 %v506
  %v2328 = vunpack.c.l.b16 %v507
  %v2329 = vunpack.c.l.b16 %v508
  %v2330 = vunpack.c.l.b16 %v509
  %v2331 = vunpack.c.l.b16 %v510
  %v2332 = vunpack.c.l.b16 %v511
  %v2333 = vunpack.c.l.b16 %v512
  %v2334 = vunpack.c.l.b16 %v513
  %v2335 = vunpack.c.l.b16 %v514
  %v2336 = vunpack.c.l.b16 %v515
  %v2337 = vunpack.c.l.b16 %v516
  %v2338 = vunpack.c.l.b16 %v517
  %v2339 = vunpack.c.l.b16 %v518
  %v2340 = vunpack.c.l.b16 %v519
  %v2341 = vunpack.c.l.b16 %v520
  %v2342 = vunpack.c.l.b16 %v521
  %v2343 = vunpack.c.l.b16 %v522
  %v2344 = vunpack.c.l.b16 %v523
  %v2345 = vunpack.c.l.b16 %v524
  %v2346 = vunpack.c.l.b16 %v525
  %v2347 = vunpack.c.l.b16 %v526
  %v2348 = vunpack.c.l.b16 %v527
  %v2349 = vunpack.c.l.b16 %v528
  %v2350 = vunpack.c.l.b16 %v529
  %v2351 = vunpack.c.l.b16 %v530
  %v2352 = vunpack.c.l.b16 %v531
  %v2353 = vunpack.c.l.b16 %v532
  %v2354 = vunpack.c.l.b16 %v533
  %v2355 = vunpack.c.l.b16 %v534
  %v2356 = vunpack.c.l.b16 %v535
  %v2357 = vunpack.c.l.b16 %v536
  %v2358 = vunpack.c.l.b16 %v537
  %v2359 = vunpack.c.l.b16 %v538
  %v2360 = vunpack.c.l.b16 %v539
  %v2361 = vunpack.c.l.b16 %v540
  %v2362 = vunpack.c.l.b16 %v541
  %v2363 = vunpack.c.l.b16 %v542
  %v2364 = vunpack.c.l.b16 %v543
  %v2365 = vunpack.c.l.b16 %v544
  %v2366 = vunpack.c.l.b16 %v545
  %v2367 = vunpack.c.l.b16 %v546
  %v2368 = vunpack.c.l.b16 %v547
  %v2369 = vunpack.c.l.b16 %v548
  %v2370 = vunpack.c.l.b16 %v549
  %v2371 = vunpack.c.l.b16 %v550
  %v2372 = vunpack.c.l.b16 %v551
  %v2373 = vunpack.c.l.b16 %v552
  %v2374 = vunpack.c.l.b16 %v553
  %v2375 = vunpack.c.l.b16 %v554
  %v2376 = vunpack.c.l.b16 %v555
  %v2377 = vunpack.c.l.b16 %v556
  %v2378 = vunpack.c.l.b16 %v557
  %v2379 = vunpack.c.l.b16 %v558
  %v2380 = vunpack.c.l.b16 %v559
  %v2381 = vunpack.c.l.b16 %v560
  %v2382 = vunpack.c.l.b16 %v561
  %v2383 = vunpack.c.l.b16 %v562
  %v2384 = vunpack.c.l.b16 %v563
  %v2385 = vunpack.c.l.b16 %v564
  %v2386 = vunpack.c.l.b16 %v565
  %v2387 = vunpack.c.l.b16 %v566
  %v2388 = vunpack.c.l.b16 %v567
  %v2389 = vunpack.c.l.b16 %v568
  %v2390 = vunpack.c.l.b16 %v569
  %v2391 = vunpack.c.l.b16 %v570
  %v2392 = vunpack.c.l.b16 %v571
  %v2393 = vunpack.c.l.b16 %v572
  %v2394 = vunpack.c.l.b16 %v573
  %v2395 = vunpack.c.l.b16 %v574
  %v2396 = vunpack.c.l.b16 %v575
  %v2397 = vunpack.c.l.b16 %v576
  %v2398 = vunpack.c.l.b16 %v577
  %v2399 = vunpack.c.l.b16 %v578
  %v2400 = vunpack.c.l.b16 %v579
  %v2401 = vunpack.c.l.b16 %v580
  %v2402 = vunpack.c.l.b16 %v581
  %v2403 = vunpack.c.l.b16 %v582
  %v2404 = vunpack.c.l.b16 %v583
  %v2405 = vunpack.c.l.b16 %v584
  %v2406 = vunpack.c.l.b16 %v585
  %v2407 = vunpack.c.l.b16 %v586
  %v2408 = vunpack.c.l.b16 %v587
  %v2409 = vunpack.c.l.b16 %v588
  %v2410 = vunpack.c.l.b16 %v589
  %v2411 = vunpack.c.l.b16 %v590
  %v2412 = vunpack.c.l.b16 %v591
  %v2413 = vunpack.c.l.b16 %v592
  %v2414 = vunpack.c.l.b16 %v593
  %v2415 = vunpack.c.l.b16 %v594
  %v2416 = vunpack.c.l.b16 %v595
  %v2417 = vunpack.c.l.b16 %v596
  %v2418 = vunpack.c.l.b16 %v597
  %v2419 = vunpack.c.l.b16 %v598
  %v2420 = vunpack.c.l.b16 %v599
  %v2421 = vunpack.c.l.b16 %v600
  %v2422 = vunpack.c.l.b16 %v601
  %v2423 = vunpack.c.l.b16 %v602
  %v2424 = vunpack.c.l.b16 %v603
  %v2425 = vunpack.c.l.b16 %v604
  %v2426 = vunpack.c.l.b16 %v605
  %v2427 = vunpack.c.l.b16 %v606
  %v2428 = vunpack.c.l.b16 %v607
  %v2429 = vunpack.c.l.b16 %v608
  %v2430 = vunpack.c.l.b16 %v609
  %v2431 = vunpack.c.l.b16 %v610
  %v2432 = vunpack.c.l.b16 %v611
  %v2433 = vunpack.c.l.b16 %v612
  %v2434 = vunpack.c.l.b16 %v613
  %v2435 = vunpack.c.l.b16 %v614
  %v2436 = vunpack.c.l.b16 %v615
  %v2437 = vunpack.c.l.b16 %v616
  %v2438 = vunpack.c.l.b16 %v617
  %v2439 = vunpack.c.l.b16 %v618
  %v2440 = vunpack.c.l.b16 %v619
  %v2441 = vunpack.c.l.b16 %v620
  %v2442 = vunpack.c.l.b16 %v621
  %v2443 = vunpack.c.l.b16 %v622
  %v2444 = vunpack.c.l.b16 %v623
  %v2445 = vunpack.c.l.b16 %v624
  %v2446 = vunpack.c.l.b16 %v625
  %v2447 = vunpack.c.l.b16 %v626
  %v2448 = vunpack.c.l.b16 %v627
  %v2449 = vunpack.c.l.b16 %v628
  %v2450 = vunpack.c.l.b16 %v629
  %v2451 = vunpack.c.l.b16 %v630
  %v2452 = vunpack.c.l.b16 %v631
  %v2453 = vunpack.c.l.b16 %v632
  %v2454 = vunpack.c.l.b16 %v633
  %v2455 = vunpack.c.l.b16 %v634
  %v2456 = vunpack.c.l.b16 %v635
  %v2457 = vunpack.c.l.b16 %v636
  %v2458 = vunpack.c.l.b16 %v637
  %v2459 = vunpack.c.l.b16 %v638
  %v2460 = vunpack.c.l.b16 %v639
  %v2461 = vunpack.c.l.b16 %v640
  %v2462 = vunpack.c.l.b16 %v641
  %v2463 = vunpack.c.l.b16 %v642
  %v2464 = vunpack.c.l.b16 %v643
  %v2465 = vunpack.c.l.b16 %v644
  %v2466 = vunpack.c.l.b16 %v645
  %v2467 = vunpack.c.l.b16 %v646
  %v2468 = vunpack.c.l.b16 %v647
  %v2469 = vunpack.c.l.b16 %v648
  %v2470 = vunpack.c.l.b16 %v649
  %v2471 = vunpack.c.l.b16 %v650
  %v2472 = vunpack.c.l.b16 %v651
  %v2473 = vunpack.c.l.b16 %v652
  %v2474 = vunpack.c.l.b16 %v653
  %v2475 = vunpack.c.l.b16 %v654
  %v2476 = vunpack.c.l.b16 %v655
  %v2477 = vunpack.c.l.b16 %v656
  %v2478 = vunpack.c.l.b16 %v657
  %v2479 = vunpack.c.l.b16 %v658
  %v2480 = vunpack.c.l.b16 %v659
  %v2481 = vunpack.c.l.b16 %v660
  %v2482 = vunpack.c.l.b16 %v661
  %v2483 = vunpack.c.l.b16 %v662
  %v2484 = vunpack.c.l.b16 %v663
  %v2485 = vunpack.c.l.b16 %v664
  %v2486 = vunpack.c.l.b16 %v665
  %v2487 = vunpack.c.l.b16 %v666
  %v2488 = vunpack.c.l.b16 %v667
  %v2489 = vunpack.c.l.b16 %v668
  %v2490 = vunpack.c.l.b16 %v669
  %v2491 = vunpack.c.l.b16 %v670
  %v2492 = vunpack.c.l.b16 %v671
  %v2493 = vunpack.c.l.b16 %v672
  %v2494 = vunpack.c.l.b16 %v673
  %v2495 = vunpack.c.l.b16 %v674
  %v2496 = vunpack.c.l.b16 %v675
  %v2497 = vunpack.c.l.b16 %v676
  %v2498 = vunpack.c.l.b16 %v677
  %v2499 = vunpack.c.l.b16 %v678
  %v2500 = vunpack.c.l.b16 %v679
  %v2501 = vunpack.c.l.b16 %v680
  %v2502 = vunpack.c.l.b16 %v681
  %v2503 = vunpack.c.l.b16 %v682
  %v2504 = vunpack.c.l.b16 %v683
  %v2505 = vunpack.c.l.b16 %v684
  %v2506 = vunpack.c.l.b16 %v685
  %v2507 = vunpack.c.l.b16 %v686
  %v2508 = vunpack.c.l.b16 %v687
  %v2509 = vunpack.c.l.b16 %v688
  %v2510 = vunpack.c.l.b16 %v689
  %v2511 = vunpack.c.l.b16 %v690
  %v2512 = vunpack.c.l.b16 %v691
  %v2513 = vunpack.c.l.b16 %v692
  %v2514 = vunpack.c.l.b16 %v693
  %v2515 = vunpack.c.l.b16 %v694
  %v2516 = vunpack.c.l.b16 %v695
  %v2517 = vunpack.c.l.b16 %v696
  %v2518 = vunpack.c.l.b16 %v697
  %v2519 = vunpack.c.l.b16 %v698
  %v2520 = vunpack.c.l.b16 %v699
  %v2521 = vunpack.c.l.b16 %v700
  %v2522 = vunpack.c.l.b16 %v701
  %v2523 = vunpack.c.l.b16 %v702
  %v2524 = vunpack.c.l.b16 %v703
  %v2525 = vunpack.c.l.b16 %v704
  %v2526 = vunpack.c.l.b16 %v705
  %v2527 = vunpack.c.l.b16 %v706
  %v2528 = vunpack.c.l.b16 %v707
  %v2529 = vunpack.c.l.b16 %v708
  %v2530 = vunpack.c.l.b16 %v709
  %v2531 = vunpack.c.l.b16 %v710
  %v2532 = vunpack.c.l.b16 %v711
  %v2533 = vunpack.c.l.b16 %v712
  %v2534 = vunpack.c.l.b16 %v713
  %v2535 = vunpack.c.l.b16 %v714
  %v2536 = vunpack.c.l.b16 %v715
  %v2537 = vunpack.c.l.b16 %v716
  %v2538 = vunpack.c.l.b16 %v717
  %v2539 = vunpack.c.l.b16 %v718
  %v2540 = vunpack.c.l.b16 %v719
  %v2541 = vunpack.c.l.b16 %v720
  %v2542 = vunpack.c.l.b16 %v721
  %v2543 = vunpack.c.l.b16 %v722
  %v2544 = vunpack.c.l.b16 %v723
  %v2545 = vunpack.c.l.b16 %v724
  %v2546 = vunpack.c.l.b16 %v725
  %v2547 = vunpack.c.l.b16 %v726
  %v2548 = vunpack.c.l.b16 %v727
  %v2549 = vunpack.c.l.b16 %v728
  %v2550 = vunpack.c.l.b16 %v729
  %v2551 = vunpack.c.l.b16 %v730
  %v2552 = vunpack.c.l.b16 %v731
  %v2553 = vunpack.c.l.b16 %v732
  %v2554 = vunpack.c.l.b16 %v733
  %v2555 = vunpack.c.l.b16 %v734
  %v2556 = vunpack.c.l.b16 %v735
  %v2557 = vunpack.c.l.b16 %v736
  %v2558 = vunpack.c.l.b16 %v737
  %v2559 = vunpack.c.l.b16 %v738
  %v2560 = vunpack.c.l.b16 %v739
  %v2561 = vunpack.c.l.b16 %v740
  %v2562 = vunpack.c.l.b16 %v741
  %v2563 = vunpack.c.l.b16 %v742
  %v2564 = vunpack.c.l.b16 %v743
  %v2565 = vunpack.c.l.b16 %v744
  %v2566 = vunpack.c.l.b16 %v745
  %v2567 = vunpack.c.l.b16 %v746
  %v2568 = vunpack.c.l.b16 %v747
  %v2569 = vunpack.c.l.b16 %v748
  %v2570 = vunpack.c.l.b16 %v749
  %v2571 = vunpack.c.l.b16 %v750
  %v2572 = vunpack.c.l.b16 %v751
  %v2573 = vunpack.c.l.b16 %v752
  %v2574 = vunpack.c.l.b16 %v753
  %v2575 = vunpack.c.l.b16 %v754
  %v2576 = vunpack.c.l.b16 %v755
  %v2577 = vunpack.c.l.b16 %v756
  %v2578 = vunpack.c.l.b16 %v757
  %v2579 = vunpack.c.l.b16 %v758
  %v2580 = vunpack.c.l.b16 %v759
  %v2581 = vunpack.c.l.b16 %v760
  %v2582 = vunpack.c.l.b16 %v761
  %v2583 = vunpack.c.l.b16 %v762
  %v2584 = vunpack.c.l.b16 %v763
  %v2585 = vunpack.c.l.b16 %v764
  %v2586 = vunpack.c.l.b16 %v765
  %v2587 = vunpack.c.l.b16 %v766
  %v2588 = vunpack.c.l.b16 %v767
  %v2589 = vunpack.c.l.b16 %v768
  %v2590 = vunpack.c.l.b16 %v769
  %v2591 = vunpack.c.l.b16 %v770
  %v2592 = vunpack.c.l.b16 %v771
  %v2593 = vunpack.c.l.b16 %v772
  %v2594 = vunpack.c.l.b16 %v773
  %v2595 = vunpack.c.l.b16 %v774
  %v2596 = vunpack.c.l.b16 %v775
  %v2597 = vunpack.c.l.b16 %v776
  %v2598 = vunpack.c.l.b16 %v777
  %v2599 = vunpack.c.l.b16 %v778
  %v2600 = vunpack.c.l.b16 %v779
  %v2601 = vunpack.c.l.b16 %v780
  %v2602 = vunpack.c.l.b16 %v781
  %v2603 = vunpack.c.l.b16 %v782
  %v2604 = vunpack.c.l.b16 %v783
  %v2605 = vunpack.c.l.b16 %v784
  %v2606 = vunpack.c.l.b16 %v785
  %v2607 = vunpack.c.l.b16 %v786
  %v2608 = vunpack.c.l.b16 %v787
  %v2609 = vunpack.c.l.b16 %v788
  %v2610 = vunpack.c.l.b16 %v789
  %v2611 = vunpack.c.l.b16 %v790
  %v2612 = vunpack.c.l.b16 %v791
  %v2613 = vunpack.c.l.b16 %v792
  %v2614 = vunpack.c.l.b16 %v793
  %v2615 = vunpack.c.l.b16 %v794
  %v2616 = vunpack.c.l.b16 %v795
  %v2617 = vunpack.c.l.b16 %v796
  %v2618 = vunpack.c.l.b16 %v797
  %v2619 = vunpack.c.l.b16 %v798
  %v2620 = vunpack.c.l.b16 %v799
  %v2621 = vunpack.c.l.b16 %v800
  %v2622 = vunpack.c.l.b16 %v801
  %v2623 = vunpack.c.l.b16 %v802
  %v2624 = vunpack.c.l.b16 %v803
  %v2625 = vunpack.c.l.b16 %v804
  %v2626 = vunpack.c.l.b16 %v805
  %v2627 = vunpack.c.l.b16 %v806
  %v2628 = vunpack.c.l.b16 %v807
  %v2629 = vunpack.c.l.b16 %v808
  %v2630 = vunpack.c.l.b16 %v809
  %v2631 = vunpack.c.l.b16 %v810
  %v2632 = vunpack.c.l.b16 %v811
  %v2633 = vunpack.c.l.b16 %v812
  %v2634 = vunpack.c.l.b16 %v813
  %v2635 = vunpack.c.l.b16 %v814
  %v2636 = vunpack.c.l.b16 %v815
  %v2637 = vunpack.c.l.b16 %v816
  %v2638 = vunpack.c.l.b16 %v817
  %v2639 = vunpack.c.l.b16 %v818
  %v2640 = vunpack.c.l.b16 %v819
  %v2641 = vunpack.c.l.b16 %v820
  %v2642 = vunpack.c.l.b16 %v821
  %v2643 = vunpack.c.l.b16 %v822
  %v2644 = vunpack.c.l.b16 %v823
  %v2645 = vunpack.c.l.b16 %v824
  %v2646 = vunpack.c.l.b16 %v825
  %v2647 = vunpack.c.l.b16 %v826
  %v2648 = vunpack.c.l.b16 %v827
  %v2649 = vunpack.c.l.b16 %v828
  %v2650 = vunpack.c.l.b16 %v829
  %v2651 = vunpack.c.l.b16 %v830
  %v2652 = vunpack.c.l.b16 %v831
  %v2653 = vunpack.c.l.b16 %v832
  %v2654 = vunpack.c.l.b16 %v833
  %v2655 = vunpack.c.l.b16 %v834
  %v2656 = vunpack.c.l.b16 %v835
  %v2657 = vunpack.c.l.b16 %v836
  %v2658 = vunpack.c.l.b16 %v837
  %v2659 = vunpack.c.l.b16 %v838
  %v2660 = vunpack.c.l.b16 %v839
  %v2661 = vunpack.c.l.b16 %v840
  %v2662 = vunpack.c.l.b16 %v841
  %v2663 = vunpack.c.l.b16 %v842
  %v2664 = vunpack.c.l.b16 %v843
  %v2665 = vunpack.c.l.b16 %v844
  %v2666 = vunpack.c.l.b16 %v845
  %v2667 = vunpack.c.l.b16 %v846
  %v2668 = vunpack.c.l.b16 %v847
  %v2669 = vunpack.c.l.b16 %v848
  %v2670 = vpack.c.b16 %v1887, %v1886
  %v2671 = vpack.c.b16 %v1889, %v1888
  %v2672 = vpack.c.b16 %v1891, %v1890
  %v2673 = vpack.c.b16 %v1893, %v1892
  %v2674 = vpack.c.b16 %v1895, %v1894
  %v2675 = vpack.c.b16 %v1897, %v1896
  %v2676 = vpack.c.b16 %v1899, %v1898
  %v2677 = vpack.c.b16 %v1901, %v1900
  %v2678 = vpack.c.b16 %v1903, %v1902
  %v2679 = vpack.c.b16 %v1905, %v1904
  %v2680 = vpack.c.b16 %v1907, %v1906
  %v2681 = vpack.c.b16 %v1909, %v1908
  %v2682 = vpack.c.b16 %v1911, %v1910
  %v2683 = vpack.c.b16 %v1913, %v1912
  %v2684 = vpack.c.b16 %v1915, %v1914
  %v2685 = vpack.c.b16 %v1917, %v1916
  %v2686 = vpack.c.b16 %v1919, %v1918
  %v2687 = vpack.c.b16 %v1921, %v1920
  %v2688 = vpack.c.b16 %v1923, %v1922
  %v2689 = vpack.c.b16 %v1925, %v1924
  %v2690 = vpack.c.b16 %v1927, %v1926
  %v2691 = vpack.c.b16 %v1929, %v1928
  %v2692 = vpack.c.b16 %v1931, %v1930
  %v2693 = vpack.c.b16 %v1933, %v1932
  %v2694 = vpack.c.b16 %v1935, %v1934
  %v2695 = vpack.c.b16 %v1937, %v1936
  %v2696 = vpack.c.b16 %v1939, %v1938
  %v2697 = vpack.c.b16 %v1941, %v1940
  %v2698 = vpack.c.b16 %v1943, %v1942
  %v2699 = vpack.c.b16 %v1945, %v1944
  %v2700 = vpack.c.b16 %v1947, %v1946
  %v2701 = vpack.c.b16 %v1949, %v1948
  %v2702 = vpack.c.b16 %v1951, %v1950
  %v2703 = vpack.c.b16 %v1953, %v1952
  %v2704 = vpack.c.b16 %v1955, %v1954
  %v2705 = vpack.c.b16 %v1957, %v1956
  %v2706 = vpack.c.b16 %v1959, %v1958
  %v2707 = vpack.c.b16 %v1961, %v1960
  %v2708 = vpack.c.b16 %v1963, %v1962
  %v2709 = vpack.c.b16 %v1965, %v1964
  %v2710 = vpack.c.b16 %v1967, %v1966
  %v2711 = vpack.c.b16 %v1969, %v1968
  %v2712 = vpack.c.b16 %v1971, %v1970
  %v2713 = vpack.c.b16 %v1973, %v1972
  %v2714 = vpack.c.b16 %v1975, %v1974
  %v2715 = vpack.c.b16 %v1977, %v1976
  %v2716 = vpack.c.b16 %v1979, %v1978
  %v2717 = vpack.c.b16 %v1981, %v1980
  %v2718 = vpack.c.b16 %v1983, %v1982
  %v2719 = vpack.c.b16 %v1985, %v1984
  %v2720 = vpack.c.b16 %v1987, %v1986
  %v2721 = vpack.c.b16 %v1989, %v1988
  %v2722 = vpack.c.b16 %v1991, %v1990
  %v2723 = vpack.c.b16 %v1993, %v1992
  %v2724 = vpack.c.b16 %v1995, %v1994
  %v2725 = vpack.c.b16 %v1997, %v1996
  %v2726 = vpack.c.b16 %v1999, %v1998
  %v2727 = vpack.c.b16 %v2001, %v2000
  %v2728 = vpack.c.b16 %v2003, %v2002
  %v2729 = vpack.c.b16 %v2005, %v2004
  %v2730 = vpack.c.b16 %v2007, %v2006
  %v2731 = vpack.c.b16 %v2009, %v2008
  %v2732 = vpack.c.b16 %v2011, %v2010
  %v2733 = vpack.c.b16 %v2013, %v2012
  %v2734 = vpack.c.b16 %v2015, %v2014
  %v2735 = vpack.c.b16 %v2017, %v2016
  %v2736 = vpack.c.b16 %v2019, %v2018
  %v2737 = vpack.c.b16 %v2021, %v2020
  %v2738 = vpack.c.b16 %v2023, %v2022
  %v2739 = vpack.c.b16 %v2025, %v2024
  %v2740 = vpack.c.b16 %v2027, %v2026
  %v2741 = vpack.c.b16 %v2029, %v2028
  %v2742 = vpack.c.b16 %v2031, %v2030
  %v2743 = vpack.c.b16 %v2033, %v2032
  %v2744 = vpack.c.b16 %v2035, %v2034
  %v2745 = vpack.c.b16 %v2037, %v2036
  %v2746 = vpack.c.b16 %v2039, %v2038
  %v2747 = vpack.c.b16 %v2041, %v2040
  %v2748 = vpack.c.b16 %v2043, %v2042
  %v2749 = vpack.c.b16 %v2045, %v2044
  %v2750 = vpack.c.b16 %v2047, %v2046
  %v2751 = vpack.c.b16 %v2049, %v2048
  %v2752 = vpack.c.b16 %v2051, %v2050
  %v2753 = vpack.c.b16 %v2053, %v2052
  %v2754 = vpack.c.b16 %v2055, %v2054
  %v2755 = vpack.c.b16 %v2057, %v2056
  %v2756 = vpack.c.b16 %v2059, %v2058
  %v2757 = vpack.c.b16 %v2061, %v2060
  %v2758 = vpack.c.b16 %v2063, %v2062
  %v2759 = vpack.c.b16 %v2065, %v2064
  %v2760 = vpack.c.b16 %v2067, %v2066
  %v2761 = vpack.c.b16 %v2069, %v2068
  %v2762 = vpack.c.b16 %v2071, %v2070
  %v2763 = vpack.c.b16 %v2073, %v2072
  %v2764 = vpack.c.b16 %v2075, %v2074
  %v2765 = vpack.c.b16 %v2077, %v2076
  %v2766 = vpack.c.b16 %v2079, %v2078
  %v2767 = vpack.c.b16 %v2081, %v2080
  %v2768 = vpack.c.b16 %v2083, %v2082
  %v2769 = vpack.c.b16 %v2085, %v2084
  %v2770 = vpack.c.b16 %v2087, %v2086
  %v2771 = vpack.c.b16 %v2089, %v2088
  %v2772 = vpack.c.b16 %v2091, %v2090
  %v2773 = vpack.c.b16 %v2093, %v2092
  %v2774 = vpack.c.b16 %v2095, %v2094
  %v2775 = vpack.c.b16 %v2097, %v2096
  %v2776 = vpack.c.b16 %v2099, %v2098
  %v2777 = vpack.c.b16 %v2101, %v2100
  %v2778 = vpack.c.b16 %v2103, %v2102
  %v2779 = vpack.c.b16 %v2105, %v2104
  %v2780 = vpack.c.b16 %v2107, %v2106
  %v2781 = vpack.c.b16 %v2109, %v2108
  %v2782 = vpack.c.b16 %v2111, %v2110
  %v2783 = vpack.c.b16 %v2113, %v2112
  %v2784 = vpack.c.b16 %v2115, %v2114
  %v2785 = vpack.c.b16 %v2117, %v2116
  %v2786 = vpack.c.b16 %v2119, %v2118
  %v2787 = vpack.c.b16 %v2121, %v2120
  %v2788 = vpack.c.b16 %v2123, %v2122
  %v2789 = vpack.c.b16 %v2125, %v2124
  %v2790 = vpack.c.b16 %v2127, %v2126
  %v2791 = vpack.c.b16 %v2129, %v2128
  %v2792 = vpack.c.b16 %v2131, %v2130
  %v2793 = vpack.c.b16 %v2133, %v2132
  %v2794 = vpack.c.b16 %v2135, %v2134
  %v2795 = vpack.c.b16 %v2137, %v2136
  %v2796 = vpack.c.b16 %v2139, %v2138
  %v2797 = vpack.c.b16 %v2141, %v2140
  %v2798 = vpack.c.b16 %v2143, %v2142
  %v2799 = vpack.c.b16 %v2145, %v2144
  %v2800 = vpack.c.b16 %v2147, %v2146
  %v2801 = vpack.c.b16 %v2149, %v2148
  %v2802 = vpack.c.b16 %v2151, %v2150
  %v2803 = vpack.c.b16 %v2153, %v2152
  %v2804 = vpack.c.b16 %v2155, %v2154
  %v2805 = vpack.c.b16 %v2157, %v2156
  %v2806 = vpack.c.b16 %v2159, %v2158
  %v2807 = vpack.c.b16 %v2161, %v2160
  %v2808 = vpack.c.b16 %v2163, %v2162
  %v2809 = vpack.c.b16 %v2165, %v2164
  %v2810 = vpack.c.b16 %v2167, %v2166
  %v2811 = vpack.c.b16 %v2169, %v2168
  %v2812 = vpack.c.b16 %v2171, %v2170
  %v2813 = vpack.c.b16 %v2173, %v2172
  %v2814 = vpack.c.b16 %v2175, %v2174
  %v2815 = vpack.c.b16 %v2177, %v2176
  %v2816 = vpack.c.b16 %v2179, %v2178
  %v2817 = vpack.c.b16 %v2181, %v2180
  %v2818 = vpack.c.b16 %v2183, %v2182
  %v2819 = vpack.c.b16 %v2185, %v2184
  %v2820 = vpack.c.b16 %v2187, %v2186
  %v2821 = vpack.c.b16 %v2189, %v2188
  %v2822 = vpack.c.b16 %v2191, %v2190
  %v2823 = vpack.c.b16 %v2193, %v2192
  %v2824 = vpack.c.b16 %v2195, %v2194
  %v2825 = vpack.c.b16 %v2197, %v2196
  %v2826 = vpack.c.b16 %v2199, %v2198
  %v2827 = vpack.c.b16 %v2201, %v2200
  %v2828 = vpack.c.b16 %v2203, %v2202
  %v2829 = vpack.c.b16 %v2205, %v2204
  %v2830 = vpack.c.b16 %v2207, %v2206
  %v2831 = vpack.c.b16 %v2209, %v2208
  %v2832 = vpack.c.b16 %v2211, %v2210
  %v2833 = vpack.c.b16 %v2213, %v2212
  %v2834 = vpack.c.b16 %v2215, %v2214
  %v2835 = vpack.c.b16 %v2217, %v2216
  %v2836 = vpack.c.b16 %v2219, %v2218
  %v2837 = vpack.c.b16 %v2221, %v2220
  %v2838 = vpack.c.b16 %v2223, %v2222
  %v2839 = vpack.c.b16 %v2225, %v2224
  %v2840 = vpack.c.b16 %v2227, %v2226
  %v2841 = vpack.c.b16 %v2229, %v2228
  %v2842 = vpack.c.b16 %v2231, %v2230
  %v2843 = vpack.c.b16 %v2233, %v2232
  %v2844 = vpack.c.b16 %v2235, %v2234
  %v2845 = vpack.c.b16 %v2237, %v2236
  %v2846 = vpack.c.b16 %v2239, %v2238
  %v2847 = vpack.c.b16 %v2241, %v2240
  %v2848 = vpack.c.b16 %v2243, %v2242
  %v2849 = vpack.c.b16 %v2245, %v2244
  %v2850 = vpack.c.b16 %v2247, %v2246
  %v2851 = vpack.c.b16 %v2249, %v2248
  %v2852 = vpack.c.b16 %v2251, %v2250
  %v2853 = vpack.c.b16 %v2253, %v2252
  %v2854 = vpack.c.b16 %v2255, %v2254
  %v2855 = vpack.c.b16 %v2257, %v2256
  %v2856 = vpack.c.b16 %v2259, %v2258
  %v2857 = vpack.c.b16 %v2261, %v2260
  %v2858 = vpack.c.b16 %v2263, %v2262
  %v2859 = vpack.c.b16 %v2265, %v2264
  %v2860 = vpack.c.b16 %v2267, %v2266
  %v2861 = vpack.c.b16 %v2269, %v2268
  %v2862 = vpack.c.b16 %v2271, %v2270
  %v2863 = vpack.c.b16 %v2273, %v2272
  %v2864 = vpack.c.b16 %v2275, %v2274
  %v2865 = vpack.c.b16 %v2277, %v2276
  %v2866 = vpack.c.b16 %v2279, %v2278
  %v2867 = vpack.c.b16 %v2281, %v2280
  %v2868 = vpack.c.b16 %v2283, %v2282
  %v2869 = vpack.c.b16 %v2285, %v2284
  %v2870 = vpack.c.b16 %v2287, %v2286
  %v2871 = vpack.c.b16 %v2289, %v2288
  %v2872 = vpack.c.b16 %v2291, %v2290
  %v2873 = vpack.c.b16 %v2293, %v2292
  %v2874 = vpack.c.b16 %v2295, %v2294
  %v2875 = vpack.c.b16 %v2297, %v2296
  %v2876 = vpack.c.b16 %v2299, %v2298
  %v2877 = vpack.c.b16 %v2301, %v2300
  %v2878 = vpack.c.b16 %v2303, %v2302
  %v2879 = vpack.c.b16 %v2305, %v2304
  %v2880 = vpack.c.b16 %v2307, %v2306
  %v2881 = vpack.c.b16 %v2309, %v2308
  %v2882 = vpack.c.b16 %v2311, %v2310
  %v2883 = vpack.c.b16 %v2313, %v2312
  %v2884 = vpack.c.b16 %v2315, %v2314
  %v2885 = vpack.c.b16 %v2317, %v2316
  %v2886 = vpack.c.b16 %v2319, %v2318
  %v2887 = vpack.c.b16 %v2321, %v2320
  %v2888 = vpack.c.b16 %v2323, %v2322
  %v2889 = vpack.c.b16 %v2325, %v2324
  %v2890 = vpack.c.b16 %v2327, %v2326
  %v2891 = vpack.c.b16 %v2329, %v2328
  %v2892 = vpack.c.b16 %v2331, %v2330
  %v2893 = vpack.c.b16 %v2333, %v2332
  %v2894 = vpack.c.b16 %v2335, %v2334
  %v2895 = vpack.c.b16 %v2337, %v2336
  %v2896 = vpack.c.b16 %v2339, %v2338
  %v2897 = vpack.c.b16 %v2341, %v2340
  %v2898 = vpack.c.b16 %v2343, %v2342
  %v2899 = vpack.c.b16 %v2345, %v2344
  %v2900 = vpack.c.b16 %v2347, %v2346
  %v2901 = vpack.c.b16 %v2349, %v2348
  %v2902 = vpack.c.b16 %v2351, %v2350
  %v2903 = vpack.c.b16 %v2353, %v2352
  %v2904 = vpack.c.b16 %v2355, %v2354
  %v2905 = vpack.c.b16 %v2357, %v2356
  %v2906 = vpack.c.b16 %v2359, %v2358
  %v2907 = vpack.c.b16 %v2361, %v2360
  %v2908 = vpack.c.b16 %v2363, %v2362
  %v2909 = vpack.c.b16 %v2365, %v2364
  %v2910 = vpack.c.b16 %v2367, %v2366
  %v2911 = vpack.c.b16 %v2369, %v2368
  %v2912 = vpack.c.b16 %v2371, %v2370
  %v2913 = vpack.c.b16 %v2373, %v2372
  %v2914 = vpack.c.b16 %v2375, %v2374
  %v2915 = vpack.c.b16 %v2377, %v2376
  %v2916 = vpack.c.b16 %v2379, %v2378
  %v2917 = vpack.c.b16 %v2381, %v2380
  %v2918 = vpack.c.b16 %v2383, %v2382
  %v2919 = vpack.c.b16 %v2385, %v2384
  %v2920 = vpack.c.b16 %v2387, %v2386
  %v2921 = vpack.c.b16 %v2389, %v2388
  %v2922 = vpack.c.b16 %v2391, %v2390
  %v2923 = vpack.c.b16 %v2393, %v2392
  %v2924 = vpack.c.b16 %v2395, %v2394
  %v2925 = vpack.c.b16 %v2397, %v2396
  %v2926 = vpack.c.b16 %v2399, %v2398
  %v2927 = vpack.c.b16 %v2401, %v2400
  %v2928 = vpack.c.b16 %v2403, %v2402
  %v2929 = vpack.c.b16 %v2405, %v2404
  %v2930 = vpack.c.b16 %v2407, %v2406
  %v2931 = vpack.c.b16 %v2409, %v2408
  %v2932 = vpack.c.b16 %v2411, %v2410
  %v2933 = vpack.c.b16 %v2413, %v2412
  %v2934 = vpack.c.b16 %v2415, %v2414
  %v2935 = vpack.c.b16 %v2417, %v2416
  %v2936 = vpack.c.b16 %v2419, %v2418
  %v2937 = vpack.c.b16 %v2421, %v2420
  %v2938 = vpack.c.b16 %v2423, %v2422
  %v2939 = vpack.c.b16 %v2425, %v2424
  %v2940 = vpack.c.b16 %v2427, %v2426
  %v2941 = vpack.c.b16 %v2429, %v2428
  %v2942 = vpack.c.b16 %v2431, %v2430
  %v2943 = vpack.c.b16 %v2433, %v2432
  %v2944 = vpack.c.b16 %v2435, %v2434
  %v2945 = vpack.c.b16 %v2437, %v2436
  %v2946 = vpack.c.b16 %v2439, %v2438
  %v2947 = vpack.c.b16 %v2441, %v2440
  %v2948 = vpack.c.b16 %v2443, %v2442
  %v2949 = vpack.c.b16 %v2445, %v2444
  %v2950 = vpack.c.b16 %v2447, %v2446
  %v2951 = vpack.c.b16 %v2449, %v2448
  %v2952 = vpack.c.b16 %v2451, %v2450
  %v2953 = vpack.c.b16 %v2453, %v2452
  %v2954 = vpack.c.b16 %v2455, %v2454
  %v2955 = vpack.c.b16 %v2457, %v2456
  %v2956 = vpack.c.b16 %v2459, %v2458
  %v2957 = vpack.c.b16 %v2461, %v2460
  %v2958 = vpack.c.b16 %v2463, %v2462
  %v2959 = vpack.c.b16 %v2465, %v2464
  %v2960 = vpack.c.b16 %v2467, %v2466
  %v2961 = vpack.c.b16 %v2469, %v2468
  %v2962 = vpack.c.b16 %v2471, %v2470
  %v2963 = vpack.c.b16 %v2473, %v2472
  %v2964 = vpack.c.b16 %v2475, %v2474
  %v2965 = vpack.c.b16 %v2477, %v2476
  %v2966 = vpack.c.b16 %v2479, %v2478
  %v2967 = vpack.c.b16 %v2481, %v2480
  %v2968 = vpack.c.b16 %v2483, %v2482
  %v2969 = vpack.c.b16 %v2485, %v2484
  %v2970 = vpack.c.b16 %v2487, %v2486
  %v2971 = vpack.c.b16 %v2489, %v2488
  %v2972 = vpack.c.b16 %v2491, %v2490
  %v2973 = vpack.c.b16 %v2493, %v2492
  %v2974 = vpack.c.b16 %v2495, %v2494
  %v2975 = vpack.c.b16 %v2497, %v2496
  %v2976 = vpack.c.b16 %v2499, %v2498
  %v2977 = vpack.c.b16 %v2501, %v2500
  %v2978 = vpack.c.b16 %v2503, %v2502
  %v2979 = vpack.c.b16 %v2505, %v2504
  %v2980 = vpack.c.b16 %v2507, %v2506
  %v2981 = vpack.c.b16 %v2509, %v2508
  %v2982 = vpack.c.b16 %v2511, %v2510
  %v2983 = vpack.c.b16 %v2513, %v2512
  %v2984 = vpack.c.b16 %v2515, %v2514
  %v2985 = vpack.c.b16 %v2517, %v2516
  %v2986 = vpack.c.b16 %v2519, %v2518
  %v2987 = vpack.c.b16 %v2521, %v2520
  %v2988 = vpack.c.b16 %v2523, %v2522
  %v2989 = vpack.c.b16 %v2525, %v2524
  %v2990 = vpack.c.b16 %v2527, %v2526
  %v2991 = vpack.c.b16 %v2529, %v2528
  %v2992 = vpack.c.b16 %v2531, %v2530
  %v2993 = vpack.c.b16 %v2533, %v2532
  %v2994 = vpack.c.b16 %v2535, %v2534
  %v2995 = vpack.c.b16 %v2537, %v2536
  %v2996 = vpack.c.b16 %v2539, %v2538
  %v2997 = vpack.c.b16 %v2541, %v2540
  %v2998 = vpack.c.b16 %v2543, %v2542
  %v2999 = vpack.c.b16 %v2545, %v2544
  %v3000 = vpack.c.b16 %v2547, %v2546
  %v3001 = vpack.c.b16 %v2549, %v2548
  %v3002 = vpack.c.b16 %v2551, %v2550
  %v3003 = vpack.c.b16 %v2553, %v2552
  %v3004 = vpack.c.b16 %v2555, %v2554
  %v3005 = vpack.c.b16 %v2557, %v2556
  %v3006 = vpack.c.b16 %v2559, %v2558
  %v3007 = vpack.c.b16 %v2561, %v2560
  %v3008 = vpack.c.b16 %v2563, %v2562
  %v3009 = vpack.c.b16 %v2565, %v2564
  %v3010 = vpack.c.b16 %v2567, %v2566
  %v3011 = vpack.c.b16 %v2569, %v2568
  %v3012 = vpack.c.b16 %v2571, %v2570
  %v3013 = vpack.c.b16 %v2573, %v2572
  %v3014 = vpack.c.b16 %v2575, %v2574
  %v3015 = vpack.c.b16 %v2577, %v2576
  %v3016 = vpack.c.b16 %v2579, %v2578
  %v3017 = vpack.c.b16 %v2581, %v2580
  %v3018 = vpack.c.b16 %v2583, %v2582
  %v3019 = vpack.c.b16 %v2585, %v2584
  %v3020 = vpack.c.b16 %v2587, %v2586
  %v3021 = vpack.c.b16 %v2589, %v2588
  %v3022 = vpack.c.b16 %v2591, %v2590
  %v3023 = vpack.c.b16 %v2593, %v2592
  %v3024 = vpack.c.b16 %v2595, %v2594
  %v3025 = vpack.c.b16 %v2597, %v2596
  %v3026 = vpack.c.b16 %v2599, %v2598
  %v3027 = vpack.c.b16 %v2601, %v2600
  %v3028 = vpack.c.b16 %v2603, %v2602
  %v3029 = vpack.c.b16 %v2605, %v2604
  %v3030 = vpack.c.b16 %v2607, %v2606
  %v3031 = vpack.c.b16 %v2609, %v2608
  %v3032 = vpack.c.b16 %v2611, %v2610
  %v3033 = vpack.c.b16 %v2613, %v2612
  %v3034 = vpack.c.b16 %v2615, %v2614
  %v3035 = vpack.c.b16 %v2617, %v2616
  %v3036 = vpack.c.b16 %v2619, %v2618
  %v3037 = vpack.c.b16 %v2621, %v2620
  %v3038 = vpack.c.b16 %v2623, %v2622
  %v3039 = vpack.c.b16 %v2625, %v2624
  %v3040 = vpack.c.b16 %v2627, %v2626
  %v3041 = vpack.c.b16 %v2629, %v2628
  %v3042 = vpack.c.b16 %v2631, %v2630
  %v3043 = vpack.c.b16 %v2633, %v2632
  %v3044 = vpack.c.b16 %v2635, %v2634
  %v3045 = vpack.c.b16 %v2637, %v2636
  %v3046 = vpack.c.b16 %v2639, %v2638
  %v3047 = vpack.c.b16 %v2641, %v2640
  %v3048 = vpack.c.b16 %v2643, %v2642
  %v3049 = vpack.c.b16 %v2645, %v2644
  %v3050 = vpack.c.b16 %v2647, %v2646
  %v3051 = vpack.c.b16 %v2649, %v2648
  %v3052 = vpack.c.b16 %v2651, %v2650
  %v3053 = vpack.c.b16 %v2653, %v2652
  %v3054 = vpack.c.b16 %v2655, %v2654
  %v3055 = vpack.c.b16 %v2657, %v2656
  %v3056 = vpack.c.b16 %v2659, %v2658
  %v3057 = vpack.c.b16 %v2661, %v2660
  %v3058 = vpack.c.b16 %v2663, %v2662
  %v3059 = vpack.c.b16 %v2665, %v2664
  %v3060 = vpack.c.b16 %v2667, %v2666
  %v3061 = vpack.c.b16 %v2669, %v2668
  %3454 = vmatprep.subr.bf16.mxu0 0
  %3455 = vmatpush1.bf16.msra.mxu0 %v2677
  %3456 = vmatprep.subr.bf16.mxu0 0
  %3457 = vmatpush1.bf16.msra.mxu0 %v2676
  %3458 = vmatprep.subr.bf16.mxu0 0
  %3459 = vmatpush1.bf16.msra.mxu0 %v2675
  %3460 = vmatprep.subr.bf16.mxu0 0
  %3461 = vmatpush1.bf16.msra.mxu0 %v2674
  %3462 = vmatprep.subr.bf16.mxu0 0
  %3463 = vmatpush1.bf16.msra.mxu0 %v2673
  %3464 = vmatprep.subr.bf16.mxu0 0
  %3465 = vmatpush1.bf16.msra.mxu0 %v2672
  %3466 = vmatprep.subr.bf16.mxu0 0
  %3467 = vmatpush1.bf16.msra.mxu0 %v2671
  %3468 = vmatprep.subr.bf16.mxu0 0
  %3469 = vmatpush1.bf16.msra.mxu0 %v2670
  %3470 = vmatprep.subr.bf16.mxu0 0
  %3471 = vmatpush2.bf16.msra.mxu0 %v2685
  %3472 = vmatprep.subr.bf16.mxu0 0
  %3473 = vmatpush2.bf16.msra.mxu0 %v2684
  %3474 = vmatprep.subr.bf16.mxu0 0
  %3475 = vmatpush2.bf16.msra.mxu0 %v2683
  %3476 = vmatprep.subr.bf16.mxu0 0
  %3477 = vmatpush2.bf16.msra.mxu0 %v2682
  %3478 = vmatprep.subr.bf16.mxu0 0
  %3479 = vmatpush2.bf16.msra.mxu0 %v2681
  %3480 = vmatprep.subr.bf16.mxu0 0
  %3481 = vmatpush2.bf16.msra.mxu0 %v2680
  %3482 = vmatprep.subr.bf16.mxu0 0
  %3483 = vmatpush2.bf16.msra.mxu0 %v2679
  %3484 = vmatprep.subr.bf16.mxu0 0
  %3485 = vmatpush2.bf16.msra.mxu0 %v2678
  %3486 = vmatprep.mubr.bf16.mxu0 %v1005
  %3487 = vmatmul.mubr.bf16.gmra.mxu0 %v1004
  %v3488 = vpop.f32.mrf.mxu0
  %v3489 = vadd.f32 %v854, %v3488
  %v3490 = vpop.f32.mrf.mxu0
  %v3491 = vpop.f32.mrf.mxu0
  %v3492 = vadd.f32 %v854, %v3491
  %v3493 = vpop.f32.mrf.mxu0
  %3494 = vdwg.mxu0
  %3495 = vmatprep.subr.bf16.mxu0 0
  %3496 = vmatpush1.bf16.msra.mxu0 %v2693
  %3497 = vmatprep.subr.bf16.mxu0 0
  %3498 = vmatpush1.bf16.msra.mxu0 %v2692
  %3499 = vmatprep.subr.bf16.mxu0 0
  %3500 = vmatpush1.bf16.msra.mxu0 %v2691
  %3501 = vmatprep.subr.bf16.mxu0 0
  %3502 = vmatpush1.bf16.msra.mxu0 %v2690
  %3503 = vmatprep.subr.bf16.mxu0 0
  %3504 = vmatpush1.bf16.msra.mxu0 %v2689
  %3505 = vmatprep.subr.bf16.mxu0 0
  %3506 = vmatpush1.bf16.msra.mxu0 %v2688
  %3507 = vmatprep.subr.bf16.mxu0 0
  %3508 = vmatpush1.bf16.msra.mxu0 %v2687
  %3509 = vmatprep.subr.bf16.mxu0 0
  %3510 = vmatpush1.bf16.msra.mxu0 %v2686
  %3511 = vmatprep.subr.bf16.mxu0 0
  %3512 = vmatpush2.bf16.msra.mxu0 %v2701
  %3513 = vmatprep.subr.bf16.mxu0 0
  %3514 = vmatpush2.bf16.msra.mxu0 %v2700
  %3515 = vmatprep.subr.bf16.mxu0 0
  %3516 = vmatpush2.bf16.msra.mxu0 %v2699
  %3517 = vmatprep.subr.bf16.mxu0 0
  %3518 = vmatpush2.bf16.msra.mxu0 %v2698
  %3519 = vmatprep.subr.bf16.mxu0 0
  %3520 = vmatpush2.bf16.msra.mxu0 %v2697
  %3521 = vmatprep.subr.bf16.mxu0 0
  %3522 = vmatpush2.bf16.msra.mxu0 %v2696
  %3523 = vmatprep.subr.bf16.mxu0 0
  %3524 = vmatpush2.bf16.msra.mxu0 %v2695
  %3525 = vmatprep.subr.bf16.mxu0 0
  %3526 = vmatpush2.bf16.msra.mxu0 %v2694
  %3527 = vmatprep.mubr.bf16.mxu0 %v1007
  %3528 = vmatmul.mubr.bf16.gmra.mxu0 %v1006
  %v3529 = vpop.f32.mrf.mxu0
  %v3530 = vadd.f32 %v3489, %v3529
  %v3531 = vpop.f32.mrf.mxu0
  %v3532 = vpop.f32.mrf.mxu0
  %v3533 = vadd.f32 %v3492, %v3532
  %v3534 = vpop.f32.mrf.mxu0
  %3535 = vdwg.mxu0
  %3536 = vmatprep.subr.bf16.mxu0 0
  %3537 = vmatpush1.bf16.msra.mxu0 %v2709
  %3538 = vmatprep.subr.bf16.mxu0 0
  %3539 = vmatpush1.bf16.msra.mxu0 %v2708
  %3540 = vmatprep.subr.bf16.mxu0 0
  %3541 = vmatpush1.bf16.msra.mxu0 %v2707
  %3542 = vmatprep.subr.bf16.mxu0 0
  %3543 = vmatpush1.bf16.msra.mxu0 %v2706
  %3544 = vmatprep.subr.bf16.mxu0 0
  %3545 = vmatpush1.bf16.msra.mxu0 %v2705
  %3546 = vmatprep.subr.bf16.mxu0 0
  %3547 = vmatpush1.bf16.msra.mxu0 %v2704
  %3548 = vmatprep.subr.bf16.mxu0 0
  %3549 = vmatpush1.bf16.msra.mxu0 %v2703
  %3550 = vmatprep.subr.bf16.mxu0 0
  %3551 = vmatpush1.bf16.msra.mxu0 %v2702
  %3552 = vmatprep.subr.bf16.mxu0 0
  %3553 = vmatpush2.bf16.msra.mxu0 %v2717
  %3554 = vmatprep.subr.bf16.mxu0 0
  %3555 = vmatpush2.bf16.msra.mxu0 %v2716
  %3556 = vmatprep.subr.bf16.mxu0 0
  %3557 = vmatpush2.bf16.msra.mxu0 %v2715
  %3558 = vmatprep.subr.bf16.mxu0 0
  %3559 = vmatpush2.bf16.msra.mxu0 %v2714
  %3560 = vmatprep.subr.bf16.mxu0 0
  %3561 = vmatpush2.bf16.msra.mxu0 %v2713
  %3562 = vmatprep.subr.bf16.mxu0 0
  %3563 = vmatpush2.bf16.msra.mxu0 %v2712
  %3564 = vmatprep.subr.bf16.mxu0 0
  %3565 = vmatpush2.bf16.msra.mxu0 %v2711
  %3566 = vmatprep.subr.bf16.mxu0 0
  %3567 = vmatpush2.bf16.msra.mxu0 %v2710
  %3568 = vmatprep.mubr.bf16.mxu0 %v1009
  %3569 = vmatmul.mubr.bf16.gmra.mxu0 %v1008
  %v3570 = vpop.f32.mrf.mxu0
  %v3571 = vadd.f32 %v3530, %v3570
  %v3572 = vpop.f32.mrf.mxu0
  %v3573 = vpop.f32.mrf.mxu0
  %v3574 = vadd.f32 %v3533, %v3573
  %v3575 = vpop.f32.mrf.mxu0
  %3576 = vdwg.mxu0
  %3577 = vmatprep.subr.bf16.mxu0 0
  %3578 = vmatpush1.bf16.msra.mxu0 %v2725
  %3579 = vmatprep.subr.bf16.mxu0 0
  %3580 = vmatpush1.bf16.msra.mxu0 %v2724
  %3581 = vmatprep.subr.bf16.mxu0 0
  %3582 = vmatpush1.bf16.msra.mxu0 %v2723
  %3583 = vmatprep.subr.bf16.mxu0 0
  %3584 = vmatpush1.bf16.msra.mxu0 %v2722
  %3585 = vmatprep.subr.bf16.mxu0 0
  %3586 = vmatpush1.bf16.msra.mxu0 %v2721
  %3587 = vmatprep.subr.bf16.mxu0 0
  %3588 = vmatpush1.bf16.msra.mxu0 %v2720
  %3589 = vmatprep.subr.bf16.mxu0 0
  %3590 = vmatpush1.bf16.msra.mxu0 %v2719
  %3591 = vmatprep.subr.bf16.mxu0 0
  %3592 = vmatpush1.bf16.msra.mxu0 %v2718
  %3593 = vmatprep.subr.bf16.mxu0 0
  %3594 = vmatpush2.bf16.msra.mxu0 %v2733
  %3595 = vmatprep.subr.bf16.mxu0 0
  %3596 = vmatpush2.bf16.msra.mxu0 %v2732
  %3597 = vmatprep.subr.bf16.mxu0 0
  %3598 = vmatpush2.bf16.msra.mxu0 %v2731
  %3599 = vmatprep.subr.bf16.mxu0 0
  %3600 = vmatpush2.bf16.msra.mxu0 %v2730
  %3601 = vmatprep.subr.bf16.mxu0 0
  %3602 = vmatpush2.bf16.msra.mxu0 %v2729
  %3603 = vmatprep.subr.bf16.mxu0 0
  %3604 = vmatpush2.bf16.msra.mxu0 %v2728
  %3605 = vmatprep.subr.bf16.mxu0 0
  %3606 = vmatpush2.bf16.msra.mxu0 %v2727
  %3607 = vmatprep.subr.bf16.mxu0 0
  %3608 = vmatpush2.bf16.msra.mxu0 %v2726
  %3609 = vmatprep.mubr.bf16.mxu0 %v1011
  %3610 = vmatmul.mubr.bf16.gmra.mxu0 %v1010
  %v3611 = vpop.f32.mrf.mxu0
  %v3612 = vadd.f32 %v3571, %v3611
  %v3613 = vpop.f32.mrf.mxu0
  %v3614 = vpop.f32.mrf.mxu0
  %v3615 = vadd.f32 %v3574, %v3614
  %v3616 = vpop.f32.mrf.mxu0
  %3617 = vdwg.mxu0
  %3618 = vmatprep.subr.bf16.mxu0 0
  %3619 = vmatpush1.bf16.msra.mxu0 %v2741
  %3620 = vmatprep.subr.bf16.mxu0 0
  %3621 = vmatpush1.bf16.msra.mxu0 %v2740
  %3622 = vmatprep.subr.bf16.mxu0 0
  %3623 = vmatpush1.bf16.msra.mxu0 %v2739
  %3624 = vmatprep.subr.bf16.mxu0 0
  %3625 = vmatpush1.bf16.msra.mxu0 %v2738
  %3626 = vmatprep.subr.bf16.mxu0 0
  %3627 = vmatpush1.bf16.msra.mxu0 %v2737
  %3628 = vmatprep.subr.bf16.mxu0 0
  %3629 = vmatpush1.bf16.msra.mxu0 %v2736
  %3630 = vmatprep.subr.bf16.mxu0 0
  %3631 = vmatpush1.bf16.msra.mxu0 %v2735
  %3632 = vmatprep.subr.bf16.mxu0 0
  %3633 = vmatpush1.bf16.msra.mxu0 %v2734
  %3634 = vmatprep.subr.bf16.mxu0 0
  %3635 = vmatpush2.bf16.msra.mxu0 %v2749
  %3636 = vmatprep.subr.bf16.mxu0 0
  %3637 = vmatpush2.bf16.msra.mxu0 %v2748
  %3638 = vmatprep.subr.bf16.mxu0 0
  %3639 = vmatpush2.bf16.msra.mxu0 %v2747
  %3640 = vmatprep.subr.bf16.mxu0 0
  %3641 = vmatpush2.bf16.msra.mxu0 %v2746
  %3642 = vmatprep.subr.bf16.mxu0 0
  %3643 = vmatpush2.bf16.msra.mxu0 %v2745
  %3644 = vmatprep.subr.bf16.mxu0 0
  %3645 = vmatpush2.bf16.msra.mxu0 %v2744
  %3646 = vmatprep.subr.bf16.mxu0 0
  %3647 = vmatpush2.bf16.msra.mxu0 %v2743
  %3648 = vmatprep.subr.bf16.mxu0 0
  %3649 = vmatpush2.bf16.msra.mxu0 %v2742
  %3650 = vmatprep.mubr.bf16.mxu0 %v1013
  %3651 = vmatmul.mubr.bf16.gmra.mxu0 %v1012
  %v3652 = vpop.f32.mrf.mxu0
  %v3653 = vadd.f32 %v3612, %v3652
  %v3654 = vpop.f32.mrf.mxu0
  %v3655 = vpop.f32.mrf.mxu0
  %v3656 = vadd.f32 %v3615, %v3655
  %v3657 = vpop.f32.mrf.mxu0
  %3658 = vdwg.mxu0
  %3659 = vmatprep.subr.bf16.mxu0 0
  %3660 = vmatpush1.bf16.msra.mxu0 %v2757
  %3661 = vmatprep.subr.bf16.mxu0 0
  %3662 = vmatpush1.bf16.msra.mxu0 %v2756
  %3663 = vmatprep.subr.bf16.mxu0 0
  %3664 = vmatpush1.bf16.msra.mxu0 %v2755
  %3665 = vmatprep.subr.bf16.mxu0 0
  %3666 = vmatpush1.bf16.msra.mxu0 %v2754
  %3667 = vmatprep.subr.bf16.mxu0 0
  %3668 = vmatpush1.bf16.msra.mxu0 %v2753
  %3669 = vmatprep.subr.bf16.mxu0 0
  %3670 = vmatpush1.bf16.msra.mxu0 %v2752
  %3671 = vmatprep.subr.bf16.mxu0 0
  %3672 = vmatpush1.bf16.msra.mxu0 %v2751
  %3673 = vmatprep.subr.bf16.mxu0 0
  %3674 = vmatpush1.bf16.msra.mxu0 %v2750
  %3675 = vmatprep.subr.bf16.mxu0 0
  %3676 = vmatpush2.bf16.msra.mxu0 %v2765
  %3677 = vmatprep.subr.bf16.mxu0 0
  %3678 = vmatpush2.bf16.msra.mxu0 %v2764
  %3679 = vmatprep.subr.bf16.mxu0 0
  %3680 = vmatpush2.bf16.msra.mxu0 %v2763
  %3681 = vmatprep.subr.bf16.mxu0 0
  %3682 = vmatpush2.bf16.msra.mxu0 %v2762
  %3683 = vmatprep.subr.bf16.mxu0 0
  %3684 = vmatpush2.bf16.msra.mxu0 %v2761
  %3685 = vmatprep.subr.bf16.mxu0 0
  %3686 = vmatpush2.bf16.msra.mxu0 %v2760
  %3687 = vmatprep.subr.bf16.mxu0 0
  %3688 = vmatpush2.bf16.msra.mxu0 %v2759
  %3689 = vmatprep.subr.bf16.mxu0 0
  %3690 = vmatpush2.bf16.msra.mxu0 %v2758
  %3691 = vmatprep.mubr.bf16.mxu0 %v1015
  %3692 = vmatmul.mubr.bf16.gmra.mxu0 %v1014
  %v3693 = vpop.f32.mrf.mxu0
  %v3694 = vadd.f32 %v3653, %v3693
  %v3695 = vpop.f32.mrf.mxu0
  %v3696 = vpop.f32.mrf.mxu0
  %v3697 = vadd.f32 %v3656, %v3696
  %v3698 = vpop.f32.mrf.mxu0
  %3699 = vdwg.mxu0
  %3700 = vmatprep.subr.bf16.mxu0 0
  %3701 = vmatpush1.bf16.msra.mxu0 %v2773
  %3702 = vmatprep.subr.bf16.mxu0 0
  %3703 = vmatpush1.bf16.msra.mxu0 %v2772
  %3704 = vmatprep.subr.bf16.mxu0 0
  %3705 = vmatpush1.bf16.msra.mxu0 %v2771
  %3706 = vmatprep.subr.bf16.mxu0 0
  %3707 = vmatpush1.bf16.msra.mxu0 %v2770
  %3708 = vmatprep.subr.bf16.mxu0 0
  %3709 = vmatpush1.bf16.msra.mxu0 %v2769
  %3710 = vmatprep.subr.bf16.mxu0 0
  %3711 = vmatpush1.bf16.msra.mxu0 %v2768
  %3712 = vmatprep.subr.bf16.mxu0 0
  %3713 = vmatpush1.bf16.msra.mxu0 %v2767
  %3714 = vmatprep.subr.bf16.mxu0 0
  %3715 = vmatpush1.bf16.msra.mxu0 %v2766
  %3716 = vmatprep.subr.bf16.mxu0 0
  %3717 = vmatpush2.bf16.msra.mxu0 %v2781
  %3718 = vmatprep.subr.bf16.mxu0 0
  %3719 = vmatpush2.bf16.msra.mxu0 %v2780
  %3720 = vmatprep.subr.bf16.mxu0 0
  %3721 = vmatpush2.bf16.msra.mxu0 %v2779
  %3722 = vmatprep.subr.bf16.mxu0 0
  %3723 = vmatpush2.bf16.msra.mxu0 %v2778
  %3724 = vmatprep.subr.bf16.mxu0 0
  %3725 = vmatpush2.bf16.msra.mxu0 %v2777
  %3726 = vmatprep.subr.bf16.mxu0 0
  %3727 = vmatpush2.bf16.msra.mxu0 %v2776
  %3728 = vmatprep.subr.bf16.mxu0 0
  %3729 = vmatpush2.bf16.msra.mxu0 %v2775
  %3730 = vmatprep.subr.bf16.mxu0 0
  %3731 = vmatpush2.bf16.msra.mxu0 %v2774
  %3732 = vmatprep.mubr.bf16.mxu0 %v1017
  %3733 = vmatmul.mubr.bf16.gmra.mxu0 %v1016
  %v3734 = vpop.f32.mrf.mxu0
  %v3735 = vadd.f32 %v3694, %v3734
  %v3736 = vpop.f32.mrf.mxu0
  %v3737 = vpop.f32.mrf.mxu0
  %v3738 = vadd.f32 %v3697, %v3737
  %v3739 = vpop.f32.mrf.mxu0
  %3740 = vdwg.mxu0
  %3741 = vmatprep.subr.bf16.mxu0 0
  %3742 = vmatpush1.bf16.msra.mxu0 %v2789
  %3743 = vmatprep.subr.bf16.mxu0 0
  %3744 = vmatpush1.bf16.msra.mxu0 %v2788
  %3745 = vmatprep.subr.bf16.mxu0 0
  %3746 = vmatpush1.bf16.msra.mxu0 %v2787
  %3747 = vmatprep.subr.bf16.mxu0 0
  %3748 = vmatpush1.bf16.msra.mxu0 %v2786
  %3749 = vmatprep.subr.bf16.mxu0 0
  %3750 = vmatpush1.bf16.msra.mxu0 %v2785
  %3751 = vmatprep.subr.bf16.mxu0 0
  %3752 = vmatpush1.bf16.msra.mxu0 %v2784
  %3753 = vmatprep.subr.bf16.mxu0 0
  %3754 = vmatpush1.bf16.msra.mxu0 %v2783
  %3755 = vmatprep.subr.bf16.mxu0 0
  %3756 = vmatpush1.bf16.msra.mxu0 %v2782
  %3757 = vmatprep.subr.bf16.mxu0 0
  %3758 = vmatpush2.bf16.msra.mxu0 %v2797
  %3759 = vmatprep.subr.bf16.mxu0 0
  %3760 = vmatpush2.bf16.msra.mxu0 %v2796
  %3761 = vmatprep.subr.bf16.mxu0 0
  %3762 = vmatpush2.bf16.msra.mxu0 %v2795
  %3763 = vmatprep.subr.bf16.mxu0 0
  %3764 = vmatpush2.bf16.msra.mxu0 %v2794
  %3765 = vmatprep.subr.bf16.mxu0 0
  %3766 = vmatpush2.bf16.msra.mxu0 %v2793
  %3767 = vmatprep.subr.bf16.mxu0 0
  %3768 = vmatpush2.bf16.msra.mxu0 %v2792
  %3769 = vmatprep.subr.bf16.mxu0 0
  %3770 = vmatpush2.bf16.msra.mxu0 %v2791
  %3771 = vmatprep.subr.bf16.mxu0 0
  %3772 = vmatpush2.bf16.msra.mxu0 %v2790
  %3773 = vmatprep.mubr.bf16.mxu0 %v1019
  %3774 = vmatmul.mubr.bf16.gmra.mxu0 %v1018
  %v3775 = vpop.f32.mrf.mxu0
  %v3776 = vadd.f32 %v3735, %v3775
  %v3777 = vpop.f32.mrf.mxu0
  %v3778 = vpop.f32.mrf.mxu0
  %v3779 = vadd.f32 %v3738, %v3778
  %v3780 = vpop.f32.mrf.mxu0
  %3781 = vdwg.mxu0
  %3782 = vmatprep.subr.bf16.mxu0 0
  %3783 = vmatpush1.bf16.msra.mxu0 %v2805
  %3784 = vmatprep.subr.bf16.mxu0 0
  %3785 = vmatpush1.bf16.msra.mxu0 %v2804
  %3786 = vmatprep.subr.bf16.mxu0 0
  %3787 = vmatpush1.bf16.msra.mxu0 %v2803
  %3788 = vmatprep.subr.bf16.mxu0 0
  %3789 = vmatpush1.bf16.msra.mxu0 %v2802
  %3790 = vmatprep.subr.bf16.mxu0 0
  %3791 = vmatpush1.bf16.msra.mxu0 %v2801
  %3792 = vmatprep.subr.bf16.mxu0 0
  %3793 = vmatpush1.bf16.msra.mxu0 %v2800
  %3794 = vmatprep.subr.bf16.mxu0 0
  %3795 = vmatpush1.bf16.msra.mxu0 %v2799
  %3796 = vmatprep.subr.bf16.mxu0 0
  %3797 = vmatpush1.bf16.msra.mxu0 %v2798
  %3798 = vmatprep.subr.bf16.mxu0 0
  %3799 = vmatpush2.bf16.msra.mxu0 %v2813
  %3800 = vmatprep.subr.bf16.mxu0 0
  %3801 = vmatpush2.bf16.msra.mxu0 %v2812
  %3802 = vmatprep.subr.bf16.mxu0 0
  %3803 = vmatpush2.bf16.msra.mxu0 %v2811
  %3804 = vmatprep.subr.bf16.mxu0 0
  %3805 = vmatpush2.bf16.msra.mxu0 %v2810
  %3806 = vmatprep.subr.bf16.mxu0 0
  %3807 = vmatpush2.bf16.msra.mxu0 %v2809
  %3808 = vmatprep.subr.bf16.mxu0 0
  %3809 = vmatpush2.bf16.msra.mxu0 %v2808
  %3810 = vmatprep.subr.bf16.mxu0 0
  %3811 = vmatpush2.bf16.msra.mxu0 %v2807
  %3812 = vmatprep.subr.bf16.mxu0 0
  %3813 = vmatpush2.bf16.msra.mxu0 %v2806
  %3814 = vmatprep.mubr.bf16.mxu0 %v1021
  %3815 = vmatmul.mubr.bf16.gmra.mxu0 %v1020
  %v3816 = vpop.f32.mrf.mxu0
  %v3817 = vadd.f32 %v3776, %v3816
  %v3818 = vpop.f32.mrf.mxu0
  %v3819 = vpop.f32.mrf.mxu0
  %v3820 = vadd.f32 %v3779, %v3819
  %v3821 = vpop.f32.mrf.mxu0
  %3822 = vdwg.mxu0
  %3823 = vmatprep.subr.bf16.mxu0 0
  %3824 = vmatpush1.bf16.msra.mxu0 %v2821
  %3825 = vmatprep.subr.bf16.mxu0 0
  %3826 = vmatpush1.bf16.msra.mxu0 %v2820
  %3827 = vmatprep.subr.bf16.mxu0 0
  %3828 = vmatpush1.bf16.msra.mxu0 %v2819
  %3829 = vmatprep.subr.bf16.mxu0 0
  %3830 = vmatpush1.bf16.msra.mxu0 %v2818
  %3831 = vmatprep.subr.bf16.mxu0 0
  %3832 = vmatpush1.bf16.msra.mxu0 %v2817
  %3833 = vmatprep.subr.bf16.mxu0 0
  %3834 = vmatpush1.bf16.msra.mxu0 %v2816
  %3835 = vmatprep.subr.bf16.mxu0 0
  %3836 = vmatpush1.bf16.msra.mxu0 %v2815
  %3837 = vmatprep.subr.bf16.mxu0 0
  %3838 = vmatpush1.bf16.msra.mxu0 %v2814
  %3839 = vmatprep.subr.bf16.mxu0 0
  %3840 = vmatpush2.bf16.msra.mxu0 %v2829
  %3841 = vmatprep.subr.bf16.mxu0 0
  %3842 = vmatpush2.bf16.msra.mxu0 %v2828
  %3843 = vmatprep.subr.bf16.mxu0 0
  %3844 = vmatpush2.bf16.msra.mxu0 %v2827
  %3845 = vmatprep.subr.bf16.mxu0 0
  %3846 = vmatpush2.bf16.msra.mxu0 %v2826
  %3847 = vmatprep.subr.bf16.mxu0 0
  %3848 = vmatpush2.bf16.msra.mxu0 %v2825
  %3849 = vmatprep.subr.bf16.mxu0 0
  %3850 = vmatpush2.bf16.msra.mxu0 %v2824
  %3851 = vmatprep.subr.bf16.mxu0 0
  %3852 = vmatpush2.bf16.msra.mxu0 %v2823
  %3853 = vmatprep.subr.bf16.mxu0 0
  %3854 = vmatpush2.bf16.msra.mxu0 %v2822
  %3855 = vmatprep.mubr.bf16.mxu0 %v1023
  %3856 = vmatmul.mubr.bf16.gmra.mxu0 %v1022
  %v3857 = vpop.f32.mrf.mxu0
  %v3858 = vadd.f32 %v3817, %v3857
  %v3859 = vpop.f32.mrf.mxu0
  %v3860 = vpop.f32.mrf.mxu0
  %v3861 = vadd.f32 %v3820, %v3860
  %v3862 = vpop.f32.mrf.mxu0
  %3863 = vdwg.mxu0
  %3864 = vmatprep.subr.bf16.mxu0 0
  %3865 = vmatpush1.bf16.msra.mxu0 %v2837
  %3866 = vmatprep.subr.bf16.mxu0 0
  %3867 = vmatpush1.bf16.msra.mxu0 %v2836
  %3868 = vmatprep.subr.bf16.mxu0 0
  %3869 = vmatpush1.bf16.msra.mxu0 %v2835
  %3870 = vmatprep.subr.bf16.mxu0 0
  %3871 = vmatpush1.bf16.msra.mxu0 %v2834
  %3872 = vmatprep.subr.bf16.mxu0 0
  %3873 = vmatpush1.bf16.msra.mxu0 %v2833
  %3874 = vmatprep.subr.bf16.mxu0 0
  %3875 = vmatpush1.bf16.msra.mxu0 %v2832
  %3876 = vmatprep.subr.bf16.mxu0 0
  %3877 = vmatpush1.bf16.msra.mxu0 %v2831
  %3878 = vmatprep.subr.bf16.mxu0 0
  %3879 = vmatpush1.bf16.msra.mxu0 %v2830
  %3880 = vmatprep.subr.bf16.mxu0 0
  %3881 = vmatpush2.bf16.msra.mxu0 %v2845
  %3882 = vmatprep.subr.bf16.mxu0 0
  %3883 = vmatpush2.bf16.msra.mxu0 %v2844
  %3884 = vmatprep.subr.bf16.mxu0 0
  %3885 = vmatpush2.bf16.msra.mxu0 %v2843
  %3886 = vmatprep.subr.bf16.mxu0 0
  %3887 = vmatpush2.bf16.msra.mxu0 %v2842
  %3888 = vmatprep.subr.bf16.mxu0 0
  %3889 = vmatpush2.bf16.msra.mxu0 %v2841
  %3890 = vmatprep.subr.bf16.mxu0 0
  %3891 = vmatpush2.bf16.msra.mxu0 %v2840
  %3892 = vmatprep.subr.bf16.mxu0 0
  %3893 = vmatpush2.bf16.msra.mxu0 %v2839
  %3894 = vmatprep.subr.bf16.mxu0 0
  %3895 = vmatpush2.bf16.msra.mxu0 %v2838
  %3896 = vmatprep.mubr.bf16.mxu0 %v1025
  %3897 = vmatmul.mubr.bf16.gmra.mxu0 %v1024
  %v3898 = vpop.f32.mrf.mxu0
  %v3899 = vadd.f32 %v3858, %v3898
  %v3900 = vpop.f32.mrf.mxu0
  %v3901 = vpop.f32.mrf.mxu0
  %v3902 = vadd.f32 %v3861, %v3901
  %v3903 = vpop.f32.mrf.mxu0
  %3904 = vdwg.mxu0
  %3905 = vmatprep.subr.bf16.mxu0 0
  %3906 = vmatpush1.bf16.msra.mxu0 %v2853
  %3907 = vmatprep.subr.bf16.mxu0 0
  %3908 = vmatpush1.bf16.msra.mxu0 %v2852
  %3909 = vmatprep.subr.bf16.mxu0 0
  %3910 = vmatpush1.bf16.msra.mxu0 %v2851
  %3911 = vmatprep.subr.bf16.mxu0 0
  %3912 = vmatpush1.bf16.msra.mxu0 %v2850
  %3913 = vmatprep.subr.bf16.mxu0 0
  %3914 = vmatpush1.bf16.msra.mxu0 %v2849
  %3915 = vmatprep.subr.bf16.mxu0 0
  %3916 = vmatpush1.bf16.msra.mxu0 %v2848
  %3917 = vmatprep.subr.bf16.mxu0 0
  %3918 = vmatpush1.bf16.msra.mxu0 %v2847
  %3919 = vmatprep.subr.bf16.mxu0 0
  %3920 = vmatpush1.bf16.msra.mxu0 %v2846
  %3921 = vmatprep.subr.bf16.mxu0 0
  %3922 = vmatpush2.bf16.msra.mxu0 %v2861
  %3923 = vmatprep.subr.bf16.mxu0 0
  %3924 = vmatpush2.bf16.msra.mxu0 %v2860
  %3925 = vmatprep.subr.bf16.mxu0 0
  %3926 = vmatpush2.bf16.msra.mxu0 %v2859
  %3927 = vmatprep.subr.bf16.mxu0 0
  %3928 = vmatpush2.bf16.msra.mxu0 %v2858
  %3929 = vmatprep.subr.bf16.mxu0 0
  %3930 = vmatpush2.bf16.msra.mxu0 %v2857
  %3931 = vmatprep.subr.bf16.mxu0 0
  %3932 = vmatpush2.bf16.msra.mxu0 %v2856
  %3933 = vmatprep.subr.bf16.mxu0 0
  %3934 = vmatpush2.bf16.msra.mxu0 %v2855
  %3935 = vmatprep.subr.bf16.mxu0 0
  %3936 = vmatpush2.bf16.msra.mxu0 %v2854
  %3937 = vmatprep.mubr.bf16.mxu0 %v1027
  %3938 = vmatmul.mubr.bf16.gmra.mxu0 %v1026
  %v3939 = vpop.f32.mrf.mxu0
  %v3940 = vadd.f32 %v3899, %v3939
  %v3941 = vpop.f32.mrf.mxu0
  %v3942 = vpop.f32.mrf.mxu0
  %v3943 = vadd.f32 %v3902, %v3942
  %v3944 = vpop.f32.mrf.mxu0
  %3945 = vdwg.mxu0
  %3946 = vmatprep.subr.bf16.mxu0 0
  %3947 = vmatpush1.bf16.msra.mxu0 %v2869
  %3948 = vmatprep.subr.bf16.mxu0 0
  %3949 = vmatpush1.bf16.msra.mxu0 %v2868
  %3950 = vmatprep.subr.bf16.mxu0 0
  %3951 = vmatpush1.bf16.msra.mxu0 %v2867
  %3952 = vmatprep.subr.bf16.mxu0 0
  %3953 = vmatpush1.bf16.msra.mxu0 %v2866
  %3954 = vmatprep.subr.bf16.mxu0 0
  %3955 = vmatpush1.bf16.msra.mxu0 %v2865
  %3956 = vmatprep.subr.bf16.mxu0 0
  %3957 = vmatpush1.bf16.msra.mxu0 %v2864
  %3958 = vmatprep.subr.bf16.mxu0 0
  %3959 = vmatpush1.bf16.msra.mxu0 %v2863
  %3960 = vmatprep.subr.bf16.mxu0 0
  %3961 = vmatpush1.bf16.msra.mxu0 %v2862
  %3962 = vmatprep.subr.bf16.mxu0 0
  %3963 = vmatpush2.bf16.msra.mxu0 %v2877
  %3964 = vmatprep.subr.bf16.mxu0 0
  %3965 = vmatpush2.bf16.msra.mxu0 %v2876
  %3966 = vmatprep.subr.bf16.mxu0 0
  %3967 = vmatpush2.bf16.msra.mxu0 %v2875
  %3968 = vmatprep.subr.bf16.mxu0 0
  %3969 = vmatpush2.bf16.msra.mxu0 %v2874
  %3970 = vmatprep.subr.bf16.mxu0 0
  %3971 = vmatpush2.bf16.msra.mxu0 %v2873
  %3972 = vmatprep.subr.bf16.mxu0 0
  %3973 = vmatpush2.bf16.msra.mxu0 %v2872
  %3974 = vmatprep.subr.bf16.mxu0 0
  %3975 = vmatpush2.bf16.msra.mxu0 %v2871
  %3976 = vmatprep.subr.bf16.mxu0 0
  %3977 = vmatpush2.bf16.msra.mxu0 %v2870
  %3978 = vmatprep.mubr.bf16.mxu0 %v1029
  %3979 = vmatmul.mubr.bf16.gmra.mxu0 %v1028
  %v3980 = vpop.f32.mrf.mxu0
  %v3981 = vadd.f32 %v3940, %v3980
  %v3982 = vpop.f32.mrf.mxu0
  %v3983 = vpop.f32.mrf.mxu0
  %v3984 = vadd.f32 %v3943, %v3983
  %v3985 = vpop.f32.mrf.mxu0
  %3986 = vdwg.mxu0
  %3987 = vmatprep.subr.bf16.mxu0 0
  %3988 = vmatpush1.bf16.msra.mxu0 %v2885
  %3989 = vmatprep.subr.bf16.mxu0 0
  %3990 = vmatpush1.bf16.msra.mxu0 %v2884
  %3991 = vmatprep.subr.bf16.mxu0 0
  %3992 = vmatpush1.bf16.msra.mxu0 %v2883
  %3993 = vmatprep.subr.bf16.mxu0 0
  %3994 = vmatpush1.bf16.msra.mxu0 %v2882
  %3995 = vmatprep.subr.bf16.mxu0 0
  %3996 = vmatpush1.bf16.msra.mxu0 %v2881
  %3997 = vmatprep.subr.bf16.mxu0 0
  %3998 = vmatpush1.bf16.msra.mxu0 %v2880
  %3999 = vmatprep.subr.bf16.mxu0 0
  %4000 = vmatpush1.bf16.msra.mxu0 %v2879
  %4001 = vmatprep.subr.bf16.mxu0 0
  %4002 = vmatpush1.bf16.msra.mxu0 %v2878
  %4003 = vmatprep.subr.bf16.mxu0 0
  %4004 = vmatpush2.bf16.msra.mxu0 %v2893
  %4005 = vmatprep.subr.bf16.mxu0 0
  %4006 = vmatpush2.bf16.msra.mxu0 %v2892
  %4007 = vmatprep.subr.bf16.mxu0 0
  %4008 = vmatpush2.bf16.msra.mxu0 %v2891
  %4009 = vmatprep.subr.bf16.mxu0 0
  %4010 = vmatpush2.bf16.msra.mxu0 %v2890
  %4011 = vmatprep.subr.bf16.mxu0 0
  %4012 = vmatpush2.bf16.msra.mxu0 %v2889
  %4013 = vmatprep.subr.bf16.mxu0 0
  %4014 = vmatpush2.bf16.msra.mxu0 %v2888
  %4015 = vmatprep.subr.bf16.mxu0 0
  %4016 = vmatpush2.bf16.msra.mxu0 %v2887
  %4017 = vmatprep.subr.bf16.mxu0 0
  %4018 = vmatpush2.bf16.msra.mxu0 %v2886
  %4019 = vmatprep.mubr.bf16.mxu0 %v1031
  %4020 = vmatmul.mubr.bf16.gmra.mxu0 %v1030
  %v4021 = vpop.f32.mrf.mxu0
  %v4022 = vadd.f32 %v3981, %v4021
  %v4023 = vpop.f32.mrf.mxu0
  %v4024 = vpop.f32.mrf.mxu0
  %v4025 = vadd.f32 %v3984, %v4024
  %v4026 = vpop.f32.mrf.mxu0
  %4027 = vdwg.mxu0
  %4028 = vmatprep.subr.bf16.mxu0 0
  %4029 = vmatpush1.bf16.msra.mxu0 %v2901
  %4030 = vmatprep.subr.bf16.mxu0 0
  %4031 = vmatpush1.bf16.msra.mxu0 %v2900
  %4032 = vmatprep.subr.bf16.mxu0 0
  %4033 = vmatpush1.bf16.msra.mxu0 %v2899
  %4034 = vmatprep.subr.bf16.mxu0 0
  %4035 = vmatpush1.bf16.msra.mxu0 %v2898
  %4036 = vmatprep.subr.bf16.mxu0 0
  %4037 = vmatpush1.bf16.msra.mxu0 %v2897
  %4038 = vmatprep.subr.bf16.mxu0 0
  %4039 = vmatpush1.bf16.msra.mxu0 %v2896
  %4040 = vmatprep.subr.bf16.mxu0 0
  %4041 = vmatpush1.bf16.msra.mxu0 %v2895
  %4042 = vmatprep.subr.bf16.mxu0 0
  %4043 = vmatpush1.bf16.msra.mxu0 %v2894
  %4044 = vmatprep.subr.bf16.mxu0 0
  %4045 = vmatpush2.bf16.msra.mxu0 %v2909
  %4046 = vmatprep.subr.bf16.mxu0 0
  %4047 = vmatpush2.bf16.msra.mxu0 %v2908
  %4048 = vmatprep.subr.bf16.mxu0 0
  %4049 = vmatpush2.bf16.msra.mxu0 %v2907
  %4050 = vmatprep.subr.bf16.mxu0 0
  %4051 = vmatpush2.bf16.msra.mxu0 %v2906
  %4052 = vmatprep.subr.bf16.mxu0 0
  %4053 = vmatpush2.bf16.msra.mxu0 %v2905
  %4054 = vmatprep.subr.bf16.mxu0 0
  %4055 = vmatpush2.bf16.msra.mxu0 %v2904
  %4056 = vmatprep.subr.bf16.mxu0 0
  %4057 = vmatpush2.bf16.msra.mxu0 %v2903
  %4058 = vmatprep.subr.bf16.mxu0 0
  %4059 = vmatpush2.bf16.msra.mxu0 %v2902
  %4060 = vmatprep.mubr.bf16.mxu0 %v1033
  %4061 = vmatmul.mubr.bf16.gmra.mxu0 %v1032
  %v4062 = vpop.f32.mrf.mxu0
  %v4063 = vadd.f32 %v4022, %v4062
  %v4064 = vpop.f32.mrf.mxu0
  %v4065 = vpop.f32.mrf.mxu0
  %v4066 = vadd.f32 %v4025, %v4065
  %v4067 = vpop.f32.mrf.mxu0
  %4068 = vdwg.mxu0
  %4069 = vmatprep.subr.bf16.mxu0 0
  %4070 = vmatpush1.bf16.msra.mxu0 %v2917
  %4071 = vmatprep.subr.bf16.mxu0 0
  %4072 = vmatpush1.bf16.msra.mxu0 %v2916
  %4073 = vmatprep.subr.bf16.mxu0 0
  %4074 = vmatpush1.bf16.msra.mxu0 %v2915
  %4075 = vmatprep.subr.bf16.mxu0 0
  %4076 = vmatpush1.bf16.msra.mxu0 %v2914
  %4077 = vmatprep.subr.bf16.mxu0 0
  %4078 = vmatpush1.bf16.msra.mxu0 %v2913
  %4079 = vmatprep.subr.bf16.mxu0 0
  %4080 = vmatpush1.bf16.msra.mxu0 %v2912
  %4081 = vmatprep.subr.bf16.mxu0 0
  %4082 = vmatpush1.bf16.msra.mxu0 %v2911
  %4083 = vmatprep.subr.bf16.mxu0 0
  %4084 = vmatpush1.bf16.msra.mxu0 %v2910
  %4085 = vmatprep.subr.bf16.mxu0 0
  %4086 = vmatpush2.bf16.msra.mxu0 %v2925
  %4087 = vmatprep.subr.bf16.mxu0 0
  %4088 = vmatpush2.bf16.msra.mxu0 %v2924
  %4089 = vmatprep.subr.bf16.mxu0 0
  %4090 = vmatpush2.bf16.msra.mxu0 %v2923
  %4091 = vmatprep.subr.bf16.mxu0 0
  %4092 = vmatpush2.bf16.msra.mxu0 %v2922
  %4093 = vmatprep.subr.bf16.mxu0 0
  %4094 = vmatpush2.bf16.msra.mxu0 %v2921
  %4095 = vmatprep.subr.bf16.mxu0 0
  %4096 = vmatpush2.bf16.msra.mxu0 %v2920
  %4097 = vmatprep.subr.bf16.mxu0 0
  %4098 = vmatpush2.bf16.msra.mxu0 %v2919
  %4099 = vmatprep.subr.bf16.mxu0 0
  %4100 = vmatpush2.bf16.msra.mxu0 %v2918
  %4101 = vmatprep.mubr.bf16.mxu0 %v1035
  %4102 = vmatmul.mubr.bf16.gmra.mxu0 %v1034
  %v4103 = vpop.f32.mrf.mxu0
  %v4104 = vadd.f32 %v4063, %v4103
  %v4105 = vpop.f32.mrf.mxu0
  %v4106 = vpop.f32.mrf.mxu0
  %v4107 = vadd.f32 %v4066, %v4106
  %v4108 = vpop.f32.mrf.mxu0
  %4109 = vdwg.mxu0
  %4110 = vmatprep.subr.bf16.mxu0 0
  %4111 = vmatpush1.bf16.msra.mxu0 %v2933
  %4112 = vmatprep.subr.bf16.mxu0 0
  %4113 = vmatpush1.bf16.msra.mxu0 %v2932
  %4114 = vmatprep.subr.bf16.mxu0 0
  %4115 = vmatpush1.bf16.msra.mxu0 %v2931
  %4116 = vmatprep.subr.bf16.mxu0 0
  %4117 = vmatpush1.bf16.msra.mxu0 %v2930
  %4118 = vmatprep.subr.bf16.mxu0 0
  %4119 = vmatpush1.bf16.msra.mxu0 %v2929
  %4120 = vmatprep.subr.bf16.mxu0 0
  %4121 = vmatpush1.bf16.msra.mxu0 %v2928
  %4122 = vmatprep.subr.bf16.mxu0 0
  %4123 = vmatpush1.bf16.msra.mxu0 %v2927
  %4124 = vmatprep.subr.bf16.mxu0 0
  %4125 = vmatpush1.bf16.msra.mxu0 %v2926
  %4126 = vmatprep.subr.bf16.mxu0 0
  %4127 = vmatpush2.bf16.msra.mxu0 %v2941
  %4128 = vmatprep.subr.bf16.mxu0 0
  %4129 = vmatpush2.bf16.msra.mxu0 %v2940
  %4130 = vmatprep.subr.bf16.mxu0 0
  %4131 = vmatpush2.bf16.msra.mxu0 %v2939
  %4132 = vmatprep.subr.bf16.mxu0 0
  %4133 = vmatpush2.bf16.msra.mxu0 %v2938
  %4134 = vmatprep.subr.bf16.mxu0 0
  %4135 = vmatpush2.bf16.msra.mxu0 %v2937
  %4136 = vmatprep.subr.bf16.mxu0 0
  %4137 = vmatpush2.bf16.msra.mxu0 %v2936
  %4138 = vmatprep.subr.bf16.mxu0 0
  %4139 = vmatpush2.bf16.msra.mxu0 %v2935
  %4140 = vmatprep.subr.bf16.mxu0 0
  %4141 = vmatpush2.bf16.msra.mxu0 %v2934
  %4142 = vmatprep.mubr.bf16.mxu0 %v1037
  %4143 = vmatmul.mubr.bf16.gmra.mxu0 %v1036
  %v4144 = vpop.f32.mrf.mxu0
  %v4145 = vadd.f32 %v4104, %v4144
  %v4146 = vpop.f32.mrf.mxu0
  %v4147 = vpop.f32.mrf.mxu0
  %v4148 = vadd.f32 %v4107, %v4147
  %v4149 = vpop.f32.mrf.mxu0
  %4150 = vdwg.mxu0
  %4151 = vmatprep.subr.bf16.mxu0 0
  %4152 = vmatpush1.bf16.msra.mxu0 %v2949
  %4153 = vmatprep.subr.bf16.mxu0 0
  %4154 = vmatpush1.bf16.msra.mxu0 %v2948
  %4155 = vmatprep.subr.bf16.mxu0 0
  %4156 = vmatpush1.bf16.msra.mxu0 %v2947
  %4157 = vmatprep.subr.bf16.mxu0 0
  %4158 = vmatpush1.bf16.msra.mxu0 %v2946
  %4159 = vmatprep.subr.bf16.mxu0 0
  %4160 = vmatpush1.bf16.msra.mxu0 %v2945
  %4161 = vmatprep.subr.bf16.mxu0 0
  %4162 = vmatpush1.bf16.msra.mxu0 %v2944
  %4163 = vmatprep.subr.bf16.mxu0 0
  %4164 = vmatpush1.bf16.msra.mxu0 %v2943
  %4165 = vmatprep.subr.bf16.mxu0 0
  %4166 = vmatpush1.bf16.msra.mxu0 %v2942
  %4167 = vmatprep.subr.bf16.mxu0 0
  %4168 = vmatpush2.bf16.msra.mxu0 %v2957
  %4169 = vmatprep.subr.bf16.mxu0 0
  %4170 = vmatpush2.bf16.msra.mxu0 %v2956
  %4171 = vmatprep.subr.bf16.mxu0 0
  %4172 = vmatpush2.bf16.msra.mxu0 %v2955
  %4173 = vmatprep.subr.bf16.mxu0 0
  %4174 = vmatpush2.bf16.msra.mxu0 %v2954
  %4175 = vmatprep.subr.bf16.mxu0 0
  %4176 = vmatpush2.bf16.msra.mxu0 %v2953
  %4177 = vmatprep.subr.bf16.mxu0 0
  %4178 = vmatpush2.bf16.msra.mxu0 %v2952
  %4179 = vmatprep.subr.bf16.mxu0 0
  %4180 = vmatpush2.bf16.msra.mxu0 %v2951
  %4181 = vmatprep.subr.bf16.mxu0 0
  %4182 = vmatpush2.bf16.msra.mxu0 %v2950
  %4183 = vmatprep.mubr.bf16.mxu0 %v1039
  %4184 = vmatmul.mubr.bf16.gmra.mxu0 %v1038
  %v4185 = vpop.f32.mrf.mxu0
  %v4186 = vadd.f32 %v4145, %v4185
  %v4187 = vpop.f32.mrf.mxu0
  %v4188 = vpop.f32.mrf.mxu0
  %v4189 = vadd.f32 %v4148, %v4188
  %v4190 = vpop.f32.mrf.mxu0
  %4191 = vdwg.mxu0
  %4192 = vmatprep.subr.bf16.mxu0 0
  %4193 = vmatpush1.bf16.msra.mxu0 %v2965
  %4194 = vmatprep.subr.bf16.mxu0 0
  %4195 = vmatpush1.bf16.msra.mxu0 %v2964
  %4196 = vmatprep.subr.bf16.mxu0 0
  %4197 = vmatpush1.bf16.msra.mxu0 %v2963
  %4198 = vmatprep.subr.bf16.mxu0 0
  %4199 = vmatpush1.bf16.msra.mxu0 %v2962
  %4200 = vmatprep.subr.bf16.mxu0 0
  %4201 = vmatpush1.bf16.msra.mxu0 %v2961
  %4202 = vmatprep.subr.bf16.mxu0 0
  %4203 = vmatpush1.bf16.msra.mxu0 %v2960
  %4204 = vmatprep.subr.bf16.mxu0 0
  %4205 = vmatpush1.bf16.msra.mxu0 %v2959
  %4206 = vmatprep.subr.bf16.mxu0 0
  %4207 = vmatpush1.bf16.msra.mxu0 %v2958
  %4208 = vmatprep.subr.bf16.mxu0 0
  %4209 = vmatpush2.bf16.msra.mxu0 %v2973
  %4210 = vmatprep.subr.bf16.mxu0 0
  %4211 = vmatpush2.bf16.msra.mxu0 %v2972
  %4212 = vmatprep.subr.bf16.mxu0 0
  %4213 = vmatpush2.bf16.msra.mxu0 %v2971
  %4214 = vmatprep.subr.bf16.mxu0 0
  %4215 = vmatpush2.bf16.msra.mxu0 %v2970
  %4216 = vmatprep.subr.bf16.mxu0 0
  %4217 = vmatpush2.bf16.msra.mxu0 %v2969
  %4218 = vmatprep.subr.bf16.mxu0 0
  %4219 = vmatpush2.bf16.msra.mxu0 %v2968
  %4220 = vmatprep.subr.bf16.mxu0 0
  %4221 = vmatpush2.bf16.msra.mxu0 %v2967
  %4222 = vmatprep.subr.bf16.mxu0 0
  %4223 = vmatpush2.bf16.msra.mxu0 %v2966
  %4224 = vmatprep.mubr.bf16.mxu0 %v1041
  %4225 = vmatmul.mubr.bf16.gmra.mxu0 %v1040
  %v4226 = vpop.f32.mrf.mxu0
  %v4227 = vadd.f32 %v4186, %v4226
  %v4228 = vpop.f32.mrf.mxu0
  %v4229 = vpop.f32.mrf.mxu0
  %v4230 = vadd.f32 %v4189, %v4229
  %v4231 = vpop.f32.mrf.mxu0
  %4232 = vdwg.mxu0
  %4233 = vmatprep.subr.bf16.mxu0 0
  %4234 = vmatpush1.bf16.msra.mxu0 %v2981
  %4235 = vmatprep.subr.bf16.mxu0 0
  %4236 = vmatpush1.bf16.msra.mxu0 %v2980
  %4237 = vmatprep.subr.bf16.mxu0 0
  %4238 = vmatpush1.bf16.msra.mxu0 %v2979
  %4239 = vmatprep.subr.bf16.mxu0 0
  %4240 = vmatpush1.bf16.msra.mxu0 %v2978
  %4241 = vmatprep.subr.bf16.mxu0 0
  %4242 = vmatpush1.bf16.msra.mxu0 %v2977
  %4243 = vmatprep.subr.bf16.mxu0 0
  %4244 = vmatpush1.bf16.msra.mxu0 %v2976
  %4245 = vmatprep.subr.bf16.mxu0 0
  %4246 = vmatpush1.bf16.msra.mxu0 %v2975
  %4247 = vmatprep.subr.bf16.mxu0 0
  %4248 = vmatpush1.bf16.msra.mxu0 %v2974
  %4249 = vmatprep.subr.bf16.mxu0 0
  %4250 = vmatpush2.bf16.msra.mxu0 %v2989
  %4251 = vmatprep.subr.bf16.mxu0 0
  %4252 = vmatpush2.bf16.msra.mxu0 %v2988
  %4253 = vmatprep.subr.bf16.mxu0 0
  %4254 = vmatpush2.bf16.msra.mxu0 %v2987
  %4255 = vmatprep.subr.bf16.mxu0 0
  %4256 = vmatpush2.bf16.msra.mxu0 %v2986
  %4257 = vmatprep.subr.bf16.mxu0 0
  %4258 = vmatpush2.bf16.msra.mxu0 %v2985
  %4259 = vmatprep.subr.bf16.mxu0 0
  %4260 = vmatpush2.bf16.msra.mxu0 %v2984
  %4261 = vmatprep.subr.bf16.mxu0 0
  %4262 = vmatpush2.bf16.msra.mxu0 %v2983
  %4263 = vmatprep.subr.bf16.mxu0 0
  %4264 = vmatpush2.bf16.msra.mxu0 %v2982
  %4265 = vmatprep.mubr.bf16.mxu0 %v1043
  %4266 = vmatmul.mubr.bf16.gmra.mxu0 %v1042
  %v4267 = vpop.f32.mrf.mxu0
  %v4268 = vadd.f32 %v4227, %v4267
  %v4269 = vpop.f32.mrf.mxu0
  %v4270 = vpop.f32.mrf.mxu0
  %v4271 = vadd.f32 %v4230, %v4270
  %v4272 = vpop.f32.mrf.mxu0
  %4273 = vdwg.mxu0
  %4274 = vmatprep.subr.bf16.mxu0 0
  %4275 = vmatpush1.bf16.msra.mxu0 %v2997
  %4276 = vmatprep.subr.bf16.mxu0 0
  %4277 = vmatpush1.bf16.msra.mxu0 %v2996
  %4278 = vmatprep.subr.bf16.mxu0 0
  %4279 = vmatpush1.bf16.msra.mxu0 %v2995
  %4280 = vmatprep.subr.bf16.mxu0 0
  %4281 = vmatpush1.bf16.msra.mxu0 %v2994
  %4282 = vmatprep.subr.bf16.mxu0 0
  %4283 = vmatpush1.bf16.msra.mxu0 %v2993
  %4284 = vmatprep.subr.bf16.mxu0 0
  %4285 = vmatpush1.bf16.msra.mxu0 %v2992
  %4286 = vmatprep.subr.bf16.mxu0 0
  %4287 = vmatpush1.bf16.msra.mxu0 %v2991
  %4288 = vmatprep.subr.bf16.mxu0 0
  %4289 = vmatpush1.bf16.msra.mxu0 %v2990
  %4290 = vmatprep.subr.bf16.mxu0 0
  %4291 = vmatpush2.bf16.msra.mxu0 %v3005
  %4292 = vmatprep.subr.bf16.mxu0 0
  %4293 = vmatpush2.bf16.msra.mxu0 %v3004
  %4294 = vmatprep.subr.bf16.mxu0 0
  %4295 = vmatpush2.bf16.msra.mxu0 %v3003
  %4296 = vmatprep.subr.bf16.mxu0 0
  %4297 = vmatpush2.bf16.msra.mxu0 %v3002
  %4298 = vmatprep.subr.bf16.mxu0 0
  %4299 = vmatpush2.bf16.msra.mxu0 %v3001
  %4300 = vmatprep.subr.bf16.mxu0 0
  %4301 = vmatpush2.bf16.msra.mxu0 %v3000
  %4302 = vmatprep.subr.bf16.mxu0 0
  %4303 = vmatpush2.bf16.msra.mxu0 %v2999
  %4304 = vmatprep.subr.bf16.mxu0 0
  %4305 = vmatpush2.bf16.msra.mxu0 %v2998
  %4306 = vmatprep.mubr.bf16.mxu0 %v1045
  %4307 = vmatmul.mubr.bf16.gmra.mxu0 %v1044
  %v4308 = vpop.f32.mrf.mxu0
  %v4309 = vadd.f32 %v4268, %v4308
  %v4310 = vpop.f32.mrf.mxu0
  %v4311 = vpop.f32.mrf.mxu0
  %v4312 = vadd.f32 %v4271, %v4311
  %v4313 = vpop.f32.mrf.mxu0
  %4314 = vdwg.mxu0
  %4315 = vmatprep.subr.bf16.mxu0 0
  %4316 = vmatpush1.bf16.msra.mxu0 %v3013
  %4317 = vmatprep.subr.bf16.mxu0 0
  %4318 = vmatpush1.bf16.msra.mxu0 %v3012
  %4319 = vmatprep.subr.bf16.mxu0 0
  %4320 = vmatpush1.bf16.msra.mxu0 %v3011
  %4321 = vmatprep.subr.bf16.mxu0 0
  %4322 = vmatpush1.bf16.msra.mxu0 %v3010
  %4323 = vmatprep.subr.bf16.mxu0 0
  %4324 = vmatpush1.bf16.msra.mxu0 %v3009
  %4325 = vmatprep.subr.bf16.mxu0 0
  %4326 = vmatpush1.bf16.msra.mxu0 %v3008
  %4327 = vmatprep.subr.bf16.mxu0 0
  %4328 = vmatpush1.bf16.msra.mxu0 %v3007
  %4329 = vmatprep.subr.bf16.mxu0 0
  %4330 = vmatpush1.bf16.msra.mxu0 %v3006
  %4331 = vmatprep.subr.bf16.mxu0 0
  %4332 = vmatpush2.bf16.msra.mxu0 %v3021
  %4333 = vmatprep.subr.bf16.mxu0 0
  %4334 = vmatpush2.bf16.msra.mxu0 %v3020
  %4335 = vmatprep.subr.bf16.mxu0 0
  %4336 = vmatpush2.bf16.msra.mxu0 %v3019
  %4337 = vmatprep.subr.bf16.mxu0 0
  %4338 = vmatpush2.bf16.msra.mxu0 %v3018
  %4339 = vmatprep.subr.bf16.mxu0 0
  %4340 = vmatpush2.bf16.msra.mxu0 %v3017
  %4341 = vmatprep.subr.bf16.mxu0 0
  %4342 = vmatpush2.bf16.msra.mxu0 %v3016
  %4343 = vmatprep.subr.bf16.mxu0 0
  %4344 = vmatpush2.bf16.msra.mxu0 %v3015
  %4345 = vmatprep.subr.bf16.mxu0 0
  %4346 = vmatpush2.bf16.msra.mxu0 %v3014
  %4347 = vmatprep.mubr.bf16.mxu0 %v1047
  %4348 = vmatmul.mubr.bf16.gmra.mxu0 %v1046
  %v4349 = vpop.f32.mrf.mxu0
  %v4350 = vadd.f32 %v4309, %v4349
  %v4351 = vpop.f32.mrf.mxu0
  %v4352 = vpop.f32.mrf.mxu0
  %v4353 = vadd.f32 %v4312, %v4352
  %v4354 = vpop.f32.mrf.mxu0
  %4355 = vdwg.mxu0
  %4356 = vmatprep.subr.bf16.mxu0 0
  %4357 = vmatpush1.bf16.msra.mxu0 %v3029
  %4358 = vmatprep.subr.bf16.mxu0 0
  %4359 = vmatpush1.bf16.msra.mxu0 %v3028
  %4360 = vmatprep.subr.bf16.mxu0 0
  %4361 = vmatpush1.bf16.msra.mxu0 %v3027
  %4362 = vmatprep.subr.bf16.mxu0 0
  %4363 = vmatpush1.bf16.msra.mxu0 %v3026
  %4364 = vmatprep.subr.bf16.mxu0 0
  %4365 = vmatpush1.bf16.msra.mxu0 %v3025
  %4366 = vmatprep.subr.bf16.mxu0 0
  %4367 = vmatpush1.bf16.msra.mxu0 %v3024
  %4368 = vmatprep.subr.bf16.mxu0 0
  %4369 = vmatpush1.bf16.msra.mxu0 %v3023
  %4370 = vmatprep.subr.bf16.mxu0 0
  %4371 = vmatpush1.bf16.msra.mxu0 %v3022
  %4372 = vmatprep.subr.bf16.mxu0 0
  %4373 = vmatpush2.bf16.msra.mxu0 %v3037
  %4374 = vmatprep.subr.bf16.mxu0 0
  %4375 = vmatpush2.bf16.msra.mxu0 %v3036
  %4376 = vmatprep.subr.bf16.mxu0 0
  %4377 = vmatpush2.bf16.msra.mxu0 %v3035
  %4378 = vmatprep.subr.bf16.mxu0 0
  %4379 = vmatpush2.bf16.msra.mxu0 %v3034
  %4380 = vmatprep.subr.bf16.mxu0 0
  %4381 = vmatpush2.bf16.msra.mxu0 %v3033
  %4382 = vmatprep.subr.bf16.mxu0 0
  %4383 = vmatpush2.bf16.msra.mxu0 %v3032
  %4384 = vmatprep.subr.bf16.mxu0 0
  %4385 = vmatpush2.bf16.msra.mxu0 %v3031
  %4386 = vmatprep.subr.bf16.mxu0 0
  %4387 = vmatpush2.bf16.msra.mxu0 %v3030
  %4388 = vmatprep.mubr.bf16.mxu0 %v1049
  %4389 = vmatmul.mubr.bf16.gmra.mxu0 %v1048
  %v4390 = vpop.f32.mrf.mxu0
  %v4391 = vadd.f32 %v4350, %v4390
  %v4392 = vpop.f32.mrf.mxu0
  %v4393 = vpop.f32.mrf.mxu0
  %v4394 = vadd.f32 %v4353, %v4393
  %v4395 = vpop.f32.mrf.mxu0
  %4396 = vdwg.mxu0
  %4397 = vmatprep.subr.bf16.mxu0 0
  %4398 = vmatpush1.bf16.msra.mxu0 %v3045
  %4399 = vmatprep.subr.bf16.mxu0 0
  %4400 = vmatpush1.bf16.msra.mxu0 %v3044
  %4401 = vmatprep.subr.bf16.mxu0 0
  %4402 = vmatpush1.bf16.msra.mxu0 %v3043
  %4403 = vmatprep.subr.bf16.mxu0 0
  %4404 = vmatpush1.bf16.msra.mxu0 %v3042
  %4405 = vmatprep.subr.bf16.mxu0 0
  %4406 = vmatpush1.bf16.msra.mxu0 %v3041
  %4407 = vmatprep.subr.bf16.mxu0 0
  %4408 = vmatpush1.bf16.msra.mxu0 %v3040
  %4409 = vmatprep.subr.bf16.mxu0 0
  %4410 = vmatpush1.bf16.msra.mxu0 %v3039
  %4411 = vmatprep.subr.bf16.mxu0 0
  %4412 = vmatpush1.bf16.msra.mxu0 %v3038
  %4413 = vmatprep.subr.bf16.mxu0 0
  %4414 = vmatpush2.bf16.msra.mxu0 %v3053
  %4415 = vmatprep.subr.bf16.mxu0 0
  %4416 = vmatpush2.bf16.msra.mxu0 %v3052
  %4417 = vmatprep.subr.bf16.mxu0 0
  %4418 = vmatpush2.bf16.msra.mxu0 %v3051
  %4419 = vmatprep.subr.bf16.mxu0 0
  %4420 = vmatpush2.bf16.msra.mxu0 %v3050
  %4421 = vmatprep.subr.bf16.mxu0 0
  %4422 = vmatpush2.bf16.msra.mxu0 %v3049
  %4423 = vmatprep.subr.bf16.mxu0 0
  %4424 = vmatpush2.bf16.msra.mxu0 %v3048
  %4425 = vmatprep.subr.bf16.mxu0 0
  %4426 = vmatpush2.bf16.msra.mxu0 %v3047
  %4427 = vmatprep.subr.bf16.mxu0 0
  %4428 = vmatpush2.bf16.msra.mxu0 %v3046
  %4429 = vmatprep.mubr.bf16.mxu0 %v1051
  %4430 = vmatmul.mubr.bf16.gmra.mxu0 %v1050
  %v4431 = vpop.f32.mrf.mxu0
  %v4432 = vadd.f32 %v4391, %v4431
  %v4433 = vpop.f32.mrf.mxu0
  %v4434 = vpop.f32.mrf.mxu0
  %v4435 = vadd.f32 %v4394, %v4434
  %v4436 = vpop.f32.mrf.mxu0
  %4437 = vdwg.mxu0
  %4438 = vmatprep.subr.bf16.mxu0 0
  %4439 = vmatpush1.bf16.msra.mxu0 %v3061
  %4440 = vmatprep.subr.bf16.mxu0 0
  %4441 = vmatpush1.bf16.msra.mxu0 %v3060
  %4442 = vmatprep.subr.bf16.mxu0 0
  %4443 = vmatpush1.bf16.msra.mxu0 %v3059
  %4444 = vmatprep.subr.bf16.mxu0 0
  %4445 = vmatpush1.bf16.msra.mxu0 %v3058
  %4446 = vmatprep.subr.bf16.mxu0 0
  %4447 = vmatpush1.bf16.msra.mxu0 %v3057
  %4448 = vmatprep.subr.bf16.mxu0 0
  %4449 = vmatpush1.bf16.msra.mxu0 %v3056
  %4450 = vmatprep.subr.bf16.mxu0 0
  %4451 = vmatpush1.bf16.msra.mxu0 %v3055
  %4452 = vmatprep.subr.bf16.mxu0 0
  %4453 = vmatpush1.bf16.msra.mxu0 %v3054
  %4454 = vmatprep.subr.bf16.mxu0 0
  %4455 = vmatpush2.bf16.msra.mxu0 0
  %4456 = vmatprep.subr.bf16.mxu0 0
  %4457 = vmatpush2.bf16.msra.mxu0 0
  %4458 = vmatprep.subr.bf16.mxu0 0
  %4459 = vmatpush2.bf16.msra.mxu0 0
  %4460 = vmatprep.subr.bf16.mxu0 0
  %4461 = vmatpush2.bf16.msra.mxu0 0
  %4462 = vmatprep.subr.bf16.mxu0 0
  %4463 = vmatpush2.bf16.msra.mxu0 0
  %4464 = vmatprep.subr.bf16.mxu0 0
  %4465 = vmatpush2.bf16.msra.mxu0 0
  %4466 = vmatprep.subr.bf16.mxu0 0
  %4467 = vmatpush2.bf16.msra.mxu0 0
  %4468 = vmatprep.subr.bf16.mxu0 0
  %4469 = vmatpush2.bf16.msra.mxu0 0
  %4470 = vmatprep.mubr.bf16.mxu0 0
  %4471 = vmatmul.mubr.bf16.gmra.mxu0 %v1052
  %v4472 = vpop.f32.mrf.mxu0
  %v4473 = vadd.f32 %v4432, %v4472
  %v4474 = vpop.f32.mrf.mxu0
  %v4475 = vpop.f32.mrf.mxu0
  %v4476 = vadd.f32 %v4435, %v4475
  %v4477 = vpop.f32.mrf.mxu0
  %4478 = vdwg.mxu0
  %4479 = vst [vmem:[%s3] sm:$0xff] %v4473
  %4480 = vst [vmem:[%s3 + $0x8] sm:$0xff] %v4476
  // Predicated region
  $region14: #{net_forward.5} parent=0 // pred_check
    _
  $region15: #{net_forward.5} parent=0 // pred_check_branch
    %4482 = sbr.rel (0) target = $region17
  $region16: #{net_forward.5} parent=0 // pred_region
    _
  $region17: #{net_forward.5} parent=0 // pred_fallthru
    _
  // Predicated region
  $region18: #{net_forward.5} parent=0 // pred_check
    _
  $region19: #{net_forward.5} parent=0 // pred_check_branch
    %4484 = sbr.rel (0) target = $region21
  $region20: #{net_forward.5} parent=0 // pred_region
    _
  $region21: #{net_forward.5} parent=0 // pred_fallthru
    _

</llo_original>
